<compile_context>
chip_gen: v7x
topology: tpu7x:2x2x1
jax: 0.10.0
libtpu: 0.0.40
codegen_flags: <defaults>
</compile_context>

<pallas_src>
import jax
import jax.numpy as jnp
from jax import lax
from jax.experimental import pallas as pl
from jax.experimental.pallas import tpu as pltpu


SEMANTIC_OUT_STRIDE = 4


# ----------------------------------------------------------------------------
# Fused Pallas kernel: one grid step == TB rois
# ----------------------------------------------------------------------------
def _sfm_fused_kernel(x_ref, wbig_ref, f_ref, r1_ref, l1te_ref, wsem_ref,
                      pt_ref, ktup_ref, ktac_ref, preds_ref, out_ref,
                      stack_ref, mstack_ref):
    TB, Cp1, HW = x_ref.shape
    C = Cp1 - 1

    wsem = wsem_ref[...]                                   # (C, 1)  f32
    pt = pt_ref[...]                                       # (W, HW) f32 0/1 selector

    # ---- per-roi: one folded matmul (fuse + preds + all biases) + roi_align
    for t in range(TB):                                    # static unroll
        # y rows 0..C-1 : W_main@x + w_mask*inst + b_fuse (+ w_mask*b_inst)
        # y row  C      : inst (class-selected instance logits, incl. bias)
        # y row  C+1    : det  (class-selected detail  logits, incl. bias)
        y = jnp.dot(wbig_ref[t], x_ref[t],
                    preferred_element_type=jnp.float32)    # (C+2, HW)
        preds_ref[t] = y[C:C + 2, :]
        inst = y[C:C + 1, :]                               # (1, HW)

        # roi_align(avg, aligned=True) of semantic_pred sampled straight to
        # HxW (flat): sem[p] = sum_{h,w} L1[p//W, h] * f[h, w] * R1[p%W, w]
        g = lax.dot_general(r1_ref[t], f_ref[t], (((1,), (1,)), ((), ())),
                            preferred_element_type=jnp.float32)      # (W, Hs)
        a = jnp.dot(g.astype(jnp.bfloat16), l1te_ref[t],
                    preferred_element_type=jnp.float32)              # (W, HW)
        sem = jnp.sum(a * pt, axis=0, keepdims=True)                 # (1, HW)

        fused = jnp.maximum(y[0:C, :] + wsem * sem, 0.0)             # (C, HW)
        stack_ref[t * C:(t + 1) * C, :] = fused                      # aligned
        mstack_ref[3 * t:3 * t + 1, :] = inst
        mstack_ref[3 * t + 1:3 * t + 2, :] = inst   # detail_masks == inst (bug-faithful)
        mstack_ref[3 * t + 2:3 * t + 3, :] = sem

    # ---- batched upsample matmuls: M = TB*C / 3*TB fills the MXU ----
    fused_up = jnp.maximum(
        jnp.dot(stack_ref[...].astype(jnp.bfloat16), ktup_ref[...],
                preferred_element_type=jnp.float32), 0.0)            # (TB*C, HWo)
    masks_up = jnp.dot(mstack_ref[...].astype(jnp.bfloat16), ktac_ref[...],
                       preferred_element_type=jnp.float32)           # (3*TB, HWo)

    # ---- lane-dense stores: one (C, HWo) + one (3, HWo) store per roi ----
    for t in range(TB):
        out_ref[t, 0:C, :] = fused_up[t * C:(t + 1) * C, :]
        out_ref[t, C:C + 3, :] = masks_up[3 * t:3 * t + 3, :]


# ----------------------------------------------------------------------------
# Interpolation-matrix builders (tiny wrapper-level XLA under jit)
# ----------------------------------------------------------------------------
def _interp_matrix(out_size, in_size, align_corners):
    if align_corners:
        if out_size == 1:
            src = jnp.zeros((1,), jnp.float32)
        else:
            src = jnp.arange(out_size, dtype=jnp.float32) * (in_size - 1) / (out_size - 1)
    else:
        scale = in_size / out_size
        src = (jnp.arange(out_size, dtype=jnp.float32) + 0.5) * scale - 0.5
        src = jnp.clip(src, 0.0, in_size - 1)
    lo = jnp.floor(src).astype(jnp.int32)
    hi = jnp.minimum(lo + 1, in_size - 1)
    frac = src - lo.astype(jnp.float32)
    M = jnp.zeros((out_size, in_size), jnp.float32)
    rows = jnp.arange(out_size)
    M = M.at[rows, lo].add(1.0 - frac)
    M = M.at[rows, hi].add(frac)
    return M


def _roi_interp_matrix(starts, bin_sizes, out_size, in_size):
    i = jnp.arange(out_size, dtype=jnp.float32)
    coords = starts[:, None] + (i[None, :] + 0.5) * bin_sizes[:, None]   # (N, out)
    # TODO(synk): mmcv roi_align (sampling_ratio=0) averages a ceil(bin)-point
    # grid per bin and zeroes samples with coord < -1 or > size; here a single
    # clamped center sample per bin is used (simplified boundary handling).
    coords = jnp.clip(coords, 0.0, in_size - 1)
    lo = jnp.floor(coords).astype(jnp.int32)
    hi = jnp.minimum(lo + 1, in_size - 1)
    frac = coords - lo.astype(jnp.float32)
    Nr = coords.shape[0]
    M = jnp.zeros((Nr, out_size, in_size), jnp.float32)
    n_idx = jnp.arange(Nr)[:, None]
    o_idx = jnp.arange(out_size)[None, :]
    M = M.at[n_idx, o_idx, lo].add(1.0 - frac)
    M = M.at[n_idx, o_idx, hi].add(frac)
    return M


# ----------------------------------------------------------------------------
# SFMStage forward (mask_use_sigmoid=False, semantic_out_stride=4) -- fused
# ----------------------------------------------------------------------------
def _sfm_forward_impl(params, instance_feats, semantic_feat, semantic_pred,
                      rois, roi_labels, roi_block=8):
    # TODO(synk): relu(semantic_transform_in(semantic_feat)) only feeds the
    # undefined point-sampling branch (fcs / get_roi_rel_points_train /
    # fuse_conv / ins_semantic_feats are never created in __init__) -> dead
    # compute w.r.t. the returned tensors, removed.
    del semantic_feat

    N, C, H, W = instance_feats.shape       # H == W (out_size) in this module
    HW = H * W
    Ho, Wo = 2 * H, 2 * W
    HWo = Ho * Wo
    Hs, Ws = semantic_pred.shape[-2:]

    TB = int(roi_block)
    Np = ((N + TB - 1) // TB) * TB
    n_pad = Np - N

    # ---- NCHW kept, spatial flattened into lanes; append a ones row so every
    #      bias rides inside the MXU matmul (no separate bias inputs) ----
    x_aug = jnp.concatenate(
        [instance_feats.reshape(N, C, HW),
         jnp.ones((N, 1, HW), instance_feats.dtype)], axis=1).astype(jnp.bfloat16)

    # ---- per-roi folded weight:
    #      rows 0..C-1 : W_main + w_mask (x) w_inst[label]   (the 3 mask concat
    #                    channels all receive `inst`, bug-faithful)
    #      row  C      : w_inst[label]  (instance logits)
    #      row  C+1    : w_det[label]   (detail logits)
    #      last column : all biases (paired with the ones row of x) ----
    w_fuse = params["w_fuse"]                                   # (C, C+4)
    W_main = w_fuse[:, :C]
    w_mask = w_fuse[:, C] + w_fuse[:, C + 1] + w_fuse[:, C + 2]
    w_sem_col = w_fuse[:, C + 3:C + 4]                          # (C, 1)

    wi = params["w_inst"][roi_labels]                           # (N, C)
    bi = params["b_inst"][roi_labels]                           # (N,)
    wd = params["w_det"][roi_labels]
    bd = params["b_det"][roi_labels]

    W_eff = W_main[None] + w_mask[None, :, None] * wi[:, None, :]       # (N,C,C)
    b_eff = params["b_fuse"][None, :] + w_mask[None, :] * bi[:, None]   # (N,C)
    main_rows = jnp.concatenate([W_eff, b_eff[..., None]], axis=2)      # (N,C,C+1)
    inst_row = jnp.concatenate([wi, bi[:, None]], axis=1)[:, None, :]   # (N,1,C+1)
    det_row = jnp.concatenate([wd, bd[:, None]], axis=1)[:, None, :]    # (N,1,C+1)
    wbig = jnp.concatenate([main_rows, inst_row, det_row],
                           axis=1).astype(jnp.bfloat16)                 # (N,C+2,C+1)

    # ---- roi_align(avg, aligned=True): per-roi separable sampling matrices --
    scale = 1.0 / SEMANTIC_OUT_STRIDE
    batch_idx = rois[:, 0].astype(jnp.int32)
    feats = semantic_pred[batch_idx, 0]                                  # (N,Hs,Ws)
    x1 = rois[:, 1] * scale - 0.5
    y1 = rois[:, 2] * scale - 0.5
    x2 = rois[:, 3] * scale - 0.5
    y2 = rois[:, 4] * scale - 0.5
    L1 = _roi_interp_matrix(y1, (y2 - y1) / H, H, Hs)                    # (N,H,Hs)
    R1 = _roi_interp_matrix(x1, (x2 - x1) / W, W, Ws)                    # (N,W,Ws)
    # lane-dense transposed row-expansion: L1Te[n, h, p] = L1[n, p//W, h]
    L1Te = jnp.repeat(jnp.swapaxes(L1, 1, 2), W, axis=2).astype(jnp.bfloat16)
    PT = jnp.tile(jnp.eye(W, dtype=jnp.float32), (1, H))                 # (W,HW)

    # ---- shared kron interpolation matrices (bf16 MXU weights) ----
    KT_up = jnp.kron(_interp_matrix(Ho, H, align_corners=False),
                     _interp_matrix(Wo, W, align_corners=False)).T.astype(jnp.bfloat16)
    KT_ac = jnp.kron(_interp_matrix(Ho, H, align_corners=True),
                     _interp_matrix(Wo, W, align_corners=True)).T.astype(jnp.bfloat16)

    # ---- pad the roi axis to a multiple of the roi tile ----
    if n_pad:
        pad = lambda a: jnp.pad(a, ((0, n_pad),) + ((0, 0),) * (a.ndim - 1))
        x_aug, wbig, feats, R1, L1Te = map(pad, (x_aug, wbig, feats, R1, L1Te))

    preds, fused = pl.pallas_call(
        _sfm_fused_kernel,
        out_shape=(jax.ShapeDtypeStruct((Np, 2, HW), jnp.float32),
                   jax.ShapeDtypeStruct((Np, C + 3, HWo), jnp.float32)),
        grid=(Np // TB,),
        in_specs=[
            pl.BlockSpec((TB, C + 1, HW), lambda n: (n, 0, 0)),    # x (+ ones row)
            pl.BlockSpec((TB, C + 2, C + 1), lambda n: (n, 0, 0)), # folded weights
            pl.BlockSpec((TB, Hs, Ws), lambda n: (n, 0, 0)),       # semantic feat
            pl.BlockSpec((TB, W, Ws), lambda n: (n, 0, 0)),        # R1
            pl.BlockSpec((TB, Hs, HW), lambda n: (n, 0, 0)),       # L1 expanded (bf16)
            pl.BlockSpec((C, 1), lambda n: (0, 0)),                # w_sem column
            pl.BlockSpec((W, HW), lambda n: (0, 0)),               # PT selector
            pl.BlockSpec((HW, HWo), lambda n: (0, 0)),             # kron up (ac=False)
            pl.BlockSpec((HW, HWo), lambda n: (0, 0)),             # kron resize (ac=True)
        ],
        out_specs=(pl.BlockSpec((TB, 2, HW), lambda n: (n, 0, 0)),
                   pl.BlockSpec((TB, C + 3, HWo), lambda n: (n, 0, 0))),
        scratch_shapes=[pltpu.VMEM((TB * C, HW), jnp.float32),
                        pltpu.VMEM((TB * 3, HW), jnp.float32)],
        compiler_params=pltpu.CompilerParams(
            dimension_semantics=("parallel",)),   # batched roi axis shards across v7x TCs
    )(x_aug, wbig, feats, R1, L1Te, w_sem_col, PT, KT_up, KT_ac)

    preds = preds[:N].reshape(N, 2, H, W)
    instance_preds = preds[:, 0:1]
    detail_preds = preds[:, 1:2]
    fused_feats = fused[:N].reshape(N, C + 3, Ho, Wo)
    return instance_preds, detail_preds, fused_feats


sfm_forward = jax.jit(_sfm_forward_impl, static_argnames=("roi_block",))


# ----------------------------------------------------------------------------
# Pure-JAX (non-fused, f32) reference of the same forward math
# ----------------------------------------------------------------------------
def _sfm_reference(params, instance_feats, semantic_pred, rois, roi_labels):
    N, C, H, W = instance_feats.shape
    wi = params["w_inst"][roi_labels]
    bi = params["b_inst"][roi_labels]
    wd = params["w_det"][roi_labels]
    bd = params["b_det"][roi_labels]
    inst = jnp.einsum("nchw,nc->nhw", instance_feats, wi) + bi[:, None, None]
    det = jnp.einsum("nchw,nc->nhw", instance_feats, wd) + bd[:, None, None]

    scale = 1.0 / SEMANTIC_OUT_STRIDE
    f = semantic_pred[rois[:, 0].astype(jnp.int32), 0]
    x1 = rois[:, 1] * scale - 0.5
    y1 = rois[:, 2] * scale - 0.5
    x2 = rois[:, 3] * scale - 0.5
    y2 = rois[:, 4] * scale - 0.5
    Hs, Ws = f.shape[-2:]
    L1 = _roi_interp_matrix(y1, (y2 - y1) / H, H, Hs)
    R1 = _roi_interp_matrix(x1, (x2 - x1) / W, W, Ws)
    sem = jnp.einsum("nih,nhw,njw->nij", L1, f, R1)

    concat = jnp.concatenate(
        [instance_feats, inst[:, None], inst[:, None], inst[:, None], sem[:, None]], axis=1)
    fused = (jnp.einsum("nkhw,ck->nchw", concat, params["w_fuse"])
             + params["b_fuse"][None, :, None, None])
    fused = jnp.maximum(fused, 0.0)
    U_h = _interp_matrix(2 * H, H, False)
    U_w = _interp_matrix(2 * W, W, False)
    fused = jnp.maximum(jnp.einsum("ph,nchw,qw->ncpq", U_h, fused, U_w), 0.0)
    A_h = _interp_matrix(2 * H, H, True)
    A_w = _interp_matrix(2 * W, W, True)
    inst_up = jnp.einsum("ph,nhw,qw->npq", A_h, inst, A_w)
    sem_up = jnp.einsum("ph,nhw,qw->npq", A_h, sem, A_w)
    fused = jnp.concatenate(
        [fused, inst_up[:, None], inst_up[:, None], sem_up[:, None]], axis=1)
    return inst[:, None], det[:, None], fused


# ----------------------------------------------------------------------------
# Deterministic parameter init (kaiming_normal fan_out/relu)
# ----------------------------------------------------------------------------
def _kaiming_fan_out(key, cout, cin):
    std = (2.0 / cout) ** 0.5            # fan_out = cout * 1 * 1 for 1x1 conv
    return std * jax.random.normal(key, (cout, cin), jnp.float32)


if __name__ == "__main__":
    C = 32            # instance_in_channel / instance_out_channel (reduced)
    SEM_C = 32        # semantic_in_channel / semantic_out_channel (reduced)
    NUM_CLASSES = 80
    OUT = 14          # out_size
    N_ROIS = 16
    B = 2
    ROI_BLOCK = 8     # rois per grid step -> grid=(2,), M = 256 in the MXU

    key = jax.random.PRNGKey(0)
    ks = jax.random.split(key, 12)

    params = {
        # semantic_transform_in params (present in the module; output feeds
        # only the undefined point-sampling branch -> unused here)
        "w_sem": _kaiming_fan_out(ks[0], SEM_C, SEM_C),
        "b_sem": jnp.zeros((SEM_C,), jnp.float32),
        "w_inst": _kaiming_fan_out(ks[1], NUM_CLASSES, C),
        "b_inst": 0.1 * jax.random.normal(ks[2], (NUM_CLASSES,), jnp.float32),
        "w_det": _kaiming_fan_out(ks[3], NUM_CLASSES, C),
        "b_det": 0.1 * jax.random.normal(ks[4], (NUM_CLASSES,), jnp.float32),
        # fuse_transform_out: in = C + 4 mask channels, out = C
        "w_fuse": _kaiming_fan_out(ks[5], C, C + 4),
        "b_fuse": 0.1 * jax.random.normal(ks[6], (C,), jnp.float32),
    }

    instance_feats = jax.random.normal(ks[7], (N_ROIS, C, OUT, OUT), jnp.float32)
    semantic_feat = jax.random.normal(ks[8], (B, SEM_C, 32, 32), jnp.float32)
    semantic_pred = jax.random.normal(ks[9], (B, 1, 32, 32), jnp.float32)

    rk = jax.random.split(ks[10], 5)
    bidx = jax.random.randint(rk[0], (N_ROIS,), 0, B).astype(jnp.float32)
    cx = jax.random.uniform(rk[1], (N_ROIS,), minval=24.0, maxval=104.0)
    cy = jax.random.uniform(rk[2], (N_ROIS,), minval=24.0, maxval=104.0)
    rw = jax.random.uniform(rk[3], (N_ROIS,), minval=24.0, maxval=80.0)
    rh = jax.random.uniform(rk[4], (N_ROIS,), minval=24.0, maxval=80.0)
    rois = jnp.stack([bidx, cx - rw / 2, cy - rh / 2, cx + rw / 2, cy + rh / 2],
                     axis=1)
    roi_labels = jax.random.randint(ks[11], (N_ROIS,), 0, NUM_CLASSES)

    inst_p, det_p, fused = sfm_forward(params, instance_feats, semantic_feat,
                                       semantic_pred, rois, roi_labels,
                                       roi_block=ROI_BLOCK)
    jax.block_until_ready((inst_p, det_p, fused))

    assert inst_p.shape == (N_ROIS, 1, OUT, OUT)
    assert det_p.shape == (N_ROIS, 1, OUT, OUT)
    assert fused.shape == (N_ROIS, C + 3, 2 * OUT, 2 * OUT)

    # correctness vs a straightforward f32 jnp reference (kernel uses bf16 MXU
    # operands with f32 accumulation -> tolerance loosened accordingly)
    ref_i, ref_d, ref_f = _sfm_reference(params, instance_feats, semantic_pred,
                                         rois, roi_labels)
    assert jnp.allclose(inst_p, ref_i, atol=5e-2, rtol=5e-2)
    assert jnp.allclose(det_p, ref_d, atol=5e-2, rtol=5e-2)
    assert jnp.allclose(fused, ref_f, atol=5e-2, rtol=5e-2)

    print("KERNEL_OK")
</pallas_src>

<mosaic_0001>
module attributes {stable_mosaic.version = 11 : i64} {
  func.func private @main(%arg0: i32) attributes {dimension_semantics = [#tpu.dimension_semantics<core_parallel>], iteration_bounds = array<i64: 2>, tpu.core_type = #tpu.core_type<sc_scalar_subcore>, window_params = []} {
    return
  }
}

module attributes {stable_mosaic.version = 11 : i64} {
  func.func private @main(%arg0: i32) attributes {dimension_semantics = [#tpu.dimension_semantics<core_parallel>], iteration_bounds = array<i64: 2>, tpu.core_type = #tpu.core_type<sc_scalar_subcore>, window_params = []} {
    return
  }
}

module attributes {stable_mosaic.version = 11 : i64} {
  func.func @_sfm_fused_kernel(%arg0: i32, %arg1: memref<8x33x196xbf16, #tpu.memory_space<vmem>>, %arg2: memref<8x34x33xbf16, #tpu.memory_space<vmem>>, %arg3: memref<8x32x32xf32, #tpu.memory_space<vmem>>, %arg4: memref<8x14x32xf32, #tpu.memory_space<vmem>>, %arg5: memref<8x32x196xbf16, #tpu.memory_space<vmem>>, %arg6: memref<32x1xf32, #tpu.memory_space<vmem>>, %arg7: memref<14x196xf32, #tpu.memory_space<vmem>>, %arg8: memref<196x784xbf16, #tpu.memory_space<vmem>>, %arg9: memref<196x784xbf16, #tpu.memory_space<vmem>>, %arg10: memref<8x2x196xf32, #tpu.memory_space<vmem>>, %arg11: memref<8x35x784xf32, #tpu.memory_space<vmem>>, %arg12: memref<256x196xf32, #tpu.memory_space<vmem>>, %arg13: memref<24x196xf32, #tpu.memory_space<vmem>>) attributes {dimension_semantics = [#tpu.dimension_semantics<parallel>], iteration_bounds = array<i64: 2>, scalar_prefetch = 0 : i64, scratch_operands = 2 : i64, tpu.core_type = #tpu.core_type<tc>, window_params = [{transform_indices = @transform_0, window_bounds = array<i64: 8, 33, 196>}, {transform_indices = @transform_1, window_bounds = array<i64: 8, 34, 33>}, {transform_indices = @transform_2, window_bounds = array<i64: 8, 32, 32>}, {transform_indices = @transform_3, window_bounds = array<i64: 8, 14, 32>}, {transform_indices = @transform_4, window_bounds = array<i64: 8, 32, 196>}, {pipeline_mode = #tpu.pipeline_mode<synchronous>, transform_indices = @transform_5, window_bounds = array<i64: 32, 1>}, {pipeline_mode = #tpu.pipeline_mode<synchronous>, transform_indices = @transform_6, window_bounds = array<i64: 14, 196>}, {pipeline_mode = #tpu.pipeline_mode<synchronous>, transform_indices = @transform_7, window_bounds = array<i64: 196, 784>}, {pipeline_mode = #tpu.pipeline_mode<synchronous>, transform_indices = @transform_8, window_bounds = array<i64: 196, 784>}, {transform_indices = @transform_9, window_bounds = array<i64: 8, 2, 196>}, {transform_indices = @transform_10, window_bounds = array<i64: 8, 35, 784>}]} {
    %c0 = arith.constant 0 : index
    %c0_0 = arith.constant 0 : index
    %0 = vector.load %arg6[%c0, %c0_0] : memref<32x1xf32, #tpu.memory_space<vmem>>, vector<32x1xf32>
    %c0_1 = arith.constant 0 : index
    %c0_2 = arith.constant 0 : index
    %1 = vector.load %arg7[%c0_1, %c0_2] : memref<14x196xf32, #tpu.memory_space<vmem>>, vector<14x196xf32>
    %c0_3 = arith.constant 0 : index
    %c0_4 = arith.constant 0 : index
    %c0_5 = arith.constant 0 : index
    %2 = vector.load %arg2[%c0_3, %c0_4, %c0_5] : memref<8x34x33xbf16, #tpu.memory_space<vmem>>, vector<1x34x33xbf16>
    %3 = vector.shape_cast %2 : vector<1x34x33xbf16> to vector<34x33xbf16>
    %c0_6 = arith.constant 0 : index
    %c0_7 = arith.constant 0 : index
    %c0_8 = arith.constant 0 : index
    %4 = vector.load %arg1[%c0_6, %c0_7, %c0_8] : memref<8x33x196xbf16, #tpu.memory_space<vmem>>, vector<1x33x196xbf16>
    %5 = vector.shape_cast %4 : vector<1x33x196xbf16> to vector<33x196xbf16>
    %cst = arith.constant dense<0.000000e+00> : vector<34x196xf32>
    %6 = tpu.matmul %3, %5, %cst {dimension_numbers = #tpu.dot_dimension_numbers<[1], [0], [0], [1], [0, 0, 1, 1], [], []>} : vector<34x33xbf16>, vector<33x196xbf16>, vector<34x196xf32> -> vector<34x196xf32>
    %7 = vector.extract_strided_slice %6 {offsets = [32, 0], sizes = [2, 196], strides = [1, 1]} : vector<34x196xf32> to vector<2x196xf32>
    %c0_9 = arith.constant 0 : index
    %c0_10 = arith.constant 0 : index
    %c0_11 = arith.constant 0 : index
    %8 = vector.load %arg10[%c0_9, %c0_10, %c0_11] : memref<8x2x196xf32, #tpu.memory_space<vmem>>, vector<1x2x196xf32>
    %9 = vector.shape_cast %8 : vector<1x2x196xf32> to vector<2x196xf32>
    %10 = vector.shape_cast %7 : vector<2x196xf32> to vector<1x2x196xf32>
    tpu.vector_store %arg10[%c0_9, %c0_10, %c0_11], %10 {strides = array<i32>} : memref<8x2x196xf32, #tpu.memory_space<vmem>>, vector<1x2x196xf32>,
    %11 = vector.extract_strided_slice %6 {offsets = [32, 0], sizes = [1, 196], strides = [1, 1]} : vector<34x196xf32> to vector<1x196xf32>
    %c0_12 = arith.constant 0 : index
    %c0_13 = arith.constant 0 : index
    %c0_14 = arith.constant 0 : index
    %12 = vector.load %arg4[%c0_12, %c0_13, %c0_14] : memref<8x14x32xf32, #tpu.memory_space<vmem>>, vector<1x14x32xf32>
    %13 = vector.shape_cast %12 : vector<1x14x32xf32> to vector<14x32xf32>
    %c0_15 = arith.constant 0 : index
    %c0_16 = arith.constant 0 : index
    %c0_17 = arith.constant 0 : index
    %14 = vector.load %arg3[%c0_15, %c0_16, %c0_17] : memref<8x32x32xf32, #tpu.memory_space<vmem>>, vector<1x32x32xf32>
    %15 = vector.shape_cast %14 : vector<1x32x32xf32> to vector<32x32xf32>
    %cst_18 = arith.constant dense<0.000000e+00> : vector<14x32xf32>
    %16 = tpu.matmul %13, %15, %cst_18 {dimension_numbers = #tpu.dot_dimension_numbers<[1], [1], [0], [0], [0, 0, 1, 0], [], []>} : vector<14x32xf32>, vector<32x32xf32>, vector<14x32xf32> -> vector<14x32xf32>
    %17 = arith.truncf %16 : vector<14x32xf32> to vector<14x32xbf16>
    %c0_19 = arith.constant 0 : index
    %c0_20 = arith.constant 0 : index
    %c0_21 = arith.constant 0 : index
    %18 = vector.load %arg5[%c0_19, %c0_20, %c0_21] : memref<8x32x196xbf16, #tpu.memory_space<vmem>>, vector<1x32x196xbf16>
    %19 = vector.shape_cast %18 : vector<1x32x196xbf16> to vector<32x196xbf16>
    %cst_22 = arith.constant dense<0.000000e+00> : vector<14x196xf32>
    %20 = tpu.matmul %17, %19, %cst_22 {dimension_numbers = #tpu.dot_dimension_numbers<[1], [0], [0], [1], [0, 0, 1, 1], [], []>} : vector<14x32xbf16>, vector<32x196xbf16>, vector<14x196xf32> -> vector<14x196xf32>
    %21 = arith.mulf %20, %1 : vector<14x196xf32>
    %cst_23 = arith.constant dense<0.000000e+00> : vector<196xf32>
    %22 = vector.multi_reduction <add>, %21, %cst_23 [0] : vector<14x196xf32> to vector<196xf32>
    %23 = vector.shape_cast %22 : vector<196xf32> to vector<1x196xf32>
    %24 = vector.extract_strided_slice %6 {offsets = [0, 0], sizes = [32, 196], strides = [1, 1]} : vector<34x196xf32> to vector<32x196xf32>
    %25 = vector.broadcast %0 : vector<32x1xf32> to vector<32x196xf32>
    %26 = vector.broadcast %23 : vector<1x196xf32> to vector<32x196xf32>
    %27 = arith.mulf %25, %26 : vector<32x196xf32>
    %28 = arith.addf %24, %27 : vector<32x196xf32>
    %cst_24 = arith.constant 0.000000e+00 : f32
    %29 = vector.broadcast %cst_24 : f32 to vector<32x196xf32>
    %30 = arith.maximumf %28, %29 : vector<32x196xf32>
    %c0_25 = arith.constant 0 : index
    %c0_26 = arith.constant 0 : index
    %31 = vector.load %arg12[%c0_25, %c0_26] : memref<256x196xf32, #tpu.memory_space<vmem>>, vector<32x196xf32>
    tpu.vector_store %arg12[%c0_25, %c0_26], %30 {strides = array<i32>} : memref<256x196xf32, #tpu.memory_space<vmem>>, vector<32x196xf32>,
    %c0_27 = arith.constant 0 : index
    %c0_28 = arith.constant 0 : index
    %32 = vector.load %arg13[%c0_27, %c0_28] : memref<24x196xf32, #tpu.memory_space<vmem>>, vector<1x196xf32>
    tpu.vector_store %arg13[%c0_27, %c0_28], %11 {strides = array<i32>} : memref<24x196xf32, #tpu.memory_space<vmem>>, vector<1x196xf32>,
    %c1 = arith.constant 1 : index
    %c0_29 = arith.constant 0 : index
    %33 = vector.load %arg13[%c1, %c0_29] : memref<24x196xf32, #tpu.memory_space<vmem>>, vector<1x196xf32>
    tpu.vector_store %arg13[%c1, %c0_29], %11 {strides = array<i32>} : memref<24x196xf32, #tpu.memory_space<vmem>>, vector<1x196xf32>,
    %c2 = arith.constant 2 : index
    %c0_30 = arith.constant 0 : index
    %34 = vector.load %arg13[%c2, %c0_30] : memref<24x196xf32, #tpu.memory_space<vmem>>, vector<1x196xf32>
    tpu.vector_store %arg13[%c2, %c0_30], %23 {strides = array<i32>} : memref<24x196xf32, #tpu.memory_space<vmem>>, vector<1x196xf32>,
    %c1_31 = arith.constant 1 : index
    %c0_32 = arith.constant 0 : index
    %c0_33 = arith.constant 0 : index
    %35 = vector.load %arg2[%c1_31, %c0_32, %c0_33] : memref<8x34x33xbf16, #tpu.memory_space<vmem>>, vector<1x34x33xbf16>
    %36 = vector.shape_cast %35 : vector<1x34x33xbf16> to vector<34x33xbf16>
    %c1_34 = arith.constant 1 : index
    %c0_35 = arith.constant 0 : index
    %c0_36 = arith.constant 0 : index
    %37 = vector.load %arg1[%c1_34, %c0_35, %c0_36] : memref<8x33x196xbf16, #tpu.memory_space<vmem>>, vector<1x33x196xbf16>
    %38 = vector.shape_cast %37 : vector<1x33x196xbf16> to vector<33x196xbf16>
    %cst_37 = arith.constant dense<0.000000e+00> : vector<34x196xf32>
    %39 = tpu.matmul %36, %38, %cst_37 {dimension_numbers = #tpu.dot_dimension_numbers<[1], [0], [0], [1], [0, 0, 1, 1], [], []>} : vector<34x33xbf16>, vector<33x196xbf16>, vector<34x196xf32> -> vector<34x196xf32>
    %40 = vector.extract_strided_slice %39 {offsets = [32, 0], sizes = [2, 196], strides = [1, 1]} : vector<34x196xf32> to vector<2x196xf32>
    %c1_38 = arith.constant 1 : index
    %c0_39 = arith.constant 0 : index
    %c0_40 = arith.constant 0 : index
    %41 = vector.load %arg10[%c1_38, %c0_39, %c0_40] : memref<8x2x196xf32, #tpu.memory_space<vmem>>, vector<1x2x196xf32>
    %42 = vector.shape_cast %41 : vector<1x2x196xf32> to vector<2x196xf32>
    %43 = vector.shape_cast %40 : vector<2x196xf32> to vector<1x2x196xf32>
    tpu.vector_store %arg10[%c1_38, %c0_39, %c0_40], %43 {strides = array<i32>} : memref<8x2x196xf32, #tpu.memory_space<vmem>>, vector<1x2x196xf32>,
    %44 = vector.extract_strided_slice %39 {offsets = [32, 0], sizes = [1, 196], strides = [1, 1]} : vector<34x196xf32> to vector<1x196xf32>
    %c1_41 = arith.constant 1 : index
    %c0_42 = arith.constant 0 : index
    %c0_43 = arith.constant 0 : index
    %45 = vector.load %arg4[%c1_41, %c0_42, %c0_43] : memref<8x14x32xf32, #tpu.memory_space<vmem>>, vector<1x14x32xf32>
    %46 = vector.shape_cast %45 : vector<1x14x32xf32> to vector<14x32xf32>
    %c1_44 = arith.constant 1 : index
    %c0_45 = arith.constant 0 : index
    %c0_46 = arith.constant 0 : index
    %47 = vector.load %arg3[%c1_44, %c0_45, %c0_46] : memref<8x32x32xf32, #tpu.memory_space<vmem>>, vector<1x32x32xf32>
    %48 = vector.shape_cast %47 : vector<1x32x32xf32> to vector<32x32xf32>
    %cst_47 = arith.constant dense<0.000000e+00> : vector<14x32xf32>
    %49 = tpu.matmul %46, %48, %cst_47 {dimension_numbers = #tpu.dot_dimension_numbers<[1], [1], [0], [0], [0, 0, 1, 0], [], []>} : vector<14x32xf32>, vector<32x32xf32>, vector<14x32xf32> -> vector<14x32xf32>
    %50 = arith.truncf %49 : vector<14x32xf32> to vector<14x32xbf16>
    %c1_48 = arith.constant 1 : index
    %c0_49 = arith.constant 0 : index
    %c0_50 = arith.constant 0 : index
    %51 = vector.load %arg5[%c1_48, %c0_49, %c0_50] : memref<8x32x196xbf16, #tpu.memory_space<vmem>>, vector<1x32x196xbf16>
    %52 = vector.shape_cast %51 : vector<1x32x196xbf16> to vector<32x196xbf16>
    %cst_51 = arith.constant dense<0.000000e+00> : vector<14x196xf32>
    %53 = tpu.matmul %50, %52, %cst_51 {dimension_numbers = #tpu.dot_dimension_numbers<[1], [0], [0], [1], [0, 0, 1, 1], [], []>} : vector<14x32xbf16>, vector<32x196xbf16>, vector<14x196xf32> -> vector<14x196xf32>
    %54 = arith.mulf %53, %1 : vector<14x196xf32>
    %cst_52 = arith.constant dense<0.000000e+00> : vector<196xf32>
    %55 = vector.multi_reduction <add>, %54, %cst_52 [0] : vector<14x196xf32> to vector<196xf32>
    %56 = vector.shape_cast %55 : vector<196xf32> to vector<1x196xf32>
    %57 = vector.extract_strided_slice %39 {offsets = [0, 0], sizes = [32, 196], strides = [1, 1]} : vector<34x196xf32> to vector<32x196xf32>
    %58 = vector.broadcast %0 : vector<32x1xf32> to vector<32x196xf32>
    %59 = vector.broadcast %56 : vector<1x196xf32> to vector<32x196xf32>
    %60 = arith.mulf %58, %59 : vector<32x196xf32>
    %61 = arith.addf %57, %60 : vector<32x196xf32>
    %cst_53 = arith.constant 0.000000e+00 : f32
    %62 = vector.broadcast %cst_53 : f32 to vector<32x196xf32>
    %63 = arith.maximumf %61, %62 : vector<32x196xf32>
    %c32 = arith.constant 32 : index
    %c0_54 = arith.constant 0 : index
    %64 = vector.load %arg12[%c32, %c0_54] : memref<256x196xf32, #tpu.memory_space<vmem>>, vector<32x196xf32>
    tpu.vector_store %arg12[%c32, %c0_54], %63 {strides = array<i32>} : memref<256x196xf32, #tpu.memory_space<vmem>>, vector<32x196xf32>,
    %c3 = arith.constant 3 : index
    %c0_55 = arith.constant 0 : index
    %65 = vector.load %arg13[%c3, %c0_55] : memref<24x196xf32, #tpu.memory_space<vmem>>, vector<1x196xf32>
    tpu.vector_store %arg13[%c3, %c0_55], %44 {strides = array<i32>} : memref<24x196xf32, #tpu.memory_space<vmem>>, vector<1x196xf32>,
    %c4 = arith.constant 4 : index
    %c0_56 = arith.constant 0 : index
    %66 = vector.load %arg13[%c4, %c0_56] : memref<24x196xf32, #tpu.memory_space<vmem>>, vector<1x196xf32>
    tpu.vector_store %arg13[%c4, %c0_56], %44 {strides = array<i32>} : memref<24x196xf32, #tpu.memory_space<vmem>>, vector<1x196xf32>,
    %c5 = arith.constant 5 : index
    %c0_57 = arith.constant 0 : index
    %67 = vector.load %arg13[%c5, %c0_57] : memref<24x196xf32, #tpu.memory_space<vmem>>, vector<1x196xf32>
    tpu.vector_store %arg13[%c5, %c0_57], %56 {strides = array<i32>} : memref<24x196xf32, #tpu.memory_space<vmem>>, vector<1x196xf32>,
    %c2_58 = arith.constant 2 : index
    %c0_59 = arith.constant 0 : index
    %c0_60 = arith.constant 0 : index
    %68 = vector.load %arg2[%c2_58, %c0_59, %c0_60] : memref<8x34x33xbf16, #tpu.memory_space<vmem>>, vector<1x34x33xbf16>
    %69 = vector.shape_cast %68 : vector<1x34x33xbf16> to vector<34x33xbf16>
    %c2_61 = arith.constant 2 : index
    %c0_62 = arith.constant 0 : index
    %c0_63 = arith.constant 0 : index
    %70 = vector.load %arg1[%c2_61, %c0_62, %c0_63] : memref<8x33x196xbf16, #tpu.memory_space<vmem>>, vector<1x33x196xbf16>
    %71 = vector.shape_cast %70 : vector<1x33x196xbf16> to vector<33x196xbf16>
    %cst_64 = arith.constant dense<0.000000e+00> : vector<34x196xf32>
    %72 = tpu.matmul %69, %71, %cst_64 {dimension_numbers = #tpu.dot_dimension_numbers<[1], [0], [0], [1], [0, 0, 1, 1], [], []>} : vector<34x33xbf16>, vector<33x196xbf16>, vector<34x196xf32> -> vector<34x196xf32>
    %73 = vector.extract_strided_slice %72 {offsets = [32, 0], sizes = [2, 196], strides = [1, 1]} : vector<34x196xf32> to vector<2x196xf32>
    %c2_65 = arith.constant 2 : index
    %c0_66 = arith.constant 0 : index
    %c0_67 = arith.constant 0 : index
    %74 = vector.load %arg10[%c2_65, %c0_66, %c0_67] : memref<8x2x196xf32, #tpu.memory_space<vmem>>, vector<1x2x196xf32>
    %75 = vector.shape_cast %74 : vector<1x2x196xf32> to vector<2x196xf32>
    %76 = vector.shape_cast %73 : vector<2x196xf32> to vector<1x2x196xf32>
    tpu.vector_store %arg10[%c2_65, %c0_66, %c0_67], %76 {strides = array<i32>} : memref<8x2x196xf32, #tpu.memory_space<vmem>>, vector<1x2x196xf32>,
    %77 = vector.extract_strided_slice %72 {offsets = [32, 0], sizes = [1, 196], strides = [1, 1]} : vector<34x196xf32> to vector<1x196xf32>
    %c2_68 = arith.constant 2 : index
    %c0_69 = arith.constant 0 : index
    %c0_70 = arith.constant 0 : index
    %78 = vector.load %arg4[%c2_68, %c0_69, %c0_70] : memref<8x14x32xf32, #tpu.memory_space<vmem>>, vector<1x14x32xf32>
    %79 = vector.shape_cast %78 : vector<1x14x32xf32> to vector<14x32xf32>
    %c2_71 = arith.constant 2 : index
    %c0_72 = arith.constant 0 : index
    %c0_73 = arith.constant 0 : index
    %80 = vector.load %arg3[%c2_71, %c0_72, %c0_73] : memref<8x32x32xf32, #tpu.memory_space<vmem>>, vector<1x32x32xf32>
    %81 = vector.shape_cast %80 : vector<1x32x32xf32> to vector<32x32xf32>
    %cst_74 = arith.constant dense<0.000000e+00> : vector<14x32xf32>
    %82 = tpu.matmul %79, %81, %cst_74 {dimension_numbers = #tpu.dot_dimension_numbers<[1], [1], [0], [0], [0, 0, 1, 0], [], []>} : vector<14x32xf32>, vector<32x32xf32>, vector<14x32xf32> -> vector<14x32xf32>
    %83 = arith.truncf %82 : vector<14x32xf32> to vector<14x32xbf16>
    %c2_75 = arith.constant 2 : index
    %c0_76 = arith.constant 0 : index
    %c0_77 = arith.constant 0 : index
    %84 = vector.load %arg5[%c2_75, %c0_76, %c0_77] : memref<8x32x196xbf16, #tpu.memory_space<vmem>>, vector<1x32x196xbf16>
    %85 = vector.shape_cast %84 : vector<1x32x196xbf16> to vector<32x196xbf16>
    %cst_78 = arith.constant dense<0.000000e+00> : vector<14x196xf32>
    %86 = tpu.matmul %83, %85, %cst_78 {dimension_numbers = #tpu.dot_dimension_numbers<[1], [0], [0], [1], [0, 0, 1, 1], [], []>} : vector<14x32xbf16>, vector<32x196xbf16>, vector<14x196xf32> -> vector<14x196xf32>
    %87 = arith.mulf %86, %1 : vector<14x196xf32>
    %cst_79 = arith.constant dense<0.000000e+00> : vector<196xf32>
    %88 = vector.multi_reduction <add>, %87, %cst_79 [0] : vector<14x196xf32> to vector<196xf32>
    %89 = vector.shape_cast %88 : vector<196xf32> to vector<1x196xf32>
    %90 = vector.extract_strided_slice %72 {offsets = [0, 0], sizes = [32, 196], strides = [1, 1]} : vector<34x196xf32> to vector<32x196xf32>
    %91 = vector.broadcast %0 : vector<32x1xf32> to vector<32x196xf32>
    %92 = vector.broadcast %89 : vector<1x196xf32> to vector<32x196xf32>
    %93 = arith.mulf %91, %92 : vector<32x196xf32>
    %94 = arith.addf %90, %93 : vector<32x196xf32>
    %cst_80 = arith.constant 0.000000e+00 : f32
    %95 = vector.broadcast %cst_80 : f32 to vector<32x196xf32>
    %96 = arith.maximumf %94, %95 : vector<32x196xf32>
    %c64 = arith.constant 64 : index
    %c0_81 = arith.constant 0 : index
    %97 = vector.load %arg12[%c64, %c0_81] : memref<256x196xf32, #tpu.memory_space<vmem>>, vector<32x196xf32>
    tpu.vector_store %arg12[%c64, %c0_81], %96 {strides = array<i32>} : memref<256x196xf32, #tpu.memory_space<vmem>>, vector<32x196xf32>,
    %c6 = arith.constant 6 : index
    %c0_82 = arith.constant 0 : index
    %98 = vector.load %arg13[%c6, %c0_82] : memref<24x196xf32, #tpu.memory_space<vmem>>, vector<1x196xf32>
    tpu.vector_store %arg13[%c6, %c0_82], %77 {strides = array<i32>} : memref<24x196xf32, #tpu.memory_space<vmem>>, vector<1x196xf32>,
    %c7 = arith.constant 7 : index
    %c0_83 = arith.constant 0 : index
    %99 = vector.load %arg13[%c7, %c0_83] : memref<24x196xf32, #tpu.memory_space<vmem>>, vector<1x196xf32>
    tpu.vector_store %arg13[%c7, %c0_83], %77 {strides = array<i32>} : memref<24x196xf32, #tpu.memory_space<vmem>>, vector<1x196xf32>,
    %c8 = arith.constant 8 : index
    %c0_84 = arith.constant 0 : index
    %100 = vector.load %arg13[%c8, %c0_84] : memref<24x196xf32, #tpu.memory_space<vmem>>, vector<1x196xf32>
    tpu.vector_store %arg13[%c8, %c0_84], %89 {strides = array<i32>} : memref<24x196xf32, #tpu.memory_space<vmem>>, vector<1x196xf32>,
    %c3_85 = arith.constant 3 : index
    %c0_86 = arith.constant 0 : index
    %c0_87 = arith.constant 0 : index
    %101 = vector.load %arg2[%c3_85, %c0_86, %c0_87] : memref<8x34x33xbf16, #tpu.memory_space<vmem>>, vector<1x34x33xbf16>
    %102 = vector.shape_cast %101 : vector<1x34x33xbf16> to vector<34x33xbf16>
    %c3_88 = arith.constant 3 : index
    %c0_89 = arith.constant 0 : index
    %c0_90 = arith.constant 0 : index
    %103 = vector.load %arg1[%c3_88, %c0_89, %c0_90] : memref<8x33x196xbf16, #tpu.memory_space<vmem>>, vector<1x33x196xbf16>
    %104 = vector.shape_cast %103 : vector<1x33x196xbf16> to vector<33x196xbf16>
    %cst_91 = arith.constant dense<0.000000e+00> : vector<34x196xf32>
    %105 = tpu.matmul %102, %104, %cst_91 {dimension_numbers = #tpu.dot_dimension_numbers<[1], [0], [0], [1], [0, 0, 1, 1], [], []>} : vector<34x33xbf16>, vector<33x196xbf16>, vector<34x196xf32> -> vector<34x196xf32>
    %106 = vector.extract_strided_slice %105 {offsets = [32, 0], sizes = [2, 196], strides = [1, 1]} : vector<34x196xf32> to vector<2x196xf32>
    %c3_92 = arith.constant 3 : index
    %c0_93 = arith.constant 0 : index
    %c0_94 = arith.constant 0 : index
    %107 = vector.load %arg10[%c3_92, %c0_93, %c0_94] : memref<8x2x196xf32, #tpu.memory_space<vmem>>, vector<1x2x196xf32>
    %108 = vector.shape_cast %107 : vector<1x2x196xf32> to vector<2x196xf32>
    %109 = vector.shape_cast %106 : vector<2x196xf32> to vector<1x2x196xf32>
    tpu.vector_store %arg10[%c3_92, %c0_93, %c0_94], %109 {strides = array<i32>} : memref<8x2x196xf32, #tpu.memory_space<vmem>>, vector<1x2x196xf32>,
    %110 = vector.extract_strided_slice %105 {offsets = [32, 0], sizes = [1, 196], strides = [1, 1]} : vector<34x196xf32> to vector<1x196xf32>
    %c3_95 = arith.constant 3 : index
    %c0_96 = arith.constant 0 : index
    %c0_97 = arith.constant 0 : index
    %111 = vector.load %arg4[%c3_95, %c0_96, %c0_97] : memref<8x14x32xf32, #tpu.memory_space<vmem>>, vector<1x14x32xf32>
    %112 = vector.shape_cast %111 : vector<1x14x32xf32> to vector<14x32xf32>
    %c3_98 = arith.constant 3 : index
    %c0_99 = arith.constant 0 : index
    %c0_100 = arith.constant 0 : index
    %113 = vector.load %arg3[%c3_98, %c0_99, %c0_100] : memref<8x32x32xf32, #tpu.memory_space<vmem>>, vector<1x32x32xf32>
    %114 = vector.shape_cast %113 : vector<1x32x32xf32> to vector<32x32xf32>
    %cst_101 = arith.constant dense<0.000000e+00> : vector<14x32xf32>
    %115 = tpu.matmul %112, %114, %cst_101 {dimension_numbers = #tpu.dot_dimension_numbers<[1], [1], [0], [0], [0, 0, 1, 0], [], []>} : vector<14x32xf32>, vector<32x32xf32>, vector<14x32xf32> -> vector<14x32xf32>
    %116 = arith.truncf %115 : vector<14x32xf32> to vector<14x32xbf16>
    %c3_102 = arith.constant 3 : index
    %c0_103 = arith.constant 0 : index
    %c0_104 = arith.constant 0 : index
    %117 = vector.load %arg5[%c3_102, %c0_103, %c0_104] : memref<8x32x196xbf16, #tpu.memory_space<vmem>>, vector<1x32x196xbf16>
    %118 = vector.shape_cast %117 : vector<1x32x196xbf16> to vector<32x196xbf16>
    %cst_105 = arith.constant dense<0.000000e+00> : vector<14x196xf32>
    %119 = tpu.matmul %116, %118, %cst_105 {dimension_numbers = #tpu.dot_dimension_numbers<[1], [0], [0], [1], [0, 0, 1, 1], [], []>} : vector<14x32xbf16>, vector<32x196xbf16>, vector<14x196xf32> -> vector<14x196xf32>
    %120 = arith.mulf %119, %1 : vector<14x196xf32>
    %cst_106 = arith.constant dense<0.000000e+00> : vector<196xf32>
    %121 = vector.multi_reduction <add>, %120, %cst_106 [0] : vector<14x196xf32> to vector<196xf32>
    %122 = vector.shape_cast %121 : vector<196xf32> to vector<1x196xf32>
    %123 = vector.extract_strided_slice %105 {offsets = [0, 0], sizes = [32, 196], strides = [1, 1]} : vector<34x196xf32> to vector<32x196xf32>
    %124 = vector.broadcast %0 : vector<32x1xf32> to vector<32x196xf32>
    %125 = vector.broadcast %122 : vector<1x196xf32> to vector<32x196xf32>
    %126 = arith.mulf %124, %125 : vector<32x196xf32>
    %127 = arith.addf %123, %126 : vector<32x196xf32>
    %cst_107 = arith.constant 0.000000e+00 : f32
    %128 = vector.broadcast %cst_107 : f32 to vector<32x196xf32>
    %129 = arith.maximumf %127, %128 : vector<32x196xf32>
    %c96 = arith.constant 96 : index
    %c0_108 = arith.constant 0 : index
    %130 = vector.load %arg12[%c96, %c0_108] : memref<256x196xf32, #tpu.memory_space<vmem>>, vector<32x196xf32>
    tpu.vector_store %arg12[%c96, %c0_108], %129 {strides = array<i32>} : memref<256x196xf32, #tpu.memory_space<vmem>>, vector<32x196xf32>,
    %c9 = arith.constant 9 : index
    %c0_109 = arith.constant 0 : index
    %131 = vector.load %arg13[%c9, %c0_109] : memref<24x196xf32, #tpu.memory_space<vmem>>, vector<1x196xf32>
    tpu.vector_store %arg13[%c9, %c0_109], %110 {strides = array<i32>} : memref<24x196xf32, #tpu.memory_space<vmem>>, vector<1x196xf32>,
    %c10 = arith.constant 10 : index
    %c0_110 = arith.constant 0 : index
    %132 = vector.load %arg13[%c10, %c0_110] : memref<24x196xf32, #tpu.memory_space<vmem>>, vector<1x196xf32>
    tpu.vector_store %arg13[%c10, %c0_110], %110 {strides = array<i32>} : memref<24x196xf32, #tpu.memory_space<vmem>>, vector<1x196xf32>,
    %c11 = arith.constant 11 : index
    %c0_111 = arith.constant 0 : index
    %133 = vector.load %arg13[%c11, %c0_111] : memref<24x196xf32, #tpu.memory_space<vmem>>, vector<1x196xf32>
    tpu.vector_store %arg13[%c11, %c0_111], %122 {strides = array<i32>} : memref<24x196xf32, #tpu.memory_space<vmem>>, vector<1x196xf32>,
    %c4_112 = arith.constant 4 : index
    %c0_113 = arith.constant 0 : index
    %c0_114 = arith.constant 0 : index
    %134 = vector.load %arg2[%c4_112, %c0_113, %c0_114] : memref<8x34x33xbf16, #tpu.memory_space<vmem>>, vector<1x34x33xbf16>
    %135 = vector.shape_cast %134 : vector<1x34x33xbf16> to vector<34x33xbf16>
    %c4_115 = arith.constant 4 : index
    %c0_116 = arith.constant 0 : index
    %c0_117 = arith.constant 0 : index
    %136 = vector.load %arg1[%c4_115, %c0_116, %c0_117] : memref<8x33x196xbf16, #tpu.memory_space<vmem>>, vector<1x33x196xbf16>
    %137 = vector.shape_cast %136 : vector<1x33x196xbf16> to vector<33x196xbf16>
    %cst_118 = arith.constant dense<0.000000e+00> : vector<34x196xf32>
    %138 = tpu.matmul %135, %137, %cst_118 {dimension_numbers = #tpu.dot_dimension_numbers<[1], [0], [0], [1], [0, 0, 1, 1], [], []>} : vector<34x33xbf16>, vector<33x196xbf16>, vector<34x196xf32> -> vector<34x196xf32>
    %139 = vector.extract_strided_slice %138 {offsets = [32, 0], sizes = [2, 196], strides = [1, 1]} : vector<34x196xf32> to vector<2x196xf32>
    %c4_119 = arith.constant 4 : index
    %c0_120 = arith.constant 0 : index
    %c0_121 = arith.constant 0 : index
    %140 = vector.load %arg10[%c4_119, %c0_120, %c0_121] : memref<8x2x196xf32, #tpu.memory_space<vmem>>, vector<1x2x196xf32>
    %141 = vector.shape_cast %140 : vector<1x2x196xf32> to vector<2x196xf32>
    %142 = vector.shape_cast %139 : vector<2x196xf32> to vector<1x2x196xf32>
    tpu.vector_store %arg10[%c4_119, %c0_120, %c0_121], %142 {strides = array<i32>} : memref<8x2x196xf32, #tpu.memory_space<vmem>>, vector<1x2x196xf32>,
    %143 = vector.extract_strided_slice %138 {offsets = [32, 0], sizes = [1, 196], strides = [1, 1]} : vector<34x196xf32> to vector<1x196xf32>
    %c4_122 = arith.constant 4 : index
    %c0_123 = arith.constant 0 : index
    %c0_124 = arith.constant 0 : index
    %144 = vector.load %arg4[%c4_122, %c0_123, %c0_124] : memref<8x14x32xf32, #tpu.memory_space<vmem>>, vector<1x14x32xf32>
    %145 = vector.shape_cast %144 : vector<1x14x32xf32> to vector<14x32xf32>
    %c4_125 = arith.constant 4 : index
    %c0_126 = arith.constant 0 : index
    %c0_127 = arith.constant 0 : index
    %146 = vector.load %arg3[%c4_125, %c0_126, %c0_127] : memref<8x32x32xf32, #tpu.memory_space<vmem>>, vector<1x32x32xf32>
    %147 = vector.shape_cast %146 : vector<1x32x32xf32> to vector<32x32xf32>
    %cst_128 = arith.constant dense<0.000000e+00> : vector<14x32xf32>
    %148 = tpu.matmul %145, %147, %cst_128 {dimension_numbers = #tpu.dot_dimension_numbers<[1], [1], [0], [0], [0, 0, 1, 0], [], []>} : vector<14x32xf32>, vector<32x32xf32>, vector<14x32xf32> -> vector<14x32xf32>
    %149 = arith.truncf %148 : vector<14x32xf32> to vector<14x32xbf16>
    %c4_129 = arith.constant 4 : index
    %c0_130 = arith.constant 0 : index
    %c0_131 = arith.constant 0 : index
    %150 = vector.load %arg5[%c4_129, %c0_130, %c0_131] : memref<8x32x196xbf16, #tpu.memory_space<vmem>>, vector<1x32x196xbf16>
    %151 = vector.shape_cast %150 : vector<1x32x196xbf16> to vector<32x196xbf16>
    %cst_132 = arith.constant dense<0.000000e+00> : vector<14x196xf32>
    %152 = tpu.matmul %149, %151, %cst_132 {dimension_numbers = #tpu.dot_dimension_numbers<[1], [0], [0], [1], [0, 0, 1, 1], [], []>} : vector<14x32xbf16>, vector<32x196xbf16>, vector<14x196xf32> -> vector<14x196xf32>
    %153 = arith.mulf %152, %1 : vector<14x196xf32>
    %cst_133 = arith.constant dense<0.000000e+00> : vector<196xf32>
    %154 = vector.multi_reduction <add>, %153, %cst_133 [0] : vector<14x196xf32> to vector<196xf32>
    %155 = vector.shape_cast %154 : vector<196xf32> to vector<1x196xf32>
    %156 = vector.extract_strided_slice %138 {offsets = [0, 0], sizes = [32, 196], strides = [1, 1]} : vector<34x196xf32> to vector<32x196xf32>
    %157 = vector.broadcast %0 : vector<32x1xf32> to vector<32x196xf32>
    %158 = vector.broadcast %155 : vector<1x196xf32> to vector<32x196xf32>
    %159 = arith.mulf %157, %158 : vector<32x196xf32>
    %160 = arith.addf %156, %159 : vector<32x196xf32>
    %cst_134 = arith.constant 0.000000e+00 : f32
    %161 = vector.broadcast %cst_134 : f32 to vector<32x196xf32>
    %162 = arith.maximumf %160, %161 : vector<32x196xf32>
    %c128 = arith.constant 128 : index
    %c0_135 = arith.constant 0 : index
    %163 = vector.load %arg12[%c128, %c0_135] : memref<256x196xf32, #tpu.memory_space<vmem>>, vector<32x196xf32>
    tpu.vector_store %arg12[%c128, %c0_135], %162 {strides = array<i32>} : memref<256x196xf32, #tpu.memory_space<vmem>>, vector<32x196xf32>,
    %c12 = arith.constant 12 : index
    %c0_136 = arith.constant 0 : index
    %164 = vector.load %arg13[%c12, %c0_136] : memref<24x196xf32, #tpu.memory_space<vmem>>, vector<1x196xf32>
    tpu.vector_store %arg13[%c12, %c0_136], %143 {strides = array<i32>} : memref<24x196xf32, #tpu.memory_space<vmem>>, vector<1x196xf32>,
    %c13 = arith.constant 13 : index
    %c0_137 = arith.constant 0 : index
    %165 = vector.load %arg13[%c13, %c0_137] : memref<24x196xf32, #tpu.memory_space<vmem>>, vector<1x196xf32>
    tpu.vector_store %arg13[%c13, %c0_137], %143 {strides = array<i32>} : memref<24x196xf32, #tpu.memory_space<vmem>>, vector<1x196xf32>,
    %c14 = arith.constant 14 : index
    %c0_138 = arith.constant 0 : index
    %166 = vector.load %arg13[%c14, %c0_138] : memref<24x196xf32, #tpu.memory_space<vmem>>, vector<1x196xf32>
    tpu.vector_store %arg13[%c14, %c0_138], %155 {strides = array<i32>} : memref<24x196xf32, #tpu.memory_space<vmem>>, vector<1x196xf32>,
    %c5_139 = arith.constant 5 : index
    %c0_140 = arith.constant 0 : index
    %c0_141 = arith.constant 0 : index
    %167 = vector.load %arg2[%c5_139, %c0_140, %c0_141] : memref<8x34x33xbf16, #tpu.memory_space<vmem>>, vector<1x34x33xbf16>
    %168 = vector.shape_cast %167 : vector<1x34x33xbf16> to vector<34x33xbf16>
    %c5_142 = arith.constant 5 : index
    %c0_143 = arith.constant 0 : index
    %c0_144 = arith.constant 0 : index
    %169 = vector.load %arg1[%c5_142, %c0_143, %c0_144] : memref<8x33x196xbf16, #tpu.memory_space<vmem>>, vector<1x33x196xbf16>
    %170 = vector.shape_cast %169 : vector<1x33x196xbf16> to vector<33x196xbf16>
    %cst_145 = arith.constant dense<0.000000e+00> : vector<34x196xf32>
    %171 = tpu.matmul %168, %170, %cst_145 {dimension_numbers = #tpu.dot_dimension_numbers<[1], [0], [0], [1], [0, 0, 1, 1], [], []>} : vector<34x33xbf16>, vector<33x196xbf16>, vector<34x196xf32> -> vector<34x196xf32>
    %172 = vector.extract_strided_slice %171 {offsets = [32, 0], sizes = [2, 196], strides = [1, 1]} : vector<34x196xf32> to vector<2x196xf32>
    %c5_146 = arith.constant 5 : index
    %c0_147 = arith.constant 0 : index
    %c0_148 = arith.constant 0 : index
    %173 = vector.load %arg10[%c5_146, %c0_147, %c0_148] : memref<8x2x196xf32, #tpu.memory_space<vmem>>, vector<1x2x196xf32>
    %174 = vector.shape_cast %173 : vector<1x2x196xf32> to vector<2x196xf32>
    %175 = vector.shape_cast %172 : vector<2x196xf32> to vector<1x2x196xf32>
    tpu.vector_store %arg10[%c5_146, %c0_147, %c0_148], %175 {strides = array<i32>} : memref<8x2x196xf32, #tpu.memory_space<vmem>>, vector<1x2x196xf32>,
    %176 = vector.extract_strided_slice %171 {offsets = [32, 0], sizes = [1, 196], strides = [1, 1]} : vector<34x196xf32> to vector<1x196xf32>
    %c5_149 = arith.constant 5 : index
    %c0_150 = arith.constant 0 : index
    %c0_151 = arith.constant 0 : index
    %177 = vector.load %arg4[%c5_149, %c0_150, %c0_151] : memref<8x14x32xf32, #tpu.memory_space<vmem>>, vector<1x14x32xf32>
    %178 = vector.shape_cast %177 : vector<1x14x32xf32> to vector<14x32xf32>
    %c5_152 = arith.constant 5 : index
    %c0_153 = arith.constant 0 : index
    %c0_154 = arith.constant 0 : index
    %179 = vector.load %arg3[%c5_152, %c0_153, %c0_154] : memref<8x32x32xf32, #tpu.memory_space<vmem>>, vector<1x32x32xf32>
    %180 = vector.shape_cast %179 : vector<1x32x32xf32> to vector<32x32xf32>
    %cst_155 = arith.constant dense<0.000000e+00> : vector<14x32xf32>
    %181 = tpu.matmul %178, %180, %cst_155 {dimension_numbers = #tpu.dot_dimension_numbers<[1], [1], [0], [0], [0, 0, 1, 0], [], []>} : vector<14x32xf32>, vector<32x32xf32>, vector<14x32xf32> -> vector<14x32xf32>
    %182 = arith.truncf %181 : vector<14x32xf32> to vector<14x32xbf16>
    %c5_156 = arith.constant 5 : index
    %c0_157 = arith.constant 0 : index
    %c0_158 = arith.constant 0 : index
    %183 = vector.load %arg5[%c5_156, %c0_157, %c0_158] : memref<8x32x196xbf16, #tpu.memory_space<vmem>>, vector<1x32x196xbf16>
    %184 = vector.shape_cast %183 : vector<1x32x196xbf16> to vector<32x196xbf16>
    %cst_159 = arith.constant dense<0.000000e+00> : vector<14x196xf32>
    %185 = tpu.matmul %182, %184, %cst_159 {dimension_numbers = #tpu.dot_dimension_numbers<[1], [0], [0], [1], [0, 0, 1, 1], [], []>} : vector<14x32xbf16>, vector<32x196xbf16>, vector<14x196xf32> -> vector<14x196xf32>
    %186 = arith.mulf %185, %1 : vector<14x196xf32>
    %cst_160 = arith.constant dense<0.000000e+00> : vector<196xf32>
    %187 = vector.multi_reduction <add>, %186, %cst_160 [0] : vector<14x196xf32> to vector<196xf32>
    %188 = vector.shape_cast %187 : vector<196xf32> to vector<1x196xf32>
    %189 = vector.extract_strided_slice %171 {offsets = [0, 0], sizes = [32, 196], strides = [1, 1]} : vector<34x196xf32> to vector<32x196xf32>
    %190 = vector.broadcast %0 : vector<32x1xf32> to vector<32x196xf32>
    %191 = vector.broadcast %188 : vector<1x196xf32> to vector<32x196xf32>
    %192 = arith.mulf %190, %191 : vector<32x196xf32>
    %193 = arith.addf %189, %192 : vector<32x196xf32>
    %cst_161 = arith.constant 0.000000e+00 : f32
    %194 = vector.broadcast %cst_161 : f32 to vector<32x196xf32>
    %195 = arith.maximumf %193, %194 : vector<32x196xf32>
    %c160 = arith.constant 160 : index
    %c0_162 = arith.constant 0 : index
    %196 = vector.load %arg12[%c160, %c0_162] : memref<256x196xf32, #tpu.memory_space<vmem>>, vector<32x196xf32>
    tpu.vector_store %arg12[%c160, %c0_162], %195 {strides = array<i32>} : memref<256x196xf32, #tpu.memory_space<vmem>>, vector<32x196xf32>,
    %c15 = arith.constant 15 : index
    %c0_163 = arith.constant 0 : index
    %197 = vector.load %arg13[%c15, %c0_163] : memref<24x196xf32, #tpu.memory_space<vmem>>, vector<1x196xf32>
    tpu.vector_store %arg13[%c15, %c0_163], %176 {strides = array<i32>} : memref<24x196xf32, #tpu.memory_space<vmem>>, vector<1x196xf32>,
    %c16 = arith.constant 16 : index
    %c0_164 = arith.constant 0 : index
    %198 = vector.load %arg13[%c16, %c0_164] : memref<24x196xf32, #tpu.memory_space<vmem>>, vector<1x196xf32>
    tpu.vector_store %arg13[%c16, %c0_164], %176 {strides = array<i32>} : memref<24x196xf32, #tpu.memory_space<vmem>>, vector<1x196xf32>,
    %c17 = arith.constant 17 : index
    %c0_165 = arith.constant 0 : index
    %199 = vector.load %arg13[%c17, %c0_165] : memref<24x196xf32, #tpu.memory_space<vmem>>, vector<1x196xf32>
    tpu.vector_store %arg13[%c17, %c0_165], %188 {strides = array<i32>} : memref<24x196xf32, #tpu.memory_space<vmem>>, vector<1x196xf32>,
    %c6_166 = arith.constant 6 : index
    %c0_167 = arith.constant 0 : index
    %c0_168 = arith.constant 0 : index
    %200 = vector.load %arg2[%c6_166, %c0_167, %c0_168] : memref<8x34x33xbf16, #tpu.memory_space<vmem>>, vector<1x34x33xbf16>
    %201 = vector.shape_cast %200 : vector<1x34x33xbf16> to vector<34x33xbf16>
    %c6_169 = arith.constant 6 : index
    %c0_170 = arith.constant 0 : index
    %c0_171 = arith.constant 0 : index
    %202 = vector.load %arg1[%c6_169, %c0_170, %c0_171] : memref<8x33x196xbf16, #tpu.memory_space<vmem>>, vector<1x33x196xbf16>
    %203 = vector.shape_cast %202 : vector<1x33x196xbf16> to vector<33x196xbf16>
    %cst_172 = arith.constant dense<0.000000e+00> : vector<34x196xf32>
    %204 = tpu.matmul %201, %203, %cst_172 {dimension_numbers = #tpu.dot_dimension_numbers<[1], [0], [0], [1], [0, 0, 1, 1], [], []>} : vector<34x33xbf16>, vector<33x196xbf16>, vector<34x196xf32> -> vector<34x196xf32>
    %205 = vector.extract_strided_slice %204 {offsets = [32, 0], sizes = [2, 196], strides = [1, 1]} : vector<34x196xf32> to vector<2x196xf32>
    %c6_173 = arith.constant 6 : index
    %c0_174 = arith.constant 0 : index
    %c0_175 = arith.constant 0 : index
    %206 = vector.load %arg10[%c6_173, %c0_174, %c0_175] : memref<8x2x196xf32, #tpu.memory_space<vmem>>, vector<1x2x196xf32>
    %207 = vector.shape_cast %206 : vector<1x2x196xf32> to vector<2x196xf32>
    %208 = vector.shape_cast %205 : vector<2x196xf32> to vector<1x2x196xf32>
    tpu.vector_store %arg10[%c6_173, %c0_174, %c0_175], %208 {strides = array<i32>} : memref<8x2x196xf32, #tpu.memory_space<vmem>>, vector<1x2x196xf32>,
    %209 = vector.extract_strided_slice %204 {offsets = [32, 0], sizes = [1, 196], strides = [1, 1]} : vector<34x196xf32> to vector<1x196xf32>
    %c6_176 = arith.constant 6 : index
    %c0_177 = arith.constant 0 : index
    %c0_178 = arith.constant 0 : index
    %210 = vector.load %arg4[%c6_176, %c0_177, %c0_178] : memref<8x14x32xf32, #tpu.memory_space<vmem>>, vector<1x14x32xf32>
    %211 = vector.shape_cast %210 : vector<1x14x32xf32> to vector<14x32xf32>
    %c6_179 = arith.constant 6 : index
    %c0_180 = arith.constant 0 : index
    %c0_181 = arith.constant 0 : index
    %212 = vector.load %arg3[%c6_179, %c0_180, %c0_181] : memref<8x32x32xf32, #tpu.memory_space<vmem>>, vector<1x32x32xf32>
    %213 = vector.shape_cast %212 : vector<1x32x32xf32> to vector<32x32xf32>
    %cst_182 = arith.constant dense<0.000000e+00> : vector<14x32xf32>
    %214 = tpu.matmul %211, %213, %cst_182 {dimension_numbers = #tpu.dot_dimension_numbers<[1], [1], [0], [0], [0, 0, 1, 0], [], []>} : vector<14x32xf32>, vector<32x32xf32>, vector<14x32xf32> -> vector<14x32xf32>
    %215 = arith.truncf %214 : vector<14x32xf32> to vector<14x32xbf16>
    %c6_183 = arith.constant 6 : index
    %c0_184 = arith.constant 0 : index
    %c0_185 = arith.constant 0 : index
    %216 = vector.load %arg5[%c6_183, %c0_184, %c0_185] : memref<8x32x196xbf16, #tpu.memory_space<vmem>>, vector<1x32x196xbf16>
    %217 = vector.shape_cast %216 : vector<1x32x196xbf16> to vector<32x196xbf16>
    %cst_186 = arith.constant dense<0.000000e+00> : vector<14x196xf32>
    %218 = tpu.matmul %215, %217, %cst_186 {dimension_numbers = #tpu.dot_dimension_numbers<[1], [0], [0], [1], [0, 0, 1, 1], [], []>} : vector<14x32xbf16>, vector<32x196xbf16>, vector<14x196xf32> -> vector<14x196xf32>
    %219 = arith.mulf %218, %1 : vector<14x196xf32>
    %cst_187 = arith.constant dense<0.000000e+00> : vector<196xf32>
    %220 = vector.multi_reduction <add>, %219, %cst_187 [0] : vector<14x196xf32> to vector<196xf32>
    %221 = vector.shape_cast %220 : vector<196xf32> to vector<1x196xf32>
    %222 = vector.extract_strided_slice %204 {offsets = [0, 0], sizes = [32, 196], strides = [1, 1]} : vector<34x196xf32> to vector<32x196xf32>
    %223 = vector.broadcast %0 : vector<32x1xf32> to vector<32x196xf32>
    %224 = vector.broadcast %221 : vector<1x196xf32> to vector<32x196xf32>
    %225 = arith.mulf %223, %224 : vector<32x196xf32>
    %226 = arith.addf %222, %225 : vector<32x196xf32>
    %cst_188 = arith.constant 0.000000e+00 : f32
    %227 = vector.broadcast %cst_188 : f32 to vector<32x196xf32>
    %228 = arith.maximumf %226, %227 : vector<32x196xf32>
    %c192 = arith.constant 192 : index
    %c0_189 = arith.constant 0 : index
    %229 = vector.load %arg12[%c192, %c0_189] : memref<256x196xf32, #tpu.memory_space<vmem>>, vector<32x196xf32>
    tpu.vector_store %arg12[%c192, %c0_189], %228 {strides = array<i32>} : memref<256x196xf32, #tpu.memory_space<vmem>>, vector<32x196xf32>,
    %c18 = arith.constant 18 : index
    %c0_190 = arith.constant 0 : index
    %230 = vector.load %arg13[%c18, %c0_190] : memref<24x196xf32, #tpu.memory_space<vmem>>, vector<1x196xf32>
    tpu.vector_store %arg13[%c18, %c0_190], %209 {strides = array<i32>} : memref<24x196xf32, #tpu.memory_space<vmem>>, vector<1x196xf32>,
    %c19 = arith.constant 19 : index
    %c0_191 = arith.constant 0 : index
    %231 = vector.load %arg13[%c19, %c0_191] : memref<24x196xf32, #tpu.memory_space<vmem>>, vector<1x196xf32>
    tpu.vector_store %arg13[%c19, %c0_191], %209 {strides = array<i32>} : memref<24x196xf32, #tpu.memory_space<vmem>>, vector<1x196xf32>,
    %c20 = arith.constant 20 : index
    %c0_192 = arith.constant 0 : index
    %232 = vector.load %arg13[%c20, %c0_192] : memref<24x196xf32, #tpu.memory_space<vmem>>, vector<1x196xf32>
    tpu.vector_store %arg13[%c20, %c0_192], %221 {strides = array<i32>} : memref<24x196xf32, #tpu.memory_space<vmem>>, vector<1x196xf32>,
    %c7_193 = arith.constant 7 : index
    %c0_194 = arith.constant 0 : index
    %c0_195 = arith.constant 0 : index
    %233 = vector.load %arg2[%c7_193, %c0_194, %c0_195] : memref<8x34x33xbf16, #tpu.memory_space<vmem>>, vector<1x34x33xbf16>
    %234 = vector.shape_cast %233 : vector<1x34x33xbf16> to vector<34x33xbf16>
    %c7_196 = arith.constant 7 : index
    %c0_197 = arith.constant 0 : index
    %c0_198 = arith.constant 0 : index
    %235 = vector.load %arg1[%c7_196, %c0_197, %c0_198] : memref<8x33x196xbf16, #tpu.memory_space<vmem>>, vector<1x33x196xbf16>
    %236 = vector.shape_cast %235 : vector<1x33x196xbf16> to vector<33x196xbf16>
    %cst_199 = arith.constant dense<0.000000e+00> : vector<34x196xf32>
    %237 = tpu.matmul %234, %236, %cst_199 {dimension_numbers = #tpu.dot_dimension_numbers<[1], [0], [0], [1], [0, 0, 1, 1], [], []>} : vector<34x33xbf16>, vector<33x196xbf16>, vector<34x196xf32> -> vector<34x196xf32>
    %238 = vector.extract_strided_slice %237 {offsets = [32, 0], sizes = [2, 196], strides = [1, 1]} : vector<34x196xf32> to vector<2x196xf32>
    %c7_200 = arith.constant 7 : index
    %c0_201 = arith.constant 0 : index
    %c0_202 = arith.constant 0 : index
    %239 = vector.load %arg10[%c7_200, %c0_201, %c0_202] : memref<8x2x196xf32, #tpu.memory_space<vmem>>, vector<1x2x196xf32>
    %240 = vector.shape_cast %239 : vector<1x2x196xf32> to vector<2x196xf32>
    %241 = vector.shape_cast %238 : vector<2x196xf32> to vector<1x2x196xf32>
    tpu.vector_store %arg10[%c7_200, %c0_201, %c0_202], %241 {strides = array<i32>} : memref<8x2x196xf32, #tpu.memory_space<vmem>>, vector<1x2x196xf32>,
    %242 = vector.extract_strided_slice %237 {offsets = [32, 0], sizes = [1, 196], strides = [1, 1]} : vector<34x196xf32> to vector<1x196xf32>
    %c7_203 = arith.constant 7 : index
    %c0_204 = arith.constant 0 : index
    %c0_205 = arith.constant 0 : index
    %243 = vector.load %arg4[%c7_203, %c0_204, %c0_205] : memref<8x14x32xf32, #tpu.memory_space<vmem>>, vector<1x14x32xf32>
    %244 = vector.shape_cast %243 : vector<1x14x32xf32> to vector<14x32xf32>
    %c7_206 = arith.constant 7 : index
    %c0_207 = arith.constant 0 : index
    %c0_208 = arith.constant 0 : index
    %245 = vector.load %arg3[%c7_206, %c0_207, %c0_208] : memref<8x32x32xf32, #tpu.memory_space<vmem>>, vector<1x32x32xf32>
    %246 = vector.shape_cast %245 : vector<1x32x32xf32> to vector<32x32xf32>
    %cst_209 = arith.constant dense<0.000000e+00> : vector<14x32xf32>
    %247 = tpu.matmul %244, %246, %cst_209 {dimension_numbers = #tpu.dot_dimension_numbers<[1], [1], [0], [0], [0, 0, 1, 0], [], []>} : vector<14x32xf32>, vector<32x32xf32>, vector<14x32xf32> -> vector<14x32xf32>
    %248 = arith.truncf %247 : vector<14x32xf32> to vector<14x32xbf16>
    %c7_210 = arith.constant 7 : index
    %c0_211 = arith.constant 0 : index
    %c0_212 = arith.constant 0 : index
    %249 = vector.load %arg5[%c7_210, %c0_211, %c0_212] : memref<8x32x196xbf16, #tpu.memory_space<vmem>>, vector<1x32x196xbf16>
    %250 = vector.shape_cast %249 : vector<1x32x196xbf16> to vector<32x196xbf16>
    %cst_213 = arith.constant dense<0.000000e+00> : vector<14x196xf32>
    %251 = tpu.matmul %248, %250, %cst_213 {dimension_numbers = #tpu.dot_dimension_numbers<[1], [0], [0], [1], [0, 0, 1, 1], [], []>} : vector<14x32xbf16>, vector<32x196xbf16>, vector<14x196xf32> -> vector<14x196xf32>
    %252 = arith.mulf %251, %1 : vector<14x196xf32>
    %cst_214 = arith.constant dense<0.000000e+00> : vector<196xf32>
    %253 = vector.multi_reduction <add>, %252, %cst_214 [0] : vector<14x196xf32> to vector<196xf32>
    %254 = vector.shape_cast %253 : vector<196xf32> to vector<1x196xf32>
    %255 = vector.extract_strided_slice %237 {offsets = [0, 0], sizes = [32, 196], strides = [1, 1]} : vector<34x196xf32> to vector<32x196xf32>
    %256 = vector.broadcast %0 : vector<32x1xf32> to vector<32x196xf32>
    %257 = vector.broadcast %254 : vector<1x196xf32> to vector<32x196xf32>
    %258 = arith.mulf %256, %257 : vector<32x196xf32>
    %259 = arith.addf %255, %258 : vector<32x196xf32>
    %cst_215 = arith.constant 0.000000e+00 : f32
    %260 = vector.broadcast %cst_215 : f32 to vector<32x196xf32>
    %261 = arith.maximumf %259, %260 : vector<32x196xf32>
    %c224 = arith.constant 224 : index
    %c0_216 = arith.constant 0 : index
    %262 = vector.load %arg12[%c224, %c0_216] : memref<256x196xf32, #tpu.memory_space<vmem>>, vector<32x196xf32>
    tpu.vector_store %arg12[%c224, %c0_216], %261 {strides = array<i32>} : memref<256x196xf32, #tpu.memory_space<vmem>>, vector<32x196xf32>,
    %c21 = arith.constant 21 : index
    %c0_217 = arith.constant 0 : index
    %263 = vector.load %arg13[%c21, %c0_217] : memref<24x196xf32, #tpu.memory_space<vmem>>, vector<1x196xf32>
    tpu.vector_store %arg13[%c21, %c0_217], %242 {strides = array<i32>} : memref<24x196xf32, #tpu.memory_space<vmem>>, vector<1x196xf32>,
    %c22 = arith.constant 22 : index
    %c0_218 = arith.constant 0 : index
    %264 = vector.load %arg13[%c22, %c0_218] : memref<24x196xf32, #tpu.memory_space<vmem>>, vector<1x196xf32>
    tpu.vector_store %arg13[%c22, %c0_218], %242 {strides = array<i32>} : memref<24x196xf32, #tpu.memory_space<vmem>>, vector<1x196xf32>,
    %c23 = arith.constant 23 : index
    %c0_219 = arith.constant 0 : index
    %265 = vector.load %arg13[%c23, %c0_219] : memref<24x196xf32, #tpu.memory_space<vmem>>, vector<1x196xf32>
    tpu.vector_store %arg13[%c23, %c0_219], %254 {strides = array<i32>} : memref<24x196xf32, #tpu.memory_space<vmem>>, vector<1x196xf32>,
    %c0_220 = arith.constant 0 : index
    %c0_221 = arith.constant 0 : index
    %266 = vector.load %arg12[%c0_220, %c0_221] : memref<256x196xf32, #tpu.memory_space<vmem>>, vector<256x196xf32>
    %267 = arith.truncf %266 : vector<256x196xf32> to vector<256x196xbf16>
    %c0_222 = arith.constant 0 : index
    %c0_223 = arith.constant 0 : index
    %268 = vector.load %arg8[%c0_222, %c0_223] : memref<196x784xbf16, #tpu.memory_space<vmem>>, vector<196x784xbf16>
    %cst_224 = arith.constant dense<0.000000e+00> : vector<256x784xf32>
    %269 = tpu.matmul %267, %268, %cst_224 {dimension_numbers = #tpu.dot_dimension_numbers<[1], [0], [0], [1], [0, 0, 1, 1], [], []>} : vector<256x196xbf16>, vector<196x784xbf16>, vector<256x784xf32> -> vector<256x784xf32>
    %cst_225 = arith.constant 0.000000e+00 : f32
    %270 = vector.broadcast %cst_225 : f32 to vector<256x784xf32>
    %271 = arith.maximumf %269, %270 : vector<256x784xf32>
    %c0_226 = arith.constant 0 : index
    %c0_227 = arith.constant 0 : index
    %272 = vector.load %arg13[%c0_226, %c0_227] : memref<24x196xf32, #tpu.memory_space<vmem>>, vector<24x196xf32>
    %273 = arith.truncf %272 : vector<24x196xf32> to vector<24x196xbf16>
    %c0_228 = arith.constant 0 : index
    %c0_229 = arith.constant 0 : index
    %274 = vector.load %arg9[%c0_228, %c0_229] : memref<196x784xbf16, #tpu.memory_space<vmem>>, vector<196x784xbf16>
    %cst_230 = arith.constant dense<0.000000e+00> : vector<24x784xf32>
    %275 = tpu.matmul %273, %274, %cst_230 {dimension_numbers = #tpu.dot_dimension_numbers<[1], [0], [0], [1], [0, 0, 1, 1], [], []>} : vector<24x196xbf16>, vector<196x784xbf16>, vector<24x784xf32> -> vector<24x784xf32>
    %276 = vector.extract_strided_slice %271 {offsets = [0, 0], sizes = [32, 784], strides = [1, 1]} : vector<256x784xf32> to vector<32x784xf32>
    %c0_231 = arith.constant 0 : index
    %c0_232 = arith.constant 0 : index
    %c0_233 = arith.constant 0 : index
    %277 = vector.load %arg11[%c0_231, %c0_232, %c0_233] : memref<8x35x784xf32, #tpu.memory_space<vmem>>, vector<1x32x784xf32>
    %278 = vector.shape_cast %277 : vector<1x32x784xf32> to vector<32x784xf32>
    %279 = vector.shape_cast %276 : vector<32x784xf32> to vector<1x32x784xf32>
    tpu.vector_store %arg11[%c0_231, %c0_232, %c0_233], %279 {strides = array<i32>} : memref<8x35x784xf32, #tpu.memory_space<vmem>>, vector<1x32x784xf32>,
    %280 = vector.extract_strided_slice %275 {offsets = [0, 0], sizes = [3, 784], strides = [1, 1]} : vector<24x784xf32> to vector<3x784xf32>
    %c0_234 = arith.constant 0 : index
    %c32_235 = arith.constant 32 : index
    %c0_236 = arith.constant 0 : index
    %281 = vector.load %arg11[%c0_234, %c32_235, %c0_236] : memref<8x35x784xf32, #tpu.memory_space<vmem>>, vector<1x3x784xf32>
    %282 = vector.shape_cast %281 : vector<1x3x784xf32> to vector<3x784xf32>
    %283 = vector.shape_cast %280 : vector<3x784xf32> to vector<1x3x784xf32>
    tpu.vector_store %arg11[%c0_234, %c32_235, %c0_236], %283 {strides = array<i32>} : memref<8x35x784xf32, #tpu.memory_space<vmem>>, vector<1x3x784xf32>,
    %284 = vector.extract_strided_slice %271 {offsets = [32, 0], sizes = [32, 784], strides = [1, 1]} : vector<256x784xf32> to vector<32x784xf32>
    %c1_237 = arith.constant 1 : index
    %c0_238 = arith.constant 0 : index
    %c0_239 = arith.constant 0 : index
    %285 = vector.load %arg11[%c1_237, %c0_238, %c0_239] : memref<8x35x784xf32, #tpu.memory_space<vmem>>, vector<1x32x784xf32>
    %286 = vector.shape_cast %285 : vector<1x32x784xf32> to vector<32x784xf32>
    %287 = vector.shape_cast %284 : vector<32x784xf32> to vector<1x32x784xf32>
    tpu.vector_store %arg11[%c1_237, %c0_238, %c0_239], %287 {strides = array<i32>} : memref<8x35x784xf32, #tpu.memory_space<vmem>>, vector<1x32x784xf32>,
    %288 = vector.extract_strided_slice %275 {offsets = [3, 0], sizes = [3, 784], strides = [1, 1]} : vector<24x784xf32> to vector<3x784xf32>
    %c1_240 = arith.constant 1 : index
    %c32_241 = arith.constant 32 : index
    %c0_242 = arith.constant 0 : index
    %289 = vector.load %arg11[%c1_240, %c32_241, %c0_242] : memref<8x35x784xf32, #tpu.memory_space<vmem>>, vector<1x3x784xf32>
    %290 = vector.shape_cast %289 : vector<1x3x784xf32> to vector<3x784xf32>
    %291 = vector.shape_cast %288 : vector<3x784xf32> to vector<1x3x784xf32>
    tpu.vector_store %arg11[%c1_240, %c32_241, %c0_242], %291 {strides = array<i32>} : memref<8x35x784xf32, #tpu.memory_space<vmem>>, vector<1x3x784xf32>,
    %292 = vector.extract_strided_slice %271 {offsets = [64, 0], sizes = [32, 784], strides = [1, 1]} : vector<256x784xf32> to vector<32x784xf32>
    %c2_243 = arith.constant 2 : index
    %c0_244 = arith.constant 0 : index
    %c0_245 = arith.constant 0 : index
    %293 = vector.load %arg11[%c2_243, %c0_244, %c0_245] : memref<8x35x784xf32, #tpu.memory_space<vmem>>, vector<1x32x784xf32>
    %294 = vector.shape_cast %293 : vector<1x32x784xf32> to vector<32x784xf32>
    %295 = vector.shape_cast %292 : vector<32x784xf32> to vector<1x32x784xf32>
    tpu.vector_store %arg11[%c2_243, %c0_244, %c0_245], %295 {strides = array<i32>} : memref<8x35x784xf32, #tpu.memory_space<vmem>>, vector<1x32x784xf32>,
    %296 = vector.extract_strided_slice %275 {offsets = [6, 0], sizes = [3, 784], strides = [1, 1]} : vector<24x784xf32> to vector<3x784xf32>
    %c2_246 = arith.constant 2 : index
    %c32_247 = arith.constant 32 : index
    %c0_248 = arith.constant 0 : index
    %297 = vector.load %arg11[%c2_246, %c32_247, %c0_248] : memref<8x35x784xf32, #tpu.memory_space<vmem>>, vector<1x3x784xf32>
    %298 = vector.shape_cast %297 : vector<1x3x784xf32> to vector<3x784xf32>
    %299 = vector.shape_cast %296 : vector<3x784xf32> to vector<1x3x784xf32>
    tpu.vector_store %arg11[%c2_246, %c32_247, %c0_248], %299 {strides = array<i32>} : memref<8x35x784xf32, #tpu.memory_space<vmem>>, vector<1x3x784xf32>,
    %300 = vector.extract_strided_slice %271 {offsets = [96, 0], sizes = [32, 784], strides = [1, 1]} : vector<256x784xf32> to vector<32x784xf32>
    %c3_249 = arith.constant 3 : index
    %c0_250 = arith.constant 0 : index
    %c0_251 = arith.constant 0 : index
    %301 = vector.load %arg11[%c3_249, %c0_250, %c0_251] : memref<8x35x784xf32, #tpu.memory_space<vmem>>, vector<1x32x784xf32>
    %302 = vector.shape_cast %301 : vector<1x32x784xf32> to vector<32x784xf32>
    %303 = vector.shape_cast %300 : vector<32x784xf32> to vector<1x32x784xf32>
    tpu.vector_store %arg11[%c3_249, %c0_250, %c0_251], %303 {strides = array<i32>} : memref<8x35x784xf32, #tpu.memory_space<vmem>>, vector<1x32x784xf32>,
    %304 = vector.extract_strided_slice %275 {offsets = [9, 0], sizes = [3, 784], strides = [1, 1]} : vector<24x784xf32> to vector<3x784xf32>
    %c3_252 = arith.constant 3 : index
    %c32_253 = arith.constant 32 : index
    %c0_254 = arith.constant 0 : index
    %305 = vector.load %arg11[%c3_252, %c32_253, %c0_254] : memref<8x35x784xf32, #tpu.memory_space<vmem>>, vector<1x3x784xf32>
    %306 = vector.shape_cast %305 : vector<1x3x784xf32> to vector<3x784xf32>
    %307 = vector.shape_cast %304 : vector<3x784xf32> to vector<1x3x784xf32>
    tpu.vector_store %arg11[%c3_252, %c32_253, %c0_254], %307 {strides = array<i32>} : memref<8x35x784xf32, #tpu.memory_space<vmem>>, vector<1x3x784xf32>,
    %308 = vector.extract_strided_slice %271 {offsets = [128, 0], sizes = [32, 784], strides = [1, 1]} : vector<256x784xf32> to vector<32x784xf32>
    %c4_255 = arith.constant 4 : index
    %c0_256 = arith.constant 0 : index
    %c0_257 = arith.constant 0 : index
    %309 = vector.load %arg11[%c4_255, %c0_256, %c0_257] : memref<8x35x784xf32, #tpu.memory_space<vmem>>, vector<1x32x784xf32>
    %310 = vector.shape_cast %309 : vector<1x32x784xf32> to vector<32x784xf32>
    %311 = vector.shape_cast %308 : vector<32x784xf32> to vector<1x32x784xf32>
    tpu.vector_store %arg11[%c4_255, %c0_256, %c0_257], %311 {strides = array<i32>} : memref<8x35x784xf32, #tpu.memory_space<vmem>>, vector<1x32x784xf32>,
    %312 = vector.extract_strided_slice %275 {offsets = [12, 0], sizes = [3, 784], strides = [1, 1]} : vector<24x784xf32> to vector<3x784xf32>
    %c4_258 = arith.constant 4 : index
    %c32_259 = arith.constant 32 : index
    %c0_260 = arith.constant 0 : index
    %313 = vector.load %arg11[%c4_258, %c32_259, %c0_260] : memref<8x35x784xf32, #tpu.memory_space<vmem>>, vector<1x3x784xf32>
    %314 = vector.shape_cast %313 : vector<1x3x784xf32> to vector<3x784xf32>
    %315 = vector.shape_cast %312 : vector<3x784xf32> to vector<1x3x784xf32>
    tpu.vector_store %arg11[%c4_258, %c32_259, %c0_260], %315 {strides = array<i32>} : memref<8x35x784xf32, #tpu.memory_space<vmem>>, vector<1x3x784xf32>,
    %316 = vector.extract_strided_slice %271 {offsets = [160, 0], sizes = [32, 784], strides = [1, 1]} : vector<256x784xf32> to vector<32x784xf32>
    %c5_261 = arith.constant 5 : index
    %c0_262 = arith.constant 0 : index
    %c0_263 = arith.constant 0 : index
    %317 = vector.load %arg11[%c5_261, %c0_262, %c0_263] : memref<8x35x784xf32, #tpu.memory_space<vmem>>, vector<1x32x784xf32>
    %318 = vector.shape_cast %317 : vector<1x32x784xf32> to vector<32x784xf32>
    %319 = vector.shape_cast %316 : vector<32x784xf32> to vector<1x32x784xf32>
    tpu.vector_store %arg11[%c5_261, %c0_262, %c0_263], %319 {strides = array<i32>} : memref<8x35x784xf32, #tpu.memory_space<vmem>>, vector<1x32x784xf32>,
    %320 = vector.extract_strided_slice %275 {offsets = [15, 0], sizes = [3, 784], strides = [1, 1]} : vector<24x784xf32> to vector<3x784xf32>
    %c5_264 = arith.constant 5 : index
    %c32_265 = arith.constant 32 : index
    %c0_266 = arith.constant 0 : index
    %321 = vector.load %arg11[%c5_264, %c32_265, %c0_266] : memref<8x35x784xf32, #tpu.memory_space<vmem>>, vector<1x3x784xf32>
    %322 = vector.shape_cast %321 : vector<1x3x784xf32> to vector<3x784xf32>
    %323 = vector.shape_cast %320 : vector<3x784xf32> to vector<1x3x784xf32>
    tpu.vector_store %arg11[%c5_264, %c32_265, %c0_266], %323 {strides = array<i32>} : memref<8x35x784xf32, #tpu.memory_space<vmem>>, vector<1x3x784xf32>,
    %324 = vector.extract_strided_slice %271 {offsets = [192, 0], sizes = [32, 784], strides = [1, 1]} : vector<256x784xf32> to vector<32x784xf32>
    %c6_267 = arith.constant 6 : index
    %c0_268 = arith.constant 0 : index
    %c0_269 = arith.constant 0 : index
    %325 = vector.load %arg11[%c6_267, %c0_268, %c0_269] : memref<8x35x784xf32, #tpu.memory_space<vmem>>, vector<1x32x784xf32>
    %326 = vector.shape_cast %325 : vector<1x32x784xf32> to vector<32x784xf32>
    %327 = vector.shape_cast %324 : vector<32x784xf32> to vector<1x32x784xf32>
    tpu.vector_store %arg11[%c6_267, %c0_268, %c0_269], %327 {strides = array<i32>} : memref<8x35x784xf32, #tpu.memory_space<vmem>>, vector<1x32x784xf32>,
    %328 = vector.extract_strided_slice %275 {offsets = [18, 0], sizes = [3, 784], strides = [1, 1]} : vector<24x784xf32> to vector<3x784xf32>
    %c6_270 = arith.constant 6 : index
    %c32_271 = arith.constant 32 : index
    %c0_272 = arith.constant 0 : index
    %329 = vector.load %arg11[%c6_270, %c32_271, %c0_272] : memref<8x35x784xf32, #tpu.memory_space<vmem>>, vector<1x3x784xf32>
    %330 = vector.shape_cast %329 : vector<1x3x784xf32> to vector<3x784xf32>
    %331 = vector.shape_cast %328 : vector<3x784xf32> to vector<1x3x784xf32>
    tpu.vector_store %arg11[%c6_270, %c32_271, %c0_272], %331 {strides = array<i32>} : memref<8x35x784xf32, #tpu.memory_space<vmem>>, vector<1x3x784xf32>,
    %332 = vector.extract_strided_slice %271 {offsets = [224, 0], sizes = [32, 784], strides = [1, 1]} : vector<256x784xf32> to vector<32x784xf32>
    %c7_273 = arith.constant 7 : index
    %c0_274 = arith.constant 0 : index
    %c0_275 = arith.constant 0 : index
    %333 = vector.load %arg11[%c7_273, %c0_274, %c0_275] : memref<8x35x784xf32, #tpu.memory_space<vmem>>, vector<1x32x784xf32>
    %334 = vector.shape_cast %333 : vector<1x32x784xf32> to vector<32x784xf32>
    %335 = vector.shape_cast %332 : vector<32x784xf32> to vector<1x32x784xf32>
    tpu.vector_store %arg11[%c7_273, %c0_274, %c0_275], %335 {strides = array<i32>} : memref<8x35x784xf32, #tpu.memory_space<vmem>>, vector<1x32x784xf32>,
    %336 = vector.extract_strided_slice %275 {offsets = [21, 0], sizes = [3, 784], strides = [1, 1]} : vector<24x784xf32> to vector<3x784xf32>
    %c7_276 = arith.constant 7 : index
    %c32_277 = arith.constant 32 : index
    %c0_278 = arith.constant 0 : index
    %337 = vector.load %arg11[%c7_276, %c32_277, %c0_278] : memref<8x35x784xf32, #tpu.memory_space<vmem>>, vector<1x3x784xf32>
    %338 = vector.shape_cast %337 : vector<1x3x784xf32> to vector<3x784xf32>
    %339 = vector.shape_cast %336 : vector<3x784xf32> to vector<1x3x784xf32>
    tpu.vector_store %arg11[%c7_276, %c32_277, %c0_278], %339 {strides = array<i32>} : memref<8x35x784xf32, #tpu.memory_space<vmem>>, vector<1x3x784xf32>,
    return
  }
  func.func @transform_0(%arg0: i32) -> (i32, i32, i32) {
    %c0_i32 = arith.constant 0 : i32
    %c0_i32_0 = arith.constant 0 : i32
    %c0_i32_1 = arith.constant 0 : i32
    return %arg0, %c0_i32, %c0_i32_0 : i32, i32, i32
  }
  func.func @transform_1(%arg0: i32) -> (i32, i32, i32) {
    %c0_i32 = arith.constant 0 : i32
    %c0_i32_0 = arith.constant 0 : i32
    %c0_i32_1 = arith.constant 0 : i32
    return %arg0, %c0_i32, %c0_i32_0 : i32, i32, i32
  }
  func.func @transform_2(%arg0: i32) -> (i32, i32, i32) {
    %c0_i32 = arith.constant 0 : i32
    %c0_i32_0 = arith.constant 0 : i32
    %c0_i32_1 = arith.constant 0 : i32
    return %arg0, %c0_i32, %c0_i32_0 : i32, i32, i32
  }
  func.func @transform_3(%arg0: i32) -> (i32, i32, i32) {
    %c0_i32 = arith.constant 0 : i32
    %c0_i32_0 = arith.constant 0 : i32
    %c0_i32_1 = arith.constant 0 : i32
    return %arg0, %c0_i32, %c0_i32_0 : i32, i32, i32
  }
  func.func @transform_4(%arg0: i32) -> (i32, i32, i32) {
    %c0_i32 = arith.constant 0 : i32
    %c0_i32_0 = arith.constant 0 : i32
    %c0_i32_1 = arith.constant 0 : i32
    return %arg0, %c0_i32, %c0_i32_0 : i32, i32, i32
  }
  func.func @transform_5(%arg0: i32) -> (i32, i32) {
    %c0_i32 = arith.constant 0 : i32
    %c0_i32_0 = arith.constant 0 : i32
    %c0_i32_1 = arith.constant 0 : i32
    return %c0_i32, %c0_i32_0 : i32, i32
  }
  func.func @transform_6(%arg0: i32) -> (i32, i32) {
    %c0_i32 = arith.constant 0 : i32
    %c0_i32_0 = arith.constant 0 : i32
    %c0_i32_1 = arith.constant 0 : i32
    return %c0_i32, %c0_i32_0 : i32, i32
  }
  func.func @transform_7(%arg0: i32) -> (i32, i32) {
    %c0_i32 = arith.constant 0 : i32
    %c0_i32_0 = arith.constant 0 : i32
    %c0_i32_1 = arith.constant 0 : i32
    return %c0_i32, %c0_i32_0 : i32, i32
  }
  func.func @transform_8(%arg0: i32) -> (i32, i32) {
    %c0_i32 = arith.constant 0 : i32
    %c0_i32_0 = arith.constant 0 : i32
    %c0_i32_1 = arith.constant 0 : i32
    return %c0_i32, %c0_i32_0 : i32, i32
  }
  func.func @transform_9(%arg0: i32) -> (i32, i32, i32) {
    %c0_i32 = arith.constant 0 : i32
    %c0_i32_0 = arith.constant 0 : i32
    %c0_i32_1 = arith.constant 0 : i32
    return %arg0, %c0_i32, %c0_i32_0 : i32, i32, i32
  }
  func.func @transform_10(%arg0: i32) -> (i32, i32, i32) {
    %c0_i32 = arith.constant 0 : i32
    %c0_i32_0 = arith.constant 0 : i32
    %c0_i32_1 = arith.constant 0 : i32
    return %arg0, %c0_i32, %c0_i32_0 : i32, i32, i32
  }
}

</mosaic_0001>

<llo_original>
// kernel: tile.9
$region0: #{tile.9}
  %s0 = inlined_call_operand.vmem [shape: f32[14,14,14], index: 0, kind: input, shape index: {}]
  %s1 = inlined_call_operand.vmem [shape: f32[14,196], index: 1, kind: output, shape index: {}]
  %s2 = smov 3
  %v3 = vld [vmem:[%s0] ss:$16 sm:%s2]
  %s4 = smov 12
  %v5 = vld [vmem:[%s0] ss:$16 sm:%s4]
  %vm6 = vcmask 1043458
  %v7 = vsel %vm6, %v5, %v3
  %s8 = smov 48
  %v9 = vld [vmem:[%s0] ss:$16 sm:%s8]
  %vm10 = vcmask 1045508
  %v11 = vsel %vm10, %v9, %v7
  %s12 = smov 192
  %v13 = vld [vmem:[%s0] ss:$16 sm:%s12]
  %vm14 = vcmask 1047558
  %v15 = vsel %vm14, %v13, %v11
  %vm16 = vcmask 113664
  %17 = vst.msk [vmem:[%s1] sm:$0xff] %vm16, %v15
  %s18 = scalar_lea.vmem %s0, 128
  %s19 = smov 3
  %v20 = vld [vmem:[%s18] ss:$16 sm:%s19]
  %s21 = scalar_lea.vmem %s0, 128
  %s22 = smov 12
  %v23 = vld [vmem:[%s21] ss:$16 sm:%s22]
  %vm24 = vcmask 1043458
  %v25 = vsel %vm24, %v23, %v20
  %s26 = scalar_lea.vmem %s0, 128
  %s27 = smov 48
  %v28 = vld [vmem:[%s26] ss:$16 sm:%s27]
  %vm29 = vcmask 1045508
  %v30 = vsel %vm29, %v28, %v25
  %vm31 = vcmask 113664
  %s32 = scalar_lea.vmem %s1, 16
  %33 = vst.msk [vmem:[%s32] sm:$0x3f] %vm31, %v30
  %s34 = scalar_lea.vmem %s0, 9
  %s35 = smov 3
  %v36 = vld [vmem:[%s34] ss:$16 sm:%s35]
  %s37 = scalar_lea.vmem %s0, 9
  %s38 = smov 12
  %v39 = vld [vmem:[%s37] ss:$16 sm:%s38]
  %vm40 = vcmask 1043458
  %v41 = vsel %vm40, %v39, %v36
  %s42 = scalar_lea.vmem %s0, 9
  %s43 = smov 48
  %v44 = vld [vmem:[%s42] ss:$16 sm:%s43]
  %vm45 = vcmask 1045508
  %v46 = vsel %vm45, %v44, %v41
  %s47 = scalar_lea.vmem %s0, 9
  %s48 = smov 192
  %v49 = vld [vmem:[%s47] ss:$16 sm:%s48]
  %vm50 = vcmask 1047558
  %v51 = vsel %vm50, %v49, %v46
  %s52 = scalar_lea.vmem %s0, 9
  %s53 = smov 3
  %v54 = vld [vmem:[%s52] ss:$16 sm:%s53]
  %s55 = scalar_lea.vmem %s0, 9
  %s56 = smov 12
  %v57 = vld [vmem:[%s55] ss:$16 sm:%s56]
  %vm58 = vcmask 1043458
  %v59 = vsel %vm58, %v57, %v54
  %s60 = scalar_lea.vmem %s0, 9
  %s61 = smov 48
  %v62 = vld [vmem:[%s60] ss:$16 sm:%s61]
  %vm63 = vcmask 1045508
  %v64 = vsel %vm63, %v62, %v59
  %s65 = scalar_lea.vmem %s0, 9
  %s66 = smov 192
  %v67 = vld [vmem:[%s65] ss:$16 sm:%s66]
  %vm68 = vcmask 1047558
  %v69 = vsel %vm68, %v67, %v64
  %vm70 = vcmask 15360
  %v71 = vsel %vm70, %v69, %v51
  %72 = vrot.lane.b32.xlu0 %v71, 126
  %v73 = vpop.permute.xlu0 %72
  %vm74 = vcmask 97280
  %s75 = scalar_lea.vmem %s1, 8
  %76 = vst.msk [vmem:[%s75] sm:$0xff] %vm74, %v73
  %vm77 = vcmask 1048560
  %78 = vst.msk [vmem:[%s1] sm:$0xff] %vm77, %v73
  %s79 = scalar_lea.vmem %s0, 137
  %s80 = smov 3
  %v81 = vld [vmem:[%s79] ss:$16 sm:%s80]
  %s82 = scalar_lea.vmem %s0, 137
  %s83 = smov 12
  %v84 = vld [vmem:[%s82] ss:$16 sm:%s83]
  %vm85 = vcmask 1043458
  %v86 = vsel %vm85, %v84, %v81
  %s87 = scalar_lea.vmem %s0, 137
  %s88 = smov 48
  %v89 = vld [vmem:[%s87] ss:$16 sm:%s88]
  %vm90 = vcmask 1045508
  %v91 = vsel %vm90, %v89, %v86
  %s92 = scalar_lea.vmem %s0, 137
  %s93 = smov 3
  %v94 = vld [vmem:[%s92] ss:$16 sm:%s93]
  %s95 = scalar_lea.vmem %s0, 137
  %s96 = smov 12
  %v97 = vld [vmem:[%s95] ss:$16 sm:%s96]
  %vm98 = vcmask 1043458
  %v99 = vsel %vm98, %v97, %v94
  %s100 = scalar_lea.vmem %s0, 137
  %s101 = smov 48
  %v102 = vld [vmem:[%s100] ss:$16 sm:%s101]
  %vm103 = vcmask 1045508
  %v104 = vsel %vm103, %v102, %v99
  %vm105 = vcmask 15360
  %v106 = vsel %vm105, %v104, %v91
  %107 = vrot.lane.b32.xlu0 %v106, 126
  %v108 = vpop.permute.xlu0 %107
  %vm109 = vcmask 97280
  %s110 = scalar_lea.vmem %s1, 24
  %111 = vst.msk [vmem:[%s110] sm:$0x3f] %vm109, %v108
  %vm112 = vcmask 1048560
  %s113 = scalar_lea.vmem %s1, 16
  %114 = vst.msk [vmem:[%s113] sm:$0x3f] %vm112, %v108
  %s115 = scalar_lea.vmem %s0, 8
  %s116 = smov 3
  %v117 = vld [vmem:[%s115] ss:$16 sm:%s116]
  %s118 = scalar_lea.vmem %s0, 8
  %s119 = smov 12
  %v120 = vld [vmem:[%s118] ss:$16 sm:%s119]
  %vm121 = vcmask 1043458
  %v122 = vsel %vm121, %v120, %v117
  %s123 = scalar_lea.vmem %s0, 8
  %s124 = smov 48
  %v125 = vld [vmem:[%s123] ss:$16 sm:%s124]
  %vm126 = vcmask 1045508
  %v127 = vsel %vm126, %v125, %v122
  %s128 = scalar_lea.vmem %s0, 8
  %s129 = smov 192
  %v130 = vld [vmem:[%s128] ss:$16 sm:%s129]
  %vm131 = vcmask 1047558
  %v132 = vsel %vm131, %v130, %v127
  %133 = vrot.lane.b32.xlu0 %v132, 112
  %v134 = vpop.permute.xlu0 %133
  %vm135 = vcmask 1032064
  %136 = vst.msk [vmem:[%s1] sm:$0xff] %vm135, %v134
  %s137 = scalar_lea.vmem %s0, 136
  %s138 = smov 3
  %v139 = vld [vmem:[%s137] ss:$16 sm:%s138]
  %s140 = scalar_lea.vmem %s0, 136
  %s141 = smov 12
  %v142 = vld [vmem:[%s140] ss:$16 sm:%s141]
  %vm143 = vcmask 1043458
  %v144 = vsel %vm143, %v142, %v139
  %s145 = scalar_lea.vmem %s0, 136
  %s146 = smov 48
  %v147 = vld [vmem:[%s145] ss:$16 sm:%s146]
  %vm148 = vcmask 1045508
  %v149 = vsel %vm148, %v147, %v144
  %150 = vrot.lane.b32.xlu0 %v149, 112
  %v151 = vpop.permute.xlu0 %150
  %vm152 = vcmask 1032064
  %s153 = scalar_lea.vmem %s1, 16
  %154 = vst.msk [vmem:[%s153] sm:$0x3f] %vm152, %v151
  %s155 = scalar_lea.vmem %s0, 7
  %s156 = smov 3
  %v157 = vld [vmem:[%s155] ss:$16 sm:%s156]
  %s158 = scalar_lea.vmem %s0, 7
  %s159 = smov 12
  %v160 = vld [vmem:[%s158] ss:$16 sm:%s159]
  %vm161 = vcmask 1043458
  %v162 = vsel %vm161, %v160, %v157
  %s163 = scalar_lea.vmem %s0, 7
  %s164 = smov 48
  %v165 = vld [vmem:[%s163] ss:$16 sm:%s164]
  %vm166 = vcmask 1045508
  %v167 = vsel %vm166, %v165, %v162
  %s168 = scalar_lea.vmem %s0, 7
  %s169 = smov 192
  %v170 = vld [vmem:[%s168] ss:$16 sm:%s169]
  %vm171 = vcmask 1047558
  %v172 = vsel %vm171, %v170, %v167
  %173 = vrot.lane.b32.xlu0 %v172, 98
  %v174 = vpop.permute.xlu0 %173
  %vm175 = vcmask 917264
  %176 = vst.msk [vmem:[%s1] sm:$0xff] %vm175, %v174
  %s177 = scalar_lea.vmem %s0, 135
  %s178 = smov 3
  %v179 = vld [vmem:[%s177] ss:$16 sm:%s178]
  %s180 = scalar_lea.vmem %s0, 135
  %s181 = smov 12
  %v182 = vld [vmem:[%s180] ss:$16 sm:%s181]
  %vm183 = vcmask 1043458
  %v184 = vsel %vm183, %v182, %v179
  %s185 = scalar_lea.vmem %s0, 135
  %s186 = smov 48
  %v187 = vld [vmem:[%s185] ss:$16 sm:%s186]
  %vm188 = vcmask 1045508
  %v189 = vsel %vm188, %v187, %v184
  %190 = vrot.lane.b32.xlu0 %v189, 98
  %v191 = vpop.permute.xlu0 %190
  %vm192 = vcmask 917264
  %s193 = scalar_lea.vmem %s1, 16
  %194 = vst.msk [vmem:[%s193] sm:$0x3f] %vm192, %v191
  %s195 = scalar_lea.vmem %s0, 6
  %s196 = smov 3
  %v197 = vld [vmem:[%s195] ss:$16 sm:%s196]
  %s198 = scalar_lea.vmem %s0, 6
  %s199 = smov 12
  %v200 = vld [vmem:[%s198] ss:$16 sm:%s199]
  %vm201 = vcmask 1043458
  %v202 = vsel %vm201, %v200, %v197
  %s203 = scalar_lea.vmem %s0, 6
  %s204 = smov 48
  %v205 = vld [vmem:[%s203] ss:$16 sm:%s204]
  %vm206 = vcmask 1045508
  %v207 = vsel %vm206, %v205, %v202
  %s208 = scalar_lea.vmem %s0, 6
  %s209 = smov 192
  %v210 = vld [vmem:[%s208] ss:$16 sm:%s209]
  %vm211 = vcmask 1047558
  %v212 = vsel %vm211, %v210, %v207
  %213 = vrot.lane.b32.xlu0 %v212, 84
  %v214 = vpop.permute.xlu0 %213
  %vm215 = vcmask 802464
  %216 = vst.msk [vmem:[%s1] sm:$0xff] %vm215, %v214
  %s217 = scalar_lea.vmem %s0, 134
  %s218 = smov 3
  %v219 = vld [vmem:[%s217] ss:$16 sm:%s218]
  %s220 = scalar_lea.vmem %s0, 134
  %s221 = smov 12
  %v222 = vld [vmem:[%s220] ss:$16 sm:%s221]
  %vm223 = vcmask 1043458
  %v224 = vsel %vm223, %v222, %v219
  %s225 = scalar_lea.vmem %s0, 134
  %s226 = smov 48
  %v227 = vld [vmem:[%s225] ss:$16 sm:%s226]
  %vm228 = vcmask 1045508
  %v229 = vsel %vm228, %v227, %v224
  %230 = vrot.lane.b32.xlu0 %v229, 84
  %v231 = vpop.permute.xlu0 %230
  %vm232 = vcmask 802464
  %s233 = scalar_lea.vmem %s1, 16
  %234 = vst.msk [vmem:[%s233] sm:$0x3f] %vm232, %v231
  %s235 = scalar_lea.vmem %s0, 5
  %s236 = smov 3
  %v237 = vld [vmem:[%s235] ss:$16 sm:%s236]
  %s238 = scalar_lea.vmem %s0, 5
  %s239 = smov 12
  %v240 = vld [vmem:[%s238] ss:$16 sm:%s239]
  %vm241 = vcmask 1043458
  %v242 = vsel %vm241, %v240, %v237
  %s243 = scalar_lea.vmem %s0, 5
  %s244 = smov 48
  %v245 = vld [vmem:[%s243] ss:$16 sm:%s244]
  %vm246 = vcmask 1045508
  %v247 = vsel %vm246, %v245, %v242
  %s248 = scalar_lea.vmem %s0, 5
  %s249 = smov 192
  %v250 = vld [vmem:[%s248] ss:$16 sm:%s249]
  %vm251 = vcmask 1047558
  %v252 = vsel %vm251, %v250, %v247
  %253 = vrot.lane.b32.xlu0 %v252, 70
  %v254 = vpop.permute.xlu0 %253
  %vm255 = vcmask 687664
  %256 = vst.msk [vmem:[%s1] sm:$0xff] %vm255, %v254
  %s257 = scalar_lea.vmem %s0, 133
  %s258 = smov 3
  %v259 = vld [vmem:[%s257] ss:$16 sm:%s258]
  %s260 = scalar_lea.vmem %s0, 133
  %s261 = smov 12
  %v262 = vld [vmem:[%s260] ss:$16 sm:%s261]
  %vm263 = vcmask 1043458
  %v264 = vsel %vm263, %v262, %v259
  %s265 = scalar_lea.vmem %s0, 133
  %s266 = smov 48
  %v267 = vld [vmem:[%s265] ss:$16 sm:%s266]
  %vm268 = vcmask 1045508
  %v269 = vsel %vm268, %v267, %v264
  %270 = vrot.lane.b32.xlu0 %v269, 70
  %v271 = vpop.permute.xlu0 %270
  %vm272 = vcmask 687664
  %s273 = scalar_lea.vmem %s1, 16
  %274 = vst.msk [vmem:[%s273] sm:$0x3f] %vm272, %v271
  %s275 = scalar_lea.vmem %s0, 4
  %s276 = smov 3
  %v277 = vld [vmem:[%s275] ss:$16 sm:%s276]
  %s278 = scalar_lea.vmem %s0, 4
  %s279 = smov 12
  %v280 = vld [vmem:[%s278] ss:$16 sm:%s279]
  %vm281 = vcmask 1043458
  %v282 = vsel %vm281, %v280, %v277
  %s283 = scalar_lea.vmem %s0, 4
  %s284 = smov 48
  %v285 = vld [vmem:[%s283] ss:$16 sm:%s284]
  %vm286 = vcmask 1045508
  %v287 = vsel %vm286, %v285, %v282
  %s288 = scalar_lea.vmem %s0, 4
  %s289 = smov 192
  %v290 = vld [vmem:[%s288] ss:$16 sm:%s289]
  %vm291 = vcmask 1047558
  %v292 = vsel %vm291, %v290, %v287
  %293 = vrot.lane.b32.xlu0 %v292, 56
  %v294 = vpop.permute.xlu0 %293
  %vm295 = vcmask 572864
  %296 = vst.msk [vmem:[%s1] sm:$0xff] %vm295, %v294
  %s297 = scalar_lea.vmem %s0, 132
  %s298 = smov 3
  %v299 = vld [vmem:[%s297] ss:$16 sm:%s298]
  %s300 = scalar_lea.vmem %s0, 132
  %s301 = smov 12
  %v302 = vld [vmem:[%s300] ss:$16 sm:%s301]
  %vm303 = vcmask 1043458
  %v304 = vsel %vm303, %v302, %v299
  %s305 = scalar_lea.vmem %s0, 132
  %s306 = smov 48
  %v307 = vld [vmem:[%s305] ss:$16 sm:%s306]
  %vm308 = vcmask 1045508
  %v309 = vsel %vm308, %v307, %v304
  %310 = vrot.lane.b32.xlu0 %v309, 56
  %v311 = vpop.permute.xlu0 %310
  %vm312 = vcmask 572864
  %s313 = scalar_lea.vmem %s1, 16
  %314 = vst.msk [vmem:[%s313] sm:$0x3f] %vm312, %v311
  %s315 = scalar_lea.vmem %s0, 13
  %s316 = smov 3
  %v317 = vld [vmem:[%s315] ss:$16 sm:%s316]
  %s318 = scalar_lea.vmem %s0, 13
  %s319 = smov 12
  %v320 = vld [vmem:[%s318] ss:$16 sm:%s319]
  %vm321 = vcmask 1043458
  %v322 = vsel %vm321, %v320, %v317
  %s323 = scalar_lea.vmem %s0, 13
  %s324 = smov 48
  %v325 = vld [vmem:[%s323] ss:$16 sm:%s324]
  %vm326 = vcmask 1045508
  %v327 = vsel %vm326, %v325, %v322
  %s328 = scalar_lea.vmem %s0, 13
  %s329 = smov 192
  %v330 = vld [vmem:[%s328] ss:$16 sm:%s329]
  %vm331 = vcmask 1047558
  %v332 = vsel %vm331, %v330, %v327
  %333 = vrot.lane.b32.xlu0 %v332, 54
  %v334 = vpop.permute.xlu0 %333
  %vm335 = vcmask 556464
  %s336 = scalar_lea.vmem %s1, 8
  %337 = vst.msk [vmem:[%s336] sm:$0xff] %vm335, %v334
  %s338 = scalar_lea.vmem %s0, 141
  %s339 = smov 3
  %v340 = vld [vmem:[%s338] ss:$16 sm:%s339]
  %s341 = scalar_lea.vmem %s0, 141
  %s342 = smov 12
  %v343 = vld [vmem:[%s341] ss:$16 sm:%s342]
  %vm344 = vcmask 1043458
  %v345 = vsel %vm344, %v343, %v340
  %s346 = scalar_lea.vmem %s0, 141
  %s347 = smov 48
  %v348 = vld [vmem:[%s346] ss:$16 sm:%s347]
  %vm349 = vcmask 1045508
  %v350 = vsel %vm349, %v348, %v345
  %351 = vrot.lane.b32.xlu0 %v350, 54
  %v352 = vpop.permute.xlu0 %351
  %vm353 = vcmask 556464
  %s354 = scalar_lea.vmem %s1, 24
  %355 = vst.msk [vmem:[%s354] sm:$0x3f] %vm353, %v352
  %s356 = scalar_lea.vmem %s0, 3
  %s357 = smov 3
  %v358 = vld [vmem:[%s356] ss:$16 sm:%s357]
  %s359 = scalar_lea.vmem %s0, 3
  %s360 = smov 12
  %v361 = vld [vmem:[%s359] ss:$16 sm:%s360]
  %vm362 = vcmask 1043458
  %v363 = vsel %vm362, %v361, %v358
  %s364 = scalar_lea.vmem %s0, 3
  %s365 = smov 48
  %v366 = vld [vmem:[%s364] ss:$16 sm:%s365]
  %vm367 = vcmask 1045508
  %v368 = vsel %vm367, %v366, %v363
  %s369 = scalar_lea.vmem %s0, 3
  %s370 = smov 192
  %v371 = vld [vmem:[%s369] ss:$16 sm:%s370]
  %vm372 = vcmask 1047558
  %v373 = vsel %vm372, %v371, %v368
  %374 = vrot.lane.b32.xlu0 %v373, 42
  %v375 = vpop.permute.xlu0 %374
  %vm376 = vcmask 458064
  %377 = vst.msk [vmem:[%s1] sm:$0xff] %vm376, %v375
  %s378 = scalar_lea.vmem %s0, 131
  %s379 = smov 3
  %v380 = vld [vmem:[%s378] ss:$16 sm:%s379]
  %s381 = scalar_lea.vmem %s0, 131
  %s382 = smov 12
  %v383 = vld [vmem:[%s381] ss:$16 sm:%s382]
  %vm384 = vcmask 1043458
  %v385 = vsel %vm384, %v383, %v380
  %s386 = scalar_lea.vmem %s0, 131
  %s387 = smov 48
  %v388 = vld [vmem:[%s386] ss:$16 sm:%s387]
  %vm389 = vcmask 1045508
  %v390 = vsel %vm389, %v388, %v385
  %391 = vrot.lane.b32.xlu0 %v390, 42
  %v392 = vpop.permute.xlu0 %391
  %vm393 = vcmask 458064
  %s394 = scalar_lea.vmem %s1, 16
  %395 = vst.msk [vmem:[%s394] sm:$0x3f] %vm393, %v392
  %s396 = scalar_lea.vmem %s0, 12
  %s397 = smov 3
  %v398 = vld [vmem:[%s396] ss:$16 sm:%s397]
  %s399 = scalar_lea.vmem %s0, 12
  %s400 = smov 12
  %v401 = vld [vmem:[%s399] ss:$16 sm:%s400]
  %vm402 = vcmask 1043458
  %v403 = vsel %vm402, %v401, %v398
  %s404 = scalar_lea.vmem %s0, 12
  %s405 = smov 48
  %v406 = vld [vmem:[%s404] ss:$16 sm:%s405]
  %vm407 = vcmask 1045508
  %v408 = vsel %vm407, %v406, %v403
  %s409 = scalar_lea.vmem %s0, 12
  %s410 = smov 192
  %v411 = vld [vmem:[%s409] ss:$16 sm:%s410]
  %vm412 = vcmask 1047558
  %v413 = vsel %vm412, %v411, %v408
  %414 = vrot.lane.b32.xlu0 %v413, 40
  %v415 = vpop.permute.xlu0 %414
  %vm416 = vcmask 441664
  %s417 = scalar_lea.vmem %s1, 8
  %418 = vst.msk [vmem:[%s417] sm:$0xff] %vm416, %v415
  %s419 = scalar_lea.vmem %s0, 140
  %s420 = smov 3
  %v421 = vld [vmem:[%s419] ss:$16 sm:%s420]
  %s422 = scalar_lea.vmem %s0, 140
  %s423 = smov 12
  %v424 = vld [vmem:[%s422] ss:$16 sm:%s423]
  %vm425 = vcmask 1043458
  %v426 = vsel %vm425, %v424, %v421
  %s427 = scalar_lea.vmem %s0, 140
  %s428 = smov 48
  %v429 = vld [vmem:[%s427] ss:$16 sm:%s428]
  %vm430 = vcmask 1045508
  %v431 = vsel %vm430, %v429, %v426
  %432 = vrot.lane.b32.xlu0 %v431, 40
  %v433 = vpop.permute.xlu0 %432
  %vm434 = vcmask 441664
  %s435 = scalar_lea.vmem %s1, 24
  %436 = vst.msk [vmem:[%s435] sm:$0x3f] %vm434, %v433
  %s437 = scalar_lea.vmem %s0, 2
  %s438 = smov 3
  %v439 = vld [vmem:[%s437] ss:$16 sm:%s438]
  %s440 = scalar_lea.vmem %s0, 2
  %s441 = smov 12
  %v442 = vld [vmem:[%s440] ss:$16 sm:%s441]
  %vm443 = vcmask 1043458
  %v444 = vsel %vm443, %v442, %v439
  %s445 = scalar_lea.vmem %s0, 2
  %s446 = smov 48
  %v447 = vld [vmem:[%s445] ss:$16 sm:%s446]
  %vm448 = vcmask 1045508
  %v449 = vsel %vm448, %v447, %v444
  %s450 = scalar_lea.vmem %s0, 2
  %s451 = smov 192
  %v452 = vld [vmem:[%s450] ss:$16 sm:%s451]
  %vm453 = vcmask 1047558
  %v454 = vsel %vm453, %v452, %v449
  %455 = vrot.lane.b32.xlu0 %v454, 28
  %v456 = vpop.permute.xlu0 %455
  %vm457 = vcmask 343264
  %458 = vst.msk [vmem:[%s1] sm:$0xff] %vm457, %v456
  %s459 = scalar_lea.vmem %s0, 130
  %s460 = smov 3
  %v461 = vld [vmem:[%s459] ss:$16 sm:%s460]
  %s462 = scalar_lea.vmem %s0, 130
  %s463 = smov 12
  %v464 = vld [vmem:[%s462] ss:$16 sm:%s463]
  %vm465 = vcmask 1043458
  %v466 = vsel %vm465, %v464, %v461
  %s467 = scalar_lea.vmem %s0, 130
  %s468 = smov 48
  %v469 = vld [vmem:[%s467] ss:$16 sm:%s468]
  %vm470 = vcmask 1045508
  %v471 = vsel %vm470, %v469, %v466
  %472 = vrot.lane.b32.xlu0 %v471, 28
  %v473 = vpop.permute.xlu0 %472
  %vm474 = vcmask 343264
  %s475 = scalar_lea.vmem %s1, 16
  %476 = vst.msk [vmem:[%s475] sm:$0x3f] %vm474, %v473
  %s477 = scalar_lea.vmem %s0, 11
  %s478 = smov 3
  %v479 = vld [vmem:[%s477] ss:$16 sm:%s478]
  %s480 = scalar_lea.vmem %s0, 11
  %s481 = smov 12
  %v482 = vld [vmem:[%s480] ss:$16 sm:%s481]
  %vm483 = vcmask 1043458
  %v484 = vsel %vm483, %v482, %v479
  %s485 = scalar_lea.vmem %s0, 11
  %s486 = smov 48
  %v487 = vld [vmem:[%s485] ss:$16 sm:%s486]
  %vm488 = vcmask 1045508
  %v489 = vsel %vm488, %v487, %v484
  %s490 = scalar_lea.vmem %s0, 11
  %s491 = smov 192
  %v492 = vld [vmem:[%s490] ss:$16 sm:%s491]
  %vm493 = vcmask 1047558
  %v494 = vsel %vm493, %v492, %v489
  %495 = vrot.lane.b32.xlu0 %v494, 26
  %v496 = vpop.permute.xlu0 %495
  %vm497 = vcmask 326864
  %s498 = scalar_lea.vmem %s1, 8
  %499 = vst.msk [vmem:[%s498] sm:$0xff] %vm497, %v496
  %s500 = scalar_lea.vmem %s0, 139
  %s501 = smov 3
  %v502 = vld [vmem:[%s500] ss:$16 sm:%s501]
  %s503 = scalar_lea.vmem %s0, 139
  %s504 = smov 12
  %v505 = vld [vmem:[%s503] ss:$16 sm:%s504]
  %vm506 = vcmask 1043458
  %v507 = vsel %vm506, %v505, %v502
  %s508 = scalar_lea.vmem %s0, 139
  %s509 = smov 48
  %v510 = vld [vmem:[%s508] ss:$16 sm:%s509]
  %vm511 = vcmask 1045508
  %v512 = vsel %vm511, %v510, %v507
  %513 = vrot.lane.b32.xlu0 %v512, 26
  %v514 = vpop.permute.xlu0 %513
  %vm515 = vcmask 326864
  %s516 = scalar_lea.vmem %s1, 24
  %517 = vst.msk [vmem:[%s516] sm:$0x3f] %vm515, %v514
  %s518 = scalar_lea.vmem %s0, 1
  %s519 = smov 3
  %v520 = vld [vmem:[%s518] ss:$16 sm:%s519]
  %s521 = scalar_lea.vmem %s0, 1
  %s522 = smov 12
  %v523 = vld [vmem:[%s521] ss:$16 sm:%s522]
  %vm524 = vcmask 1043458
  %v525 = vsel %vm524, %v523, %v520
  %s526 = scalar_lea.vmem %s0, 1
  %s527 = smov 48
  %v528 = vld [vmem:[%s526] ss:$16 sm:%s527]
  %vm529 = vcmask 1045508
  %v530 = vsel %vm529, %v528, %v525
  %s531 = scalar_lea.vmem %s0, 1
  %s532 = smov 192
  %v533 = vld [vmem:[%s531] ss:$16 sm:%s532]
  %vm534 = vcmask 1047558
  %v535 = vsel %vm534, %v533, %v530
  %536 = vrot.lane.b32.xlu0 %v535, 14
  %v537 = vpop.permute.xlu0 %536
  %vm538 = vcmask 228464
  %539 = vst.msk [vmem:[%s1] sm:$0xff] %vm538, %v537
  %s540 = scalar_lea.vmem %s0, 129
  %s541 = smov 3
  %v542 = vld [vmem:[%s540] ss:$16 sm:%s541]
  %s543 = scalar_lea.vmem %s0, 129
  %s544 = smov 12
  %v545 = vld [vmem:[%s543] ss:$16 sm:%s544]
  %vm546 = vcmask 1043458
  %v547 = vsel %vm546, %v545, %v542
  %s548 = scalar_lea.vmem %s0, 129
  %s549 = smov 48
  %v550 = vld [vmem:[%s548] ss:$16 sm:%s549]
  %vm551 = vcmask 1045508
  %v552 = vsel %vm551, %v550, %v547
  %553 = vrot.lane.b32.xlu0 %v552, 14
  %v554 = vpop.permute.xlu0 %553
  %vm555 = vcmask 228464
  %s556 = scalar_lea.vmem %s1, 16
  %557 = vst.msk [vmem:[%s556] sm:$0x3f] %vm555, %v554
  %s558 = scalar_lea.vmem %s0, 10
  %s559 = smov 3
  %v560 = vld [vmem:[%s558] ss:$16 sm:%s559]
  %s561 = scalar_lea.vmem %s0, 10
  %s562 = smov 12
  %v563 = vld [vmem:[%s561] ss:$16 sm:%s562]
  %vm564 = vcmask 1043458
  %v565 = vsel %vm564, %v563, %v560
  %s566 = scalar_lea.vmem %s0, 10
  %s567 = smov 48
  %v568 = vld [vmem:[%s566] ss:$16 sm:%s567]
  %vm569 = vcmask 1045508
  %v570 = vsel %vm569, %v568, %v565
  %s571 = scalar_lea.vmem %s0, 10
  %s572 = smov 192
  %v573 = vld [vmem:[%s571] ss:$16 sm:%s572]
  %vm574 = vcmask 1047558
  %v575 = vsel %vm574, %v573, %v570
  %576 = vrot.lane.b32.xlu0 %v575, 12
  %v577 = vpop.permute.xlu0 %576
  %vm578 = vcmask 212064
  %s579 = scalar_lea.vmem %s1, 8
  %580 = vst.msk [vmem:[%s579] sm:$0xff] %vm578, %v577
  %s581 = scalar_lea.vmem %s0, 138
  %s582 = smov 3
  %v583 = vld [vmem:[%s581] ss:$16 sm:%s582]
  %s584 = scalar_lea.vmem %s0, 138
  %s585 = smov 12
  %v586 = vld [vmem:[%s584] ss:$16 sm:%s585]
  %vm587 = vcmask 1043458
  %v588 = vsel %vm587, %v586, %v583
  %s589 = scalar_lea.vmem %s0, 138
  %s590 = smov 48
  %v591 = vld [vmem:[%s589] ss:$16 sm:%s590]
  %vm592 = vcmask 1045508
  %v593 = vsel %vm592, %v591, %v588
  %594 = vrot.lane.b32.xlu0 %v593, 12
  %v595 = vpop.permute.xlu0 %594
  %vm596 = vcmask 212064
  %s597 = scalar_lea.vmem %s1, 24
  %598 = vst.msk [vmem:[%s597] sm:$0x3f] %vm596, %v595

// kernel: _sfm_forward_impl.1
$region0: #{_sfm_forward_impl.1}
  #allocation0 [shape = 'u32[]', space=smem, size = 0x4, offset = 0x4, fixed_abs, tag = 'smem constant byte address 0x4 - core index']
  #allocation1 [shape = 'u32[144,128]{1,0:T(1,128)}', space=vmem, size = 0x12000, scoped, tag = 'internal scratch']
  #allocation2 [shape = 'f32[256,196]{1,0:T(8,128)}', space=vmem, size = 0x40000, scoped, tag = 'scratch operand']
  #allocation3 [shape = 'f32[24,196]{1,0:T(8,128)}', space=vmem, size = 0x6000, scoped, tag = 'scratch operand']
  %s0 = inlined_call_operand.vmem [shape: bf16[16,33,196], index: 0, kind: input, shape index: {}]
  %s1 = inlined_call_operand.vmem [shape: bf16[16,34,33], index: 1, kind: input, shape index: {}]
  %s2 = inlined_call_operand.vmem [shape: f32[16,32,32], index: 2, kind: input, shape index: {}]
  %s3 = inlined_call_operand.vmem [shape: f32[16,14,32], index: 3, kind: input, shape index: {}]
  %s4 = inlined_call_operand.vmem [shape: bf16[16,32,196], index: 4, kind: input, shape index: {}]
  %s5 = inlined_call_operand.vmem [shape: f32[32,1], index: 5, kind: input, shape index: {}]
  %s6 = inlined_call_operand.vmem [shape: f32[14,196], index: 6, kind: input, shape index: {}]
  %s7 = inlined_call_operand.vmem [shape: bf16[196,784], index: 7, kind: input, shape index: {}]
  %s8 = inlined_call_operand.vmem [shape: bf16[196,784], index: 8, kind: input, shape index: {}]
  %s9 = inlined_call_operand.vmem [shape: f32[16,2,196], index: 9, kind: output, shape index: {0}]
  %s10 = inlined_call_operand.vmem [shape: f32[16,35,784], index: 10, kind: output, shape index: {1}]
  %11 = xla_tuple %s9, %s10
  %s12 = sld [smem:[#allocation0]]
  $region77: #{_sfm_forward_impl.1} parent=0
    _
  %s14 = ssub.s32 1, %s12
  %s15 = scalar_select 0, %s14, %s12
  loop: start=0, step=1, limit=4
  $region2: #{_sfm_forward_impl.1} parent=0 // loop_pre_header
    _
  $region3: #{_sfm_forward_impl.1} parent=0 // loop_header
    %s17 = sphi 0, %s21
    %p18 = scmp.ge.s32.totalorder %s17, 4
    %s27 = sphi 0, %s29
    %s30 = sphi 0, %s27
    %s31 = sphi 0, %s30
    %s47 = sphi 0, %s31
    %s53 = sphi 0, %s55
    %s56 = sphi 0, %s53
    %s57 = sphi 0, %s56
    %s73 = sphi 0, %s57
    %s79 = sphi 0, %s81
    %s82 = sphi 0, %s79
    %s83 = sphi 0, %s82
    %s99 = sphi 0, %s83
    %s105 = sphi 0, %s107
    %s108 = sphi 0, %s105
    %s109 = sphi 0, %s108
    %s125 = sphi 0, %s109
    %s131 = sphi 0, %s133
    %s134 = sphi 0, %s131
    %s135 = sphi 0, %s134
    %s151 = sphi 0, %s135
    %s155 = sphi 0, %s155
    %s157 = sphi 0, %s155
    %s158 = sphi 0, %s157
    %s172 = sphi 0, %s158
    %s176 = sphi 0, %s176
    %s178 = sphi 0, %s176
    %s179 = sphi 0, %s178
    %s193 = sphi 0, %s179
    %s197 = sphi 0, %s197
    %s199 = sphi 0, %s197
    %s200 = sphi 0, %s199
    %s214 = sphi 0, %s200
    %s218 = sphi 0, %s218
    %s220 = sphi 0, %s218
    %s221 = sphi 0, %s220
    %s235 = sphi 0, %s221
    %s241 = sphi 0, %s243
    %s244 = sphi 0, %s241
    %s245 = sphi 0, %s244
    %s261 = sphi 0, %s245
    %s267 = sphi 0, %s269
    %s270 = sphi 0, %s267
    %s271 = sphi 0, %s270
    %s287 = sphi 0, %s271
  $region4: #{_sfm_forward_impl.1} parent=0 // loop_header_branch
    %20 = sbr.rel (%p18) target = $region8
  $region5: #{_sfm_forward_impl.1} parent=0 // loop_body
    %s22 = ssub.s32 %s17, 1
    %s23 = ssub.s32 %s17, 2
    %s24 = sadd.s32 %s17, 1
    %s25 = ssub.s32 %s17, %s24
    %p26 = scmp.eq.s32.totalorder %s25, 0
    %s28 = sadd.s32 %s27, 1
    %s29 = scalar_select %p26, %s27, %s28
    %p32 = pneg %p26
    %p33 = scmp.eq.s32.totalorder %s17, 1
    %p34 = por %p32, %p33
    %p35 = scmp.ne.s32.totalorder %s27, %s30
    %p36 = scmp.eq.s32.totalorder %s17, 0
    %p37 = por %p35, %p36
    %p38 = scmp.ne.s32.totalorder %s27, %s30
    %p39 = scmp.eq.s32.totalorder %s22, 1
    %p40 = por %p38, %p39
    %p41 = scmp.ne.s32.totalorder %s30, %s31
    %p42 = scmp.eq.s32.totalorder %s22, 0
    %p43 = por %p41, %p42
    %p44 = scmp.ne.s32.totalorder %s30, %s31
    %p45 = scmp.eq.s32.totalorder %s23, 1
    %p46 = por %p44, %p45
    %p48 = scmp.ne.s32.totalorder %s31, %s47
    %p49 = scmp.eq.s32.totalorder %s23, 0
    %p50 = por %p48, %p49
    %s51 = ssub.s32 %s17, %s24
    %p52 = scmp.eq.s32.totalorder %s51, 0
    %s54 = sadd.s32 %s53, 1
    %s55 = scalar_select %p52, %s53, %s54
    %p58 = pneg %p52
    %p59 = scmp.eq.s32.totalorder %s17, 1
    %p60 = por %p58, %p59
    %p61 = scmp.ne.s32.totalorder %s53, %s56
    %p62 = scmp.eq.s32.totalorder %s17, 0
    %p63 = por %p61, %p62
    %p64 = scmp.ne.s32.totalorder %s53, %s56
    %p65 = scmp.eq.s32.totalorder %s22, 1
    %p66 = por %p64, %p65
    %p67 = scmp.ne.s32.totalorder %s56, %s57
    %p68 = scmp.eq.s32.totalorder %s22, 0
    %p69 = por %p67, %p68
    %p70 = scmp.ne.s32.totalorder %s56, %s57
    %p71 = scmp.eq.s32.totalorder %s23, 1
    %p72 = por %p70, %p71
    %p74 = scmp.ne.s32.totalorder %s57, %s73
    %p75 = scmp.eq.s32.totalorder %s23, 0
    %p76 = por %p74, %p75
    %s77 = ssub.s32 %s17, %s24
    %p78 = scmp.eq.s32.totalorder %s77, 0
    %s80 = sadd.s32 %s79, 1
    %s81 = scalar_select %p78, %s79, %s80
    %p84 = pneg %p78
    %p85 = scmp.eq.s32.totalorder %s17, 1
    %p86 = por %p84, %p85
    %p87 = scmp.ne.s32.totalorder %s79, %s82
    %p88 = scmp.eq.s32.totalorder %s17, 0
    %p89 = por %p87, %p88
    %p90 = scmp.ne.s32.totalorder %s79, %s82
    %p91 = scmp.eq.s32.totalorder %s22, 1
    %p92 = por %p90, %p91
    %p93 = scmp.ne.s32.totalorder %s82, %s83
    %p94 = scmp.eq.s32.totalorder %s22, 0
    %p95 = por %p93, %p94
    %p96 = scmp.ne.s32.totalorder %s82, %s83
    %p97 = scmp.eq.s32.totalorder %s23, 1
    %p98 = por %p96, %p97
    %p100 = scmp.ne.s32.totalorder %s83, %s99
    %p101 = scmp.eq.s32.totalorder %s23, 0
    %p102 = por %p100, %p101
    %s103 = ssub.s32 %s17, %s24
    %p104 = scmp.eq.s32.totalorder %s103, 0
    %s106 = sadd.s32 %s105, 1
    %s107 = scalar_select %p104, %s105, %s106
    %p110 = pneg %p104
    %p111 = scmp.eq.s32.totalorder %s17, 1
    %p112 = por %p110, %p111
    %p113 = scmp.ne.s32.totalorder %s105, %s108
    %p114 = scmp.eq.s32.totalorder %s17, 0
    %p115 = por %p113, %p114
    %p116 = scmp.ne.s32.totalorder %s105, %s108
    %p117 = scmp.eq.s32.totalorder %s22, 1
    %p118 = por %p116, %p117
    %p119 = scmp.ne.s32.totalorder %s108, %s109
    %p120 = scmp.eq.s32.totalorder %s22, 0
    %p121 = por %p119, %p120
    %p122 = scmp.ne.s32.totalorder %s108, %s109
    %p123 = scmp.eq.s32.totalorder %s23, 1
    %p124 = por %p122, %p123
    %p126 = scmp.ne.s32.totalorder %s109, %s125
    %p127 = scmp.eq.s32.totalorder %s23, 0
    %p128 = por %p126, %p127
    %s129 = ssub.s32 %s17, %s24
    %p130 = scmp.eq.s32.totalorder %s129, 0
    %s132 = sadd.s32 %s131, 1
    %s133 = scalar_select %p130, %s131, %s132
    %p136 = pneg %p130
    %p137 = scmp.eq.s32.totalorder %s17, 1
    %p138 = por %p136, %p137
    %p139 = scmp.ne.s32.totalorder %s131, %s134
    %p140 = scmp.eq.s32.totalorder %s17, 0
    %p141 = por %p139, %p140
    %p142 = scmp.ne.s32.totalorder %s131, %s134
    %p143 = scmp.eq.s32.totalorder %s22, 1
    %p144 = por %p142, %p143
    %p145 = scmp.ne.s32.totalorder %s134, %s135
    %p146 = scmp.eq.s32.totalorder %s22, 0
    %p147 = por %p145, %p146
    %p148 = scmp.ne.s32.totalorder %s134, %s135
    %p149 = scmp.eq.s32.totalorder %s23, 1
    %p150 = por %p148, %p149
    %p152 = scmp.ne.s32.totalorder %s135, %s151
    %p153 = scmp.eq.s32.totalorder %s23, 0
    %p154 = por %p152, %p153
    %s156 = sadd.s32 %s155, 1
    %p159 = scmp.eq.s32.totalorder %s17, 1
    %p160 = scmp.ne.s32.totalorder %s155, %s157
    %p161 = scmp.eq.s32.totalorder %s17, 0
    %p162 = por %p160, %p161
    %p163 = scmp.ne.s32.totalorder %s155, %s157
    %p164 = scmp.eq.s32.totalorder %s22, 1
    %p165 = por %p163, %p164
    %p166 = scmp.ne.s32.totalorder %s157, %s158
    %p167 = scmp.eq.s32.totalorder %s22, 0
    %p168 = por %p166, %p167
    %p169 = scmp.ne.s32.totalorder %s157, %s158
    %p170 = scmp.eq.s32.totalorder %s23, 1
    %p171 = por %p169, %p170
    %p173 = scmp.ne.s32.totalorder %s158, %s172
    %p174 = scmp.eq.s32.totalorder %s23, 0
    %p175 = por %p173, %p174
    %s177 = sadd.s32 %s176, 1
    %p180 = scmp.eq.s32.totalorder %s17, 1
    %p181 = scmp.ne.s32.totalorder %s176, %s178
    %p182 = scmp.eq.s32.totalorder %s17, 0
    %p183 = por %p181, %p182
    %p184 = scmp.ne.s32.totalorder %s176, %s178
    %p185 = scmp.eq.s32.totalorder %s22, 1
    %p186 = por %p184, %p185
    %p187 = scmp.ne.s32.totalorder %s178, %s179
    %p188 = scmp.eq.s32.totalorder %s22, 0
    %p189 = por %p187, %p188
    %p190 = scmp.ne.s32.totalorder %s178, %s179
    %p191 = scmp.eq.s32.totalorder %s23, 1
    %p192 = por %p190, %p191
    %p194 = scmp.ne.s32.totalorder %s179, %s193
    %p195 = scmp.eq.s32.totalorder %s23, 0
    %p196 = por %p194, %p195
    %s198 = sadd.s32 %s197, 1
    %p201 = scmp.eq.s32.totalorder %s17, 1
    %p202 = scmp.ne.s32.totalorder %s197, %s199
    %p203 = scmp.eq.s32.totalorder %s17, 0
    %p204 = por %p202, %p203
    %p205 = scmp.ne.s32.totalorder %s197, %s199
    %p206 = scmp.eq.s32.totalorder %s22, 1
    %p207 = por %p205, %p206
    %p208 = scmp.ne.s32.totalorder %s199, %s200
    %p209 = scmp.eq.s32.totalorder %s22, 0
    %p210 = por %p208, %p209
    %p211 = scmp.ne.s32.totalorder %s199, %s200
    %p212 = scmp.eq.s32.totalorder %s23, 1
    %p213 = por %p211, %p212
    %p215 = scmp.ne.s32.totalorder %s200, %s214
    %p216 = scmp.eq.s32.totalorder %s23, 0
    %p217 = por %p215, %p216
    %s219 = sadd.s32 %s218, 1
    %p222 = scmp.eq.s32.totalorder %s17, 1
    %p223 = scmp.ne.s32.totalorder %s218, %s220
    %p224 = scmp.eq.s32.totalorder %s17, 0
    %p225 = por %p223, %p224
    %p226 = scmp.ne.s32.totalorder %s218, %s220
    %p227 = scmp.eq.s32.totalorder %s22, 1
    %p228 = por %p226, %p227
    %p229 = scmp.ne.s32.totalorder %s220, %s221
    %p230 = scmp.eq.s32.totalorder %s22, 0
    %p231 = por %p229, %p230
    %p232 = scmp.ne.s32.totalorder %s220, %s221
    %p233 = scmp.eq.s32.totalorder %s23, 1
    %p234 = por %p232, %p233
    %p236 = scmp.ne.s32.totalorder %s221, %s235
    %p237 = scmp.eq.s32.totalorder %s23, 0
    %p238 = por %p236, %p237
    %s239 = ssub.s32 %s17, %s24
    %p240 = scmp.eq.s32.totalorder %s239, 0
    %s242 = sadd.s32 %s241, 1
    %s243 = scalar_select %p240, %s241, %s242
    %p246 = pneg %p240
    %p247 = scmp.eq.s32.totalorder %s17, 1
    %p248 = por %p246, %p247
    %p249 = scmp.ne.s32.totalorder %s241, %s244
    %p250 = scmp.eq.s32.totalorder %s17, 0
    %p251 = por %p249, %p250
    %p252 = scmp.ne.s32.totalorder %s241, %s244
    %p253 = scmp.eq.s32.totalorder %s22, 1
    %p254 = por %p252, %p253
    %p255 = scmp.ne.s32.totalorder %s244, %s245
    %p256 = scmp.eq.s32.totalorder %s22, 0
    %p257 = por %p255, %p256
    %p258 = scmp.ne.s32.totalorder %s244, %s245
    %p259 = scmp.eq.s32.totalorder %s23, 1
    %p260 = por %p258, %p259
    %p262 = scmp.ne.s32.totalorder %s245, %s261
    %p263 = scmp.eq.s32.totalorder %s23, 0
    %p264 = por %p262, %p263
    %s265 = ssub.s32 %s17, %s24
    %p266 = scmp.eq.s32.totalorder %s265, 0
    %s268 = sadd.s32 %s267, 1
    %s269 = scalar_select %p266, %s267, %s268
    %p272 = pneg %p266
    %p273 = scmp.eq.s32.totalorder %s17, 1
    %p274 = por %p272, %p273
    %p275 = scmp.ne.s32.totalorder %s267, %s270
    %p276 = scmp.eq.s32.totalorder %s17, 0
    %p277 = por %p275, %p276
    %p278 = scmp.ne.s32.totalorder %s267, %s270
    %p279 = scmp.eq.s32.totalorder %s22, 1
    %p280 = por %p278, %p279
    %p281 = scmp.ne.s32.totalorder %s270, %s271
    %p282 = scmp.eq.s32.totalorder %s22, 0
    %p283 = por %p281, %p282
    %p284 = scmp.ne.s32.totalorder %s270, %s271
    %p285 = scmp.eq.s32.totalorder %s23, 1
    %p286 = por %p284, %p285
    %p288 = scmp.ne.s32.totalorder %s271, %s287
    %p289 = scmp.eq.s32.totalorder %s23, 0
    %p290 = por %p288, %p289
    %p291 = scmp.le.s32.totalorder 1, %s17
    %p292 = scmp.lt.s32.totalorder %s17, 3
    %p293 = pnand %p291, %p292
    %p294 = pneg %p293
    // Predicated region
    $region9: #{_sfm_forward_impl.1} parent=5 // pred_check
      _
    $region10: #{_sfm_forward_impl.1} parent=5 // pred_check_branch
      %296 = sbr.rel (%p293) target = $region12
    $region11: #{_sfm_forward_impl.1} parent=5 // pred_region
      %s297 = ssub.s32 %s17, 1
      // Predicated region
      $region13: #{_sfm_forward_impl.1} parent=11 // pred_check
        %p298 = pneg %p168
      $region14: #{_sfm_forward_impl.1} parent=11 // pred_check_branch
        %300 = sbr.rel (%p298) target = $region16
      $region15: #{_sfm_forward_impl.1} parent=11 // pred_region
        _
      $region16: #{_sfm_forward_impl.1} parent=11 // pred_fallthru
        _
      // Predicated region
      $region17: #{_sfm_forward_impl.1} parent=11 // pred_check
        %p301 = pneg %p189
      $region18: #{_sfm_forward_impl.1} parent=11 // pred_check_branch
        %303 = sbr.rel (%p301) target = $region20
      $region19: #{_sfm_forward_impl.1} parent=11 // pred_region
        _
      $region20: #{_sfm_forward_impl.1} parent=11 // pred_fallthru
        _
      // Predicated region
      $region21: #{_sfm_forward_impl.1} parent=11 // pred_check
        %p304 = pneg %p210
      $region22: #{_sfm_forward_impl.1} parent=11 // pred_check_branch
        %306 = sbr.rel (%p304) target = $region24
      $region23: #{_sfm_forward_impl.1} parent=11 // pred_region
        _
      $region24: #{_sfm_forward_impl.1} parent=11 // pred_fallthru
        _
      // Predicated region
      $region25: #{_sfm_forward_impl.1} parent=11 // pred_check
        %p307 = pneg %p231
      $region26: #{_sfm_forward_impl.1} parent=11 // pred_check_branch
        %309 = sbr.rel (%p307) target = $region28
      $region27: #{_sfm_forward_impl.1} parent=11 // pred_region
        _
      $region28: #{_sfm_forward_impl.1} parent=11 // pred_fallthru
        _
    $region12: #{_sfm_forward_impl.1} parent=5 // pred_fallthru
      _
    %p310 = scmp.lt.s32.totalorder %s17, 2
    // Predicated region
    $region29: #{_sfm_forward_impl.1} parent=5 // pred_check
      %p311 = pneg %p310
    $region30: #{_sfm_forward_impl.1} parent=5 // pred_check_branch
      %313 = sbr.rel (%p311) target = $region32
    $region31: #{_sfm_forward_impl.1} parent=5 // pred_region
      // Predicated region
      $region33: #{_sfm_forward_impl.1} parent=31 // pred_check
        %p314 = pneg %p37
      $region34: #{_sfm_forward_impl.1} parent=31 // pred_check_branch
        %316 = sbr.rel (%p314) target = $region36
      $region35: #{_sfm_forward_impl.1} parent=31 // pred_region
        %s317 = smul.u32 8, %s17
        %p318 = scmp.lt.s32.totalorder %s317, 15
        %s319 = scalar_select %p318, %s317, 15
        %s320 = smul.addr %s319, 10
        %s321 = smul.addr %s320, 4
        %s322 = scalar_lea.vmem %s0, %s321
        %s323 = smul.u32 8, %s17
      $region36: #{_sfm_forward_impl.1} parent=31 // pred_fallthru
        _
      // Predicated region
      $region37: #{_sfm_forward_impl.1} parent=31 // pred_check
        %p324 = pneg %p63
      $region38: #{_sfm_forward_impl.1} parent=31 // pred_check_branch
        %326 = sbr.rel (%p324) target = $region40
      $region39: #{_sfm_forward_impl.1} parent=31 // pred_region
        %s327 = smul.u32 8, %s17
        %p328 = scmp.lt.s32.totalorder %s327, 15
        %s329 = scalar_select %p328, %s327, 15
        %s330 = smul.addr %s329, 5
        %s331 = smul.addr %s330, 4
        %s332 = scalar_lea.vmem %s1, %s331
        %s333 = smul.u32 8, %s17
      $region40: #{_sfm_forward_impl.1} parent=31 // pred_fallthru
        _
      // Predicated region
      $region41: #{_sfm_forward_impl.1} parent=31 // pred_check
        %p334 = pneg %p89
      $region42: #{_sfm_forward_impl.1} parent=31 // pred_check_branch
        %336 = sbr.rel (%p334) target = $region44
      $region43: #{_sfm_forward_impl.1} parent=31 // pred_region
        %s337 = smul.u32 8, %s17
        %p338 = scmp.lt.s32.totalorder %s337, 15
        %s339 = scalar_select %p338, %s337, 15
        %s340 = smul.addr %s339, 4
        %s341 = smul.addr %s340, 8
        %s342 = scalar_lea.vmem %s2, %s341
        %s343 = smul.u32 8, %s17
      $region44: #{_sfm_forward_impl.1} parent=31 // pred_fallthru
        _
      // Predicated region
      $region45: #{_sfm_forward_impl.1} parent=31 // pred_check
        %p344 = pneg %p115
      $region46: #{_sfm_forward_impl.1} parent=31 // pred_check_branch
        %346 = sbr.rel (%p344) target = $region48
      $region47: #{_sfm_forward_impl.1} parent=31 // pred_region
        %s347 = smul.u32 8, %s17
        %p348 = scmp.lt.s32.totalorder %s347, 15
        %s349 = scalar_select %p348, %s347, 15
        %s350 = smul.addr %s349, 2
        %s351 = smul.addr %s350, 8
        %s352 = scalar_lea.vmem %s3, %s351
        %s353 = smul.u32 8, %s17
      $region48: #{_sfm_forward_impl.1} parent=31 // pred_fallthru
        _
      // Predicated region
      $region49: #{_sfm_forward_impl.1} parent=31 // pred_check
        %p354 = pneg %p141
      $region50: #{_sfm_forward_impl.1} parent=31 // pred_check_branch
        %356 = sbr.rel (%p354) target = $region52
      $region51: #{_sfm_forward_impl.1} parent=31 // pred_region
        %s357 = smul.u32 8, %s17
        %p358 = scmp.lt.s32.totalorder %s357, 15
        %s359 = scalar_select %p358, %s357, 15
        %s360 = smul.addr %s359, 8
        %s361 = smul.addr %s360, 4
        %s362 = scalar_lea.vmem %s4, %s361
        %s363 = smul.u32 8, %s17
      $region52: #{_sfm_forward_impl.1} parent=31 // pred_fallthru
        _
    $region32: #{_sfm_forward_impl.1} parent=5 // pred_fallthru
      _
    %p364 = scmp.le.s32.totalorder 1, %s17
    %p365 = scmp.lt.s32.totalorder %s17, 3
    %p366 = pnand %p364, %p365
    %p367 = pneg %p366
    // Predicated region
    $region53: #{_sfm_forward_impl.1} parent=5 // pred_check
      _
    $region54: #{_sfm_forward_impl.1} parent=5 // pred_check_branch
      %369 = sbr.rel (%p366) target = $region56
    $region55: #{_sfm_forward_impl.1} parent=5 // pred_region
      %s370 = ssub.s32 %s17, 1
      %s371 = smul.u32 8, %s22
      %p372 = scmp.lt.s32.totalorder %s371, 15
      %s373 = scalar_select %p372, %s371, 15
      %s374 = smul.addr %s373, 10
      %s375 = smul.addr %s374, 4
      %s376 = scalar_lea.vmem %s0, %s375
      %p377 = pneg %p43
      %p378 = pneg %p40
      %s379 = smul.u32 8, %s22
      %p380 = scmp.lt.s32.totalorder %s379, 15
      %s381 = scalar_select %p380, %s379, 15
      %s382 = smul.addr %s381, 5
      %s383 = smul.addr %s382, 4
      %s384 = scalar_lea.vmem %s1, %s383
      %p385 = pneg %p69
      %p386 = pneg %p66
      %s387 = smul.u32 8, %s22
      %p388 = scmp.lt.s32.totalorder %s387, 15
      %s389 = scalar_select %p388, %s387, 15
      %s390 = smul.addr %s389, 4
      %s391 = smul.addr %s390, 8
      %s392 = scalar_lea.vmem %s2, %s391
      %p393 = pneg %p95
      %p394 = pneg %p92
      %s395 = smul.u32 8, %s22
      %p396 = scmp.lt.s32.totalorder %s395, 15
      %s397 = scalar_select %p396, %s395, 15
      %s398 = smul.addr %s397, 2
      %s399 = smul.addr %s398, 8
      %s400 = scalar_lea.vmem %s3, %s399
      %p401 = pneg %p121
      %p402 = pneg %p118
      %s403 = smul.u32 8, %s22
      %p404 = scmp.lt.s32.totalorder %s403, 15
      %s405 = scalar_select %p404, %s403, 15
      %s406 = smul.addr %s405, 8
      %s407 = smul.addr %s406, 4
      %s408 = scalar_lea.vmem %s4, %s407
      %p409 = pneg %p147
      %p410 = pneg %p144
      %p411 = pneg %p168
      %p412 = pneg %p165
      %p413 = pneg %p189
      %p414 = pneg %p186
      %p415 = pneg %p210
      %p416 = pneg %p207
      %p417 = pneg %p231
      %p418 = pneg %p228
      %p419 = pneg %p257
      %p420 = pneg %p254
      %s421 = smul.u32 8, %s22
      %p422 = scmp.lt.s32.totalorder %s421, 15
      %s423 = scalar_select %p422, %s421, 15
      %s424 = smul.addr %s423, 2
      %s425 = smul.addr %s424, 2
      %s426 = scalar_lea.vmem %s9, %s425
      %p427 = pneg %p283
      %p428 = pneg %p280
      %s429 = smul.u32 8, %s22
      %p430 = scmp.lt.s32.totalorder %s429, 15
      %s431 = scalar_select %p430, %s429, 15
      %s432 = smul.addr %s431, 35
      %s433 = smul.addr %s432, 8
      %s434 = scalar_lea.vmem %s10, %s433
      %s435 = smul.u32 8, %s22
      %p436 = scmp.lt.s32.totalorder %s435, 15
      %s437 = scalar_select %p436, %s435, 15
      %s438 = smul.addr %s437, 10
      %s439 = smul.addr %s438, 4
      %s440 = scalar_lea.vmem %s0, %s439
      %s441 = smul.u32 8, %s22
      %s442 = smul.u32 8, %s22
      %p443 = scmp.lt.s32.totalorder %s442, 15
      %s444 = scalar_select %p443, %s442, 15
      %s445 = smul.addr %s444, 5
      %s446 = smul.addr %s445, 4
      %s447 = scalar_lea.vmem %s1, %s446
      %s448 = smul.u32 8, %s22
      %s449 = smul.u32 8, %s22
      %p450 = scmp.lt.s32.totalorder %s449, 15
      %s451 = scalar_select %p450, %s449, 15
      %s452 = smul.addr %s451, 4
      %s453 = smul.addr %s452, 8
      %s454 = scalar_lea.vmem %s2, %s453
      %s455 = smul.u32 8, %s22
      %s456 = smul.u32 8, %s22
      %p457 = scmp.lt.s32.totalorder %s456, 15
      %s458 = scalar_select %p457, %s456, 15
      %s459 = smul.addr %s458, 2
      %s460 = smul.addr %s459, 8
      %s461 = scalar_lea.vmem %s3, %s460
      %s462 = smul.u32 8, %s22
      %s463 = smul.u32 8, %s22
      %p464 = scmp.lt.s32.totalorder %s463, 15
      %s465 = scalar_select %p464, %s463, 15
      %s466 = smul.addr %s465, 8
      %s467 = smul.addr %s466, 4
      %s468 = scalar_lea.vmem %s4, %s467
      %s469 = smul.u32 8, %s22
      %s470 = smul.u32 8, %s22
      %p471 = scmp.lt.s32.totalorder %s470, 15
      %s472 = scalar_select %p471, %s470, 15
      %s473 = smul.addr %s472, 2
      %s474 = smul.addr %s473, 2
      %s475 = scalar_lea.vmem %s9, %s474
      %s476 = smul.u32 8, %s22
      %s477 = smul.u32 8, %s22
      %p478 = scmp.lt.s32.totalorder %s477, 15
      %s479 = scalar_select %p478, %s477, 15
      %s480 = smul.addr %s479, 35
      %s481 = smul.addr %s480, 8
      %s482 = scalar_lea.vmem %s10, %s481
      %s483 = smul.u32 8, %s22
      %v485 = vld [vmem:[%s5] sm:$0xff]
      %v486 = vld [vmem:[%s5 + $0x8] sm:$0xff]
      %v487 = vld [vmem:[%s5 + $0x10] sm:$0xff]
      %v488 = vld [vmem:[%s5 + $0x18] sm:$0xff]
      %v489 = vld [vmem:[%s6] sm:$0xff]
      %v490 = vld [vmem:[%s6 + $0x8] sm:$0xff]
      %v491 = vld [vmem:[%s6 + $0x10] sm:$0x3f]
      %v492 = vld [vmem:[%s6 + $0x18] sm:$0x3f]
      %v493 = vld [vmem:[%s447] sm:$0xf]
      %v494 = vld [vmem:[%s447 + $0x4] sm:$0xf]
      %v495 = vld [vmem:[%s447 + $0x8] sm:$0xf]
      %v496 = vld [vmem:[%s447 + $0xc] sm:$0xf]
      %v497 = vld [vmem:[%s447 + $0x10] sm:$0x1]
      %v498 = vld [vmem:[%s440] sm:$0xff]
      %v499 = vld [vmem:[%s440 + $0x8] sm:$0xff]
      %v500 = vld [vmem:[%s440 + $0x10] sm:$0xff]
      %v501 = vld [vmem:[%s440 + $0x18] sm:$0xff]
      %v502 = vld [vmem:[%s440 + $0x20] sm:$0x11]
      %v508 = vunpack.c.l.b16 %v493
      %v509 = vunpack.c.l.b16 %v494
      %v510 = vunpack.c.l.b16 %v495
      %v511 = vunpack.c.l.b16 %v496
      %v512 = vunpack.c.l.b16 %v497
      %v513 = vpack.c.b16 %v509, %v508
      %v514 = vpack.c.b16 %v511, %v510
      %v515 = vpack.c.b16 %v512, %v512
      %v521 = vunpack.c.l.b16 %v498
      %v522 = vunpack.c.h.b16 %v498
      %v523 = vunpack.c.l.b16 %v499
      %v524 = vunpack.c.h.b16 %v499
      %v525 = vunpack.c.l.b16 %v500
      %v526 = vunpack.c.h.b16 %v500
      %v527 = vunpack.c.l.b16 %v501
      %v528 = vunpack.c.h.b16 %v501
      %v529 = vunpack.c.l.b16 %v502
      %v530 = vunpack.c.h.b16 %v502
      %v531 = vpack.c.b16 %v523, %v521
      %v532 = vpack.c.b16 %v524, %v522
      %v533 = vpack.c.b16 %v527, %v525
      %v534 = vpack.c.b16 %v528, %v526
      %v535 = vpack.c.b16 %v529, %v529
      %v536 = vpack.c.b16 %v530, %v530
      %vm541 = vcmask 269312
      %v543 = vsel %vm541, %v513, 0
      %v546 = vsel %vm541, %v514, 0
      %v549 = vsel %vm541, %v515, 0
      %vm551 = vcmask 1040384
      %v552 = vsel 0, 4294967295, 65535
      %v553 = vsel %vm551, %v552, 0
      %v555 = vand.u32 %v535, %v553
      %v558 = vand.u32 %v536, %v553
      %560 = vmatprep.subr.bf16.mxu0 %v532
      %561 = vmatpush1.bf16.msra.mxu0 %v531
      %562 = vmatprep.subr.bf16.mxu0 %v534
      %563 = vmatpush1.bf16.msra.mxu0 %v533
      %564 = vmatprep.subr.bf16.mxu0 %v558
      %565 = vmatpush1.bf16.msra.mxu0 %v555
      %566 = vmatprep.subr.bf16.mxu0 0
      %567 = vmatpush1.bf16.msra.mxu0 0
      %568 = vmatprep.subr.bf16.mxu0 0
      %569 = vmatpush1.bf16.msra.mxu0 0
      %570 = vmatprep.subr.bf16.mxu0 0
      %571 = vmatpush1.bf16.msra.mxu0 0
      %572 = vmatprep.subr.bf16.mxu0 0
      %573 = vmatpush1.bf16.msra.mxu0 0
      %574 = vmatprep.subr.bf16.mxu0 0
      %575 = vmatpush1.bf16.msra.mxu0 0
      %576 = vmatprep.subr.bf16.mxu0 0
      %577 = vmatpush1.bf16.msra.mxu0 0
      %578 = vmatprep.subr.bf16.mxu0 0
      %579 = vmatpush1.bf16.msra.mxu0 0
      %580 = vmatprep.subr.bf16.mxu0 0
      %581 = vmatpush1.bf16.msra.mxu0 0
      %582 = vmatprep.subr.bf16.mxu0 0
      %583 = vmatpush1.bf16.msra.mxu0 0
      %584 = vmatprep.subr.bf16.mxu0 0
      %585 = vmatpush1.bf16.msra.mxu0 0
      %586 = vmatprep.subr.bf16.mxu0 0
      %587 = vmatpush1.bf16.msra.mxu0 0
      %588 = vmatprep.subr.bf16.mxu0 0
      %589 = vmatpush1.bf16.msra.mxu0 0
      %590 = vmatprep.subr.bf16.mxu0 0
      %591 = vmatpush1.bf16.msra.mxu0 0
      %592 = vmatprep.mubr.bf16.mxu0 0
      %593 = vmatmul.mubr.bf16.gmra.mrb[0].mxu0 %v543
      %v594 = vpop.f32.mrb[0].mxu0
      %v595 = vadd.f32 0.0, %v594
      %v596 = vpop.f32.mrb[0].mxu0
      %v597 = vadd.f32 0.0, %v596
      %v598 = vpop.f32.mrb[0].mxu0
      %v599 = vadd.f32 0.0, %v598
      %v600 = vpop.f32.mrb[0].mxu0
      %v601 = vadd.f32 0.0, %v600
      %602 = vmatprep.mubr.bf16.mxu0 0
      %603 = vmatmul.mubr.bf16.gmra.mrb[0].mxu0 %v546
      %v604 = vpop.f32.mrb[0].mxu0
      %v605 = vadd.f32 0.0, %v604
      %v606 = vpop.f32.mrb[0].mxu0
      %v607 = vadd.f32 0.0, %v606
      %v608 = vpop.f32.mrb[0].mxu0
      %v609 = vadd.f32 0.0, %v608
      %v610 = vpop.f32.mrb[0].mxu0
      %v611 = vadd.f32 0.0, %v610
      %612 = vmatprep.mubr.bf16.mxu0 0
      %613 = vmatmul.mubr.bf16.gmra.mrb[0].mxu0 %v549
      %v614 = vpop.f32.mrb[0].mxu0
      %v615 = vadd.f32 0.0, %v614
      %v616 = vpop.f32.mrb[0].mxu0
      %v617 = vadd.f32 0.0, %v616
      %v618 = vpop.f32.mrb[0].mxu0
      %v619 = vpop.f32.mrb[0].mxu0
      %620 = vdwg.mxu0
      %v623 = vcombine.low %v615, %v617
      %v625 = vunpack.c.l.s4 1983009808
      %v626 = vunpack.c.0.s8 %v625
      %v627 = vlaneseq
      %v628 = vshrl.u32 %v627, 7
      %v629 = vsub.s32 %v626, %v628
      %v630 = vrot.slane %v623, %v629
      %vm632 = vcmask 1041408
      %vm633 = vcmask 551938
      %vm634 = vmor %vm633, %vm632
      %635 = vst.msk [vmem:[%s475] sm:$0xf] %vm634, %v630
      %v636 = vld [vmem:[%s461] sm:$0xff]
      %v637 = vld [vmem:[%s461 + $0x8] sm:$0x3f]
      %v638 = vld [vmem:[%s454] sm:$0xff]
      %v639 = vld [vmem:[%s454 + $0x8] sm:$0xff]
      %v640 = vld [vmem:[%s454 + $0x10] sm:$0xff]
      %v641 = vld [vmem:[%s454 + $0x18] sm:$0xff]
      %vm642 = vcmask 261120
      %v644 = vsel %vm642, %v636, 0
      %v647 = vsel %vm642, %v637, 0
      %v650 = vsel %vm642, %v638, 0
      %v653 = vsel %vm642, %v639, 0
      %v656 = vsel %vm642, %v640, 0
      %v659 = vsel %vm642, %v641, 0
      %661 = vmatprep.subr.mxu0 0.0
      %662 = vmatpush1.xpose.msra.mxu0 %v650
      %663 = vmatprep.subr.mxu0 0.0
      %664 = vmatpush1.xpose.msra.mxu0 %v653
      %665 = vmatprep.subr.mxu0 0.0
      %666 = vmatpush1.xpose.msra.mxu0 %v656
      %667 = vmatprep.subr.mxu0 0.0
      %668 = vmatpush1.xpose.msra.mxu0 %v659
      %669 = vmatprep.subr.mxu0 0.0
      %670 = vmatpush1.xpose.msra.mxu0 0.0
      %671 = vmatprep.subr.mxu0 0.0
      %672 = vmatpush1.xpose.msra.mxu0 0.0
      %673 = vmatprep.subr.mxu0 0.0
      %674 = vmatpush1.xpose.msra.mxu0 0.0
      %675 = vmatprep.subr.mxu0 0.0
      %676 = vmatpush1.xpose.msra.mxu0 0.0
      %677 = vmatprep.subr.mxu0 0.0
      %678 = vmatpush1.xpose.msra.mxu0 0.0
      %679 = vmatprep.subr.mxu0 0.0
      %680 = vmatpush1.xpose.msra.mxu0 0.0
      %681 = vmatprep.subr.mxu0 0.0
      %682 = vmatpush1.xpose.msra.mxu0 0.0
      %683 = vmatprep.subr.mxu0 0.0
      %684 = vmatpush1.xpose.msra.mxu0 0.0
      %685 = vmatprep.subr.mxu0 0.0
      %686 = vmatpush1.xpose.msra.mxu0 0.0
      %687 = vmatprep.subr.mxu0 0.0
      %688 = vmatpush1.xpose.msra.mxu0 0.0
      %689 = vmatprep.subr.mxu0 0.0
      %690 = vmatpush1.xpose.msra.mxu0 0.0
      %691 = vmatprep.subr.mxu0 0.0
      %692 = vmatpush1.xpose.msra.mxu0 0.0
      %693 = vmatprep.subr.mxu0 0.0
      %694 = vmatpush1.xpose.msra.mxu0 0.0
      %695 = vmatprep.subr.mxu0 0.0
      %696 = vmatpush1.xpose.msra.mxu0 0.0
      %697 = vmatprep.subr.mxu0 0.0
      %698 = vmatpush1.xpose.msra.mxu0 0.0
      %699 = vmatprep.subr.mxu0 0.0
      %700 = vmatpush1.xpose.msra.mxu0 0.0
      %701 = vmatprep.subr.mxu0 0.0
      %702 = vmatpush1.xpose.msra.mxu0 0.0
      %703 = vmatprep.subr.mxu0 0.0
      %704 = vmatpush1.xpose.msra.mxu0 0.0
      %705 = vmatprep.subr.mxu0 0.0
      %706 = vmatpush1.xpose.msra.mxu0 0.0
      %707 = vmatprep.subr.mxu0 0.0
      %708 = vmatpush1.xpose.msra.mxu0 0.0
      %709 = vmatprep.subr.mxu0 0.0
      %710 = vmatpush1.xpose.msra.mxu0 0.0
      %711 = vmatprep.subr.mxu0 0.0
      %712 = vmatpush1.xpose.msra.mxu0 0.0
      %713 = vmatprep.subr.mxu0 0.0
      %714 = vmatpush1.xpose.msra.mxu0 0.0
      %715 = vmatprep.subr.mxu0 0.0
      %716 = vmatpush1.xpose.msra.mxu0 0.0
      %717 = vmatprep.subr.mxu0 0.0
      %718 = vmatpush1.xpose.msra.mxu0 0.0
      %719 = vmatprep.subr.mxu0 0.0
      %720 = vmatpush1.xpose.msra.mxu0 0.0
      %721 = vmatprep.subr.mxu0 0.0
      %722 = vmatpush1.xpose.msra.mxu0 0.0
      %723 = vmatprep.subr.mxu0 0.0
      %724 = vmatpush1.xpose.msra.mxu0 0.0
      %725 = vmatprep.mubr.f32.mxu0 0.0
      %726 = vmatmul.mubr.f32.gmra.mrb[0].mxu0 %v644
      %v727 = vpop.f32.mrb[0].mxu0
      %v728 = vadd.f32 0.0, %v727
      %v729 = vpop.f32.mrb[0].mxu0
      %730 = vmatprep.mubr.f32.mxu0 0.0
      %731 = vmatmul.mubr.f32.gmra.mrb[0].mxu0 %v647
      %v732 = vpop.f32.mrb[0].mxu0
      %v733 = vadd.f32 0.0, %v732
      %v734 = vpop.f32.mrb[0].mxu0
      %735 = vdwg.mxu0
      %v736 = vpack.c.bf16 %v733, %v728
      %v737 = vld [vmem:[%s468] sm:$0xff]
      %v738 = vld [vmem:[%s468 + $0x8] sm:$0xff]
      %v739 = vld [vmem:[%s468 + $0x10] sm:$0xff]
      %v740 = vld [vmem:[%s468 + $0x18] sm:$0xff]
      %v745 = vunpack.c.l.b16 %v737
      %v746 = vunpack.c.h.b16 %v737
      %v747 = vunpack.c.l.b16 %v738
      %v748 = vunpack.c.h.b16 %v738
      %v749 = vunpack.c.l.b16 %v739
      %v750 = vunpack.c.h.b16 %v739
      %v751 = vunpack.c.l.b16 %v740
      %v752 = vunpack.c.h.b16 %v740
      %v753 = vpack.c.b16 %v747, %v745
      %v754 = vpack.c.b16 %v748, %v746
      %v755 = vpack.c.b16 %v751, %v749
      %v756 = vpack.c.b16 %v752, %v750
      %v762 = vsel %vm642, %v736, 0
      %764 = vmatprep.subr.bf16.mxu0 %v754
      %765 = vmatpush1.bf16.msra.mxu0 %v753
      %766 = vmatprep.subr.bf16.mxu0 %v756
      %767 = vmatpush1.bf16.msra.mxu0 %v755
      %768 = vmatprep.subr.bf16.mxu0 0
      %769 = vmatpush1.bf16.msra.mxu0 0
      %770 = vmatprep.subr.bf16.mxu0 0
      %771 = vmatpush1.bf16.msra.mxu0 0
      %772 = vmatprep.subr.bf16.mxu0 0
      %773 = vmatpush1.bf16.msra.mxu0 0
      %774 = vmatprep.subr.bf16.mxu0 0
      %775 = vmatpush1.bf16.msra.mxu0 0
      %776 = vmatprep.subr.bf16.mxu0 0
      %777 = vmatpush1.bf16.msra.mxu0 0
      %778 = vmatprep.subr.bf16.mxu0 0
      %779 = vmatpush1.bf16.msra.mxu0 0
      %780 = vmatprep.subr.bf16.mxu0 0
      %781 = vmatpush1.bf16.msra.mxu0 0
      %782 = vmatprep.subr.bf16.mxu0 0
      %783 = vmatpush1.bf16.msra.mxu0 0
      %784 = vmatprep.subr.bf16.mxu0 0
      %785 = vmatpush1.bf16.msra.mxu0 0
      %786 = vmatprep.subr.bf16.mxu0 0
      %787 = vmatpush1.bf16.msra.mxu0 0
      %788 = vmatprep.subr.bf16.mxu0 0
      %789 = vmatpush1.bf16.msra.mxu0 0
      %790 = vmatprep.subr.bf16.mxu0 0
      %791 = vmatpush1.bf16.msra.mxu0 0
      %792 = vmatprep.subr.bf16.mxu0 0
      %793 = vmatpush1.bf16.msra.mxu0 0
      %794 = vmatprep.subr.bf16.mxu0 0
      %795 = vmatpush1.bf16.msra.mxu0 0
      %796 = vmatprep.mubr.bf16.mxu0 0
      %797 = vmatmul.mubr.bf16.gmra.mrb[0].mxu0 %v762
      %v798 = vpop.f32.mrb[0].mxu0
      %v799 = vadd.f32 0.0, %v798
      %v800 = vpop.f32.mrb[0].mxu0
      %v801 = vadd.f32 0.0, %v800
      %v802 = vpop.f32.mrb[0].mxu0
      %v803 = vadd.f32 0.0, %v802
      %v804 = vpop.f32.mrb[0].mxu0
      %v805 = vadd.f32 0.0, %v804
      %806 = vdwg.mxu0
      %v807 = vmul.f32 %v799, %v489
      %v808 = vmul.f32 %v801, %v490
      %v809 = vmul.f32 %v803, %v491
      %v810 = vmul.f32 %v805, %v492
      %vm811 = vcmask 1045504
      %v812 = vsel %vm811, %v809, 0.0
      %v813 = vadd.f32 %v807, %v812
      %v814 = vrot.slane %v813, 4
      %v815 = vadd.f32 %v813, %v814
      %v816 = vrot.slane %v815, 2
      %v817 = vadd.f32 %v815, %v816
      %v818 = vrot.slane %v817, 1
      %v819 = vadd.f32 %v817, %v818
      %vm820 = vcmask 556032
      %v821 = vsel %vm820, %v808, 0.0
      %vm822 = vcmask 553984
      %v823 = vsel %vm822, %v810, 0.0
      %v824 = vadd.f32 %v821, %v823
      %v825 = vrot.slane %v824, 4
      %v826 = vadd.f32 %v824, %v825
      %v827 = vrot.slane %v826, 2
      %v828 = vadd.f32 %v826, %v827
      %v829 = vrot.slane %v828, 1
      %v830 = vadd.f32 %v828, %v829
      %832 = vset.pattern.permute.xlu0 0
      %833 = vperm.xlu0 %832, %v485
      %v834 = vpop.permute.xlu0 %833
      %837 = vset.pattern.permute.xlu0 0
      %838 = vperm.xlu0 %837, %v486
      %v839 = vpop.permute.xlu0 %838
      %842 = vset.pattern.permute.xlu0 0
      %843 = vperm.xlu0 %842, %v487
      %v844 = vpop.permute.xlu0 %843
      %847 = vset.pattern.permute.xlu0 0
      %848 = vperm.xlu0 %847, %v488
      %v849 = vpop.permute.xlu0 %848
      %v851 = vmul.f32 %v834, %v819
      %v852 = vmul.f32 %v834, %v830
      %v853 = vmul.f32 %v839, %v819
      %v854 = vmul.f32 %v839, %v830
      %v855 = vmul.f32 %v844, %v819
      %v856 = vmul.f32 %v844, %v830
      %v857 = vmul.f32 %v849, %v819
      %v858 = vmul.f32 %v849, %v830
      %v859 = vadd.f32 %v595, %v851
      %v860 = vadd.f32 %v597, %v852
      %v861 = vadd.f32 %v599, %v853
      %v862 = vadd.f32 %v601, %v854
      %v863 = vadd.f32 %v605, %v855
      %v864 = vadd.f32 %v607, %v856
      %v865 = vadd.f32 %v609, %v857
      %v866 = vadd.f32 %v611, %v858
      %v867 = vmax.f32 %v859, 0.0
      %v868 = vmax.f32 %v860, 0.0
      %v869 = vmax.f32 %v861, 0.0
      %v870 = vmax.f32 %v862, 0.0
      %v871 = vmax.f32 %v863, 0.0
      %v872 = vmax.f32 %v864, 0.0
      %v873 = vmax.f32 %v865, 0.0
      %v874 = vmax.f32 %v866, 0.0
      %875 = vst [vmem:[#allocation2] sm:$0xff] %v867
      %876 = vst.msk [vmem:[#allocation2 + $0x8] sm:$0xff] %vm820, %v868
      %877 = vst [vmem:[#allocation2 + $0x10] sm:$0xff] %v869
      %878 = vst.msk [vmem:[#allocation2 + $0x18] sm:$0xff] %vm820, %v870
      %879 = vst [vmem:[#allocation2 + $0x20] sm:$0xff] %v871
      %880 = vst.msk [vmem:[#allocation2 + $0x28] sm:$0xff] %vm820, %v872
      %881 = vst [vmem:[#allocation2 + $0x30] sm:$0xff] %v873
      %882 = vst.msk [vmem:[#allocation2 + $0x38] sm:$0xff] %vm820, %v874
      %v884 = vunpack.c.l.s4 1966171168
      %v885 = vunpack.c.0.s8 %v884
      %v886 = vlaneseq
      %v887 = vshrl.u32 %v886, 7
      %v888 = vsub.s32 %v885, %v887
      %v889 = vrot.slane %v623, %v888
      %v891 = vunpack.c.l.s4 1966171168
      %v892 = vunpack.c.0.s8 %v891
      %v893 = vlaneseq
      %v894 = vshrl.u32 %v893, 7
      %v895 = vsub.s32 %v892, %v894
      %v896 = vrot.slane %v889, %v895
      %v898 = vlaneseq
      %vm899 = vcmp.ge.s32.totalorder %v898, 0
      %vm900 = vcmp.lt.s32.totalorder %v898, 196
      %vm901 = vmand %vm899, %vm900
      %902 = vst.msk [vmem:[#allocation3] ss:$8 sm:$0x3] %vm901, %v896
      %903 = vst.msk [vmem:[#allocation3] ss:$8 sm:$0x0] %vm901, %v896
      %s904 = scalar_lea.vmem [#allocation3], 1
      %905 = vst.msk [vmem:[%s904] ss:$8 sm:$0x3] %vm901, %v896
      %906 = vst.msk [vmem:[%s904] ss:$8 sm:$0x0] %vm901, %v896
      %v909 = vcombine.low %v819, %v830
      %v911 = vunpack.c.l.s4 1966171168
      %v912 = vunpack.c.0.s8 %v911
      %v913 = vlaneseq
      %v914 = vshrl.u32 %v913, 7
      %v915 = vsub.s32 %v912, %v914
      %v916 = vrot.slane %v909, %v915
      %v918 = vunpack.c.l.s4 1966171168
      %v919 = vunpack.c.0.s8 %v918
      %v920 = vlaneseq
      %v921 = vshrl.u32 %v920, 7
      %v922 = vsub.s32 %v919, %v921
      %v923 = vrot.slane %v916, %v922
      %s925 = scalar_lea.vmem [#allocation3], 2
      %926 = vst.msk [vmem:[%s925] ss:$8 sm:$0x3] %vm901, %v923
      %927 = vst.msk [vmem:[%s925] ss:$8 sm:$0x0] %vm901, %v923
      %s928 = scalar_lea.vmem %s447, 20
      %v929 = vld [vmem:[%s928] sm:$0xf]
      %v930 = vld [vmem:[%s928 + $0x4] sm:$0xf]
      %v931 = vld [vmem:[%s928 + $0x8] sm:$0xf]
      %v932 = vld [vmem:[%s928 + $0xc] sm:$0xf]
      %v933 = vld [vmem:[%s928 + $0x10] sm:$0x1]
      %s934 = scalar_lea.vmem %s440, 40
      %v935 = vld [vmem:[%s934] sm:$0xff]
      %v936 = vld [vmem:[%s934 + $0x8] sm:$0xff]
      %v937 = vld [vmem:[%s934 + $0x10] sm:$0xff]
      %v938 = vld [vmem:[%s934 + $0x18] sm:$0xff]
      %v939 = vld [vmem:[%s934 + $0x20] sm:$0x11]
      %v945 = vunpack.c.l.b16 %v929
      %v946 = vunpack.c.l.b16 %v930
      %v947 = vunpack.c.l.b16 %v931
      %v948 = vunpack.c.l.b16 %v932
      %v949 = vunpack.c.l.b16 %v933
      %v950 = vpack.c.b16 %v946, %v945
      %v951 = vpack.c.b16 %v948, %v947
      %v952 = vpack.c.b16 %v949, %v949
      %v958 = vunpack.c.l.b16 %v935
      %v959 = vunpack.c.h.b16 %v935
      %v960 = vunpack.c.l.b16 %v936
      %v961 = vunpack.c.h.b16 %v936
      %v962 = vunpack.c.l.b16 %v937
      %v963 = vunpack.c.h.b16 %v937
      %v964 = vunpack.c.l.b16 %v938
      %v965 = vunpack.c.h.b16 %v938
      %v966 = vunpack.c.l.b16 %v939
      %v967 = vunpack.c.h.b16 %v939
      %v968 = vpack.c.b16 %v960, %v958
      %v969 = vpack.c.b16 %v961, %v959
      %v970 = vpack.c.b16 %v964, %v962
      %v971 = vpack.c.b16 %v965, %v963
      %v972 = vpack.c.b16 %v966, %v966
      %v973 = vpack.c.b16 %v967, %v967
      %v979 = vsel %vm541, %v950, 0
      %v982 = vsel %vm541, %v951, 0
      %v985 = vsel %vm541, %v952, 0
      %v988 = vand.u32 %v972, %v553
      %v991 = vand.u32 %v973, %v553
      %993 = vmatprep.subr.bf16.mxu0 %v969
      %994 = vmatpush1.bf16.msra.mxu0 %v968
      %995 = vmatprep.subr.bf16.mxu0 %v971
      %996 = vmatpush1.bf16.msra.mxu0 %v970
      %997 = vmatprep.subr.bf16.mxu0 %v991
      %998 = vmatpush1.bf16.msra.mxu0 %v988
      %999 = vmatprep.subr.bf16.mxu0 0
      %1000 = vmatpush1.bf16.msra.mxu0 0
      %1001 = vmatprep.subr.bf16.mxu0 0
      %1002 = vmatpush1.bf16.msra.mxu0 0
      %1003 = vmatprep.subr.bf16.mxu0 0
      %1004 = vmatpush1.bf16.msra.mxu0 0
      %1005 = vmatprep.subr.bf16.mxu0 0
      %1006 = vmatpush1.bf16.msra.mxu0 0
      %1007 = vmatprep.subr.bf16.mxu0 0
      %1008 = vmatpush1.bf16.msra.mxu0 0
      %1009 = vmatprep.subr.bf16.mxu0 0
      %1010 = vmatpush1.bf16.msra.mxu0 0
      %1011 = vmatprep.subr.bf16.mxu0 0
      %1012 = vmatpush1.bf16.msra.mxu0 0
      %1013 = vmatprep.subr.bf16.mxu0 0
      %1014 = vmatpush1.bf16.msra.mxu0 0
      %1015 = vmatprep.subr.bf16.mxu0 0
      %1016 = vmatpush1.bf16.msra.mxu0 0
      %1017 = vmatprep.subr.bf16.mxu0 0
      %1018 = vmatpush1.bf16.msra.mxu0 0
      %1019 = vmatprep.subr.bf16.mxu0 0
      %1020 = vmatpush1.bf16.msra.mxu0 0
      %1021 = vmatprep.subr.bf16.mxu0 0
      %1022 = vmatpush1.bf16.msra.mxu0 0
      %1023 = vmatprep.subr.bf16.mxu0 0
      %1024 = vmatpush1.bf16.msra.mxu0 0
      %1025 = vmatprep.mubr.bf16.mxu0 0
      %1026 = vmatmul.mubr.bf16.gmra.mrb[0].mxu0 %v979
      %v1027 = vpop.f32.mrb[0].mxu0
      %v1028 = vadd.f32 0.0, %v1027
      %v1029 = vpop.f32.mrb[0].mxu0
      %v1030 = vadd.f32 0.0, %v1029
      %v1031 = vpop.f32.mrb[0].mxu0
      %v1032 = vadd.f32 0.0, %v1031
      %v1033 = vpop.f32.mrb[0].mxu0
      %v1034 = vadd.f32 0.0, %v1033
      %1035 = vmatprep.mubr.bf16.mxu0 0
      %1036 = vmatmul.mubr.bf16.gmra.mrb[0].mxu0 %v982
      %v1037 = vpop.f32.mrb[0].mxu0
      %v1038 = vadd.f32 0.0, %v1037
      %v1039 = vpop.f32.mrb[0].mxu0
      %v1040 = vadd.f32 0.0, %v1039
      %v1041 = vpop.f32.mrb[0].mxu0
      %v1042 = vadd.f32 0.0, %v1041
      %v1043 = vpop.f32.mrb[0].mxu0
      %v1044 = vadd.f32 0.0, %v1043
      %1045 = vmatprep.mubr.bf16.mxu0 0
      %1046 = vmatmul.mubr.bf16.gmra.mrb[0].mxu0 %v985
      %v1047 = vpop.f32.mrb[0].mxu0
      %v1048 = vadd.f32 0.0, %v1047
      %v1049 = vpop.f32.mrb[0].mxu0
      %v1050 = vadd.f32 0.0, %v1049
      %v1051 = vpop.f32.mrb[0].mxu0
      %v1052 = vpop.f32.mrb[0].mxu0
      %1053 = vdwg.mxu0
      %v1056 = vcombine.low %v1048, %v1050
      %v1058 = vunpack.c.l.s4 1983009808
      %v1059 = vunpack.c.0.s8 %v1058
      %v1060 = vlaneseq
      %v1061 = vshrl.u32 %v1060, 7
      %v1062 = vsub.s32 %v1059, %v1061
      %v1063 = vrot.slane %v1056, %v1062
      %s1065 = scalar_lea.vmem %s475, 4
      %1066 = vst.msk [vmem:[%s1065] sm:$0xf] %vm634, %v1063
      %s1067 = scalar_lea.vmem %s461, 16
      %v1068 = vld [vmem:[%s1067] sm:$0xff]
      %v1069 = vld [vmem:[%s1067 + $0x8] sm:$0x3f]
      %s1070 = scalar_lea.vmem %s454, 32
      %v1071 = vld [vmem:[%s1070] sm:$0xff]
      %v1072 = vld [vmem:[%s1070 + $0x8] sm:$0xff]
      %v1073 = vld [vmem:[%s1070 + $0x10] sm:$0xff]
      %v1074 = vld [vmem:[%s1070 + $0x18] sm:$0xff]
      %v1076 = vsel %vm642, %v1068, 0
      %v1079 = vsel %vm642, %v1069, 0
      %v1082 = vsel %vm642, %v1071, 0
      %v1085 = vsel %vm642, %v1072, 0
      %v1088 = vsel %vm642, %v1073, 0
      %v1091 = vsel %vm642, %v1074, 0
      %1093 = vmatprep.subr.mxu0 0.0
      %1094 = vmatpush1.xpose.msra.mxu0 %v1082
      %1095 = vmatprep.subr.mxu0 0.0
      %1096 = vmatpush1.xpose.msra.mxu0 %v1085
      %1097 = vmatprep.subr.mxu0 0.0
      %1098 = vmatpush1.xpose.msra.mxu0 %v1088
      %1099 = vmatprep.subr.mxu0 0.0
      %1100 = vmatpush1.xpose.msra.mxu0 %v1091
      %1101 = vmatprep.subr.mxu0 0.0
      %1102 = vmatpush1.xpose.msra.mxu0 0.0
      %1103 = vmatprep.subr.mxu0 0.0
      %1104 = vmatpush1.xpose.msra.mxu0 0.0
      %1105 = vmatprep.subr.mxu0 0.0
      %1106 = vmatpush1.xpose.msra.mxu0 0.0
      %1107 = vmatprep.subr.mxu0 0.0
      %1108 = vmatpush1.xpose.msra.mxu0 0.0
      %1109 = vmatprep.subr.mxu0 0.0
      %1110 = vmatpush1.xpose.msra.mxu0 0.0
      %1111 = vmatprep.subr.mxu0 0.0
      %1112 = vmatpush1.xpose.msra.mxu0 0.0
      %1113 = vmatprep.subr.mxu0 0.0
      %1114 = vmatpush1.xpose.msra.mxu0 0.0
      %1115 = vmatprep.subr.mxu0 0.0
      %1116 = vmatpush1.xpose.msra.mxu0 0.0
      %1117 = vmatprep.subr.mxu0 0.0
      %1118 = vmatpush1.xpose.msra.mxu0 0.0
      %1119 = vmatprep.subr.mxu0 0.0
      %1120 = vmatpush1.xpose.msra.mxu0 0.0
      %1121 = vmatprep.subr.mxu0 0.0
      %1122 = vmatpush1.xpose.msra.mxu0 0.0
      %1123 = vmatprep.subr.mxu0 0.0
      %1124 = vmatpush1.xpose.msra.mxu0 0.0
      %1125 = vmatprep.subr.mxu0 0.0
      %1126 = vmatpush1.xpose.msra.mxu0 0.0
      %1127 = vmatprep.subr.mxu0 0.0
      %1128 = vmatpush1.xpose.msra.mxu0 0.0
      %1129 = vmatprep.subr.mxu0 0.0
      %1130 = vmatpush1.xpose.msra.mxu0 0.0
      %1131 = vmatprep.subr.mxu0 0.0
      %1132 = vmatpush1.xpose.msra.mxu0 0.0
      %1133 = vmatprep.subr.mxu0 0.0
      %1134 = vmatpush1.xpose.msra.mxu0 0.0
      %1135 = vmatprep.subr.mxu0 0.0
      %1136 = vmatpush1.xpose.msra.mxu0 0.0
      %1137 = vmatprep.subr.mxu0 0.0
      %1138 = vmatpush1.xpose.msra.mxu0 0.0
      %1139 = vmatprep.subr.mxu0 0.0
      %1140 = vmatpush1.xpose.msra.mxu0 0.0
      %1141 = vmatprep.subr.mxu0 0.0
      %1142 = vmatpush1.xpose.msra.mxu0 0.0
      %1143 = vmatprep.subr.mxu0 0.0
      %1144 = vmatpush1.xpose.msra.mxu0 0.0
      %1145 = vmatprep.subr.mxu0 0.0
      %1146 = vmatpush1.xpose.msra.mxu0 0.0
      %1147 = vmatprep.subr.mxu0 0.0
      %1148 = vmatpush1.xpose.msra.mxu0 0.0
      %1149 = vmatprep.subr.mxu0 0.0
      %1150 = vmatpush1.xpose.msra.mxu0 0.0
      %1151 = vmatprep.subr.mxu0 0.0
      %1152 = vmatpush1.xpose.msra.mxu0 0.0
      %1153 = vmatprep.subr.mxu0 0.0
      %1154 = vmatpush1.xpose.msra.mxu0 0.0
      %1155 = vmatprep.subr.mxu0 0.0
      %1156 = vmatpush1.xpose.msra.mxu0 0.0
      %1157 = vmatprep.mubr.f32.mxu0 0.0
      %1158 = vmatmul.mubr.f32.gmra.mrb[0].mxu0 %v1076
      %v1159 = vpop.f32.mrb[0].mxu0
      %v1160 = vadd.f32 0.0, %v1159
      %v1161 = vpop.f32.mrb[0].mxu0
      %1162 = vmatprep.mubr.f32.mxu0 0.0
      %1163 = vmatmul.mubr.f32.gmra.mrb[0].mxu0 %v1079
      %v1164 = vpop.f32.mrb[0].mxu0
      %v1165 = vadd.f32 0.0, %v1164
      %v1166 = vpop.f32.mrb[0].mxu0
      %1167 = vdwg.mxu0
      %v1168 = vpack.c.bf16 %v1165, %v1160
      %s1169 = scalar_lea.vmem %s468, 32
      %v1170 = vld [vmem:[%s1169] sm:$0xff]
      %v1171 = vld [vmem:[%s1169 + $0x8] sm:$0xff]
      %v1172 = vld [vmem:[%s1169 + $0x10] sm:$0xff]
      %v1173 = vld [vmem:[%s1169 + $0x18] sm:$0xff]
      %v1178 = vunpack.c.l.b16 %v1170
      %v1179 = vunpack.c.h.b16 %v1170
      %v1180 = vunpack.c.l.b16 %v1171
      %v1181 = vunpack.c.h.b16 %v1171
      %v1182 = vunpack.c.l.b16 %v1172
      %v1183 = vunpack.c.h.b16 %v1172
      %v1184 = vunpack.c.l.b16 %v1173
      %v1185 = vunpack.c.h.b16 %v1173
      %v1186 = vpack.c.b16 %v1180, %v1178
      %v1187 = vpack.c.b16 %v1181, %v1179
      %v1188 = vpack.c.b16 %v1184, %v1182
      %v1189 = vpack.c.b16 %v1185, %v1183
      %v1195 = vsel %vm642, %v1168, 0
      %1197 = vmatprep.subr.bf16.mxu0 %v1187
      %1198 = vmatpush1.bf16.msra.mxu0 %v1186
      %1199 = vmatprep.subr.bf16.mxu0 %v1189
      %1200 = vmatpush1.bf16.msra.mxu0 %v1188
      %1201 = vmatprep.subr.bf16.mxu0 0
      %1202 = vmatpush1.bf16.msra.mxu0 0
      %1203 = vmatprep.subr.bf16.mxu0 0
      %1204 = vmatpush1.bf16.msra.mxu0 0
      %1205 = vmatprep.subr.bf16.mxu0 0
      %1206 = vmatpush1.bf16.msra.mxu0 0
      %1207 = vmatprep.subr.bf16.mxu0 0
      %1208 = vmatpush1.bf16.msra.mxu0 0
      %1209 = vmatprep.subr.bf16.mxu0 0
      %1210 = vmatpush1.bf16.msra.mxu0 0
      %1211 = vmatprep.subr.bf16.mxu0 0
      %1212 = vmatpush1.bf16.msra.mxu0 0
      %1213 = vmatprep.subr.bf16.mxu0 0
      %1214 = vmatpush1.bf16.msra.mxu0 0
      %1215 = vmatprep.subr.bf16.mxu0 0
      %1216 = vmatpush1.bf16.msra.mxu0 0
      %1217 = vmatprep.subr.bf16.mxu0 0
      %1218 = vmatpush1.bf16.msra.mxu0 0
      %1219 = vmatprep.subr.bf16.mxu0 0
      %1220 = vmatpush1.bf16.msra.mxu0 0
      %1221 = vmatprep.subr.bf16.mxu0 0
      %1222 = vmatpush1.bf16.msra.mxu0 0
      %1223 = vmatprep.subr.bf16.mxu0 0
      %1224 = vmatpush1.bf16.msra.mxu0 0
      %1225 = vmatprep.subr.bf16.mxu0 0
      %1226 = vmatpush1.bf16.msra.mxu0 0
      %1227 = vmatprep.subr.bf16.mxu0 0
      %1228 = vmatpush1.bf16.msra.mxu0 0
      %1229 = vmatprep.mubr.bf16.mxu0 0
      %1230 = vmatmul.mubr.bf16.gmra.mrb[0].mxu0 %v1195
      %v1231 = vpop.f32.mrb[0].mxu0
      %v1232 = vadd.f32 0.0, %v1231
      %v1233 = vpop.f32.mrb[0].mxu0
      %v1234 = vadd.f32 0.0, %v1233
      %v1235 = vpop.f32.mrb[0].mxu0
      %v1236 = vadd.f32 0.0, %v1235
      %v1237 = vpop.f32.mrb[0].mxu0
      %v1238 = vadd.f32 0.0, %v1237
      %1239 = vdwg.mxu0
      %v1240 = vmul.f32 %v1232, %v489
      %v1241 = vmul.f32 %v1234, %v490
      %v1242 = vmul.f32 %v1236, %v491
      %v1243 = vmul.f32 %v1238, %v492
      %v1244 = vsel %vm811, %v1242, 0.0
      %v1245 = vadd.f32 %v1240, %v1244
      %v1246 = vrot.slane %v1245, 4
      %v1247 = vadd.f32 %v1245, %v1246
      %v1248 = vrot.slane %v1247, 2
      %v1249 = vadd.f32 %v1247, %v1248
      %v1250 = vrot.slane %v1249, 1
      %v1251 = vadd.f32 %v1249, %v1250
      %v1252 = vsel %vm820, %v1241, 0.0
      %v1253 = vsel %vm822, %v1243, 0.0
      %v1254 = vadd.f32 %v1252, %v1253
      %v1255 = vrot.slane %v1254, 4
      %v1256 = vadd.f32 %v1254, %v1255
      %v1257 = vrot.slane %v1256, 2
      %v1258 = vadd.f32 %v1256, %v1257
      %v1259 = vrot.slane %v1258, 1
      %v1260 = vadd.f32 %v1258, %v1259
      %v1261 = vmul.f32 %v834, %v1251
      %v1262 = vmul.f32 %v834, %v1260
      %v1263 = vmul.f32 %v839, %v1251
      %v1264 = vmul.f32 %v839, %v1260
      %v1265 = vmul.f32 %v844, %v1251
      %v1266 = vmul.f32 %v844, %v1260
      %v1267 = vmul.f32 %v849, %v1251
      %v1268 = vmul.f32 %v849, %v1260
      %v1269 = vadd.f32 %v1028, %v1261
      %v1270 = vadd.f32 %v1030, %v1262
      %v1271 = vadd.f32 %v1032, %v1263
      %v1272 = vadd.f32 %v1034, %v1264
      %v1273 = vadd.f32 %v1038, %v1265
      %v1274 = vadd.f32 %v1040, %v1266
      %v1275 = vadd.f32 %v1042, %v1267
      %v1276 = vadd.f32 %v1044, %v1268
      %v1277 = vmax.f32 %v1269, 0.0
      %v1278 = vmax.f32 %v1270, 0.0
      %v1279 = vmax.f32 %v1271, 0.0
      %v1280 = vmax.f32 %v1272, 0.0
      %v1281 = vmax.f32 %v1273, 0.0
      %v1282 = vmax.f32 %v1274, 0.0
      %v1283 = vmax.f32 %v1275, 0.0
      %v1284 = vmax.f32 %v1276, 0.0
      %1285 = vst [vmem:[#allocation2 + $0x40] sm:$0xff] %v1277
      %1286 = vst.msk [vmem:[#allocation2 + $0x48] sm:$0xff] %vm820, %v1278
      %1287 = vst [vmem:[#allocation2 + $0x50] sm:$0xff] %v1279
      %1288 = vst.msk [vmem:[#allocation2 + $0x58] sm:$0xff] %vm820, %v1280
      %1289 = vst [vmem:[#allocation2 + $0x60] sm:$0xff] %v1281
      %1290 = vst.msk [vmem:[#allocation2 + $0x68] sm:$0xff] %vm820, %v1282
      %1291 = vst [vmem:[#allocation2 + $0x70] sm:$0xff] %v1283
      %1292 = vst.msk [vmem:[#allocation2 + $0x78] sm:$0xff] %vm820, %v1284
      %v1294 = vunpack.c.l.s4 1966171168
      %v1295 = vunpack.c.0.s8 %v1294
      %v1296 = vlaneseq
      %v1297 = vshrl.u32 %v1296, 7
      %v1298 = vsub.s32 %v1295, %v1297
      %v1299 = vrot.slane %v1056, %v1298
      %v1301 = vunpack.c.l.s4 1966171168
      %v1302 = vunpack.c.0.s8 %v1301
      %v1303 = vlaneseq
      %v1304 = vshrl.u32 %v1303, 7
      %v1305 = vsub.s32 %v1302, %v1304
      %v1306 = vrot.slane %v1299, %v1305
      %s1308 = scalar_lea.vmem [#allocation3], 3
      %1309 = vst.msk [vmem:[%s1308] ss:$8 sm:$0x3] %vm901, %v1306
      %1310 = vst.msk [vmem:[%s1308] ss:$8 sm:$0x0] %vm901, %v1306
      %s1311 = scalar_lea.vmem [#allocation3], 4
      %1312 = vst.msk [vmem:[%s1311] ss:$8 sm:$0x3] %vm901, %v1306
      %1313 = vst.msk [vmem:[%s1311] ss:$8 sm:$0x0] %vm901, %v1306
      %v1316 = vcombine.low %v1251, %v1260
      %v1318 = vunpack.c.l.s4 1966171168
      %v1319 = vunpack.c.0.s8 %v1318
      %v1320 = vlaneseq
      %v1321 = vshrl.u32 %v1320, 7
      %v1322 = vsub.s32 %v1319, %v1321
      %v1323 = vrot.slane %v1316, %v1322
      %v1325 = vunpack.c.l.s4 1966171168
      %v1326 = vunpack.c.0.s8 %v1325
      %v1327 = vlaneseq
      %v1328 = vshrl.u32 %v1327, 7
      %v1329 = vsub.s32 %v1326, %v1328
      %v1330 = vrot.slane %v1323, %v1329
      %s1332 = scalar_lea.vmem [#allocation3], 5
      %1333 = vst.msk [vmem:[%s1332] ss:$8 sm:$0x3] %vm901, %v1330
      %1334 = vst.msk [vmem:[%s1332] ss:$8 sm:$0x0] %vm901, %v1330
      %s1335 = scalar_lea.vmem %s447, 40
      %v1336 = vld [vmem:[%s1335] sm:$0xf]
      %v1337 = vld [vmem:[%s1335 + $0x4] sm:$0xf]
      %v1338 = vld [vmem:[%s1335 + $0x8] sm:$0xf]
      %v1339 = vld [vmem:[%s1335 + $0xc] sm:$0xf]
      %v1340 = vld [vmem:[%s1335 + $0x10] sm:$0x1]
      %s1341 = scalar_lea.vmem %s440, 80
      %v1342 = vld [vmem:[%s1341] sm:$0xff]
      %v1343 = vld [vmem:[%s1341 + $0x8] sm:$0xff]
      %v1344 = vld [vmem:[%s1341 + $0x10] sm:$0xff]
      %v1345 = vld [vmem:[%s1341 + $0x18] sm:$0xff]
      %v1346 = vld [vmem:[%s1341 + $0x20] sm:$0x11]
      %v1352 = vunpack.c.l.b16 %v1336
      %v1353 = vunpack.c.l.b16 %v1337
      %v1354 = vunpack.c.l.b16 %v1338
      %v1355 = vunpack.c.l.b16 %v1339
      %v1356 = vunpack.c.l.b16 %v1340
      %v1357 = vpack.c.b16 %v1353, %v1352
      %v1358 = vpack.c.b16 %v1355, %v1354
      %v1359 = vpack.c.b16 %v1356, %v1356
      %v1365 = vunpack.c.l.b16 %v1342
      %v1366 = vunpack.c.h.b16 %v1342
      %v1367 = vunpack.c.l.b16 %v1343
      %v1368 = vunpack.c.h.b16 %v1343
      %v1369 = vunpack.c.l.b16 %v1344
      %v1370 = vunpack.c.h.b16 %v1344
      %v1371 = vunpack.c.l.b16 %v1345
      %v1372 = vunpack.c.h.b16 %v1345
      %v1373 = vunpack.c.l.b16 %v1346
      %v1374 = vunpack.c.h.b16 %v1346
      %v1375 = vpack.c.b16 %v1367, %v1365
      %v1376 = vpack.c.b16 %v1368, %v1366
      %v1377 = vpack.c.b16 %v1371, %v1369
      %v1378 = vpack.c.b16 %v1372, %v1370
      %v1379 = vpack.c.b16 %v1373, %v1373
      %v1380 = vpack.c.b16 %v1374, %v1374
      %v1386 = vsel %vm541, %v1357, 0
      %v1389 = vsel %vm541, %v1358, 0
      %v1392 = vsel %vm541, %v1359, 0
      %v1395 = vand.u32 %v1379, %v553
      %v1398 = vand.u32 %v1380, %v553
      %1400 = vmatprep.subr.bf16.mxu0 %v1376
      %1401 = vmatpush1.bf16.msra.mxu0 %v1375
      %1402 = vmatprep.subr.bf16.mxu0 %v1378
      %1403 = vmatpush1.bf16.msra.mxu0 %v1377
      %1404 = vmatprep.subr.bf16.mxu0 %v1398
      %1405 = vmatpush1.bf16.msra.mxu0 %v1395
      %1406 = vmatprep.subr.bf16.mxu0 0
      %1407 = vmatpush1.bf16.msra.mxu0 0
      %1408 = vmatprep.subr.bf16.mxu0 0
      %1409 = vmatpush1.bf16.msra.mxu0 0
      %1410 = vmatprep.subr.bf16.mxu0 0
      %1411 = vmatpush1.bf16.msra.mxu0 0
      %1412 = vmatprep.subr.bf16.mxu0 0
      %1413 = vmatpush1.bf16.msra.mxu0 0
      %1414 = vmatprep.subr.bf16.mxu0 0
      %1415 = vmatpush1.bf16.msra.mxu0 0
      %1416 = vmatprep.subr.bf16.mxu0 0
      %1417 = vmatpush1.bf16.msra.mxu0 0
      %1418 = vmatprep.subr.bf16.mxu0 0
      %1419 = vmatpush1.bf16.msra.mxu0 0
      %1420 = vmatprep.subr.bf16.mxu0 0
      %1421 = vmatpush1.bf16.msra.mxu0 0
      %1422 = vmatprep.subr.bf16.mxu0 0
      %1423 = vmatpush1.bf16.msra.mxu0 0
      %1424 = vmatprep.subr.bf16.mxu0 0
      %1425 = vmatpush1.bf16.msra.mxu0 0
      %1426 = vmatprep.subr.bf16.mxu0 0
      %1427 = vmatpush1.bf16.msra.mxu0 0
      %1428 = vmatprep.subr.bf16.mxu0 0
      %1429 = vmatpush1.bf16.msra.mxu0 0
      %1430 = vmatprep.subr.bf16.mxu0 0
      %1431 = vmatpush1.bf16.msra.mxu0 0
      %1432 = vmatprep.mubr.bf16.mxu0 0
      %1433 = vmatmul.mubr.bf16.gmra.mrb[0].mxu0 %v1386
      %v1434 = vpop.f32.mrb[0].mxu0
      %v1435 = vadd.f32 0.0, %v1434
      %v1436 = vpop.f32.mrb[0].mxu0
      %v1437 = vadd.f32 0.0, %v1436
      %v1438 = vpop.f32.mrb[0].mxu0
      %v1439 = vadd.f32 0.0, %v1438
      %v1440 = vpop.f32.mrb[0].mxu0
      %v1441 = vadd.f32 0.0, %v1440
      %1442 = vmatprep.mubr.bf16.mxu0 0
      %1443 = vmatmul.mubr.bf16.gmra.mrb[0].mxu0 %v1389
      %v1444 = vpop.f32.mrb[0].mxu0
      %v1445 = vadd.f32 0.0, %v1444
      %v1446 = vpop.f32.mrb[0].mxu0
      %v1447 = vadd.f32 0.0, %v1446
      %v1448 = vpop.f32.mrb[0].mxu0
      %v1449 = vadd.f32 0.0, %v1448
      %v1450 = vpop.f32.mrb[0].mxu0
      %v1451 = vadd.f32 0.0, %v1450
      %1452 = vmatprep.mubr.bf16.mxu0 0
      %1453 = vmatmul.mubr.bf16.gmra.mrb[0].mxu0 %v1392
      %v1454 = vpop.f32.mrb[0].mxu0
      %v1455 = vadd.f32 0.0, %v1454
      %v1456 = vpop.f32.mrb[0].mxu0
      %v1457 = vadd.f32 0.0, %v1456
      %v1458 = vpop.f32.mrb[0].mxu0
      %v1459 = vpop.f32.mrb[0].mxu0
      %1460 = vdwg.mxu0
      %v1463 = vcombine.low %v1455, %v1457
      %v1465 = vunpack.c.l.s4 1983009808
      %v1466 = vunpack.c.0.s8 %v1465
      %v1467 = vlaneseq
      %v1468 = vshrl.u32 %v1467, 7
      %v1469 = vsub.s32 %v1466, %v1468
      %v1470 = vrot.slane %v1463, %v1469
      %s1472 = scalar_lea.vmem %s475, 8
      %1473 = vst.msk [vmem:[%s1472] sm:$0xf] %vm634, %v1470
      %s1474 = scalar_lea.vmem %s461, 32
      %v1475 = vld [vmem:[%s1474] sm:$0xff]
      %v1476 = vld [vmem:[%s1474 + $0x8] sm:$0x3f]
      %s1477 = scalar_lea.vmem %s454, 64
      %v1478 = vld [vmem:[%s1477] sm:$0xff]
      %v1479 = vld [vmem:[%s1477 + $0x8] sm:$0xff]
      %v1480 = vld [vmem:[%s1477 + $0x10] sm:$0xff]
      %v1481 = vld [vmem:[%s1477 + $0x18] sm:$0xff]
      %v1483 = vsel %vm642, %v1475, 0
      %v1486 = vsel %vm642, %v1476, 0
      %v1489 = vsel %vm642, %v1478, 0
      %v1492 = vsel %vm642, %v1479, 0
      %v1495 = vsel %vm642, %v1480, 0
      %v1498 = vsel %vm642, %v1481, 0
      %1500 = vmatprep.subr.mxu0 0.0
      %1501 = vmatpush1.xpose.msra.mxu0 %v1489
      %1502 = vmatprep.subr.mxu0 0.0
      %1503 = vmatpush1.xpose.msra.mxu0 %v1492
      %1504 = vmatprep.subr.mxu0 0.0
      %1505 = vmatpush1.xpose.msra.mxu0 %v1495
      %1506 = vmatprep.subr.mxu0 0.0
      %1507 = vmatpush1.xpose.msra.mxu0 %v1498
      %1508 = vmatprep.subr.mxu0 0.0
      %1509 = vmatpush1.xpose.msra.mxu0 0.0
      %1510 = vmatprep.subr.mxu0 0.0
      %1511 = vmatpush1.xpose.msra.mxu0 0.0
      %1512 = vmatprep.subr.mxu0 0.0
      %1513 = vmatpush1.xpose.msra.mxu0 0.0
      %1514 = vmatprep.subr.mxu0 0.0
      %1515 = vmatpush1.xpose.msra.mxu0 0.0
      %1516 = vmatprep.subr.mxu0 0.0
      %1517 = vmatpush1.xpose.msra.mxu0 0.0
      %1518 = vmatprep.subr.mxu0 0.0
      %1519 = vmatpush1.xpose.msra.mxu0 0.0
      %1520 = vmatprep.subr.mxu0 0.0
      %1521 = vmatpush1.xpose.msra.mxu0 0.0
      %1522 = vmatprep.subr.mxu0 0.0
      %1523 = vmatpush1.xpose.msra.mxu0 0.0
      %1524 = vmatprep.subr.mxu0 0.0
      %1525 = vmatpush1.xpose.msra.mxu0 0.0
      %1526 = vmatprep.subr.mxu0 0.0
      %1527 = vmatpush1.xpose.msra.mxu0 0.0
      %1528 = vmatprep.subr.mxu0 0.0
      %1529 = vmatpush1.xpose.msra.mxu0 0.0
      %1530 = vmatprep.subr.mxu0 0.0
      %1531 = vmatpush1.xpose.msra.mxu0 0.0
      %1532 = vmatprep.subr.mxu0 0.0
      %1533 = vmatpush1.xpose.msra.mxu0 0.0
      %1534 = vmatprep.subr.mxu0 0.0
      %1535 = vmatpush1.xpose.msra.mxu0 0.0
      %1536 = vmatprep.subr.mxu0 0.0
      %1537 = vmatpush1.xpose.msra.mxu0 0.0
      %1538 = vmatprep.subr.mxu0 0.0
      %1539 = vmatpush1.xpose.msra.mxu0 0.0
      %1540 = vmatprep.subr.mxu0 0.0
      %1541 = vmatpush1.xpose.msra.mxu0 0.0
      %1542 = vmatprep.subr.mxu0 0.0
      %1543 = vmatpush1.xpose.msra.mxu0 0.0
      %1544 = vmatprep.subr.mxu0 0.0
      %1545 = vmatpush1.xpose.msra.mxu0 0.0
      %1546 = vmatprep.subr.mxu0 0.0
      %1547 = vmatpush1.xpose.msra.mxu0 0.0
      %1548 = vmatprep.subr.mxu0 0.0
      %1549 = vmatpush1.xpose.msra.mxu0 0.0
      %1550 = vmatprep.subr.mxu0 0.0
      %1551 = vmatpush1.xpose.msra.mxu0 0.0
      %1552 = vmatprep.subr.mxu0 0.0
      %1553 = vmatpush1.xpose.msra.mxu0 0.0
      %1554 = vmatprep.subr.mxu0 0.0
      %1555 = vmatpush1.xpose.msra.mxu0 0.0
      %1556 = vmatprep.subr.mxu0 0.0
      %1557 = vmatpush1.xpose.msra.mxu0 0.0
      %1558 = vmatprep.subr.mxu0 0.0
      %1559 = vmatpush1.xpose.msra.mxu0 0.0
      %1560 = vmatprep.subr.mxu0 0.0
      %1561 = vmatpush1.xpose.msra.mxu0 0.0
      %1562 = vmatprep.subr.mxu0 0.0
      %1563 = vmatpush1.xpose.msra.mxu0 0.0
      %1564 = vmatprep.mubr.f32.mxu0 0.0
      %1565 = vmatmul.mubr.f32.gmra.mrb[0].mxu0 %v1483
      %v1566 = vpop.f32.mrb[0].mxu0
      %v1567 = vadd.f32 0.0, %v1566
      %v1568 = vpop.f32.mrb[0].mxu0
      %1569 = vmatprep.mubr.f32.mxu0 0.0
      %1570 = vmatmul.mubr.f32.gmra.mrb[0].mxu0 %v1486
      %v1571 = vpop.f32.mrb[0].mxu0
      %v1572 = vadd.f32 0.0, %v1571
      %v1573 = vpop.f32.mrb[0].mxu0
      %1574 = vdwg.mxu0
      %v1575 = vpack.c.bf16 %v1572, %v1567
      %s1576 = scalar_lea.vmem %s468, 64
      %v1577 = vld [vmem:[%s1576] sm:$0xff]
      %v1578 = vld [vmem:[%s1576 + $0x8] sm:$0xff]
      %v1579 = vld [vmem:[%s1576 + $0x10] sm:$0xff]
      %v1580 = vld [vmem:[%s1576 + $0x18] sm:$0xff]
      %v1585 = vunpack.c.l.b16 %v1577
      %v1586 = vunpack.c.h.b16 %v1577
      %v1587 = vunpack.c.l.b16 %v1578
      %v1588 = vunpack.c.h.b16 %v1578
      %v1589 = vunpack.c.l.b16 %v1579
      %v1590 = vunpack.c.h.b16 %v1579
      %v1591 = vunpack.c.l.b16 %v1580
      %v1592 = vunpack.c.h.b16 %v1580
      %v1593 = vpack.c.b16 %v1587, %v1585
      %v1594 = vpack.c.b16 %v1588, %v1586
      %v1595 = vpack.c.b16 %v1591, %v1589
      %v1596 = vpack.c.b16 %v1592, %v1590
      %v1602 = vsel %vm642, %v1575, 0
      %1604 = vmatprep.subr.bf16.mxu0 %v1594
      %1605 = vmatpush1.bf16.msra.mxu0 %v1593
      %1606 = vmatprep.subr.bf16.mxu0 %v1596
      %1607 = vmatpush1.bf16.msra.mxu0 %v1595
      %1608 = vmatprep.subr.bf16.mxu0 0
      %1609 = vmatpush1.bf16.msra.mxu0 0
      %1610 = vmatprep.subr.bf16.mxu0 0
      %1611 = vmatpush1.bf16.msra.mxu0 0
      %1612 = vmatprep.subr.bf16.mxu0 0
      %1613 = vmatpush1.bf16.msra.mxu0 0
      %1614 = vmatprep.subr.bf16.mxu0 0
      %1615 = vmatpush1.bf16.msra.mxu0 0
      %1616 = vmatprep.subr.bf16.mxu0 0
      %1617 = vmatpush1.bf16.msra.mxu0 0
      %1618 = vmatprep.subr.bf16.mxu0 0
      %1619 = vmatpush1.bf16.msra.mxu0 0
      %1620 = vmatprep.subr.bf16.mxu0 0
      %1621 = vmatpush1.bf16.msra.mxu0 0
      %1622 = vmatprep.subr.bf16.mxu0 0
      %1623 = vmatpush1.bf16.msra.mxu0 0
      %1624 = vmatprep.subr.bf16.mxu0 0
      %1625 = vmatpush1.bf16.msra.mxu0 0
      %1626 = vmatprep.subr.bf16.mxu0 0
      %1627 = vmatpush1.bf16.msra.mxu0 0
      %1628 = vmatprep.subr.bf16.mxu0 0
      %1629 = vmatpush1.bf16.msra.mxu0 0
      %1630 = vmatprep.subr.bf16.mxu0 0
      %1631 = vmatpush1.bf16.msra.mxu0 0
      %1632 = vmatprep.subr.bf16.mxu0 0
      %1633 = vmatpush1.bf16.msra.mxu0 0
      %1634 = vmatprep.subr.bf16.mxu0 0
      %1635 = vmatpush1.bf16.msra.mxu0 0
      %1636 = vmatprep.mubr.bf16.mxu0 0
      %1637 = vmatmul.mubr.bf16.gmra.mrb[0].mxu0 %v1602
      %v1638 = vpop.f32.mrb[0].mxu0
      %v1639 = vadd.f32 0.0, %v1638
      %v1640 = vpop.f32.mrb[0].mxu0
      %v1641 = vadd.f32 0.0, %v1640
      %v1642 = vpop.f32.mrb[0].mxu0
      %v1643 = vadd.f32 0.0, %v1642
      %v1644 = vpop.f32.mrb[0].mxu0
      %v1645 = vadd.f32 0.0, %v1644
      %1646 = vdwg.mxu0
      %v1647 = vmul.f32 %v1639, %v489
      %v1648 = vmul.f32 %v1641, %v490
      %v1649 = vmul.f32 %v1643, %v491
      %v1650 = vmul.f32 %v1645, %v492
      %v1651 = vsel %vm811, %v1649, 0.0
      %v1652 = vadd.f32 %v1647, %v1651
      %v1653 = vrot.slane %v1652, 4
      %v1654 = vadd.f32 %v1652, %v1653
      %v1655 = vrot.slane %v1654, 2
      %v1656 = vadd.f32 %v1654, %v1655
      %v1657 = vrot.slane %v1656, 1
      %v1658 = vadd.f32 %v1656, %v1657
      %v1659 = vsel %vm820, %v1648, 0.0
      %v1660 = vsel %vm822, %v1650, 0.0
      %v1661 = vadd.f32 %v1659, %v1660
      %v1662 = vrot.slane %v1661, 4
      %v1663 = vadd.f32 %v1661, %v1662
      %v1664 = vrot.slane %v1663, 2
      %v1665 = vadd.f32 %v1663, %v1664
      %v1666 = vrot.slane %v1665, 1
      %v1667 = vadd.f32 %v1665, %v1666
      %v1668 = vmul.f32 %v834, %v1658
      %v1669 = vmul.f32 %v834, %v1667
      %v1670 = vmul.f32 %v839, %v1658
      %v1671 = vmul.f32 %v839, %v1667
      %v1672 = vmul.f32 %v844, %v1658
      %v1673 = vmul.f32 %v844, %v1667
      %v1674 = vmul.f32 %v849, %v1658
      %v1675 = vmul.f32 %v849, %v1667
      %v1676 = vadd.f32 %v1435, %v1668
      %v1677 = vadd.f32 %v1437, %v1669
      %v1678 = vadd.f32 %v1439, %v1670
      %v1679 = vadd.f32 %v1441, %v1671
      %v1680 = vadd.f32 %v1445, %v1672
      %v1681 = vadd.f32 %v1447, %v1673
      %v1682 = vadd.f32 %v1449, %v1674
      %v1683 = vadd.f32 %v1451, %v1675
      %v1684 = vmax.f32 %v1676, 0.0
      %v1685 = vmax.f32 %v1677, 0.0
      %v1686 = vmax.f32 %v1678, 0.0
      %v1687 = vmax.f32 %v1679, 0.0
      %v1688 = vmax.f32 %v1680, 0.0
      %v1689 = vmax.f32 %v1681, 0.0
      %v1690 = vmax.f32 %v1682, 0.0
      %v1691 = vmax.f32 %v1683, 0.0
      %1692 = vst [vmem:[#allocation2 + $0x80] sm:$0xff] %v1684
      %1693 = vst.msk [vmem:[#allocation2 + $0x88] sm:$0xff] %vm820, %v1685
      %1694 = vst [vmem:[#allocation2 + $0x90] sm:$0xff] %v1686
      %1695 = vst.msk [vmem:[#allocation2 + $0x98] sm:$0xff] %vm820, %v1687
      %1696 = vst [vmem:[#allocation2 + $0xa0] sm:$0xff] %v1688
      %1697 = vst.msk [vmem:[#allocation2 + $0xa8] sm:$0xff] %vm820, %v1689
      %1698 = vst [vmem:[#allocation2 + $0xb0] sm:$0xff] %v1690
      %1699 = vst.msk [vmem:[#allocation2 + $0xb8] sm:$0xff] %vm820, %v1691
      %v1701 = vunpack.c.l.s4 1966171168
      %v1702 = vunpack.c.0.s8 %v1701
      %v1703 = vlaneseq
      %v1704 = vshrl.u32 %v1703, 7
      %v1705 = vsub.s32 %v1702, %v1704
      %v1706 = vrot.slane %v1463, %v1705
      %v1708 = vunpack.c.l.s4 1966171168
      %v1709 = vunpack.c.0.s8 %v1708
      %v1710 = vlaneseq
      %v1711 = vshrl.u32 %v1710, 7
      %v1712 = vsub.s32 %v1709, %v1711
      %v1713 = vrot.slane %v1706, %v1712
      %s1715 = scalar_lea.vmem [#allocation3], 6
      %1716 = vst.msk [vmem:[%s1715] ss:$8 sm:$0x3] %vm901, %v1713
      %1717 = vst.msk [vmem:[%s1715] ss:$8 sm:$0x0] %vm901, %v1713
      %s1718 = scalar_lea.vmem [#allocation3], 7
      %1719 = vst.msk [vmem:[%s1718] ss:$8 sm:$0x3] %vm901, %v1713
      %1720 = vst.msk [vmem:[%s1718] ss:$8 sm:$0x0] %vm901, %v1713
      %v1723 = vcombine.low %v1658, %v1667
      %v1725 = vunpack.c.l.s4 1966171168
      %v1726 = vunpack.c.0.s8 %v1725
      %v1727 = vlaneseq
      %v1728 = vshrl.u32 %v1727, 7
      %v1729 = vsub.s32 %v1726, %v1728
      %v1730 = vrot.slane %v1723, %v1729
      %v1732 = vunpack.c.l.s4 1966171168
      %v1733 = vunpack.c.0.s8 %v1732
      %v1734 = vlaneseq
      %v1735 = vshrl.u32 %v1734, 7
      %v1736 = vsub.s32 %v1733, %v1735
      %v1737 = vrot.slane %v1730, %v1736
      %s1739 = scalar_lea.vmem [#allocation3], 16
      %1740 = vst.msk [vmem:[%s1739] ss:$8 sm:$0x3] %vm901, %v1737
      %1741 = vst.msk [vmem:[%s1739] ss:$8 sm:$0x0] %vm901, %v1737
      %s1742 = scalar_lea.vmem %s447, 60
      %v1743 = vld [vmem:[%s1742] sm:$0xf]
      %v1744 = vld [vmem:[%s1742 + $0x4] sm:$0xf]
      %v1745 = vld [vmem:[%s1742 + $0x8] sm:$0xf]
      %v1746 = vld [vmem:[%s1742 + $0xc] sm:$0xf]
      %v1747 = vld [vmem:[%s1742 + $0x10] sm:$0x1]
      %s1748 = scalar_lea.vmem %s440, 120
      %v1749 = vld [vmem:[%s1748] sm:$0xff]
      %v1750 = vld [vmem:[%s1748 + $0x8] sm:$0xff]
      %v1751 = vld [vmem:[%s1748 + $0x10] sm:$0xff]
      %v1752 = vld [vmem:[%s1748 + $0x18] sm:$0xff]
      %v1753 = vld [vmem:[%s1748 + $0x20] sm:$0x11]
      %v1759 = vunpack.c.l.b16 %v1743
      %v1760 = vunpack.c.l.b16 %v1744
      %v1761 = vunpack.c.l.b16 %v1745
      %v1762 = vunpack.c.l.b16 %v1746
      %v1763 = vunpack.c.l.b16 %v1747
      %v1764 = vpack.c.b16 %v1760, %v1759
      %v1765 = vpack.c.b16 %v1762, %v1761
      %v1766 = vpack.c.b16 %v1763, %v1763
      %v1772 = vunpack.c.l.b16 %v1749
      %v1773 = vunpack.c.h.b16 %v1749
      %v1774 = vunpack.c.l.b16 %v1750
      %v1775 = vunpack.c.h.b16 %v1750
      %v1776 = vunpack.c.l.b16 %v1751
      %v1777 = vunpack.c.h.b16 %v1751
      %v1778 = vunpack.c.l.b16 %v1752
      %v1779 = vunpack.c.h.b16 %v1752
      %v1780 = vunpack.c.l.b16 %v1753
      %v1781 = vunpack.c.h.b16 %v1753
      %v1782 = vpack.c.b16 %v1774, %v1772
      %v1783 = vpack.c.b16 %v1775, %v1773
      %v1784 = vpack.c.b16 %v1778, %v1776
      %v1785 = vpack.c.b16 %v1779, %v1777
      %v1786 = vpack.c.b16 %v1780, %v1780
      %v1787 = vpack.c.b16 %v1781, %v1781
      %v1793 = vsel %vm541, %v1764, 0
      %v1796 = vsel %vm541, %v1765, 0
      %v1799 = vsel %vm541, %v1766, 0
      %v1802 = vand.u32 %v1786, %v553
      %v1805 = vand.u32 %v1787, %v553
      %1807 = vmatprep.subr.bf16.mxu0 %v1783
      %1808 = vmatpush1.bf16.msra.mxu0 %v1782
      %1809 = vmatprep.subr.bf16.mxu0 %v1785
      %1810 = vmatpush1.bf16.msra.mxu0 %v1784
      %1811 = vmatprep.subr.bf16.mxu0 %v1805
      %1812 = vmatpush1.bf16.msra.mxu0 %v1802
      %1813 = vmatprep.subr.bf16.mxu0 0
      %1814 = vmatpush1.bf16.msra.mxu0 0
      %1815 = vmatprep.subr.bf16.mxu0 0
      %1816 = vmatpush1.bf16.msra.mxu0 0
      %1817 = vmatprep.subr.bf16.mxu0 0
      %1818 = vmatpush1.bf16.msra.mxu0 0
      %1819 = vmatprep.subr.bf16.mxu0 0
      %1820 = vmatpush1.bf16.msra.mxu0 0
      %1821 = vmatprep.subr.bf16.mxu0 0
      %1822 = vmatpush1.bf16.msra.mxu0 0
      %1823 = vmatprep.subr.bf16.mxu0 0
      %1824 = vmatpush1.bf16.msra.mxu0 0
      %1825 = vmatprep.subr.bf16.mxu0 0
      %1826 = vmatpush1.bf16.msra.mxu0 0
      %1827 = vmatprep.subr.bf16.mxu0 0
      %1828 = vmatpush1.bf16.msra.mxu0 0
      %1829 = vmatprep.subr.bf16.mxu0 0
      %1830 = vmatpush1.bf16.msra.mxu0 0
      %1831 = vmatprep.subr.bf16.mxu0 0
      %1832 = vmatpush1.bf16.msra.mxu0 0
      %1833 = vmatprep.subr.bf16.mxu0 0
      %1834 = vmatpush1.bf16.msra.mxu0 0
      %1835 = vmatprep.subr.bf16.mxu0 0
      %1836 = vmatpush1.bf16.msra.mxu0 0
      %1837 = vmatprep.subr.bf16.mxu0 0
      %1838 = vmatpush1.bf16.msra.mxu0 0
      %1839 = vmatprep.mubr.bf16.mxu0 0
      %1840 = vmatmul.mubr.bf16.gmra.mrb[0].mxu0 %v1793
      %v1841 = vpop.f32.mrb[0].mxu0
      %v1842 = vadd.f32 0.0, %v1841
      %v1843 = vpop.f32.mrb[0].mxu0
      %v1844 = vadd.f32 0.0, %v1843
      %v1845 = vpop.f32.mrb[0].mxu0
      %v1846 = vadd.f32 0.0, %v1845
      %v1847 = vpop.f32.mrb[0].mxu0
      %v1848 = vadd.f32 0.0, %v1847
      %1849 = vmatprep.mubr.bf16.mxu0 0
      %1850 = vmatmul.mubr.bf16.gmra.mrb[0].mxu0 %v1796
      %v1851 = vpop.f32.mrb[0].mxu0
      %v1852 = vadd.f32 0.0, %v1851
      %v1853 = vpop.f32.mrb[0].mxu0
      %v1854 = vadd.f32 0.0, %v1853
      %v1855 = vpop.f32.mrb[0].mxu0
      %v1856 = vadd.f32 0.0, %v1855
      %v1857 = vpop.f32.mrb[0].mxu0
      %v1858 = vadd.f32 0.0, %v1857
      %1859 = vmatprep.mubr.bf16.mxu0 0
      %1860 = vmatmul.mubr.bf16.gmra.mrb[0].mxu0 %v1799
      %v1861 = vpop.f32.mrb[0].mxu0
      %v1862 = vadd.f32 0.0, %v1861
      %v1863 = vpop.f32.mrb[0].mxu0
      %v1864 = vadd.f32 0.0, %v1863
      %v1865 = vpop.f32.mrb[0].mxu0
      %v1866 = vpop.f32.mrb[0].mxu0
      %1867 = vdwg.mxu0
      %v1870 = vcombine.low %v1862, %v1864
      %v1872 = vunpack.c.l.s4 1983009808
      %v1873 = vunpack.c.0.s8 %v1872
      %v1874 = vlaneseq
      %v1875 = vshrl.u32 %v1874, 7
      %v1876 = vsub.s32 %v1873, %v1875
      %v1877 = vrot.slane %v1870, %v1876
      %s1879 = scalar_lea.vmem %s475, 12
      %1880 = vst.msk [vmem:[%s1879] sm:$0xf] %vm634, %v1877
      %s1881 = scalar_lea.vmem %s461, 48
      %v1882 = vld [vmem:[%s1881] sm:$0xff]
      %v1883 = vld [vmem:[%s1881 + $0x8] sm:$0x3f]
      %s1884 = scalar_lea.vmem %s454, 96
      %v1885 = vld [vmem:[%s1884] sm:$0xff]
      %v1886 = vld [vmem:[%s1884 + $0x8] sm:$0xff]
      %v1887 = vld [vmem:[%s1884 + $0x10] sm:$0xff]
      %v1888 = vld [vmem:[%s1884 + $0x18] sm:$0xff]
      %v1890 = vsel %vm642, %v1882, 0
      %v1893 = vsel %vm642, %v1883, 0
      %v1896 = vsel %vm642, %v1885, 0
      %v1899 = vsel %vm642, %v1886, 0
      %v1902 = vsel %vm642, %v1887, 0
      %v1905 = vsel %vm642, %v1888, 0
      %1907 = vmatprep.subr.mxu0 0.0
      %1908 = vmatpush1.xpose.msra.mxu0 %v1896
      %1909 = vmatprep.subr.mxu0 0.0
      %1910 = vmatpush1.xpose.msra.mxu0 %v1899
      %1911 = vmatprep.subr.mxu0 0.0
      %1912 = vmatpush1.xpose.msra.mxu0 %v1902
      %1913 = vmatprep.subr.mxu0 0.0
      %1914 = vmatpush1.xpose.msra.mxu0 %v1905
      %1915 = vmatprep.subr.mxu0 0.0
      %1916 = vmatpush1.xpose.msra.mxu0 0.0
      %1917 = vmatprep.subr.mxu0 0.0
      %1918 = vmatpush1.xpose.msra.mxu0 0.0
      %1919 = vmatprep.subr.mxu0 0.0
      %1920 = vmatpush1.xpose.msra.mxu0 0.0
      %1921 = vmatprep.subr.mxu0 0.0
      %1922 = vmatpush1.xpose.msra.mxu0 0.0
      %1923 = vmatprep.subr.mxu0 0.0
      %1924 = vmatpush1.xpose.msra.mxu0 0.0
      %1925 = vmatprep.subr.mxu0 0.0
      %1926 = vmatpush1.xpose.msra.mxu0 0.0
      %1927 = vmatprep.subr.mxu0 0.0
      %1928 = vmatpush1.xpose.msra.mxu0 0.0
      %1929 = vmatprep.subr.mxu0 0.0
      %1930 = vmatpush1.xpose.msra.mxu0 0.0
      %1931 = vmatprep.subr.mxu0 0.0
      %1932 = vmatpush1.xpose.msra.mxu0 0.0
      %1933 = vmatprep.subr.mxu0 0.0
      %1934 = vmatpush1.xpose.msra.mxu0 0.0
      %1935 = vmatprep.subr.mxu0 0.0
      %1936 = vmatpush1.xpose.msra.mxu0 0.0
      %1937 = vmatprep.subr.mxu0 0.0
      %1938 = vmatpush1.xpose.msra.mxu0 0.0
      %1939 = vmatprep.subr.mxu0 0.0
      %1940 = vmatpush1.xpose.msra.mxu0 0.0
      %1941 = vmatprep.subr.mxu0 0.0
      %1942 = vmatpush1.xpose.msra.mxu0 0.0
      %1943 = vmatprep.subr.mxu0 0.0
      %1944 = vmatpush1.xpose.msra.mxu0 0.0
      %1945 = vmatprep.subr.mxu0 0.0
      %1946 = vmatpush1.xpose.msra.mxu0 0.0
      %1947 = vmatprep.subr.mxu0 0.0
      %1948 = vmatpush1.xpose.msra.mxu0 0.0
      %1949 = vmatprep.subr.mxu0 0.0
      %1950 = vmatpush1.xpose.msra.mxu0 0.0
      %1951 = vmatprep.subr.mxu0 0.0
      %1952 = vmatpush1.xpose.msra.mxu0 0.0
      %1953 = vmatprep.subr.mxu0 0.0
      %1954 = vmatpush1.xpose.msra.mxu0 0.0
      %1955 = vmatprep.subr.mxu0 0.0
      %1956 = vmatpush1.xpose.msra.mxu0 0.0
      %1957 = vmatprep.subr.mxu0 0.0
      %1958 = vmatpush1.xpose.msra.mxu0 0.0
      %1959 = vmatprep.subr.mxu0 0.0
      %1960 = vmatpush1.xpose.msra.mxu0 0.0
      %1961 = vmatprep.subr.mxu0 0.0
      %1962 = vmatpush1.xpose.msra.mxu0 0.0
      %1963 = vmatprep.subr.mxu0 0.0
      %1964 = vmatpush1.xpose.msra.mxu0 0.0
      %1965 = vmatprep.subr.mxu0 0.0
      %1966 = vmatpush1.xpose.msra.mxu0 0.0
      %1967 = vmatprep.subr.mxu0 0.0
      %1968 = vmatpush1.xpose.msra.mxu0 0.0
      %1969 = vmatprep.subr.mxu0 0.0
      %1970 = vmatpush1.xpose.msra.mxu0 0.0
      %1971 = vmatprep.mubr.f32.mxu0 0.0
      %1972 = vmatmul.mubr.f32.gmra.mrb[0].mxu0 %v1890
      %v1973 = vpop.f32.mrb[0].mxu0
      %v1974 = vadd.f32 0.0, %v1973
      %v1975 = vpop.f32.mrb[0].mxu0
      %1976 = vmatprep.mubr.f32.mxu0 0.0
      %1977 = vmatmul.mubr.f32.gmra.mrb[0].mxu0 %v1893
      %v1978 = vpop.f32.mrb[0].mxu0
      %v1979 = vadd.f32 0.0, %v1978
      %v1980 = vpop.f32.mrb[0].mxu0
      %1981 = vdwg.mxu0
      %v1982 = vpack.c.bf16 %v1979, %v1974
      %s1983 = scalar_lea.vmem %s468, 96
      %v1984 = vld [vmem:[%s1983] sm:$0xff]
      %v1985 = vld [vmem:[%s1983 + $0x8] sm:$0xff]
      %v1986 = vld [vmem:[%s1983 + $0x10] sm:$0xff]
      %v1987 = vld [vmem:[%s1983 + $0x18] sm:$0xff]
      %v1992 = vunpack.c.l.b16 %v1984
      %v1993 = vunpack.c.h.b16 %v1984
      %v1994 = vunpack.c.l.b16 %v1985
      %v1995 = vunpack.c.h.b16 %v1985
      %v1996 = vunpack.c.l.b16 %v1986
      %v1997 = vunpack.c.h.b16 %v1986
      %v1998 = vunpack.c.l.b16 %v1987
      %v1999 = vunpack.c.h.b16 %v1987
      %v2000 = vpack.c.b16 %v1994, %v1992
      %v2001 = vpack.c.b16 %v1995, %v1993
      %v2002 = vpack.c.b16 %v1998, %v1996
      %v2003 = vpack.c.b16 %v1999, %v1997
      %v2009 = vsel %vm642, %v1982, 0
      %2011 = vmatprep.subr.bf16.mxu0 %v2001
      %2012 = vmatpush1.bf16.msra.mxu0 %v2000
      %2013 = vmatprep.subr.bf16.mxu0 %v2003
      %2014 = vmatpush1.bf16.msra.mxu0 %v2002
      %2015 = vmatprep.subr.bf16.mxu0 0
      %2016 = vmatpush1.bf16.msra.mxu0 0
      %2017 = vmatprep.subr.bf16.mxu0 0
      %2018 = vmatpush1.bf16.msra.mxu0 0
      %2019 = vmatprep.subr.bf16.mxu0 0
      %2020 = vmatpush1.bf16.msra.mxu0 0
      %2021 = vmatprep.subr.bf16.mxu0 0
      %2022 = vmatpush1.bf16.msra.mxu0 0
      %2023 = vmatprep.subr.bf16.mxu0 0
      %2024 = vmatpush1.bf16.msra.mxu0 0
      %2025 = vmatprep.subr.bf16.mxu0 0
      %2026 = vmatpush1.bf16.msra.mxu0 0
      %2027 = vmatprep.subr.bf16.mxu0 0
      %2028 = vmatpush1.bf16.msra.mxu0 0
      %2029 = vmatprep.subr.bf16.mxu0 0
      %2030 = vmatpush1.bf16.msra.mxu0 0
      %2031 = vmatprep.subr.bf16.mxu0 0
      %2032 = vmatpush1.bf16.msra.mxu0 0
      %2033 = vmatprep.subr.bf16.mxu0 0
      %2034 = vmatpush1.bf16.msra.mxu0 0
      %2035 = vmatprep.subr.bf16.mxu0 0
      %2036 = vmatpush1.bf16.msra.mxu0 0
      %2037 = vmatprep.subr.bf16.mxu0 0
      %2038 = vmatpush1.bf16.msra.mxu0 0
      %2039 = vmatprep.subr.bf16.mxu0 0
      %2040 = vmatpush1.bf16.msra.mxu0 0
      %2041 = vmatprep.subr.bf16.mxu0 0
      %2042 = vmatpush1.bf16.msra.mxu0 0
      %2043 = vmatprep.mubr.bf16.mxu0 0
      %2044 = vmatmul.mubr.bf16.gmra.mrb[0].mxu0 %v2009
      %v2045 = vpop.f32.mrb[0].mxu0
      %v2046 = vadd.f32 0.0, %v2045
      %v2047 = vpop.f32.mrb[0].mxu0
      %v2048 = vadd.f32 0.0, %v2047
      %v2049 = vpop.f32.mrb[0].mxu0
      %v2050 = vadd.f32 0.0, %v2049
      %v2051 = vpop.f32.mrb[0].mxu0
      %v2052 = vadd.f32 0.0, %v2051
      %2053 = vdwg.mxu0
      %v2054 = vmul.f32 %v2046, %v489
      %v2055 = vmul.f32 %v2048, %v490
      %v2056 = vmul.f32 %v2050, %v491
      %v2057 = vmul.f32 %v2052, %v492
      %v2058 = vsel %vm811, %v2056, 0.0
      %v2059 = vadd.f32 %v2054, %v2058
      %v2060 = vrot.slane %v2059, 4
      %v2061 = vadd.f32 %v2059, %v2060
      %v2062 = vrot.slane %v2061, 2
      %v2063 = vadd.f32 %v2061, %v2062
      %v2064 = vrot.slane %v2063, 1
      %v2065 = vadd.f32 %v2063, %v2064
      %v2066 = vsel %vm820, %v2055, 0.0
      %v2067 = vsel %vm822, %v2057, 0.0
      %v2068 = vadd.f32 %v2066, %v2067
      %v2069 = vrot.slane %v2068, 4
      %v2070 = vadd.f32 %v2068, %v2069
      %v2071 = vrot.slane %v2070, 2
      %v2072 = vadd.f32 %v2070, %v2071
      %v2073 = vrot.slane %v2072, 1
      %v2074 = vadd.f32 %v2072, %v2073
      %v2075 = vmul.f32 %v834, %v2065
      %v2076 = vmul.f32 %v834, %v2074
      %v2077 = vmul.f32 %v839, %v2065
      %v2078 = vmul.f32 %v839, %v2074
      %v2079 = vmul.f32 %v844, %v2065
      %v2080 = vmul.f32 %v844, %v2074
      %v2081 = vmul.f32 %v849, %v2065
      %v2082 = vmul.f32 %v849, %v2074
      %v2083 = vadd.f32 %v1842, %v2075
      %v2084 = vadd.f32 %v1844, %v2076
      %v2085 = vadd.f32 %v1846, %v2077
      %v2086 = vadd.f32 %v1848, %v2078
      %v2087 = vadd.f32 %v1852, %v2079
      %v2088 = vadd.f32 %v1854, %v2080
      %v2089 = vadd.f32 %v1856, %v2081
      %v2090 = vadd.f32 %v1858, %v2082
      %v2091 = vmax.f32 %v2083, 0.0
      %v2092 = vmax.f32 %v2084, 0.0
      %v2093 = vmax.f32 %v2085, 0.0
      %v2094 = vmax.f32 %v2086, 0.0
      %v2095 = vmax.f32 %v2087, 0.0
      %v2096 = vmax.f32 %v2088, 0.0
      %v2097 = vmax.f32 %v2089, 0.0
      %v2098 = vmax.f32 %v2090, 0.0
      %2099 = vst [vmem:[#allocation2 + $0xc0] sm:$0xff] %v2091
      %2100 = vst.msk [vmem:[#allocation2 + $0xc8] sm:$0xff] %vm820, %v2092
      %2101 = vst [vmem:[#allocation2 + $0xd0] sm:$0xff] %v2093
      %2102 = vst.msk [vmem:[#allocation2 + $0xd8] sm:$0xff] %vm820, %v2094
      %2103 = vst [vmem:[#allocation2 + $0xe0] sm:$0xff] %v2095
      %2104 = vst.msk [vmem:[#allocation2 + $0xe8] sm:$0xff] %vm820, %v2096
      %2105 = vst [vmem:[#allocation2 + $0xf0] sm:$0xff] %v2097
      %2106 = vst.msk [vmem:[#allocation2 + $0xf8] sm:$0xff] %vm820, %v2098
      %v2108 = vunpack.c.l.s4 1966171168
      %v2109 = vunpack.c.0.s8 %v2108
      %v2110 = vlaneseq
      %v2111 = vshrl.u32 %v2110, 7
      %v2112 = vsub.s32 %v2109, %v2111
      %v2113 = vrot.slane %v1870, %v2112
      %v2115 = vunpack.c.l.s4 1966171168
      %v2116 = vunpack.c.0.s8 %v2115
      %v2117 = vlaneseq
      %v2118 = vshrl.u32 %v2117, 7
      %v2119 = vsub.s32 %v2116, %v2118
      %v2120 = vrot.slane %v2113, %v2119
      %s2122 = scalar_lea.vmem [#allocation3], 17
      %2123 = vst.msk [vmem:[%s2122] ss:$8 sm:$0x3] %vm901, %v2120
      %2124 = vst.msk [vmem:[%s2122] ss:$8 sm:$0x0] %vm901, %v2120
      %s2125 = scalar_lea.vmem [#allocation3], 18
      %2126 = vst.msk [vmem:[%s2125] ss:$8 sm:$0x3] %vm901, %v2120
      %2127 = vst.msk [vmem:[%s2125] ss:$8 sm:$0x0] %vm901, %v2120
      %v2130 = vcombine.low %v2065, %v2074
      %v2132 = vunpack.c.l.s4 1966171168
      %v2133 = vunpack.c.0.s8 %v2132
      %v2134 = vlaneseq
      %v2135 = vshrl.u32 %v2134, 7
      %v2136 = vsub.s32 %v2133, %v2135
      %v2137 = vrot.slane %v2130, %v2136
      %v2139 = vunpack.c.l.s4 1966171168
      %v2140 = vunpack.c.0.s8 %v2139
      %v2141 = vlaneseq
      %v2142 = vshrl.u32 %v2141, 7
      %v2143 = vsub.s32 %v2140, %v2142
      %v2144 = vrot.slane %v2137, %v2143
      %s2146 = scalar_lea.vmem [#allocation3], 19
      %2147 = vst.msk [vmem:[%s2146] ss:$8 sm:$0x3] %vm901, %v2144
      %2148 = vst.msk [vmem:[%s2146] ss:$8 sm:$0x0] %vm901, %v2144
      %s2149 = scalar_lea.vmem %s447, 80
      %v2150 = vld [vmem:[%s2149] sm:$0xf]
      %v2151 = vld [vmem:[%s2149 + $0x4] sm:$0xf]
      %v2152 = vld [vmem:[%s2149 + $0x8] sm:$0xf]
      %v2153 = vld [vmem:[%s2149 + $0xc] sm:$0xf]
      %v2154 = vld [vmem:[%s2149 + $0x10] sm:$0x1]
      %s2155 = scalar_lea.vmem %s440, 160
      %v2156 = vld [vmem:[%s2155] sm:$0xff]
      %v2157 = vld [vmem:[%s2155 + $0x8] sm:$0xff]
      %v2158 = vld [vmem:[%s2155 + $0x10] sm:$0xff]
      %v2159 = vld [vmem:[%s2155 + $0x18] sm:$0xff]
      %v2160 = vld [vmem:[%s2155 + $0x20] sm:$0x11]
      %v2166 = vunpack.c.l.b16 %v2150
      %v2167 = vunpack.c.l.b16 %v2151
      %v2168 = vunpack.c.l.b16 %v2152
      %v2169 = vunpack.c.l.b16 %v2153
      %v2170 = vunpack.c.l.b16 %v2154
      %v2171 = vpack.c.b16 %v2167, %v2166
      %v2172 = vpack.c.b16 %v2169, %v2168
      %v2173 = vpack.c.b16 %v2170, %v2170
      %v2179 = vunpack.c.l.b16 %v2156
      %v2180 = vunpack.c.h.b16 %v2156
      %v2181 = vunpack.c.l.b16 %v2157
      %v2182 = vunpack.c.h.b16 %v2157
      %v2183 = vunpack.c.l.b16 %v2158
      %v2184 = vunpack.c.h.b16 %v2158
      %v2185 = vunpack.c.l.b16 %v2159
      %v2186 = vunpack.c.h.b16 %v2159
      %v2187 = vunpack.c.l.b16 %v2160
      %v2188 = vunpack.c.h.b16 %v2160
      %v2189 = vpack.c.b16 %v2181, %v2179
      %v2190 = vpack.c.b16 %v2182, %v2180
      %v2191 = vpack.c.b16 %v2185, %v2183
      %v2192 = vpack.c.b16 %v2186, %v2184
      %v2193 = vpack.c.b16 %v2187, %v2187
      %v2194 = vpack.c.b16 %v2188, %v2188
      %v2200 = vsel %vm541, %v2171, 0
      %v2203 = vsel %vm541, %v2172, 0
      %v2206 = vsel %vm541, %v2173, 0
      %v2209 = vand.u32 %v2193, %v553
      %v2212 = vand.u32 %v2194, %v553
      %2214 = vmatprep.subr.bf16.mxu0 %v2190
      %2215 = vmatpush1.bf16.msra.mxu0 %v2189
      %2216 = vmatprep.subr.bf16.mxu0 %v2192
      %2217 = vmatpush1.bf16.msra.mxu0 %v2191
      %2218 = vmatprep.subr.bf16.mxu0 %v2212
      %2219 = vmatpush1.bf16.msra.mxu0 %v2209
      %2220 = vmatprep.subr.bf16.mxu0 0
      %2221 = vmatpush1.bf16.msra.mxu0 0
      %2222 = vmatprep.subr.bf16.mxu0 0
      %2223 = vmatpush1.bf16.msra.mxu0 0
      %2224 = vmatprep.subr.bf16.mxu0 0
      %2225 = vmatpush1.bf16.msra.mxu0 0
      %2226 = vmatprep.subr.bf16.mxu0 0
      %2227 = vmatpush1.bf16.msra.mxu0 0
      %2228 = vmatprep.subr.bf16.mxu0 0
      %2229 = vmatpush1.bf16.msra.mxu0 0
      %2230 = vmatprep.subr.bf16.mxu0 0
      %2231 = vmatpush1.bf16.msra.mxu0 0
      %2232 = vmatprep.subr.bf16.mxu0 0
      %2233 = vmatpush1.bf16.msra.mxu0 0
      %2234 = vmatprep.subr.bf16.mxu0 0
      %2235 = vmatpush1.bf16.msra.mxu0 0
      %2236 = vmatprep.subr.bf16.mxu0 0
      %2237 = vmatpush1.bf16.msra.mxu0 0
      %2238 = vmatprep.subr.bf16.mxu0 0
      %2239 = vmatpush1.bf16.msra.mxu0 0
      %2240 = vmatprep.subr.bf16.mxu0 0
      %2241 = vmatpush1.bf16.msra.mxu0 0
      %2242 = vmatprep.subr.bf16.mxu0 0
      %2243 = vmatpush1.bf16.msra.mxu0 0
      %2244 = vmatprep.subr.bf16.mxu0 0
      %2245 = vmatpush1.bf16.msra.mxu0 0
      %2246 = vmatprep.mubr.bf16.mxu0 0
      %2247 = vmatmul.mubr.bf16.gmra.mrb[0].mxu0 %v2200
      %v2248 = vpop.f32.mrb[0].mxu0
      %v2249 = vadd.f32 0.0, %v2248
      %v2250 = vpop.f32.mrb[0].mxu0
      %v2251 = vadd.f32 0.0, %v2250
      %v2252 = vpop.f32.mrb[0].mxu0
      %v2253 = vadd.f32 0.0, %v2252
      %v2254 = vpop.f32.mrb[0].mxu0
      %v2255 = vadd.f32 0.0, %v2254
      %2256 = vmatprep.mubr.bf16.mxu0 0
      %2257 = vmatmul.mubr.bf16.gmra.mrb[0].mxu0 %v2203
      %v2258 = vpop.f32.mrb[0].mxu0
      %v2259 = vadd.f32 0.0, %v2258
      %v2260 = vpop.f32.mrb[0].mxu0
      %v2261 = vadd.f32 0.0, %v2260
      %v2262 = vpop.f32.mrb[0].mxu0
      %v2263 = vadd.f32 0.0, %v2262
      %v2264 = vpop.f32.mrb[0].mxu0
      %v2265 = vadd.f32 0.0, %v2264
      %2266 = vmatprep.mubr.bf16.mxu0 0
      %2267 = vmatmul.mubr.bf16.gmra.mrb[0].mxu0 %v2206
      %v2268 = vpop.f32.mrb[0].mxu0
      %v2269 = vadd.f32 0.0, %v2268
      %v2270 = vpop.f32.mrb[0].mxu0
      %v2271 = vadd.f32 0.0, %v2270
      %v2272 = vpop.f32.mrb[0].mxu0
      %v2273 = vpop.f32.mrb[0].mxu0
      %2274 = vdwg.mxu0
      %v2277 = vcombine.low %v2269, %v2271
      %v2279 = vunpack.c.l.s4 1983009808
      %v2280 = vunpack.c.0.s8 %v2279
      %v2281 = vlaneseq
      %v2282 = vshrl.u32 %v2281, 7
      %v2283 = vsub.s32 %v2280, %v2282
      %v2284 = vrot.slane %v2277, %v2283
      %s2286 = scalar_lea.vmem %s475, 16
      %2287 = vst.msk [vmem:[%s2286] sm:$0xf] %vm634, %v2284
      %s2288 = scalar_lea.vmem %s461, 64
      %v2289 = vld [vmem:[%s2288] sm:$0xff]
      %v2290 = vld [vmem:[%s2288 + $0x8] sm:$0x3f]
      %s2291 = scalar_lea.vmem %s454, 128
      %v2292 = vld [vmem:[%s2291] sm:$0xff]
      %v2293 = vld [vmem:[%s2291 + $0x8] sm:$0xff]
      %v2294 = vld [vmem:[%s2291 + $0x10] sm:$0xff]
      %v2295 = vld [vmem:[%s2291 + $0x18] sm:$0xff]
      %v2297 = vsel %vm642, %v2289, 0
      %v2300 = vsel %vm642, %v2290, 0
      %v2303 = vsel %vm642, %v2292, 0
      %v2306 = vsel %vm642, %v2293, 0
      %v2309 = vsel %vm642, %v2294, 0
      %v2312 = vsel %vm642, %v2295, 0
      %2314 = vmatprep.subr.mxu0 0.0
      %2315 = vmatpush1.xpose.msra.mxu0 %v2303
      %2316 = vmatprep.subr.mxu0 0.0
      %2317 = vmatpush1.xpose.msra.mxu0 %v2306
      %2318 = vmatprep.subr.mxu0 0.0
      %2319 = vmatpush1.xpose.msra.mxu0 %v2309
      %2320 = vmatprep.subr.mxu0 0.0
      %2321 = vmatpush1.xpose.msra.mxu0 %v2312
      %2322 = vmatprep.subr.mxu0 0.0
      %2323 = vmatpush1.xpose.msra.mxu0 0.0
      %2324 = vmatprep.subr.mxu0 0.0
      %2325 = vmatpush1.xpose.msra.mxu0 0.0
      %2326 = vmatprep.subr.mxu0 0.0
      %2327 = vmatpush1.xpose.msra.mxu0 0.0
      %2328 = vmatprep.subr.mxu0 0.0
      %2329 = vmatpush1.xpose.msra.mxu0 0.0
      %2330 = vmatprep.subr.mxu0 0.0
      %2331 = vmatpush1.xpose.msra.mxu0 0.0
      %2332 = vmatprep.subr.mxu0 0.0
      %2333 = vmatpush1.xpose.msra.mxu0 0.0
      %2334 = vmatprep.subr.mxu0 0.0
      %2335 = vmatpush1.xpose.msra.mxu0 0.0
      %2336 = vmatprep.subr.mxu0 0.0
      %2337 = vmatpush1.xpose.msra.mxu0 0.0
      %2338 = vmatprep.subr.mxu0 0.0
      %2339 = vmatpush1.xpose.msra.mxu0 0.0
      %2340 = vmatprep.subr.mxu0 0.0
      %2341 = vmatpush1.xpose.msra.mxu0 0.0
      %2342 = vmatprep.subr.mxu0 0.0
      %2343 = vmatpush1.xpose.msra.mxu0 0.0
      %2344 = vmatprep.subr.mxu0 0.0
      %2345 = vmatpush1.xpose.msra.mxu0 0.0
      %2346 = vmatprep.subr.mxu0 0.0
      %2347 = vmatpush1.xpose.msra.mxu0 0.0
      %2348 = vmatprep.subr.mxu0 0.0
      %2349 = vmatpush1.xpose.msra.mxu0 0.0
      %2350 = vmatprep.subr.mxu0 0.0
      %2351 = vmatpush1.xpose.msra.mxu0 0.0
      %2352 = vmatprep.subr.mxu0 0.0
      %2353 = vmatpush1.xpose.msra.mxu0 0.0
      %2354 = vmatprep.subr.mxu0 0.0
      %2355 = vmatpush1.xpose.msra.mxu0 0.0
      %2356 = vmatprep.subr.mxu0 0.0
      %2357 = vmatpush1.xpose.msra.mxu0 0.0
      %2358 = vmatprep.subr.mxu0 0.0
      %2359 = vmatpush1.xpose.msra.mxu0 0.0
      %2360 = vmatprep.subr.mxu0 0.0
      %2361 = vmatpush1.xpose.msra.mxu0 0.0
      %2362 = vmatprep.subr.mxu0 0.0
      %2363 = vmatpush1.xpose.msra.mxu0 0.0
      %2364 = vmatprep.subr.mxu0 0.0
      %2365 = vmatpush1.xpose.msra.mxu0 0.0
      %2366 = vmatprep.subr.mxu0 0.0
      %2367 = vmatpush1.xpose.msra.mxu0 0.0
      %2368 = vmatprep.subr.mxu0 0.0
      %2369 = vmatpush1.xpose.msra.mxu0 0.0
      %2370 = vmatprep.subr.mxu0 0.0
      %2371 = vmatpush1.xpose.msra.mxu0 0.0
      %2372 = vmatprep.subr.mxu0 0.0
      %2373 = vmatpush1.xpose.msra.mxu0 0.0
      %2374 = vmatprep.subr.mxu0 0.0
      %2375 = vmatpush1.xpose.msra.mxu0 0.0
      %2376 = vmatprep.subr.mxu0 0.0
      %2377 = vmatpush1.xpose.msra.mxu0 0.0
      %2378 = vmatprep.mubr.f32.mxu0 0.0
      %2379 = vmatmul.mubr.f32.gmra.mrb[0].mxu0 %v2297
      %v2380 = vpop.f32.mrb[0].mxu0
      %v2381 = vadd.f32 0.0, %v2380
      %v2382 = vpop.f32.mrb[0].mxu0
      %2383 = vmatprep.mubr.f32.mxu0 0.0
      %2384 = vmatmul.mubr.f32.gmra.mrb[0].mxu0 %v2300
      %v2385 = vpop.f32.mrb[0].mxu0
      %v2386 = vadd.f32 0.0, %v2385
      %v2387 = vpop.f32.mrb[0].mxu0
      %2388 = vdwg.mxu0
      %v2389 = vpack.c.bf16 %v2386, %v2381
      %s2390 = scalar_lea.vmem %s468, 128
      %v2391 = vld [vmem:[%s2390] sm:$0xff]
      %v2392 = vld [vmem:[%s2390 + $0x8] sm:$0xff]
      %v2393 = vld [vmem:[%s2390 + $0x10] sm:$0xff]
      %v2394 = vld [vmem:[%s2390 + $0x18] sm:$0xff]
      %v2399 = vunpack.c.l.b16 %v2391
      %v2400 = vunpack.c.h.b16 %v2391
      %v2401 = vunpack.c.l.b16 %v2392
      %v2402 = vunpack.c.h.b16 %v2392
      %v2403 = vunpack.c.l.b16 %v2393
      %v2404 = vunpack.c.h.b16 %v2393
      %v2405 = vunpack.c.l.b16 %v2394
      %v2406 = vunpack.c.h.b16 %v2394
      %v2407 = vpack.c.b16 %v2401, %v2399
      %v2408 = vpack.c.b16 %v2402, %v2400
      %v2409 = vpack.c.b16 %v2405, %v2403
      %v2410 = vpack.c.b16 %v2406, %v2404
      %v2416 = vsel %vm642, %v2389, 0
      %2418 = vmatprep.subr.bf16.mxu0 %v2408
      %2419 = vmatpush1.bf16.msra.mxu0 %v2407
      %2420 = vmatprep.subr.bf16.mxu0 %v2410
      %2421 = vmatpush1.bf16.msra.mxu0 %v2409
      %2422 = vmatprep.subr.bf16.mxu0 0
      %2423 = vmatpush1.bf16.msra.mxu0 0
      %2424 = vmatprep.subr.bf16.mxu0 0
      %2425 = vmatpush1.bf16.msra.mxu0 0
      %2426 = vmatprep.subr.bf16.mxu0 0
      %2427 = vmatpush1.bf16.msra.mxu0 0
      %2428 = vmatprep.subr.bf16.mxu0 0
      %2429 = vmatpush1.bf16.msra.mxu0 0
      %2430 = vmatprep.subr.bf16.mxu0 0
      %2431 = vmatpush1.bf16.msra.mxu0 0
      %2432 = vmatprep.subr.bf16.mxu0 0
      %2433 = vmatpush1.bf16.msra.mxu0 0
      %2434 = vmatprep.subr.bf16.mxu0 0
      %2435 = vmatpush1.bf16.msra.mxu0 0
      %2436 = vmatprep.subr.bf16.mxu0 0
      %2437 = vmatpush1.bf16.msra.mxu0 0
      %2438 = vmatprep.subr.bf16.mxu0 0
      %2439 = vmatpush1.bf16.msra.mxu0 0
      %2440 = vmatprep.subr.bf16.mxu0 0
      %2441 = vmatpush1.bf16.msra.mxu0 0
      %2442 = vmatprep.subr.bf16.mxu0 0
      %2443 = vmatpush1.bf16.msra.mxu0 0
      %2444 = vmatprep.subr.bf16.mxu0 0
      %2445 = vmatpush1.bf16.msra.mxu0 0
      %2446 = vmatprep.subr.bf16.mxu0 0
      %2447 = vmatpush1.bf16.msra.mxu0 0
      %2448 = vmatprep.subr.bf16.mxu0 0
      %2449 = vmatpush1.bf16.msra.mxu0 0
      %2450 = vmatprep.mubr.bf16.mxu0 0
      %2451 = vmatmul.mubr.bf16.gmra.mrb[0].mxu0 %v2416
      %v2452 = vpop.f32.mrb[0].mxu0
      %v2453 = vadd.f32 0.0, %v2452
      %v2454 = vpop.f32.mrb[0].mxu0
      %v2455 = vadd.f32 0.0, %v2454
      %v2456 = vpop.f32.mrb[0].mxu0
      %v2457 = vadd.f32 0.0, %v2456
      %v2458 = vpop.f32.mrb[0].mxu0
      %v2459 = vadd.f32 0.0, %v2458
      %2460 = vdwg.mxu0
      %v2461 = vmul.f32 %v2453, %v489
      %v2462 = vmul.f32 %v2455, %v490
      %v2463 = vmul.f32 %v2457, %v491
      %v2464 = vmul.f32 %v2459, %v492
      %v2465 = vsel %vm811, %v2463, 0.0
      %v2466 = vadd.f32 %v2461, %v2465
      %v2467 = vrot.slane %v2466, 4
      %v2468 = vadd.f32 %v2466, %v2467
      %v2469 = vrot.slane %v2468, 2
      %v2470 = vadd.f32 %v2468, %v2469
      %v2471 = vrot.slane %v2470, 1
      %v2472 = vadd.f32 %v2470, %v2471
      %v2473 = vsel %vm820, %v2462, 0.0
      %v2474 = vsel %vm822, %v2464, 0.0
      %v2475 = vadd.f32 %v2473, %v2474
      %v2476 = vrot.slane %v2475, 4
      %v2477 = vadd.f32 %v2475, %v2476
      %v2478 = vrot.slane %v2477, 2
      %v2479 = vadd.f32 %v2477, %v2478
      %v2480 = vrot.slane %v2479, 1
      %v2481 = vadd.f32 %v2479, %v2480
      %v2482 = vmul.f32 %v834, %v2472
      %v2483 = vmul.f32 %v834, %v2481
      %v2484 = vmul.f32 %v839, %v2472
      %v2485 = vmul.f32 %v839, %v2481
      %v2486 = vmul.f32 %v844, %v2472
      %v2487 = vmul.f32 %v844, %v2481
      %v2488 = vmul.f32 %v849, %v2472
      %v2489 = vmul.f32 %v849, %v2481
      %v2490 = vadd.f32 %v2249, %v2482
      %v2491 = vadd.f32 %v2251, %v2483
      %v2492 = vadd.f32 %v2253, %v2484
      %v2493 = vadd.f32 %v2255, %v2485
      %v2494 = vadd.f32 %v2259, %v2486
      %v2495 = vadd.f32 %v2261, %v2487
      %v2496 = vadd.f32 %v2263, %v2488
      %v2497 = vadd.f32 %v2265, %v2489
      %v2498 = vmax.f32 %v2490, 0.0
      %v2499 = vmax.f32 %v2491, 0.0
      %v2500 = vmax.f32 %v2492, 0.0
      %v2501 = vmax.f32 %v2493, 0.0
      %v2502 = vmax.f32 %v2494, 0.0
      %v2503 = vmax.f32 %v2495, 0.0
      %v2504 = vmax.f32 %v2496, 0.0
      %v2505 = vmax.f32 %v2497, 0.0
      %2506 = vst [vmem:[#allocation2 + $0x100] sm:$0xff] %v2498
      %2507 = vst.msk [vmem:[#allocation2 + $0x108] sm:$0xff] %vm820, %v2499
      %2508 = vst [vmem:[#allocation2 + $0x110] sm:$0xff] %v2500
      %2509 = vst.msk [vmem:[#allocation2 + $0x118] sm:$0xff] %vm820, %v2501
      %2510 = vst [vmem:[#allocation2 + $0x120] sm:$0xff] %v2502
      %2511 = vst.msk [vmem:[#allocation2 + $0x128] sm:$0xff] %vm820, %v2503
      %2512 = vst [vmem:[#allocation2 + $0x130] sm:$0xff] %v2504
      %2513 = vst.msk [vmem:[#allocation2 + $0x138] sm:$0xff] %vm820, %v2505
      %v2515 = vunpack.c.l.s4 1966171168
      %v2516 = vunpack.c.0.s8 %v2515
      %v2517 = vlaneseq
      %v2518 = vshrl.u32 %v2517, 7
      %v2519 = vsub.s32 %v2516, %v2518
      %v2520 = vrot.slane %v2277, %v2519
      %v2522 = vunpack.c.l.s4 1966171168
      %v2523 = vunpack.c.0.s8 %v2522
      %v2524 = vlaneseq
      %v2525 = vshrl.u32 %v2524, 7
      %v2526 = vsub.s32 %v2523, %v2525
      %v2527 = vrot.slane %v2520, %v2526
      %s2529 = scalar_lea.vmem [#allocation3], 20
      %2530 = vst.msk [vmem:[%s2529] ss:$8 sm:$0x3] %vm901, %v2527
      %2531 = vst.msk [vmem:[%s2529] ss:$8 sm:$0x0] %vm901, %v2527
      %s2532 = scalar_lea.vmem [#allocation3], 21
      %2533 = vst.msk [vmem:[%s2532] ss:$8 sm:$0x3] %vm901, %v2527
      %2534 = vst.msk [vmem:[%s2532] ss:$8 sm:$0x0] %vm901, %v2527
      %v2537 = vcombine.low %v2472, %v2481
      %v2539 = vunpack.c.l.s4 1966171168
      %v2540 = vunpack.c.0.s8 %v2539
      %v2541 = vlaneseq
      %v2542 = vshrl.u32 %v2541, 7
      %v2543 = vsub.s32 %v2540, %v2542
      %v2544 = vrot.slane %v2537, %v2543
      %v2546 = vunpack.c.l.s4 1966171168
      %v2547 = vunpack.c.0.s8 %v2546
      %v2548 = vlaneseq
      %v2549 = vshrl.u32 %v2548, 7
      %v2550 = vsub.s32 %v2547, %v2549
      %v2551 = vrot.slane %v2544, %v2550
      %s2553 = scalar_lea.vmem [#allocation3], 22
      %2554 = vst.msk [vmem:[%s2553] ss:$8 sm:$0x3] %vm901, %v2551
      %2555 = vst.msk [vmem:[%s2553] ss:$8 sm:$0x0] %vm901, %v2551
      %s2556 = scalar_lea.vmem %s447, 100
      %v2557 = vld [vmem:[%s2556] sm:$0xf]
      %v2558 = vld [vmem:[%s2556 + $0x4] sm:$0xf]
      %v2559 = vld [vmem:[%s2556 + $0x8] sm:$0xf]
      %v2560 = vld [vmem:[%s2556 + $0xc] sm:$0xf]
      %v2561 = vld [vmem:[%s2556 + $0x10] sm:$0x1]
      %s2562 = scalar_lea.vmem %s440, 200
      %v2563 = vld [vmem:[%s2562] sm:$0xff]
      %v2564 = vld [vmem:[%s2562 + $0x8] sm:$0xff]
      %v2565 = vld [vmem:[%s2562 + $0x10] sm:$0xff]
      %v2566 = vld [vmem:[%s2562 + $0x18] sm:$0xff]
      %v2567 = vld [vmem:[%s2562 + $0x20] sm:$0x11]
      %v2573 = vunpack.c.l.b16 %v2557
      %v2574 = vunpack.c.l.b16 %v2558
      %v2575 = vunpack.c.l.b16 %v2559
      %v2576 = vunpack.c.l.b16 %v2560
      %v2577 = vunpack.c.l.b16 %v2561
      %v2578 = vpack.c.b16 %v2574, %v2573
      %v2579 = vpack.c.b16 %v2576, %v2575
      %v2580 = vpack.c.b16 %v2577, %v2577
      %v2586 = vunpack.c.l.b16 %v2563
      %v2587 = vunpack.c.h.b16 %v2563
      %v2588 = vunpack.c.l.b16 %v2564
      %v2589 = vunpack.c.h.b16 %v2564
      %v2590 = vunpack.c.l.b16 %v2565
      %v2591 = vunpack.c.h.b16 %v2565
      %v2592 = vunpack.c.l.b16 %v2566
      %v2593 = vunpack.c.h.b16 %v2566
      %v2594 = vunpack.c.l.b16 %v2567
      %v2595 = vunpack.c.h.b16 %v2567
      %v2596 = vpack.c.b16 %v2588, %v2586
      %v2597 = vpack.c.b16 %v2589, %v2587
      %v2598 = vpack.c.b16 %v2592, %v2590
      %v2599 = vpack.c.b16 %v2593, %v2591
      %v2600 = vpack.c.b16 %v2594, %v2594
      %v2601 = vpack.c.b16 %v2595, %v2595
      %v2607 = vsel %vm541, %v2578, 0
      %v2610 = vsel %vm541, %v2579, 0
      %v2613 = vsel %vm541, %v2580, 0
      %v2616 = vand.u32 %v2600, %v553
      %v2619 = vand.u32 %v2601, %v553
      %2621 = vmatprep.subr.bf16.mxu0 %v2597
      %2622 = vmatpush1.bf16.msra.mxu0 %v2596
      %2623 = vmatprep.subr.bf16.mxu0 %v2599
      %2624 = vmatpush1.bf16.msra.mxu0 %v2598
      %2625 = vmatprep.subr.bf16.mxu0 %v2619
      %2626 = vmatpush1.bf16.msra.mxu0 %v2616
      %2627 = vmatprep.subr.bf16.mxu0 0
      %2628 = vmatpush1.bf16.msra.mxu0 0
      %2629 = vmatprep.subr.bf16.mxu0 0
      %2630 = vmatpush1.bf16.msra.mxu0 0
      %2631 = vmatprep.subr.bf16.mxu0 0
      %2632 = vmatpush1.bf16.msra.mxu0 0
      %2633 = vmatprep.subr.bf16.mxu0 0
      %2634 = vmatpush1.bf16.msra.mxu0 0
      %2635 = vmatprep.subr.bf16.mxu0 0
      %2636 = vmatpush1.bf16.msra.mxu0 0
      %2637 = vmatprep.subr.bf16.mxu0 0
      %2638 = vmatpush1.bf16.msra.mxu0 0
      %2639 = vmatprep.subr.bf16.mxu0 0
      %2640 = vmatpush1.bf16.msra.mxu0 0
      %2641 = vmatprep.subr.bf16.mxu0 0
      %2642 = vmatpush1.bf16.msra.mxu0 0
      %2643 = vmatprep.subr.bf16.mxu0 0
      %2644 = vmatpush1.bf16.msra.mxu0 0
      %2645 = vmatprep.subr.bf16.mxu0 0
      %2646 = vmatpush1.bf16.msra.mxu0 0
      %2647 = vmatprep.subr.bf16.mxu0 0
      %2648 = vmatpush1.bf16.msra.mxu0 0
      %2649 = vmatprep.subr.bf16.mxu0 0
      %2650 = vmatpush1.bf16.msra.mxu0 0
      %2651 = vmatprep.subr.bf16.mxu0 0
      %2652 = vmatpush1.bf16.msra.mxu0 0
      %2653 = vmatprep.mubr.bf16.mxu0 0
      %2654 = vmatmul.mubr.bf16.gmra.mrb[0].mxu0 %v2607
      %v2655 = vpop.f32.mrb[0].mxu0
      %v2656 = vadd.f32 0.0, %v2655
      %v2657 = vpop.f32.mrb[0].mxu0
      %v2658 = vadd.f32 0.0, %v2657
      %v2659 = vpop.f32.mrb[0].mxu0
      %v2660 = vadd.f32 0.0, %v2659
      %v2661 = vpop.f32.mrb[0].mxu0
      %v2662 = vadd.f32 0.0, %v2661
      %2663 = vmatprep.mubr.bf16.mxu0 0
      %2664 = vmatmul.mubr.bf16.gmra.mrb[0].mxu0 %v2610
      %v2665 = vpop.f32.mrb[0].mxu0
      %v2666 = vadd.f32 0.0, %v2665
      %v2667 = vpop.f32.mrb[0].mxu0
      %v2668 = vadd.f32 0.0, %v2667
      %v2669 = vpop.f32.mrb[0].mxu0
      %v2670 = vadd.f32 0.0, %v2669
      %v2671 = vpop.f32.mrb[0].mxu0
      %v2672 = vadd.f32 0.0, %v2671
      %2673 = vmatprep.mubr.bf16.mxu0 0
      %2674 = vmatmul.mubr.bf16.gmra.mrb[0].mxu0 %v2613
      %v2675 = vpop.f32.mrb[0].mxu0
      %v2676 = vadd.f32 0.0, %v2675
      %v2677 = vpop.f32.mrb[0].mxu0
      %v2678 = vadd.f32 0.0, %v2677
      %v2679 = vpop.f32.mrb[0].mxu0
      %v2680 = vpop.f32.mrb[0].mxu0
      %2681 = vdwg.mxu0
      %v2684 = vcombine.low %v2676, %v2678
      %v2686 = vunpack.c.l.s4 1983009808
      %v2687 = vunpack.c.0.s8 %v2686
      %v2688 = vlaneseq
      %v2689 = vshrl.u32 %v2688, 7
      %v2690 = vsub.s32 %v2687, %v2689
      %v2691 = vrot.slane %v2684, %v2690
      %s2693 = scalar_lea.vmem %s475, 20
      %2694 = vst.msk [vmem:[%s2693] sm:$0xf] %vm634, %v2691
      %s2695 = scalar_lea.vmem %s461, 80
      %v2696 = vld [vmem:[%s2695] sm:$0xff]
      %v2697 = vld [vmem:[%s2695 + $0x8] sm:$0x3f]
      %s2698 = scalar_lea.vmem %s454, 160
      %v2699 = vld [vmem:[%s2698] sm:$0xff]
      %v2700 = vld [vmem:[%s2698 + $0x8] sm:$0xff]
      %v2701 = vld [vmem:[%s2698 + $0x10] sm:$0xff]
      %v2702 = vld [vmem:[%s2698 + $0x18] sm:$0xff]
      %v2704 = vsel %vm642, %v2696, 0
      %v2707 = vsel %vm642, %v2697, 0
      %v2710 = vsel %vm642, %v2699, 0
      %v2713 = vsel %vm642, %v2700, 0
      %v2716 = vsel %vm642, %v2701, 0
      %v2719 = vsel %vm642, %v2702, 0
      %2721 = vmatprep.subr.mxu0 0.0
      %2722 = vmatpush1.xpose.msra.mxu0 %v2710
      %2723 = vmatprep.subr.mxu0 0.0
      %2724 = vmatpush1.xpose.msra.mxu0 %v2713
      %2725 = vmatprep.subr.mxu0 0.0
      %2726 = vmatpush1.xpose.msra.mxu0 %v2716
      %2727 = vmatprep.subr.mxu0 0.0
      %2728 = vmatpush1.xpose.msra.mxu0 %v2719
      %2729 = vmatprep.subr.mxu0 0.0
      %2730 = vmatpush1.xpose.msra.mxu0 0.0
      %2731 = vmatprep.subr.mxu0 0.0
      %2732 = vmatpush1.xpose.msra.mxu0 0.0
      %2733 = vmatprep.subr.mxu0 0.0
      %2734 = vmatpush1.xpose.msra.mxu0 0.0
      %2735 = vmatprep.subr.mxu0 0.0
      %2736 = vmatpush1.xpose.msra.mxu0 0.0
      %2737 = vmatprep.subr.mxu0 0.0
      %2738 = vmatpush1.xpose.msra.mxu0 0.0
      %2739 = vmatprep.subr.mxu0 0.0
      %2740 = vmatpush1.xpose.msra.mxu0 0.0
      %2741 = vmatprep.subr.mxu0 0.0
      %2742 = vmatpush1.xpose.msra.mxu0 0.0
      %2743 = vmatprep.subr.mxu0 0.0
      %2744 = vmatpush1.xpose.msra.mxu0 0.0
      %2745 = vmatprep.subr.mxu0 0.0
      %2746 = vmatpush1.xpose.msra.mxu0 0.0
      %2747 = vmatprep.subr.mxu0 0.0
      %2748 = vmatpush1.xpose.msra.mxu0 0.0
      %2749 = vmatprep.subr.mxu0 0.0
      %2750 = vmatpush1.xpose.msra.mxu0 0.0
      %2751 = vmatprep.subr.mxu0 0.0
      %2752 = vmatpush1.xpose.msra.mxu0 0.0
      %2753 = vmatprep.subr.mxu0 0.0
      %2754 = vmatpush1.xpose.msra.mxu0 0.0
      %2755 = vmatprep.subr.mxu0 0.0
      %2756 = vmatpush1.xpose.msra.mxu0 0.0
      %2757 = vmatprep.subr.mxu0 0.0
      %2758 = vmatpush1.xpose.msra.mxu0 0.0
      %2759 = vmatprep.subr.mxu0 0.0
      %2760 = vmatpush1.xpose.msra.mxu0 0.0
      %2761 = vmatprep.subr.mxu0 0.0
      %2762 = vmatpush1.xpose.msra.mxu0 0.0
      %2763 = vmatprep.subr.mxu0 0.0
      %2764 = vmatpush1.xpose.msra.mxu0 0.0
      %2765 = vmatprep.subr.mxu0 0.0
      %2766 = vmatpush1.xpose.msra.mxu0 0.0
      %2767 = vmatprep.subr.mxu0 0.0
      %2768 = vmatpush1.xpose.msra.mxu0 0.0
      %2769 = vmatprep.subr.mxu0 0.0
      %2770 = vmatpush1.xpose.msra.mxu0 0.0
      %2771 = vmatprep.subr.mxu0 0.0
      %2772 = vmatpush1.xpose.msra.mxu0 0.0
      %2773 = vmatprep.subr.mxu0 0.0
      %2774 = vmatpush1.xpose.msra.mxu0 0.0
      %2775 = vmatprep.subr.mxu0 0.0
      %2776 = vmatpush1.xpose.msra.mxu0 0.0
      %2777 = vmatprep.subr.mxu0 0.0
      %2778 = vmatpush1.xpose.msra.mxu0 0.0
      %2779 = vmatprep.subr.mxu0 0.0
      %2780 = vmatpush1.xpose.msra.mxu0 0.0
      %2781 = vmatprep.subr.mxu0 0.0
      %2782 = vmatpush1.xpose.msra.mxu0 0.0
      %2783 = vmatprep.subr.mxu0 0.0
      %2784 = vmatpush1.xpose.msra.mxu0 0.0
      %2785 = vmatprep.mubr.f32.mxu0 0.0
      %2786 = vmatmul.mubr.f32.gmra.mrb[0].mxu0 %v2704
      %v2787 = vpop.f32.mrb[0].mxu0
      %v2788 = vadd.f32 0.0, %v2787
      %v2789 = vpop.f32.mrb[0].mxu0
      %2790 = vmatprep.mubr.f32.mxu0 0.0
      %2791 = vmatmul.mubr.f32.gmra.mrb[0].mxu0 %v2707
      %v2792 = vpop.f32.mrb[0].mxu0
      %v2793 = vadd.f32 0.0, %v2792
      %v2794 = vpop.f32.mrb[0].mxu0
      %2795 = vdwg.mxu0
      %v2796 = vpack.c.bf16 %v2793, %v2788
      %s2797 = scalar_lea.vmem %s468, 160
      %v2798 = vld [vmem:[%s2797] sm:$0xff]
      %v2799 = vld [vmem:[%s2797 + $0x8] sm:$0xff]
      %v2800 = vld [vmem:[%s2797 + $0x10] sm:$0xff]
      %v2801 = vld [vmem:[%s2797 + $0x18] sm:$0xff]
      %v2806 = vunpack.c.l.b16 %v2798
      %v2807 = vunpack.c.h.b16 %v2798
      %v2808 = vunpack.c.l.b16 %v2799
      %v2809 = vunpack.c.h.b16 %v2799
      %v2810 = vunpack.c.l.b16 %v2800
      %v2811 = vunpack.c.h.b16 %v2800
      %v2812 = vunpack.c.l.b16 %v2801
      %v2813 = vunpack.c.h.b16 %v2801
      %v2814 = vpack.c.b16 %v2808, %v2806
      %v2815 = vpack.c.b16 %v2809, %v2807
      %v2816 = vpack.c.b16 %v2812, %v2810
      %v2817 = vpack.c.b16 %v2813, %v2811
      %v2823 = vsel %vm642, %v2796, 0
      %2825 = vmatprep.subr.bf16.mxu0 %v2815
      %2826 = vmatpush1.bf16.msra.mxu0 %v2814
      %2827 = vmatprep.subr.bf16.mxu0 %v2817
      %2828 = vmatpush1.bf16.msra.mxu0 %v2816
      %2829 = vmatprep.subr.bf16.mxu0 0
      %2830 = vmatpush1.bf16.msra.mxu0 0
      %2831 = vmatprep.subr.bf16.mxu0 0
      %2832 = vmatpush1.bf16.msra.mxu0 0
      %2833 = vmatprep.subr.bf16.mxu0 0
      %2834 = vmatpush1.bf16.msra.mxu0 0
      %2835 = vmatprep.subr.bf16.mxu0 0
      %2836 = vmatpush1.bf16.msra.mxu0 0
      %2837 = vmatprep.subr.bf16.mxu0 0
      %2838 = vmatpush1.bf16.msra.mxu0 0
      %2839 = vmatprep.subr.bf16.mxu0 0
      %2840 = vmatpush1.bf16.msra.mxu0 0
      %2841 = vmatprep.subr.bf16.mxu0 0
      %2842 = vmatpush1.bf16.msra.mxu0 0
      %2843 = vmatprep.subr.bf16.mxu0 0
      %2844 = vmatpush1.bf16.msra.mxu0 0
      %2845 = vmatprep.subr.bf16.mxu0 0
      %2846 = vmatpush1.bf16.msra.mxu0 0
      %2847 = vmatprep.subr.bf16.mxu0 0
      %2848 = vmatpush1.bf16.msra.mxu0 0
      %2849 = vmatprep.subr.bf16.mxu0 0
      %2850 = vmatpush1.bf16.msra.mxu0 0
      %2851 = vmatprep.subr.bf16.mxu0 0
      %2852 = vmatpush1.bf16.msra.mxu0 0
      %2853 = vmatprep.subr.bf16.mxu0 0
      %2854 = vmatpush1.bf16.msra.mxu0 0
      %2855 = vmatprep.subr.bf16.mxu0 0
      %2856 = vmatpush1.bf16.msra.mxu0 0
      %2857 = vmatprep.mubr.bf16.mxu0 0
      %2858 = vmatmul.mubr.bf16.gmra.mrb[0].mxu0 %v2823
      %v2859 = vpop.f32.mrb[0].mxu0
      %v2860 = vadd.f32 0.0, %v2859
      %v2861 = vpop.f32.mrb[0].mxu0
      %v2862 = vadd.f32 0.0, %v2861
      %v2863 = vpop.f32.mrb[0].mxu0
      %v2864 = vadd.f32 0.0, %v2863
      %v2865 = vpop.f32.mrb[0].mxu0
      %v2866 = vadd.f32 0.0, %v2865
      %2867 = vdwg.mxu0
      %v2868 = vmul.f32 %v2860, %v489
      %v2869 = vmul.f32 %v2862, %v490
      %v2870 = vmul.f32 %v2864, %v491
      %v2871 = vmul.f32 %v2866, %v492
      %v2872 = vsel %vm811, %v2870, 0.0
      %v2873 = vadd.f32 %v2868, %v2872
      %v2874 = vrot.slane %v2873, 4
      %v2875 = vadd.f32 %v2873, %v2874
      %v2876 = vrot.slane %v2875, 2
      %v2877 = vadd.f32 %v2875, %v2876
      %v2878 = vrot.slane %v2877, 1
      %v2879 = vadd.f32 %v2877, %v2878
      %v2880 = vsel %vm820, %v2869, 0.0
      %v2881 = vsel %vm822, %v2871, 0.0
      %v2882 = vadd.f32 %v2880, %v2881
      %v2883 = vrot.slane %v2882, 4
      %v2884 = vadd.f32 %v2882, %v2883
      %v2885 = vrot.slane %v2884, 2
      %v2886 = vadd.f32 %v2884, %v2885
      %v2887 = vrot.slane %v2886, 1
      %v2888 = vadd.f32 %v2886, %v2887
      %v2889 = vmul.f32 %v834, %v2879
      %v2890 = vmul.f32 %v834, %v2888
      %v2891 = vmul.f32 %v839, %v2879
      %v2892 = vmul.f32 %v839, %v2888
      %v2893 = vmul.f32 %v844, %v2879
      %v2894 = vmul.f32 %v844, %v2888
      %v2895 = vmul.f32 %v849, %v2879
      %v2896 = vmul.f32 %v849, %v2888
      %v2897 = vadd.f32 %v2656, %v2889
      %v2898 = vadd.f32 %v2658, %v2890
      %v2899 = vadd.f32 %v2660, %v2891
      %v2900 = vadd.f32 %v2662, %v2892
      %v2901 = vadd.f32 %v2666, %v2893
      %v2902 = vadd.f32 %v2668, %v2894
      %v2903 = vadd.f32 %v2670, %v2895
      %v2904 = vadd.f32 %v2672, %v2896
      %v2905 = vmax.f32 %v2897, 0.0
      %v2906 = vmax.f32 %v2898, 0.0
      %v2907 = vmax.f32 %v2899, 0.0
      %v2908 = vmax.f32 %v2900, 0.0
      %v2909 = vmax.f32 %v2901, 0.0
      %v2910 = vmax.f32 %v2902, 0.0
      %v2911 = vmax.f32 %v2903, 0.0
      %v2912 = vmax.f32 %v2904, 0.0
      %2913 = vst [vmem:[#allocation2 + $0x140] sm:$0xff] %v2905
      %2914 = vst.msk [vmem:[#allocation2 + $0x148] sm:$0xff] %vm820, %v2906
      %2915 = vst [vmem:[#allocation2 + $0x150] sm:$0xff] %v2907
      %2916 = vst.msk [vmem:[#allocation2 + $0x158] sm:$0xff] %vm820, %v2908
      %2917 = vst [vmem:[#allocation2 + $0x160] sm:$0xff] %v2909
      %2918 = vst.msk [vmem:[#allocation2 + $0x168] sm:$0xff] %vm820, %v2910
      %2919 = vst [vmem:[#allocation2 + $0x170] sm:$0xff] %v2911
      %2920 = vst.msk [vmem:[#allocation2 + $0x178] sm:$0xff] %vm820, %v2912
      %v2922 = vunpack.c.l.s4 1966171168
      %v2923 = vunpack.c.0.s8 %v2922
      %v2924 = vlaneseq
      %v2925 = vshrl.u32 %v2924, 7
      %v2926 = vsub.s32 %v2923, %v2925
      %v2927 = vrot.slane %v2684, %v2926
      %v2929 = vunpack.c.l.s4 1966171168
      %v2930 = vunpack.c.0.s8 %v2929
      %v2931 = vlaneseq
      %v2932 = vshrl.u32 %v2931, 7
      %v2933 = vsub.s32 %v2930, %v2932
      %v2934 = vrot.slane %v2927, %v2933
      %s2936 = scalar_lea.vmem [#allocation3], 23
      %2937 = vst.msk [vmem:[%s2936] ss:$8 sm:$0x3] %vm901, %v2934
      %2938 = vst.msk [vmem:[%s2936] ss:$8 sm:$0x0] %vm901, %v2934
      %s2939 = scalar_lea.vmem [#allocation3], 32
      %2940 = vst.msk [vmem:[%s2939] ss:$8 sm:$0x3] %vm901, %v2934
      %2941 = vst.msk [vmem:[%s2939] ss:$8 sm:$0x0] %vm901, %v2934
      %v2944 = vcombine.low %v2879, %v2888
      %v2946 = vunpack.c.l.s4 1966171168
      %v2947 = vunpack.c.0.s8 %v2946
      %v2948 = vlaneseq
      %v2949 = vshrl.u32 %v2948, 7
      %v2950 = vsub.s32 %v2947, %v2949
      %v2951 = vrot.slane %v2944, %v2950
      %v2953 = vunpack.c.l.s4 1966171168
      %v2954 = vunpack.c.0.s8 %v2953
      %v2955 = vlaneseq
      %v2956 = vshrl.u32 %v2955, 7
      %v2957 = vsub.s32 %v2954, %v2956
      %v2958 = vrot.slane %v2951, %v2957
      %s2960 = scalar_lea.vmem [#allocation3], 33
      %2961 = vst.msk [vmem:[%s2960] ss:$8 sm:$0x3] %vm901, %v2958
      %2962 = vst.msk [vmem:[%s2960] ss:$8 sm:$0x0] %vm901, %v2958
      %s2963 = scalar_lea.vmem %s447, 120
      %v2964 = vld [vmem:[%s2963] sm:$0xf]
      %v2965 = vld [vmem:[%s2963 + $0x4] sm:$0xf]
      %v2966 = vld [vmem:[%s2963 + $0x8] sm:$0xf]
      %v2967 = vld [vmem:[%s2963 + $0xc] sm:$0xf]
      %v2968 = vld [vmem:[%s2963 + $0x10] sm:$0x1]
      %s2969 = scalar_lea.vmem %s440, 240
      %v2970 = vld [vmem:[%s2969] sm:$0xff]
      %v2971 = vld [vmem:[%s2969 + $0x8] sm:$0xff]
      %v2972 = vld [vmem:[%s2969 + $0x10] sm:$0xff]
      %v2973 = vld [vmem:[%s2969 + $0x18] sm:$0xff]
      %v2974 = vld [vmem:[%s2969 + $0x20] sm:$0x11]
      %v2980 = vunpack.c.l.b16 %v2964
      %v2981 = vunpack.c.l.b16 %v2965
      %v2982 = vunpack.c.l.b16 %v2966
      %v2983 = vunpack.c.l.b16 %v2967
      %v2984 = vunpack.c.l.b16 %v2968
      %v2985 = vpack.c.b16 %v2981, %v2980
      %v2986 = vpack.c.b16 %v2983, %v2982
      %v2987 = vpack.c.b16 %v2984, %v2984
      %v2993 = vunpack.c.l.b16 %v2970
      %v2994 = vunpack.c.h.b16 %v2970
      %v2995 = vunpack.c.l.b16 %v2971
      %v2996 = vunpack.c.h.b16 %v2971
      %v2997 = vunpack.c.l.b16 %v2972
      %v2998 = vunpack.c.h.b16 %v2972
      %v2999 = vunpack.c.l.b16 %v2973
      %v3000 = vunpack.c.h.b16 %v2973
      %v3001 = vunpack.c.l.b16 %v2974
      %v3002 = vunpack.c.h.b16 %v2974
      %v3003 = vpack.c.b16 %v2995, %v2993
      %v3004 = vpack.c.b16 %v2996, %v2994
      %v3005 = vpack.c.b16 %v2999, %v2997
      %v3006 = vpack.c.b16 %v3000, %v2998
      %v3007 = vpack.c.b16 %v3001, %v3001
      %v3008 = vpack.c.b16 %v3002, %v3002
      %v3014 = vsel %vm541, %v2985, 0
      %v3017 = vsel %vm541, %v2986, 0
      %v3020 = vsel %vm541, %v2987, 0
      %v3023 = vand.u32 %v3007, %v553
      %v3026 = vand.u32 %v3008, %v553
      %3028 = vmatprep.subr.bf16.mxu0 %v3004
      %3029 = vmatpush1.bf16.msra.mxu0 %v3003
      %3030 = vmatprep.subr.bf16.mxu0 %v3006
      %3031 = vmatpush1.bf16.msra.mxu0 %v3005
      %3032 = vmatprep.subr.bf16.mxu0 %v3026
      %3033 = vmatpush1.bf16.msra.mxu0 %v3023
      %3034 = vmatprep.subr.bf16.mxu0 0
      %3035 = vmatpush1.bf16.msra.mxu0 0
      %3036 = vmatprep.subr.bf16.mxu0 0
      %3037 = vmatpush1.bf16.msra.mxu0 0
      %3038 = vmatprep.subr.bf16.mxu0 0
      %3039 = vmatpush1.bf16.msra.mxu0 0
      %3040 = vmatprep.subr.bf16.mxu0 0
      %3041 = vmatpush1.bf16.msra.mxu0 0
      %3042 = vmatprep.subr.bf16.mxu0 0
      %3043 = vmatpush1.bf16.msra.mxu0 0
      %3044 = vmatprep.subr.bf16.mxu0 0
      %3045 = vmatpush1.bf16.msra.mxu0 0
      %3046 = vmatprep.subr.bf16.mxu0 0
      %3047 = vmatpush1.bf16.msra.mxu0 0
      %3048 = vmatprep.subr.bf16.mxu0 0
      %3049 = vmatpush1.bf16.msra.mxu0 0
      %3050 = vmatprep.subr.bf16.mxu0 0
      %3051 = vmatpush1.bf16.msra.mxu0 0
      %3052 = vmatprep.subr.bf16.mxu0 0
      %3053 = vmatpush1.bf16.msra.mxu0 0
      %3054 = vmatprep.subr.bf16.mxu0 0
      %3055 = vmatpush1.bf16.msra.mxu0 0
      %3056 = vmatprep.subr.bf16.mxu0 0
      %3057 = vmatpush1.bf16.msra.mxu0 0
      %3058 = vmatprep.subr.bf16.mxu0 0
      %3059 = vmatpush1.bf16.msra.mxu0 0
      %3060 = vmatprep.mubr.bf16.mxu0 0
      %3061 = vmatmul.mubr.bf16.gmra.mrb[0].mxu0 %v3014
      %v3062 = vpop.f32.mrb[0].mxu0
      %v3063 = vadd.f32 0.0, %v3062
      %v3064 = vpop.f32.mrb[0].mxu0
      %v3065 = vadd.f32 0.0, %v3064
      %v3066 = vpop.f32.mrb[0].mxu0
      %v3067 = vadd.f32 0.0, %v3066
      %v3068 = vpop.f32.mrb[0].mxu0
      %v3069 = vadd.f32 0.0, %v3068
      %3070 = vmatprep.mubr.bf16.mxu0 0
      %3071 = vmatmul.mubr.bf16.gmra.mrb[0].mxu0 %v3017
      %v3072 = vpop.f32.mrb[0].mxu0
      %v3073 = vadd.f32 0.0, %v3072
      %v3074 = vpop.f32.mrb[0].mxu0
      %v3075 = vadd.f32 0.0, %v3074
      %v3076 = vpop.f32.mrb[0].mxu0
      %v3077 = vadd.f32 0.0, %v3076
      %v3078 = vpop.f32.mrb[0].mxu0
      %v3079 = vadd.f32 0.0, %v3078
      %3080 = vmatprep.mubr.bf16.mxu0 0
      %3081 = vmatmul.mubr.bf16.gmra.mrb[0].mxu0 %v3020
      %v3082 = vpop.f32.mrb[0].mxu0
      %v3083 = vadd.f32 0.0, %v3082
      %v3084 = vpop.f32.mrb[0].mxu0
      %v3085 = vadd.f32 0.0, %v3084
      %v3086 = vpop.f32.mrb[0].mxu0
      %v3087 = vpop.f32.mrb[0].mxu0
      %3088 = vdwg.mxu0
      %v3091 = vcombine.low %v3083, %v3085
      %v3093 = vunpack.c.l.s4 1983009808
      %v3094 = vunpack.c.0.s8 %v3093
      %v3095 = vlaneseq
      %v3096 = vshrl.u32 %v3095, 7
      %v3097 = vsub.s32 %v3094, %v3096
      %v3098 = vrot.slane %v3091, %v3097
      %s3100 = scalar_lea.vmem %s475, 24
      %3101 = vst.msk [vmem:[%s3100] sm:$0xf] %vm634, %v3098
      %s3102 = scalar_lea.vmem %s461, 96
      %v3103 = vld [vmem:[%s3102] sm:$0xff]
      %v3104 = vld [vmem:[%s3102 + $0x8] sm:$0x3f]
      %s3105 = scalar_lea.vmem %s454, 192
      %v3106 = vld [vmem:[%s3105] sm:$0xff]
      %v3107 = vld [vmem:[%s3105 + $0x8] sm:$0xff]
      %v3108 = vld [vmem:[%s3105 + $0x10] sm:$0xff]
      %v3109 = vld [vmem:[%s3105 + $0x18] sm:$0xff]
      %v3111 = vsel %vm642, %v3103, 0
      %v3114 = vsel %vm642, %v3104, 0
      %v3117 = vsel %vm642, %v3106, 0
      %v3120 = vsel %vm642, %v3107, 0
      %v3123 = vsel %vm642, %v3108, 0
      %v3126 = vsel %vm642, %v3109, 0
      %3128 = vmatprep.subr.mxu0 0.0
      %3129 = vmatpush1.xpose.msra.mxu0 %v3117
      %3130 = vmatprep.subr.mxu0 0.0
      %3131 = vmatpush1.xpose.msra.mxu0 %v3120
      %3132 = vmatprep.subr.mxu0 0.0
      %3133 = vmatpush1.xpose.msra.mxu0 %v3123
      %3134 = vmatprep.subr.mxu0 0.0
      %3135 = vmatpush1.xpose.msra.mxu0 %v3126
      %3136 = vmatprep.subr.mxu0 0.0
      %3137 = vmatpush1.xpose.msra.mxu0 0.0
      %3138 = vmatprep.subr.mxu0 0.0
      %3139 = vmatpush1.xpose.msra.mxu0 0.0
      %3140 = vmatprep.subr.mxu0 0.0
      %3141 = vmatpush1.xpose.msra.mxu0 0.0
      %3142 = vmatprep.subr.mxu0 0.0
      %3143 = vmatpush1.xpose.msra.mxu0 0.0
      %3144 = vmatprep.subr.mxu0 0.0
      %3145 = vmatpush1.xpose.msra.mxu0 0.0
      %3146 = vmatprep.subr.mxu0 0.0
      %3147 = vmatpush1.xpose.msra.mxu0 0.0
      %3148 = vmatprep.subr.mxu0 0.0
      %3149 = vmatpush1.xpose.msra.mxu0 0.0
      %3150 = vmatprep.subr.mxu0 0.0
      %3151 = vmatpush1.xpose.msra.mxu0 0.0
      %3152 = vmatprep.subr.mxu0 0.0
      %3153 = vmatpush1.xpose.msra.mxu0 0.0
      %3154 = vmatprep.subr.mxu0 0.0
      %3155 = vmatpush1.xpose.msra.mxu0 0.0
      %3156 = vmatprep.subr.mxu0 0.0
      %3157 = vmatpush1.xpose.msra.mxu0 0.0
      %3158 = vmatprep.subr.mxu0 0.0
      %3159 = vmatpush1.xpose.msra.mxu0 0.0
      %3160 = vmatprep.subr.mxu0 0.0
      %3161 = vmatpush1.xpose.msra.mxu0 0.0
      %3162 = vmatprep.subr.mxu0 0.0
      %3163 = vmatpush1.xpose.msra.mxu0 0.0
      %3164 = vmatprep.subr.mxu0 0.0
      %3165 = vmatpush1.xpose.msra.mxu0 0.0
      %3166 = vmatprep.subr.mxu0 0.0
      %3167 = vmatpush1.xpose.msra.mxu0 0.0
      %3168 = vmatprep.subr.mxu0 0.0
      %3169 = vmatpush1.xpose.msra.mxu0 0.0
      %3170 = vmatprep.subr.mxu0 0.0
      %3171 = vmatpush1.xpose.msra.mxu0 0.0
      %3172 = vmatprep.subr.mxu0 0.0
      %3173 = vmatpush1.xpose.msra.mxu0 0.0
      %3174 = vmatprep.subr.mxu0 0.0
      %3175 = vmatpush1.xpose.msra.mxu0 0.0
      %3176 = vmatprep.subr.mxu0 0.0
      %3177 = vmatpush1.xpose.msra.mxu0 0.0
      %3178 = vmatprep.subr.mxu0 0.0
      %3179 = vmatpush1.xpose.msra.mxu0 0.0
      %3180 = vmatprep.subr.mxu0 0.0
      %3181 = vmatpush1.xpose.msra.mxu0 0.0
      %3182 = vmatprep.subr.mxu0 0.0
      %3183 = vmatpush1.xpose.msra.mxu0 0.0
      %3184 = vmatprep.subr.mxu0 0.0
      %3185 = vmatpush1.xpose.msra.mxu0 0.0
      %3186 = vmatprep.subr.mxu0 0.0
      %3187 = vmatpush1.xpose.msra.mxu0 0.0
      %3188 = vmatprep.subr.mxu0 0.0
      %3189 = vmatpush1.xpose.msra.mxu0 0.0
      %3190 = vmatprep.subr.mxu0 0.0
      %3191 = vmatpush1.xpose.msra.mxu0 0.0
      %3192 = vmatprep.mubr.f32.mxu0 0.0
      %3193 = vmatmul.mubr.f32.gmra.mrb[0].mxu0 %v3111
      %v3194 = vpop.f32.mrb[0].mxu0
      %v3195 = vadd.f32 0.0, %v3194
      %v3196 = vpop.f32.mrb[0].mxu0
      %3197 = vmatprep.mubr.f32.mxu0 0.0
      %3198 = vmatmul.mubr.f32.gmra.mrb[0].mxu0 %v3114
      %v3199 = vpop.f32.mrb[0].mxu0
      %v3200 = vadd.f32 0.0, %v3199
      %v3201 = vpop.f32.mrb[0].mxu0
      %3202 = vdwg.mxu0
      %v3203 = vpack.c.bf16 %v3200, %v3195
      %s3204 = scalar_lea.vmem %s468, 192
      %v3205 = vld [vmem:[%s3204] sm:$0xff]
      %v3206 = vld [vmem:[%s3204 + $0x8] sm:$0xff]
      %v3207 = vld [vmem:[%s3204 + $0x10] sm:$0xff]
      %v3208 = vld [vmem:[%s3204 + $0x18] sm:$0xff]
      %v3213 = vunpack.c.l.b16 %v3205
      %v3214 = vunpack.c.h.b16 %v3205
      %v3215 = vunpack.c.l.b16 %v3206
      %v3216 = vunpack.c.h.b16 %v3206
      %v3217 = vunpack.c.l.b16 %v3207
      %v3218 = vunpack.c.h.b16 %v3207
      %v3219 = vunpack.c.l.b16 %v3208
      %v3220 = vunpack.c.h.b16 %v3208
      %v3221 = vpack.c.b16 %v3215, %v3213
      %v3222 = vpack.c.b16 %v3216, %v3214
      %v3223 = vpack.c.b16 %v3219, %v3217
      %v3224 = vpack.c.b16 %v3220, %v3218
      %v3230 = vsel %vm642, %v3203, 0
      %3232 = vmatprep.subr.bf16.mxu0 %v3222
      %3233 = vmatpush1.bf16.msra.mxu0 %v3221
      %3234 = vmatprep.subr.bf16.mxu0 %v3224
      %3235 = vmatpush1.bf16.msra.mxu0 %v3223
      %3236 = vmatprep.subr.bf16.mxu0 0
      %3237 = vmatpush1.bf16.msra.mxu0 0
      %3238 = vmatprep.subr.bf16.mxu0 0
      %3239 = vmatpush1.bf16.msra.mxu0 0
      %3240 = vmatprep.subr.bf16.mxu0 0
      %3241 = vmatpush1.bf16.msra.mxu0 0
      %3242 = vmatprep.subr.bf16.mxu0 0
      %3243 = vmatpush1.bf16.msra.mxu0 0
      %3244 = vmatprep.subr.bf16.mxu0 0
      %3245 = vmatpush1.bf16.msra.mxu0 0
      %3246 = vmatprep.subr.bf16.mxu0 0
      %3247 = vmatpush1.bf16.msra.mxu0 0
      %3248 = vmatprep.subr.bf16.mxu0 0
      %3249 = vmatpush1.bf16.msra.mxu0 0
      %3250 = vmatprep.subr.bf16.mxu0 0
      %3251 = vmatpush1.bf16.msra.mxu0 0
      %3252 = vmatprep.subr.bf16.mxu0 0
      %3253 = vmatpush1.bf16.msra.mxu0 0
      %3254 = vmatprep.subr.bf16.mxu0 0
      %3255 = vmatpush1.bf16.msra.mxu0 0
      %3256 = vmatprep.subr.bf16.mxu0 0
      %3257 = vmatpush1.bf16.msra.mxu0 0
      %3258 = vmatprep.subr.bf16.mxu0 0
      %3259 = vmatpush1.bf16.msra.mxu0 0
      %3260 = vmatprep.subr.bf16.mxu0 0
      %3261 = vmatpush1.bf16.msra.mxu0 0
      %3262 = vmatprep.subr.bf16.mxu0 0
      %3263 = vmatpush1.bf16.msra.mxu0 0
      %3264 = vmatprep.mubr.bf16.mxu0 0
      %3265 = vmatmul.mubr.bf16.gmra.mrb[0].mxu0 %v3230
      %v3266 = vpop.f32.mrb[0].mxu0
      %v3267 = vadd.f32 0.0, %v3266
      %v3268 = vpop.f32.mrb[0].mxu0
      %v3269 = vadd.f32 0.0, %v3268
      %v3270 = vpop.f32.mrb[0].mxu0
      %v3271 = vadd.f32 0.0, %v3270
      %v3272 = vpop.f32.mrb[0].mxu0
      %v3273 = vadd.f32 0.0, %v3272
      %3274 = vdwg.mxu0
      %v3275 = vmul.f32 %v3267, %v489
      %v3276 = vmul.f32 %v3269, %v490
      %v3277 = vmul.f32 %v3271, %v491
      %v3278 = vmul.f32 %v3273, %v492
      %v3279 = vsel %vm811, %v3277, 0.0
      %v3280 = vadd.f32 %v3275, %v3279
      %v3281 = vrot.slane %v3280, 4
      %v3282 = vadd.f32 %v3280, %v3281
      %v3283 = vrot.slane %v3282, 2
      %v3284 = vadd.f32 %v3282, %v3283
      %v3285 = vrot.slane %v3284, 1
      %v3286 = vadd.f32 %v3284, %v3285
      %v3287 = vsel %vm820, %v3276, 0.0
      %v3288 = vsel %vm822, %v3278, 0.0
      %v3289 = vadd.f32 %v3287, %v3288
      %v3290 = vrot.slane %v3289, 4
      %v3291 = vadd.f32 %v3289, %v3290
      %v3292 = vrot.slane %v3291, 2
      %v3293 = vadd.f32 %v3291, %v3292
      %v3294 = vrot.slane %v3293, 1
      %v3295 = vadd.f32 %v3293, %v3294
      %v3296 = vmul.f32 %v834, %v3286
      %v3297 = vmul.f32 %v834, %v3295
      %v3298 = vmul.f32 %v839, %v3286
      %v3299 = vmul.f32 %v839, %v3295
      %v3300 = vmul.f32 %v844, %v3286
      %v3301 = vmul.f32 %v844, %v3295
      %v3302 = vmul.f32 %v849, %v3286
      %v3303 = vmul.f32 %v849, %v3295
      %v3304 = vadd.f32 %v3063, %v3296
      %v3305 = vadd.f32 %v3065, %v3297
      %v3306 = vadd.f32 %v3067, %v3298
      %v3307 = vadd.f32 %v3069, %v3299
      %v3308 = vadd.f32 %v3073, %v3300
      %v3309 = vadd.f32 %v3075, %v3301
      %v3310 = vadd.f32 %v3077, %v3302
      %v3311 = vadd.f32 %v3079, %v3303
      %v3312 = vmax.f32 %v3304, 0.0
      %v3313 = vmax.f32 %v3305, 0.0
      %v3314 = vmax.f32 %v3306, 0.0
      %v3315 = vmax.f32 %v3307, 0.0
      %v3316 = vmax.f32 %v3308, 0.0
      %v3317 = vmax.f32 %v3309, 0.0
      %v3318 = vmax.f32 %v3310, 0.0
      %v3319 = vmax.f32 %v3311, 0.0
      %3320 = vst [vmem:[#allocation2 + $0x180] sm:$0xff] %v3312
      %3321 = vst.msk [vmem:[#allocation2 + $0x188] sm:$0xff] %vm820, %v3313
      %3322 = vst [vmem:[#allocation2 + $0x190] sm:$0xff] %v3314
      %3323 = vst.msk [vmem:[#allocation2 + $0x198] sm:$0xff] %vm820, %v3315
      %3324 = vst [vmem:[#allocation2 + $0x1a0] sm:$0xff] %v3316
      %3325 = vst.msk [vmem:[#allocation2 + $0x1a8] sm:$0xff] %vm820, %v3317
      %3326 = vst [vmem:[#allocation2 + $0x1b0] sm:$0xff] %v3318
      %3327 = vst.msk [vmem:[#allocation2 + $0x1b8] sm:$0xff] %vm820, %v3319
      %v3329 = vunpack.c.l.s4 1966171168
      %v3330 = vunpack.c.0.s8 %v3329
      %v3331 = vlaneseq
      %v3332 = vshrl.u32 %v3331, 7
      %v3333 = vsub.s32 %v3330, %v3332
      %v3334 = vrot.slane %v3091, %v3333
      %v3336 = vunpack.c.l.s4 1966171168
      %v3337 = vunpack.c.0.s8 %v3336
      %v3338 = vlaneseq
      %v3339 = vshrl.u32 %v3338, 7
      %v3340 = vsub.s32 %v3337, %v3339
      %v3341 = vrot.slane %v3334, %v3340
      %s3343 = scalar_lea.vmem [#allocation3], 34
      %3344 = vst.msk [vmem:[%s3343] ss:$8 sm:$0x3] %vm901, %v3341
      %3345 = vst.msk [vmem:[%s3343] ss:$8 sm:$0x0] %vm901, %v3341
      %s3346 = scalar_lea.vmem [#allocation3], 35
      %3347 = vst.msk [vmem:[%s3346] ss:$8 sm:$0x3] %vm901, %v3341
      %3348 = vst.msk [vmem:[%s3346] ss:$8 sm:$0x0] %vm901, %v3341
      %v3351 = vcombine.low %v3286, %v3295
      %v3353 = vunpack.c.l.s4 1966171168
      %v3354 = vunpack.c.0.s8 %v3353
      %v3355 = vlaneseq
      %v3356 = vshrl.u32 %v3355, 7
      %v3357 = vsub.s32 %v3354, %v3356
      %v3358 = vrot.slane %v3351, %v3357
      %v3360 = vunpack.c.l.s4 1966171168
      %v3361 = vunpack.c.0.s8 %v3360
      %v3362 = vlaneseq
      %v3363 = vshrl.u32 %v3362, 7
      %v3364 = vsub.s32 %v3361, %v3363
      %v3365 = vrot.slane %v3358, %v3364
      %s3367 = scalar_lea.vmem [#allocation3], 36
      %3368 = vst.msk [vmem:[%s3367] ss:$8 sm:$0x3] %vm901, %v3365
      %3369 = vst.msk [vmem:[%s3367] ss:$8 sm:$0x0] %vm901, %v3365
      %s3370 = scalar_lea.vmem %s447, 140
      %v3371 = vld [vmem:[%s3370] sm:$0xf]
      %v3372 = vld [vmem:[%s3370 + $0x4] sm:$0xf]
      %v3373 = vld [vmem:[%s3370 + $0x8] sm:$0xf]
      %v3374 = vld [vmem:[%s3370 + $0xc] sm:$0xf]
      %v3375 = vld [vmem:[%s3370 + $0x10] sm:$0x1]
      %s3376 = scalar_lea.vmem %s440, 280
      %v3377 = vld [vmem:[%s3376] sm:$0xff]
      %v3378 = vld [vmem:[%s3376 + $0x8] sm:$0xff]
      %v3379 = vld [vmem:[%s3376 + $0x10] sm:$0xff]
      %v3380 = vld [vmem:[%s3376 + $0x18] sm:$0xff]
      %v3381 = vld [vmem:[%s3376 + $0x20] sm:$0x11]
      %v3387 = vunpack.c.l.b16 %v3371
      %v3388 = vunpack.c.l.b16 %v3372
      %v3389 = vunpack.c.l.b16 %v3373
      %v3390 = vunpack.c.l.b16 %v3374
      %v3391 = vunpack.c.l.b16 %v3375
      %v3392 = vpack.c.b16 %v3388, %v3387
      %v3393 = vpack.c.b16 %v3390, %v3389
      %v3394 = vpack.c.b16 %v3391, %v3391
      %v3400 = vunpack.c.l.b16 %v3377
      %v3401 = vunpack.c.h.b16 %v3377
      %v3402 = vunpack.c.l.b16 %v3378
      %v3403 = vunpack.c.h.b16 %v3378
      %v3404 = vunpack.c.l.b16 %v3379
      %v3405 = vunpack.c.h.b16 %v3379
      %v3406 = vunpack.c.l.b16 %v3380
      %v3407 = vunpack.c.h.b16 %v3380
      %v3408 = vunpack.c.l.b16 %v3381
      %v3409 = vunpack.c.h.b16 %v3381
      %v3410 = vpack.c.b16 %v3402, %v3400
      %v3411 = vpack.c.b16 %v3403, %v3401
      %v3412 = vpack.c.b16 %v3406, %v3404
      %v3413 = vpack.c.b16 %v3407, %v3405
      %v3414 = vpack.c.b16 %v3408, %v3408
      %v3415 = vpack.c.b16 %v3409, %v3409
      %v3421 = vsel %vm541, %v3392, 0
      %v3424 = vsel %vm541, %v3393, 0
      %v3427 = vsel %vm541, %v3394, 0
      %v3430 = vand.u32 %v3414, %v553
      %v3433 = vand.u32 %v3415, %v553
      %3435 = vmatprep.subr.bf16.mxu0 %v3411
      %3436 = vmatpush1.bf16.msra.mxu0 %v3410
      %3437 = vmatprep.subr.bf16.mxu0 %v3413
      %3438 = vmatpush1.bf16.msra.mxu0 %v3412
      %3439 = vmatprep.subr.bf16.mxu0 %v3433
      %3440 = vmatpush1.bf16.msra.mxu0 %v3430
      %3441 = vmatprep.subr.bf16.mxu0 0
      %3442 = vmatpush1.bf16.msra.mxu0 0
      %3443 = vmatprep.subr.bf16.mxu0 0
      %3444 = vmatpush1.bf16.msra.mxu0 0
      %3445 = vmatprep.subr.bf16.mxu0 0
      %3446 = vmatpush1.bf16.msra.mxu0 0
      %3447 = vmatprep.subr.bf16.mxu0 0
      %3448 = vmatpush1.bf16.msra.mxu0 0
      %3449 = vmatprep.subr.bf16.mxu0 0
      %3450 = vmatpush1.bf16.msra.mxu0 0
      %3451 = vmatprep.subr.bf16.mxu0 0
      %3452 = vmatpush1.bf16.msra.mxu0 0
      %3453 = vmatprep.subr.bf16.mxu0 0
      %3454 = vmatpush1.bf16.msra.mxu0 0
      %3455 = vmatprep.subr.bf16.mxu0 0
      %3456 = vmatpush1.bf16.msra.mxu0 0
      %3457 = vmatprep.subr.bf16.mxu0 0
      %3458 = vmatpush1.bf16.msra.mxu0 0
      %3459 = vmatprep.subr.bf16.mxu0 0
      %3460 = vmatpush1.bf16.msra.mxu0 0
      %3461 = vmatprep.subr.bf16.mxu0 0
      %3462 = vmatpush1.bf16.msra.mxu0 0
      %3463 = vmatprep.subr.bf16.mxu0 0
      %3464 = vmatpush1.bf16.msra.mxu0 0
      %3465 = vmatprep.subr.bf16.mxu0 0
      %3466 = vmatpush1.bf16.msra.mxu0 0
      %3467 = vmatprep.mubr.bf16.mxu0 0
      %3468 = vmatmul.mubr.bf16.gmra.mrb[0].mxu0 %v3421
      %v3469 = vpop.f32.mrb[0].mxu0
      %v3470 = vadd.f32 0.0, %v3469
      %v3471 = vpop.f32.mrb[0].mxu0
      %v3472 = vadd.f32 0.0, %v3471
      %v3473 = vpop.f32.mrb[0].mxu0
      %v3474 = vadd.f32 0.0, %v3473
      %v3475 = vpop.f32.mrb[0].mxu0
      %v3476 = vadd.f32 0.0, %v3475
      %3477 = vmatprep.mubr.bf16.mxu0 0
      %3478 = vmatmul.mubr.bf16.gmra.mrb[0].mxu0 %v3424
      %v3479 = vpop.f32.mrb[0].mxu0
      %v3480 = vadd.f32 0.0, %v3479
      %v3481 = vpop.f32.mrb[0].mxu0
      %v3482 = vadd.f32 0.0, %v3481
      %v3483 = vpop.f32.mrb[0].mxu0
      %v3484 = vadd.f32 0.0, %v3483
      %v3485 = vpop.f32.mrb[0].mxu0
      %v3486 = vadd.f32 0.0, %v3485
      %3487 = vmatprep.mubr.bf16.mxu0 0
      %3488 = vmatmul.mubr.bf16.gmra.mrb[0].mxu0 %v3427
      %v3489 = vpop.f32.mrb[0].mxu0
      %v3490 = vadd.f32 0.0, %v3489
      %v3491 = vpop.f32.mrb[0].mxu0
      %v3492 = vadd.f32 0.0, %v3491
      %v3493 = vpop.f32.mrb[0].mxu0
      %v3494 = vpop.f32.mrb[0].mxu0
      %3495 = vdwg.mxu0
      %v3498 = vcombine.low %v3490, %v3492
      %v3500 = vunpack.c.l.s4 1983009808
      %v3501 = vunpack.c.0.s8 %v3500
      %v3502 = vlaneseq
      %v3503 = vshrl.u32 %v3502, 7
      %v3504 = vsub.s32 %v3501, %v3503
      %v3505 = vrot.slane %v3498, %v3504
      %s3507 = scalar_lea.vmem %s475, 28
      %3508 = vst.msk [vmem:[%s3507] sm:$0xf] %vm634, %v3505
      %s3509 = scalar_lea.vmem %s461, 112
      %v3510 = vld [vmem:[%s3509] sm:$0xff]
      %v3511 = vld [vmem:[%s3509 + $0x8] sm:$0x3f]
      %s3512 = scalar_lea.vmem %s454, 224
      %v3513 = vld [vmem:[%s3512] sm:$0xff]
      %v3514 = vld [vmem:[%s3512 + $0x8] sm:$0xff]
      %v3515 = vld [vmem:[%s3512 + $0x10] sm:$0xff]
      %v3516 = vld [vmem:[%s3512 + $0x18] sm:$0xff]
      %v3518 = vsel %vm642, %v3510, 0
      %v3521 = vsel %vm642, %v3511, 0
      %v3524 = vsel %vm642, %v3513, 0
      %v3527 = vsel %vm642, %v3514, 0
      %v3530 = vsel %vm642, %v3515, 0
      %v3533 = vsel %vm642, %v3516, 0
      %3535 = vmatprep.subr.mxu0 0.0
      %3536 = vmatpush1.xpose.msra.mxu0 %v3524
      %3537 = vmatprep.subr.mxu0 0.0
      %3538 = vmatpush1.xpose.msra.mxu0 %v3527
      %3539 = vmatprep.subr.mxu0 0.0
      %3540 = vmatpush1.xpose.msra.mxu0 %v3530
      %3541 = vmatprep.subr.mxu0 0.0
      %3542 = vmatpush1.xpose.msra.mxu0 %v3533
      %3543 = vmatprep.subr.mxu0 0.0
      %3544 = vmatpush1.xpose.msra.mxu0 0.0
      %3545 = vmatprep.subr.mxu0 0.0
      %3546 = vmatpush1.xpose.msra.mxu0 0.0
      %3547 = vmatprep.subr.mxu0 0.0
      %3548 = vmatpush1.xpose.msra.mxu0 0.0
      %3549 = vmatprep.subr.mxu0 0.0
      %3550 = vmatpush1.xpose.msra.mxu0 0.0
      %3551 = vmatprep.subr.mxu0 0.0
      %3552 = vmatpush1.xpose.msra.mxu0 0.0
      %3553 = vmatprep.subr.mxu0 0.0
      %3554 = vmatpush1.xpose.msra.mxu0 0.0
      %3555 = vmatprep.subr.mxu0 0.0
      %3556 = vmatpush1.xpose.msra.mxu0 0.0
      %3557 = vmatprep.subr.mxu0 0.0
      %3558 = vmatpush1.xpose.msra.mxu0 0.0
      %3559 = vmatprep.subr.mxu0 0.0
      %3560 = vmatpush1.xpose.msra.mxu0 0.0
      %3561 = vmatprep.subr.mxu0 0.0
      %3562 = vmatpush1.xpose.msra.mxu0 0.0
      %3563 = vmatprep.subr.mxu0 0.0
      %3564 = vmatpush1.xpose.msra.mxu0 0.0
      %3565 = vmatprep.subr.mxu0 0.0
      %3566 = vmatpush1.xpose.msra.mxu0 0.0
      %3567 = vmatprep.subr.mxu0 0.0
      %3568 = vmatpush1.xpose.msra.mxu0 0.0
      %3569 = vmatprep.subr.mxu0 0.0
      %3570 = vmatpush1.xpose.msra.mxu0 0.0
      %3571 = vmatprep.subr.mxu0 0.0
      %3572 = vmatpush1.xpose.msra.mxu0 0.0
      %3573 = vmatprep.subr.mxu0 0.0
      %3574 = vmatpush1.xpose.msra.mxu0 0.0
      %3575 = vmatprep.subr.mxu0 0.0
      %3576 = vmatpush1.xpose.msra.mxu0 0.0
      %3577 = vmatprep.subr.mxu0 0.0
      %3578 = vmatpush1.xpose.msra.mxu0 0.0
      %3579 = vmatprep.subr.mxu0 0.0
      %3580 = vmatpush1.xpose.msra.mxu0 0.0
      %3581 = vmatprep.subr.mxu0 0.0
      %3582 = vmatpush1.xpose.msra.mxu0 0.0
      %3583 = vmatprep.subr.mxu0 0.0
      %3584 = vmatpush1.xpose.msra.mxu0 0.0
      %3585 = vmatprep.subr.mxu0 0.0
      %3586 = vmatpush1.xpose.msra.mxu0 0.0
      %3587 = vmatprep.subr.mxu0 0.0
      %3588 = vmatpush1.xpose.msra.mxu0 0.0
      %3589 = vmatprep.subr.mxu0 0.0
      %3590 = vmatpush1.xpose.msra.mxu0 0.0
      %3591 = vmatprep.subr.mxu0 0.0
      %3592 = vmatpush1.xpose.msra.mxu0 0.0
      %3593 = vmatprep.subr.mxu0 0.0
      %3594 = vmatpush1.xpose.msra.mxu0 0.0
      %3595 = vmatprep.subr.mxu0 0.0
      %3596 = vmatpush1.xpose.msra.mxu0 0.0
      %3597 = vmatprep.subr.mxu0 0.0
      %3598 = vmatpush1.xpose.msra.mxu0 0.0
      %3599 = vmatprep.mubr.f32.mxu0 0.0
      %3600 = vmatmul.mubr.f32.gmra.mrb[0].mxu0 %v3518
      %v3601 = vpop.f32.mrb[0].mxu0
      %v3602 = vadd.f32 0.0, %v3601
      %v3603 = vpop.f32.mrb[0].mxu0
      %3604 = vmatprep.mubr.f32.mxu0 0.0
      %3605 = vmatmul.mubr.f32.gmra.mrb[0].mxu0 %v3521
      %v3606 = vpop.f32.mrb[0].mxu0
      %v3607 = vadd.f32 0.0, %v3606
      %v3608 = vpop.f32.mrb[0].mxu0
      %3609 = vdwg.mxu0
      %v3610 = vpack.c.bf16 %v3607, %v3602
      %s3611 = scalar_lea.vmem %s468, 224
      %v3612 = vld [vmem:[%s3611] sm:$0xff]
      %v3613 = vld [vmem:[%s3611 + $0x8] sm:$0xff]
      %v3614 = vld [vmem:[%s3611 + $0x10] sm:$0xff]
      %v3615 = vld [vmem:[%s3611 + $0x18] sm:$0xff]
      %v3620 = vunpack.c.l.b16 %v3612
      %v3621 = vunpack.c.h.b16 %v3612
      %v3622 = vunpack.c.l.b16 %v3613
      %v3623 = vunpack.c.h.b16 %v3613
      %v3624 = vunpack.c.l.b16 %v3614
      %v3625 = vunpack.c.h.b16 %v3614
      %v3626 = vunpack.c.l.b16 %v3615
      %v3627 = vunpack.c.h.b16 %v3615
      %v3628 = vpack.c.b16 %v3622, %v3620
      %v3629 = vpack.c.b16 %v3623, %v3621
      %v3630 = vpack.c.b16 %v3626, %v3624
      %v3631 = vpack.c.b16 %v3627, %v3625
      %v3637 = vsel %vm642, %v3610, 0
      %3639 = vmatprep.subr.bf16.mxu0 %v3629
      %3640 = vmatpush1.bf16.msra.mxu0 %v3628
      %3641 = vmatprep.subr.bf16.mxu0 %v3631
      %3642 = vmatpush1.bf16.msra.mxu0 %v3630
      %3643 = vmatprep.subr.bf16.mxu0 0
      %3644 = vmatpush1.bf16.msra.mxu0 0
      %3645 = vmatprep.subr.bf16.mxu0 0
      %3646 = vmatpush1.bf16.msra.mxu0 0
      %3647 = vmatprep.subr.bf16.mxu0 0
      %3648 = vmatpush1.bf16.msra.mxu0 0
      %3649 = vmatprep.subr.bf16.mxu0 0
      %3650 = vmatpush1.bf16.msra.mxu0 0
      %3651 = vmatprep.subr.bf16.mxu0 0
      %3652 = vmatpush1.bf16.msra.mxu0 0
      %3653 = vmatprep.subr.bf16.mxu0 0
      %3654 = vmatpush1.bf16.msra.mxu0 0
      %3655 = vmatprep.subr.bf16.mxu0 0
      %3656 = vmatpush1.bf16.msra.mxu0 0
      %3657 = vmatprep.subr.bf16.mxu0 0
      %3658 = vmatpush1.bf16.msra.mxu0 0
      %3659 = vmatprep.subr.bf16.mxu0 0
      %3660 = vmatpush1.bf16.msra.mxu0 0
      %3661 = vmatprep.subr.bf16.mxu0 0
      %3662 = vmatpush1.bf16.msra.mxu0 0
      %3663 = vmatprep.subr.bf16.mxu0 0
      %3664 = vmatpush1.bf16.msra.mxu0 0
      %3665 = vmatprep.subr.bf16.mxu0 0
      %3666 = vmatpush1.bf16.msra.mxu0 0
      %3667 = vmatprep.subr.bf16.mxu0 0
      %3668 = vmatpush1.bf16.msra.mxu0 0
      %3669 = vmatprep.subr.bf16.mxu0 0
      %3670 = vmatpush1.bf16.msra.mxu0 0
      %3671 = vmatprep.mubr.bf16.mxu0 0
      %3672 = vmatmul.mubr.bf16.gmra.mrb[0].mxu0 %v3637
      %v3673 = vpop.f32.mrb[0].mxu0
      %v3674 = vadd.f32 0.0, %v3673
      %v3675 = vpop.f32.mrb[0].mxu0
      %v3676 = vadd.f32 0.0, %v3675
      %v3677 = vpop.f32.mrb[0].mxu0
      %v3678 = vadd.f32 0.0, %v3677
      %v3679 = vpop.f32.mrb[0].mxu0
      %v3680 = vadd.f32 0.0, %v3679
      %3681 = vdwg.mxu0
      %v3682 = vmul.f32 %v3674, %v489
      %v3683 = vmul.f32 %v3676, %v490
      %v3684 = vmul.f32 %v3678, %v491
      %v3685 = vmul.f32 %v3680, %v492
      %v3686 = vsel %vm811, %v3684, 0.0
      %v3687 = vadd.f32 %v3682, %v3686
      %v3688 = vrot.slane %v3687, 4
      %v3689 = vadd.f32 %v3687, %v3688
      %v3690 = vrot.slane %v3689, 2
      %v3691 = vadd.f32 %v3689, %v3690
      %v3692 = vrot.slane %v3691, 1
      %v3693 = vadd.f32 %v3691, %v3692
      %v3694 = vsel %vm820, %v3683, 0.0
      %v3695 = vsel %vm822, %v3685, 0.0
      %v3696 = vadd.f32 %v3694, %v3695
      %v3697 = vrot.slane %v3696, 4
      %v3698 = vadd.f32 %v3696, %v3697
      %v3699 = vrot.slane %v3698, 2
      %v3700 = vadd.f32 %v3698, %v3699
      %v3701 = vrot.slane %v3700, 1
      %v3702 = vadd.f32 %v3700, %v3701
      %v3703 = vmul.f32 %v834, %v3693
      %v3704 = vmul.f32 %v834, %v3702
      %v3705 = vmul.f32 %v839, %v3693
      %v3706 = vmul.f32 %v839, %v3702
      %v3707 = vmul.f32 %v844, %v3693
      %v3708 = vmul.f32 %v844, %v3702
      %v3709 = vmul.f32 %v849, %v3693
      %v3710 = vmul.f32 %v849, %v3702
      %v3711 = vadd.f32 %v3470, %v3703
      %v3712 = vadd.f32 %v3472, %v3704
      %v3713 = vadd.f32 %v3474, %v3705
      %v3714 = vadd.f32 %v3476, %v3706
      %v3715 = vadd.f32 %v3480, %v3707
      %v3716 = vadd.f32 %v3482, %v3708
      %v3717 = vadd.f32 %v3484, %v3709
      %v3718 = vadd.f32 %v3486, %v3710
      %v3719 = vmax.f32 %v3711, 0.0
      %v3720 = vmax.f32 %v3712, 0.0
      %v3721 = vmax.f32 %v3713, 0.0
      %v3722 = vmax.f32 %v3714, 0.0
      %v3723 = vmax.f32 %v3715, 0.0
      %v3724 = vmax.f32 %v3716, 0.0
      %v3725 = vmax.f32 %v3717, 0.0
      %v3726 = vmax.f32 %v3718, 0.0
      %3727 = vst [vmem:[#allocation2 + $0x1c0] sm:$0xff] %v3719
      %3728 = vst.msk [vmem:[#allocation2 + $0x1c8] sm:$0xff] %vm820, %v3720
      %3729 = vst [vmem:[#allocation2 + $0x1d0] sm:$0xff] %v3721
      %3730 = vst.msk [vmem:[#allocation2 + $0x1d8] sm:$0xff] %vm820, %v3722
      %3731 = vst [vmem:[#allocation2 + $0x1e0] sm:$0xff] %v3723
      %3732 = vst.msk [vmem:[#allocation2 + $0x1e8] sm:$0xff] %vm820, %v3724
      %3733 = vst [vmem:[#allocation2 + $0x1f0] sm:$0xff] %v3725
      %3734 = vst.msk [vmem:[#allocation2 + $0x1f8] sm:$0xff] %vm820, %v3726
      %v3736 = vunpack.c.l.s4 1966171168
      %v3737 = vunpack.c.0.s8 %v3736
      %v3738 = vlaneseq
      %v3739 = vshrl.u32 %v3738, 7
      %v3740 = vsub.s32 %v3737, %v3739
      %v3741 = vrot.slane %v3498, %v3740
      %v3743 = vunpack.c.l.s4 1966171168
      %v3744 = vunpack.c.0.s8 %v3743
      %v3745 = vlaneseq
      %v3746 = vshrl.u32 %v3745, 7
      %v3747 = vsub.s32 %v3744, %v3746
      %v3748 = vrot.slane %v3741, %v3747
      %s3750 = scalar_lea.vmem [#allocation3], 37
      %3751 = vst.msk [vmem:[%s3750] ss:$8 sm:$0x3] %vm901, %v3748
      %3752 = vst.msk [vmem:[%s3750] ss:$8 sm:$0x0] %vm901, %v3748
      %s3753 = scalar_lea.vmem [#allocation3], 38
      %3754 = vst.msk [vmem:[%s3753] ss:$8 sm:$0x3] %vm901, %v3748
      %3755 = vst.msk [vmem:[%s3753] ss:$8 sm:$0x0] %vm901, %v3748
      %v3758 = vcombine.low %v3693, %v3702
      %v3760 = vunpack.c.l.s4 1966171168
      %v3761 = vunpack.c.0.s8 %v3760
      %v3762 = vlaneseq
      %v3763 = vshrl.u32 %v3762, 7
      %v3764 = vsub.s32 %v3761, %v3763
      %v3765 = vrot.slane %v3758, %v3764
      %v3767 = vunpack.c.l.s4 1966171168
      %v3768 = vunpack.c.0.s8 %v3767
      %v3769 = vlaneseq
      %v3770 = vshrl.u32 %v3769, 7
      %v3771 = vsub.s32 %v3768, %v3770
      %v3772 = vrot.slane %v3765, %v3771
      %s3774 = scalar_lea.vmem [#allocation3], 39
      %3775 = vst.msk [vmem:[%s3774] ss:$8 sm:$0x3] %vm901, %v3772
      %3776 = vst.msk [vmem:[%s3774] ss:$8 sm:$0x0] %vm901, %v3772
      %v3777 = vld [vmem:[#allocation2] sm:$0xff]
      %v3778 = vld [vmem:[#allocation2 + $0x8] sm:$0xff]
      %v3779 = vld [vmem:[#allocation2 + $0x10] sm:$0xff]
      %v3780 = vld [vmem:[#allocation2 + $0x18] sm:$0xff]
      %v3781 = vld [vmem:[#allocation2 + $0x20] sm:$0xff]
      %v3782 = vld [vmem:[#allocation2 + $0x28] sm:$0xff]
      %v3783 = vld [vmem:[#allocation2 + $0x30] sm:$0xff]
      %v3784 = vld [vmem:[#allocation2 + $0x38] sm:$0xff]
      %v3785 = vld [vmem:[#allocation2 + $0x40] sm:$0xff]
      %v3786 = vld [vmem:[#allocation2 + $0x48] sm:$0xff]
      %v3787 = vld [vmem:[#allocation2 + $0x50] sm:$0xff]
      %v3788 = vld [vmem:[#allocation2 + $0x58] sm:$0xff]
      %v3789 = vld [vmem:[#allocation2 + $0x60] sm:$0xff]
      %v3790 = vld [vmem:[#allocation2 + $0x68] sm:$0xff]
      %v3791 = vld [vmem:[#allocation2 + $0x70] sm:$0xff]
      %v3792 = vld [vmem:[#allocation2 + $0x78] sm:$0xff]
      %v3793 = vld [vmem:[#allocation2 + $0x80] sm:$0xff]
      %v3794 = vld [vmem:[#allocation2 + $0x88] sm:$0xff]
      %v3795 = vld [vmem:[#allocation2 + $0x90] sm:$0xff]
      %v3796 = vld [vmem:[#allocation2 + $0x98] sm:$0xff]
      %v3797 = vld [vmem:[#allocation2 + $0xa0] sm:$0xff]
      %v3798 = vld [vmem:[#allocation2 + $0xa8] sm:$0xff]
      %v3799 = vld [vmem:[#allocation2 + $0xb0] sm:$0xff]
      %v3800 = vld [vmem:[#allocation2 + $0xb8] sm:$0xff]
      %v3801 = vld [vmem:[#allocation2 + $0xc0] sm:$0xff]
      %v3802 = vld [vmem:[#allocation2 + $0xc8] sm:$0xff]
      %v3803 = vld [vmem:[#allocation2 + $0xd0] sm:$0xff]
      %v3804 = vld [vmem:[#allocation2 + $0xd8] sm:$0xff]
      %v3805 = vld [vmem:[#allocation2 + $0xe0] sm:$0xff]
      %v3806 = vld [vmem:[#allocation2 + $0xe8] sm:$0xff]
      %v3807 = vld [vmem:[#allocation2 + $0xf0] sm:$0xff]
      %v3808 = vld [vmem:[#allocation2 + $0xf8] sm:$0xff]
      %v3809 = vld [vmem:[#allocation2 + $0x100] sm:$0xff]
      %v3810 = vld [vmem:[#allocation2 + $0x108] sm:$0xff]
      %v3811 = vld [vmem:[#allocation2 + $0x110] sm:$0xff]
      %v3812 = vld [vmem:[#allocation2 + $0x118] sm:$0xff]
      %v3813 = vld [vmem:[#allocation2 + $0x120] sm:$0xff]
      %v3814 = vld [vmem:[#allocation2 + $0x128] sm:$0xff]
      %v3815 = vld [vmem:[#allocation2 + $0x130] sm:$0xff]
      %v3816 = vld [vmem:[#allocation2 + $0x138] sm:$0xff]
      %v3817 = vld [vmem:[#allocation2 + $0x140] sm:$0xff]
      %v3818 = vld [vmem:[#allocation2 + $0x148] sm:$0xff]
      %v3819 = vld [vmem:[#allocation2 + $0x150] sm:$0xff]
      %v3820 = vld [vmem:[#allocation2 + $0x158] sm:$0xff]
      %v3821 = vld [vmem:[#allocation2 + $0x160] sm:$0xff]
      %v3822 = vld [vmem:[#allocation2 + $0x168] sm:$0xff]
      %v3823 = vld [vmem:[#allocation2 + $0x170] sm:$0xff]
      %v3824 = vld [vmem:[#allocation2 + $0x178] sm:$0xff]
      %v3825 = vld [vmem:[#allocation2 + $0x180] sm:$0xff]
      %v3826 = vld [vmem:[#allocation2 + $0x188] sm:$0xff]
      %v3827 = vld [vmem:[#allocation2 + $0x190] sm:$0xff]
      %v3828 = vld [vmem:[#allocation2 + $0x198] sm:$0xff]
      %v3829 = vld [vmem:[#allocation2 + $0x1a0] sm:$0xff]
      %v3830 = vld [vmem:[#allocation2 + $0x1a8] sm:$0xff]
      %v3831 = vld [vmem:[#allocation2 + $0x1b0] sm:$0xff]
      %v3832 = vld [vmem:[#allocation2 + $0x1b8] sm:$0xff]
      %v3833 = vld [vmem:[#allocation2 + $0x1c0] sm:$0xff]
      %v3834 = vld [vmem:[#allocation2 + $0x1c8] sm:$0xff]
      %v3835 = vld [vmem:[#allocation2 + $0x1d0] sm:$0xff]
      %v3836 = vld [vmem:[#allocation2 + $0x1d8] sm:$0xff]
      %v3837 = vld [vmem:[#allocation2 + $0x1e0] sm:$0xff]
      %v3838 = vld [vmem:[#allocation2 + $0x1e8] sm:$0xff]
      %v3839 = vld [vmem:[#allocation2 + $0x1f0] sm:$0xff]
      %v3840 = vld [vmem:[#allocation2 + $0x1f8] sm:$0xff]
      %v3841 = vpack.c.bf16 %v3779, %v3777
      %v3842 = vpack.c.bf16 %v3780, %v3778
      %v3843 = vpack.c.bf16 %v3783, %v3781
      %v3844 = vpack.c.bf16 %v3784, %v3782
      %v3845 = vpack.c.bf16 %v3787, %v3785
      %v3846 = vpack.c.bf16 %v3788, %v3786
      %v3847 = vpack.c.bf16 %v3791, %v3789
      %v3848 = vpack.c.bf16 %v3792, %v3790
      %v3849 = vpack.c.bf16 %v3795, %v3793
      %v3850 = vpack.c.bf16 %v3796, %v3794
      %v3851 = vpack.c.bf16 %v3799, %v3797
      %v3852 = vpack.c.bf16 %v3800, %v3798
      %v3853 = vpack.c.bf16 %v3803, %v3801
      %v3854 = vpack.c.bf16 %v3804, %v3802
      %v3855 = vpack.c.bf16 %v3807, %v3805
      %v3856 = vpack.c.bf16 %v3808, %v3806
      %v3857 = vpack.c.bf16 %v3811, %v3809
      %v3858 = vpack.c.bf16 %v3812, %v3810
      %v3859 = vpack.c.bf16 %v3815, %v3813
      %v3860 = vpack.c.bf16 %v3816, %v3814
      %v3861 = vpack.c.bf16 %v3819, %v3817
      %v3862 = vpack.c.bf16 %v3820, %v3818
      %v3863 = vpack.c.bf16 %v3823, %v3821
      %v3864 = vpack.c.bf16 %v3824, %v3822
      %v3865 = vpack.c.bf16 %v3827, %v3825
      %v3866 = vpack.c.bf16 %v3828, %v3826
      %v3867 = vpack.c.bf16 %v3831, %v3829
      %v3868 = vpack.c.bf16 %v3832, %v3830
      %v3869 = vpack.c.bf16 %v3835, %v3833
      %v3870 = vpack.c.bf16 %v3836, %v3834
      %v3871 = vpack.c.bf16 %v3839, %v3837
      %v3872 = vpack.c.bf16 %v3840, %v3838
      %v3873 = vld [vmem:[%s7] sm:$0xff]
      %v3874 = vld [vmem:[%s7 + $0x8] sm:$0xff]
      %v3875 = vld [vmem:[%s7 + $0x10] sm:$0xff]
      %v3876 = vld [vmem:[%s7 + $0x18] sm:$0xf]
      %v3877 = vld [vmem:[%s7 + $0x1c] sm:$0xff]
      %v3878 = vld [vmem:[%s7 + $0x24] sm:$0xff]
      %v3879 = vld [vmem:[%s7 + $0x2c] sm:$0xff]
      %v3880 = vld [vmem:[%s7 + $0x34] sm:$0xf]
      %v3881 = vld [vmem:[%s7 + $0x38] sm:$0xff]
      %v3882 = vld [vmem:[%s7 + $0x40] sm:$0xff]
      %v3883 = vld [vmem:[%s7 + $0x48] sm:$0xff]
      %v3884 = vld [vmem:[%s7 + $0x50] sm:$0xf]
      %v3885 = vld [vmem:[%s7 + $0x54] sm:$0xff]
      %v3886 = vld [vmem:[%s7 + $0x5c] sm:$0xff]
      %v3887 = vld [vmem:[%s7 + $0x64] sm:$0xff]
      %v3888 = vld [vmem:[%s7 + $0x6c] sm:$0xf]
      %v3889 = vld [vmem:[%s7 + $0x70] sm:$0xff]
      %v3890 = vld [vmem:[%s7 + $0x78] sm:$0xff]
      %v3891 = vld [vmem:[%s7 + $0x80] sm:$0xff]
      %v3892 = vld [vmem:[%s7 + $0x88] sm:$0xf]
      %v3893 = vld [vmem:[%s7 + $0x8c] sm:$0xff]
      %v3894 = vld [vmem:[%s7 + $0x94] sm:$0xff]
      %v3895 = vld [vmem:[%s7 + $0x9c] sm:$0xff]
      %v3896 = vld [vmem:[%s7 + $0xa4] sm:$0xf]
      %v3897 = vld [vmem:[%s7 + $0xa8] sm:$0xff]
      %v3898 = vld [vmem:[%s7 + $0xb0] sm:$0xff]
      %v3899 = vld [vmem:[%s7 + $0xb8] sm:$0xff]
      %v3900 = vld [vmem:[%s7 + $0xc0] sm:$0xf]
      %v3901 = vld [vmem:[%s7 + $0xc4] sm:$0xff]
      %v3902 = vld [vmem:[%s7 + $0xcc] sm:$0xff]
      %v3903 = vld [vmem:[%s7 + $0xd4] sm:$0xff]
      %v3904 = vld [vmem:[%s7 + $0xdc] sm:$0xf]
      %v3905 = vld [vmem:[%s7 + $0xe0] sm:$0xff]
      %v3906 = vld [vmem:[%s7 + $0xe8] sm:$0xff]
      %v3907 = vld [vmem:[%s7 + $0xf0] sm:$0xff]
      %v3908 = vld [vmem:[%s7 + $0xf8] sm:$0xf]
      %v3909 = vld [vmem:[%s7 + $0xfc] sm:$0xff]
      %v3910 = vld [vmem:[%s7 + $0x104] sm:$0xff]
      %v3911 = vld [vmem:[%s7 + $0x10c] sm:$0xff]
      %v3912 = vld [vmem:[%s7 + $0x114] sm:$0xf]
      %v3913 = vld [vmem:[%s7 + $0x118] sm:$0xff]
      %v3914 = vld [vmem:[%s7 + $0x120] sm:$0xff]
      %v3915 = vld [vmem:[%s7 + $0x128] sm:$0xff]
      %v3916 = vld [vmem:[%s7 + $0x130] sm:$0xf]
      %v3917 = vld [vmem:[%s7 + $0x134] sm:$0xff]
      %v3918 = vld [vmem:[%s7 + $0x13c] sm:$0xff]
      %v3919 = vld [vmem:[%s7 + $0x144] sm:$0xff]
      %v3920 = vld [vmem:[%s7 + $0x14c] sm:$0xf]
      %v3921 = vld [vmem:[%s7 + $0x150] sm:$0xff]
      %v3922 = vld [vmem:[%s7 + $0x158] sm:$0xff]
      %v3923 = vld [vmem:[%s7 + $0x160] sm:$0xff]
      %v3924 = vld [vmem:[%s7 + $0x168] sm:$0xf]
      %v3925 = vld [vmem:[%s7 + $0x16c] sm:$0xff]
      %v3926 = vld [vmem:[%s7 + $0x174] sm:$0xff]
      %v3927 = vld [vmem:[%s7 + $0x17c] sm:$0xff]
      %v3928 = vld [vmem:[%s7 + $0x184] sm:$0xf]
      %v3929 = vld [vmem:[%s7 + $0x188] sm:$0xff]
      %v3930 = vld [vmem:[%s7 + $0x190] sm:$0xff]
      %v3931 = vld [vmem:[%s7 + $0x198] sm:$0xff]
      %v3932 = vld [vmem:[%s7 + $0x1a0] sm:$0xf]
      %v3933 = vld [vmem:[%s7 + $0x1a4] sm:$0xff]
      %v3934 = vld [vmem:[%s7 + $0x1ac] sm:$0xff]
      %v3935 = vld [vmem:[%s7 + $0x1b4] sm:$0xff]
      %v3936 = vld [vmem:[%s7 + $0x1bc] sm:$0xf]
      %v3937 = vld [vmem:[%s7 + $0x1c0] sm:$0xff]
      %v3938 = vld [vmem:[%s7 + $0x1c8] sm:$0xff]
      %v3939 = vld [vmem:[%s7 + $0x1d0] sm:$0xff]
      %v3940 = vld [vmem:[%s7 + $0x1d8] sm:$0xf]
      %v3941 = vld [vmem:[%s7 + $0x1dc] sm:$0xff]
      %v3942 = vld [vmem:[%s7 + $0x1e4] sm:$0xff]
      %v3943 = vld [vmem:[%s7 + $0x1ec] sm:$0xff]
      %v3944 = vld [vmem:[%s7 + $0x1f4] sm:$0xf]
      %v3945 = vld [vmem:[%s7 + $0x1f8] sm:$0xff]
      %v3946 = vld [vmem:[%s7 + $0x200] sm:$0xff]
      %v3947 = vld [vmem:[%s7 + $0x208] sm:$0xff]
      %v3948 = vld [vmem:[%s7 + $0x210] sm:$0xf]
      %v3949 = vld [vmem:[%s7 + $0x214] sm:$0xff]
      %v3950 = vld [vmem:[%s7 + $0x21c] sm:$0xff]
      %v3951 = vld [vmem:[%s7 + $0x224] sm:$0xff]
      %v3952 = vld [vmem:[%s7 + $0x22c] sm:$0xf]
      %v3953 = vld [vmem:[%s7 + $0x230] sm:$0xff]
      %v3954 = vld [vmem:[%s7 + $0x238] sm:$0xff]
      %v3955 = vld [vmem:[%s7 + $0x240] sm:$0xff]
      %v3956 = vld [vmem:[%s7 + $0x248] sm:$0xf]
      %v3957 = vld [vmem:[%s7 + $0x24c] sm:$0xff]
      %v3958 = vld [vmem:[%s7 + $0x254] sm:$0xff]
      %v3959 = vld [vmem:[%s7 + $0x25c] sm:$0xff]
      %v3960 = vld [vmem:[%s7 + $0x264] sm:$0xf]
      %v3961 = vld [vmem:[%s7 + $0x268] sm:$0xff]
      %v3962 = vld [vmem:[%s7 + $0x270] sm:$0xff]
      %v3963 = vld [vmem:[%s7 + $0x278] sm:$0xff]
      %v3964 = vld [vmem:[%s7 + $0x280] sm:$0xf]
      %v3965 = vld [vmem:[%s7 + $0x284] sm:$0xff]
      %v3966 = vld [vmem:[%s7 + $0x28c] sm:$0xff]
      %v3967 = vld [vmem:[%s7 + $0x294] sm:$0xff]
      %v3968 = vld [vmem:[%s7 + $0x29c] sm:$0xf]
      %v3969 = vld [vmem:[%s7 + $0x2a0] sm:$0x33]
      %v3970 = vld [vmem:[%s7 + $0x2a8] sm:$0x33]
      %v3971 = vld [vmem:[%s7 + $0x2b0] sm:$0x33]
      %v3972 = vld [vmem:[%s7 + $0x2b8] sm:$0x3]
      %v4073 = vunpack.c.l.b16 %v3873
      %v4074 = vunpack.c.h.b16 %v3873
      %v4075 = vunpack.c.l.b16 %v3874
      %v4076 = vunpack.c.h.b16 %v3874
      %v4077 = vunpack.c.l.b16 %v3875
      %v4078 = vunpack.c.h.b16 %v3875
      %v4079 = vunpack.c.l.b16 %v3876
      %v4080 = vunpack.c.l.b16 %v3877
      %v4081 = vunpack.c.h.b16 %v3877
      %v4082 = vunpack.c.l.b16 %v3878
      %v4083 = vunpack.c.h.b16 %v3878
      %v4084 = vunpack.c.l.b16 %v3879
      %v4085 = vunpack.c.h.b16 %v3879
      %v4086 = vunpack.c.l.b16 %v3880
      %v4087 = vunpack.c.l.b16 %v3881
      %v4088 = vunpack.c.h.b16 %v3881
      %v4089 = vunpack.c.l.b16 %v3882
      %v4090 = vunpack.c.h.b16 %v3882
      %v4091 = vunpack.c.l.b16 %v3883
      %v4092 = vunpack.c.h.b16 %v3883
      %v4093 = vunpack.c.l.b16 %v3884
      %v4094 = vunpack.c.l.b16 %v3885
      %v4095 = vunpack.c.h.b16 %v3885
      %v4096 = vunpack.c.l.b16 %v3886
      %v4097 = vunpack.c.h.b16 %v3886
      %v4098 = vunpack.c.l.b16 %v3887
      %v4099 = vunpack.c.h.b16 %v3887
      %v4100 = vunpack.c.l.b16 %v3888
      %v4101 = vunpack.c.l.b16 %v3889
      %v4102 = vunpack.c.h.b16 %v3889
      %v4103 = vunpack.c.l.b16 %v3890
      %v4104 = vunpack.c.h.b16 %v3890
      %v4105 = vunpack.c.l.b16 %v3891
      %v4106 = vunpack.c.h.b16 %v3891
      %v4107 = vunpack.c.l.b16 %v3892
      %v4108 = vunpack.c.l.b16 %v3893
      %v4109 = vunpack.c.h.b16 %v3893
      %v4110 = vunpack.c.l.b16 %v3894
      %v4111 = vunpack.c.h.b16 %v3894
      %v4112 = vunpack.c.l.b16 %v3895
      %v4113 = vunpack.c.h.b16 %v3895
      %v4114 = vunpack.c.l.b16 %v3896
      %v4115 = vunpack.c.l.b16 %v3897
      %v4116 = vunpack.c.h.b16 %v3897
      %v4117 = vunpack.c.l.b16 %v3898
      %v4118 = vunpack.c.h.b16 %v3898
      %v4119 = vunpack.c.l.b16 %v3899
      %v4120 = vunpack.c.h.b16 %v3899
      %v4121 = vunpack.c.l.b16 %v3900
      %v4122 = vunpack.c.l.b16 %v3901
      %v4123 = vunpack.c.h.b16 %v3901
      %v4124 = vunpack.c.l.b16 %v3902
      %v4125 = vunpack.c.h.b16 %v3902
      %v4126 = vunpack.c.l.b16 %v3903
      %v4127 = vunpack.c.h.b16 %v3903
      %v4128 = vunpack.c.l.b16 %v3904
      %v4129 = vunpack.c.l.b16 %v3905
      %v4130 = vunpack.c.h.b16 %v3905
      %v4131 = vunpack.c.l.b16 %v3906
      %v4132 = vunpack.c.h.b16 %v3906
      %v4133 = vunpack.c.l.b16 %v3907
      %v4134 = vunpack.c.h.b16 %v3907
      %v4135 = vunpack.c.l.b16 %v3908
      %v4136 = vunpack.c.l.b16 %v3909
      %v4137 = vunpack.c.h.b16 %v3909
      %v4138 = vunpack.c.l.b16 %v3910
      %v4139 = vunpack.c.h.b16 %v3910
      %v4140 = vunpack.c.l.b16 %v3911
      %v4141 = vunpack.c.h.b16 %v3911
      %v4142 = vunpack.c.l.b16 %v3912
      %v4143 = vunpack.c.l.b16 %v3913
      %v4144 = vunpack.c.h.b16 %v3913
      %v4145 = vunpack.c.l.b16 %v3914
      %v4146 = vunpack.c.h.b16 %v3914
      %v4147 = vunpack.c.l.b16 %v3915
      %v4148 = vunpack.c.h.b16 %v3915
      %v4149 = vunpack.c.l.b16 %v3916
      %v4150 = vunpack.c.l.b16 %v3917
      %v4151 = vunpack.c.h.b16 %v3917
      %v4152 = vunpack.c.l.b16 %v3918
      %v4153 = vunpack.c.h.b16 %v3918
      %v4154 = vunpack.c.l.b16 %v3919
      %v4155 = vunpack.c.h.b16 %v3919
      %v4156 = vunpack.c.l.b16 %v3920
      %v4157 = vunpack.c.l.b16 %v3921
      %v4158 = vunpack.c.h.b16 %v3921
      %v4159 = vunpack.c.l.b16 %v3922
      %v4160 = vunpack.c.h.b16 %v3922
      %v4161 = vunpack.c.l.b16 %v3923
      %v4162 = vunpack.c.h.b16 %v3923
      %v4163 = vunpack.c.l.b16 %v3924
      %v4164 = vunpack.c.l.b16 %v3925
      %v4165 = vunpack.c.h.b16 %v3925
      %v4166 = vunpack.c.l.b16 %v3926
      %v4167 = vunpack.c.h.b16 %v3926
      %v4168 = vunpack.c.l.b16 %v3927
      %v4169 = vunpack.c.h.b16 %v3927
      %v4170 = vunpack.c.l.b16 %v3928
      %v4171 = vunpack.c.l.b16 %v3929
      %v4172 = vunpack.c.h.b16 %v3929
      %v4173 = vunpack.c.l.b16 %v3930
      %v4174 = vunpack.c.h.b16 %v3930
      %v4175 = vunpack.c.l.b16 %v3931
      %v4176 = vunpack.c.h.b16 %v3931
      %v4177 = vunpack.c.l.b16 %v3932
      %v4178 = vunpack.c.l.b16 %v3933
      %v4179 = vunpack.c.h.b16 %v3933
      %v4180 = vunpack.c.l.b16 %v3934
      %v4181 = vunpack.c.h.b16 %v3934
      %v4182 = vunpack.c.l.b16 %v3935
      %v4183 = vunpack.c.h.b16 %v3935
      %v4184 = vunpack.c.l.b16 %v3936
      %v4185 = vunpack.c.l.b16 %v3937
      %v4186 = vunpack.c.h.b16 %v3937
      %v4187 = vunpack.c.l.b16 %v3938
      %v4188 = vunpack.c.h.b16 %v3938
      %v4189 = vunpack.c.l.b16 %v3939
      %v4190 = vunpack.c.h.b16 %v3939
      %v4191 = vunpack.c.l.b16 %v3940
      %v4192 = vunpack.c.l.b16 %v3941
      %v4193 = vunpack.c.h.b16 %v3941
      %v4194 = vunpack.c.l.b16 %v3942
      %v4195 = vunpack.c.h.b16 %v3942
      %v4196 = vunpack.c.l.b16 %v3943
      %v4197 = vunpack.c.h.b16 %v3943
      %v4198 = vunpack.c.l.b16 %v3944
      %v4199 = vunpack.c.l.b16 %v3945
      %v4200 = vunpack.c.h.b16 %v3945
      %v4201 = vunpack.c.l.b16 %v3946
      %v4202 = vunpack.c.h.b16 %v3946
      %v4203 = vunpack.c.l.b16 %v3947
      %v4204 = vunpack.c.h.b16 %v3947
      %v4205 = vunpack.c.l.b16 %v3948
      %v4206 = vunpack.c.l.b16 %v3949
      %v4207 = vunpack.c.h.b16 %v3949
      %v4208 = vunpack.c.l.b16 %v3950
      %v4209 = vunpack.c.h.b16 %v3950
      %v4210 = vunpack.c.l.b16 %v3951
      %v4211 = vunpack.c.h.b16 %v3951
      %v4212 = vunpack.c.l.b16 %v3952
      %v4213 = vunpack.c.l.b16 %v3953
      %v4214 = vunpack.c.h.b16 %v3953
      %v4215 = vunpack.c.l.b16 %v3954
      %v4216 = vunpack.c.h.b16 %v3954
      %v4217 = vunpack.c.l.b16 %v3955
      %v4218 = vunpack.c.h.b16 %v3955
      %v4219 = vunpack.c.l.b16 %v3956
      %v4220 = vunpack.c.l.b16 %v3957
      %v4221 = vunpack.c.h.b16 %v3957
      %v4222 = vunpack.c.l.b16 %v3958
      %v4223 = vunpack.c.h.b16 %v3958
      %v4224 = vunpack.c.l.b16 %v3959
      %v4225 = vunpack.c.h.b16 %v3959
      %v4226 = vunpack.c.l.b16 %v3960
      %v4227 = vunpack.c.l.b16 %v3961
      %v4228 = vunpack.c.h.b16 %v3961
      %v4229 = vunpack.c.l.b16 %v3962
      %v4230 = vunpack.c.h.b16 %v3962
      %v4231 = vunpack.c.l.b16 %v3963
      %v4232 = vunpack.c.h.b16 %v3963
      %v4233 = vunpack.c.l.b16 %v3964
      %v4234 = vunpack.c.l.b16 %v3965
      %v4235 = vunpack.c.h.b16 %v3965
      %v4236 = vunpack.c.l.b16 %v3966
      %v4237 = vunpack.c.h.b16 %v3966
      %v4238 = vunpack.c.l.b16 %v3967
      %v4239 = vunpack.c.h.b16 %v3967
      %v4240 = vunpack.c.l.b16 %v3968
      %v4241 = vunpack.c.l.b16 %v3969
      %v4242 = vunpack.c.h.b16 %v3969
      %v4243 = vunpack.c.l.b16 %v3970
      %v4244 = vunpack.c.h.b16 %v3970
      %v4245 = vunpack.c.l.b16 %v3971
      %v4246 = vunpack.c.h.b16 %v3971
      %v4247 = vunpack.c.l.b16 %v3972
      %v4248 = vpack.c.b16 %v4080, %v4073
      %v4249 = vpack.c.b16 %v4081, %v4074
      %v4250 = vpack.c.b16 %v4082, %v4075
      %v4251 = vpack.c.b16 %v4083, %v4076
      %v4252 = vpack.c.b16 %v4084, %v4077
      %v4253 = vpack.c.b16 %v4085, %v4078
      %v4254 = vpack.c.b16 %v4086, %v4079
      %v4255 = vpack.c.b16 %v4094, %v4087
      %v4256 = vpack.c.b16 %v4095, %v4088
      %v4257 = vpack.c.b16 %v4096, %v4089
      %v4258 = vpack.c.b16 %v4097, %v4090
      %v4259 = vpack.c.b16 %v4098, %v4091
      %v4260 = vpack.c.b16 %v4099, %v4092
      %v4261 = vpack.c.b16 %v4100, %v4093
      %v4262 = vpack.c.b16 %v4108, %v4101
      %v4263 = vpack.c.b16 %v4109, %v4102
      %v4264 = vpack.c.b16 %v4110, %v4103
      %v4265 = vpack.c.b16 %v4111, %v4104
      %v4266 = vpack.c.b16 %v4112, %v4105
      %v4267 = vpack.c.b16 %v4113, %v4106
      %v4268 = vpack.c.b16 %v4114, %v4107
      %v4269 = vpack.c.b16 %v4122, %v4115
      %v4270 = vpack.c.b16 %v4123, %v4116
      %v4271 = vpack.c.b16 %v4124, %v4117
      %v4272 = vpack.c.b16 %v4125, %v4118
      %v4273 = vpack.c.b16 %v4126, %v4119
      %v4274 = vpack.c.b16 %v4127, %v4120
      %v4275 = vpack.c.b16 %v4128, %v4121
      %v4276 = vpack.c.b16 %v4136, %v4129
      %v4277 = vpack.c.b16 %v4137, %v4130
      %v4278 = vpack.c.b16 %v4138, %v4131
      %v4279 = vpack.c.b16 %v4139, %v4132
      %v4280 = vpack.c.b16 %v4140, %v4133
      %v4281 = vpack.c.b16 %v4141, %v4134
      %v4282 = vpack.c.b16 %v4142, %v4135
      %v4283 = vpack.c.b16 %v4150, %v4143
      %v4284 = vpack.c.b16 %v4151, %v4144
      %v4285 = vpack.c.b16 %v4152, %v4145
      %v4286 = vpack.c.b16 %v4153, %v4146
      %v4287 = vpack.c.b16 %v4154, %v4147
      %v4288 = vpack.c.b16 %v4155, %v4148
      %v4289 = vpack.c.b16 %v4156, %v4149
      %v4290 = vpack.c.b16 %v4164, %v4157
      %v4291 = vpack.c.b16 %v4165, %v4158
      %v4292 = vpack.c.b16 %v4166, %v4159
      %v4293 = vpack.c.b16 %v4167, %v4160
      %v4294 = vpack.c.b16 %v4168, %v4161
      %v4295 = vpack.c.b16 %v4169, %v4162
      %v4296 = vpack.c.b16 %v4170, %v4163
      %v4297 = vpack.c.b16 %v4178, %v4171
      %v4298 = vpack.c.b16 %v4179, %v4172
      %v4299 = vpack.c.b16 %v4180, %v4173
      %v4300 = vpack.c.b16 %v4181, %v4174
      %v4301 = vpack.c.b16 %v4182, %v4175
      %v4302 = vpack.c.b16 %v4183, %v4176
      %v4303 = vpack.c.b16 %v4184, %v4177
      %v4304 = vpack.c.b16 %v4192, %v4185
      %v4305 = vpack.c.b16 %v4193, %v4186
      %v4306 = vpack.c.b16 %v4194, %v4187
      %v4307 = vpack.c.b16 %v4195, %v4188
      %v4308 = vpack.c.b16 %v4196, %v4189
      %v4309 = vpack.c.b16 %v4197, %v4190
      %v4310 = vpack.c.b16 %v4198, %v4191
      %v4311 = vpack.c.b16 %v4206, %v4199
      %v4312 = vpack.c.b16 %v4207, %v4200
      %v4313 = vpack.c.b16 %v4208, %v4201
      %v4314 = vpack.c.b16 %v4209, %v4202
      %v4315 = vpack.c.b16 %v4210, %v4203
      %v4316 = vpack.c.b16 %v4211, %v4204
      %v4317 = vpack.c.b16 %v4212, %v4205
      %v4318 = vpack.c.b16 %v4220, %v4213
      %v4319 = vpack.c.b16 %v4221, %v4214
      %v4320 = vpack.c.b16 %v4222, %v4215
      %v4321 = vpack.c.b16 %v4223, %v4216
      %v4322 = vpack.c.b16 %v4224, %v4217
      %v4323 = vpack.c.b16 %v4225, %v4218
      %v4324 = vpack.c.b16 %v4226, %v4219
      %v4325 = vpack.c.b16 %v4234, %v4227
      %v4326 = vpack.c.b16 %v4235, %v4228
      %v4327 = vpack.c.b16 %v4236, %v4229
      %v4328 = vpack.c.b16 %v4237, %v4230
      %v4329 = vpack.c.b16 %v4238, %v4231
      %v4330 = vpack.c.b16 %v4239, %v4232
      %v4331 = vpack.c.b16 %v4240, %v4233
      %v4332 = vpack.c.b16 %v4241, %v4241
      %v4333 = vpack.c.b16 %v4242, %v4242
      %v4334 = vpack.c.b16 %v4243, %v4243
      %v4335 = vpack.c.b16 %v4244, %v4244
      %v4336 = vpack.c.b16 %v4245, %v4245
      %v4337 = vpack.c.b16 %v4246, %v4246
      %v4338 = vpack.c.b16 %v4247, %v4247
      %v4424 = vsel %vm820, %v3842, 0
      %v4427 = vsel %vm820, %v3844, 0
      %v4430 = vsel %vm820, %v3846, 0
      %v4433 = vsel %vm820, %v3848, 0
      %v4436 = vsel %vm820, %v3850, 0
      %v4439 = vsel %vm820, %v3852, 0
      %v4442 = vsel %vm820, %v3854, 0
      %v4445 = vsel %vm820, %v3856, 0
      %v4448 = vsel %vm820, %v3858, 0
      %v4451 = vsel %vm820, %v3860, 0
      %v4454 = vsel %vm820, %v3862, 0
      %v4457 = vsel %vm820, %v3864, 0
      %v4460 = vsel %vm820, %v3866, 0
      %v4463 = vsel %vm820, %v3868, 0
      %v4466 = vsel %vm820, %v3870, 0
      %v4469 = vsel %vm820, %v3872, 0
      %v4472 = vsel %vm632, %v4332, 0
      %v4475 = vsel %vm632, %v4333, 0
      %v4478 = vsel %vm632, %v4334, 0
      %v4481 = vsel %vm632, %v4335, 0
      %v4484 = vsel %vm632, %v4336, 0
      %v4487 = vsel %vm632, %v4337, 0
      %v4490 = vsel %vm632, %v4338, 0
      %4492 = vmatprep.subr.bf16.mxu0 %v4249
      %4493 = vmatpush1.bf16.msra.mxu0 %v4248
      %4494 = vmatprep.subr.bf16.mxu0 %v4256
      %4495 = vmatpush1.bf16.msra.mxu0 %v4255
      %4496 = vmatprep.subr.bf16.mxu0 %v4263
      %4497 = vmatpush1.bf16.msra.mxu0 %v4262
      %4498 = vmatprep.subr.bf16.mxu0 %v4270
      %4499 = vmatpush1.bf16.msra.mxu0 %v4269
      %4500 = vmatprep.subr.bf16.mxu0 %v4277
      %4501 = vmatpush1.bf16.msra.mxu0 %v4276
      %4502 = vmatprep.subr.bf16.mxu0 %v4284
      %4503 = vmatpush1.bf16.msra.mxu0 %v4283
      %4504 = vmatprep.subr.bf16.mxu0 %v4291
      %4505 = vmatpush1.bf16.msra.mxu0 %v4290
      %4506 = vmatprep.subr.bf16.mxu0 %v4298
      %4507 = vmatpush1.bf16.msra.mxu0 %v4297
      %4508 = vmatprep.subr.bf16.mxu0 %v4305
      %4509 = vmatpush1.bf16.msra.mxu0 %v4304
      %4510 = vmatprep.subr.bf16.mxu0 %v4312
      %4511 = vmatpush1.bf16.msra.mxu0 %v4311
      %4512 = vmatprep.subr.bf16.mxu0 %v4319
      %4513 = vmatpush1.bf16.msra.mxu0 %v4318
      %4514 = vmatprep.subr.bf16.mxu0 %v4326
      %4515 = vmatpush1.bf16.msra.mxu0 %v4325
      %4516 = vmatprep.subr.bf16.mxu0 %v4475
      %4517 = vmatpush1.bf16.msra.mxu0 %v4472
      %4518 = vmatprep.subr.bf16.mxu0 0
      %4519 = vmatpush1.bf16.msra.mxu0 0
      %4520 = vmatprep.subr.bf16.mxu0 0
      %4521 = vmatpush1.bf16.msra.mxu0 0
      %4522 = vmatprep.subr.bf16.mxu0 0
      %4523 = vmatpush1.bf16.msra.mxu0 0
      %4524 = vmatprep.mubr.bf16.mxu0 %v4424
      %4525 = vmatmul.mubr.bf16.gmra.mrb[0].mxu0 %v3841
      %v4526 = vpop.f32.mrb[0].mxu0
      %v4527 = vadd.f32 0.0, %v4526
      %v4528 = vpop.f32.mrb[0].mxu0
      %v4529 = vadd.f32 0.0, %v4528
      %v4530 = vpop.f32.mrb[0].mxu0
      %v4531 = vadd.f32 0.0, %v4530
      %v4532 = vpop.f32.mrb[0].mxu0
      %v4533 = vadd.f32 0.0, %v4532
      %4534 = vmatprep.mubr.bf16.mxu0 %v4427
      %4535 = vmatmul.mubr.bf16.gmra.mrb[0].mxu0 %v3843
      %v4536 = vpop.f32.mrb[0].mxu0
      %v4537 = vadd.f32 0.0, %v4536
      %v4538 = vpop.f32.mrb[0].mxu0
      %v4539 = vadd.f32 0.0, %v4538
      %v4540 = vpop.f32.mrb[0].mxu0
      %v4541 = vadd.f32 0.0, %v4540
      %v4542 = vpop.f32.mrb[0].mxu0
      %v4543 = vadd.f32 0.0, %v4542
      %4544 = vmatprep.mubr.bf16.mxu0 %v4430
      %4545 = vmatmul.mubr.bf16.gmra.mrb[0].mxu0 %v3845
      %v4546 = vpop.f32.mrb[0].mxu0
      %v4547 = vadd.f32 0.0, %v4546
      %v4548 = vpop.f32.mrb[0].mxu0
      %v4549 = vadd.f32 0.0, %v4548
      %v4550 = vpop.f32.mrb[0].mxu0
      %v4551 = vadd.f32 0.0, %v4550
      %v4552 = vpop.f32.mrb[0].mxu0
      %v4553 = vadd.f32 0.0, %v4552
      %4554 = vmatprep.mubr.bf16.mxu0 %v4433
      %4555 = vmatmul.mubr.bf16.gmra.mrb[0].mxu0 %v3847
      %v4556 = vpop.f32.mrb[0].mxu0
      %v4557 = vadd.f32 0.0, %v4556
      %v4558 = vpop.f32.mrb[0].mxu0
      %v4559 = vadd.f32 0.0, %v4558
      %v4560 = vpop.f32.mrb[0].mxu0
      %v4561 = vadd.f32 0.0, %v4560
      %v4562 = vpop.f32.mrb[0].mxu0
      %v4563 = vadd.f32 0.0, %v4562
      %4564 = vmatprep.mubr.bf16.mxu0 %v4436
      %4565 = vmatmul.mubr.bf16.gmra.mrb[0].mxu0 %v3849
      %v4566 = vpop.f32.mrb[0].mxu0
      %v4567 = vadd.f32 0.0, %v4566
      %v4568 = vpop.f32.mrb[0].mxu0
      %v4569 = vadd.f32 0.0, %v4568
      %v4570 = vpop.f32.mrb[0].mxu0
      %v4571 = vadd.f32 0.0, %v4570
      %v4572 = vpop.f32.mrb[0].mxu0
      %v4573 = vadd.f32 0.0, %v4572
      %4574 = vmatprep.mubr.bf16.mxu0 %v4439
      %4575 = vmatmul.mubr.bf16.gmra.mrb[0].mxu0 %v3851
      %v4576 = vpop.f32.mrb[0].mxu0
      %v4577 = vadd.f32 0.0, %v4576
      %v4578 = vpop.f32.mrb[0].mxu0
      %v4579 = vadd.f32 0.0, %v4578
      %v4580 = vpop.f32.mrb[0].mxu0
      %v4581 = vadd.f32 0.0, %v4580
      %v4582 = vpop.f32.mrb[0].mxu0
      %v4583 = vadd.f32 0.0, %v4582
      %4584 = vmatprep.mubr.bf16.mxu0 %v4442
      %4585 = vmatmul.mubr.bf16.gmra.mrb[0].mxu0 %v3853
      %v4586 = vpop.f32.mrb[0].mxu0
      %v4587 = vadd.f32 0.0, %v4586
      %v4588 = vpop.f32.mrb[0].mxu0
      %v4589 = vadd.f32 0.0, %v4588
      %v4590 = vpop.f32.mrb[0].mxu0
      %v4591 = vadd.f32 0.0, %v4590
      %v4592 = vpop.f32.mrb[0].mxu0
      %v4593 = vadd.f32 0.0, %v4592
      %4594 = vmatprep.mubr.bf16.mxu0 %v4445
      %4595 = vmatmul.mubr.bf16.gmra.mrb[0].mxu0 %v3855
      %v4596 = vpop.f32.mrb[0].mxu0
      %v4597 = vadd.f32 0.0, %v4596
      %v4598 = vpop.f32.mrb[0].mxu0
      %v4599 = vadd.f32 0.0, %v4598
      %v4600 = vpop.f32.mrb[0].mxu0
      %v4601 = vadd.f32 0.0, %v4600
      %v4602 = vpop.f32.mrb[0].mxu0
      %v4603 = vadd.f32 0.0, %v4602
      %4604 = vmatprep.mubr.bf16.mxu0 %v4448
      %4605 = vmatmul.mubr.bf16.gmra.mrb[0].mxu0 %v3857
      %v4606 = vpop.f32.mrb[0].mxu0
      %v4607 = vadd.f32 0.0, %v4606
      %v4608 = vpop.f32.mrb[0].mxu0
      %v4609 = vadd.f32 0.0, %v4608
      %v4610 = vpop.f32.mrb[0].mxu0
      %v4611 = vadd.f32 0.0, %v4610
      %v4612 = vpop.f32.mrb[0].mxu0
      %v4613 = vadd.f32 0.0, %v4612
      %4614 = vmatprep.mubr.bf16.mxu0 %v4451
      %4615 = vmatmul.mubr.bf16.gmra.mrb[0].mxu0 %v3859
      %v4616 = vpop.f32.mrb[0].mxu0
      %v4617 = vadd.f32 0.0, %v4616
      %v4618 = vpop.f32.mrb[0].mxu0
      %v4619 = vadd.f32 0.0, %v4618
      %v4620 = vpop.f32.mrb[0].mxu0
      %v4621 = vadd.f32 0.0, %v4620
      %v4622 = vpop.f32.mrb[0].mxu0
      %v4623 = vadd.f32 0.0, %v4622
      %4624 = vmatprep.mubr.bf16.mxu0 %v4454
      %4625 = vmatmul.mubr.bf16.gmra.mrb[0].mxu0 %v3861
      %v4626 = vpop.f32.mrb[0].mxu0
      %v4627 = vadd.f32 0.0, %v4626
      %v4628 = vpop.f32.mrb[0].mxu0
      %v4629 = vadd.f32 0.0, %v4628
      %v4630 = vpop.f32.mrb[0].mxu0
      %v4631 = vadd.f32 0.0, %v4630
      %v4632 = vpop.f32.mrb[0].mxu0
      %v4633 = vadd.f32 0.0, %v4632
      %4634 = vmatprep.mubr.bf16.mxu0 %v4457
      %4635 = vmatmul.mubr.bf16.gmra.mrb[0].mxu0 %v3863
      %v4636 = vpop.f32.mrb[0].mxu0
      %v4637 = vadd.f32 0.0, %v4636
      %v4638 = vpop.f32.mrb[0].mxu0
      %v4639 = vadd.f32 0.0, %v4638
      %v4640 = vpop.f32.mrb[0].mxu0
      %v4641 = vadd.f32 0.0, %v4640
      %v4642 = vpop.f32.mrb[0].mxu0
      %v4643 = vadd.f32 0.0, %v4642
      %4644 = vmatprep.mubr.bf16.mxu0 %v4460
      %4645 = vmatmul.mubr.bf16.gmra.mrb[0].mxu0 %v3865
      %v4646 = vpop.f32.mrb[0].mxu0
      %v4647 = vadd.f32 0.0, %v4646
      %v4648 = vpop.f32.mrb[0].mxu0
      %v4649 = vadd.f32 0.0, %v4648
      %v4650 = vpop.f32.mrb[0].mxu0
      %v4651 = vadd.f32 0.0, %v4650
      %v4652 = vpop.f32.mrb[0].mxu0
      %v4653 = vadd.f32 0.0, %v4652
      %4654 = vmatprep.mubr.bf16.mxu0 %v4463
      %4655 = vmatmul.mubr.bf16.gmra.mrb[0].mxu0 %v3867
      %v4656 = vpop.f32.mrb[0].mxu0
      %v4657 = vadd.f32 0.0, %v4656
      %v4658 = vpop.f32.mrb[0].mxu0
      %v4659 = vadd.f32 0.0, %v4658
      %v4660 = vpop.f32.mrb[0].mxu0
      %v4661 = vadd.f32 0.0, %v4660
      %v4662 = vpop.f32.mrb[0].mxu0
      %v4663 = vadd.f32 0.0, %v4662
      %4664 = vmatprep.mubr.bf16.mxu0 %v4466
      %4665 = vmatmul.mubr.bf16.gmra.mrb[0].mxu0 %v3869
      %v4666 = vpop.f32.mrb[0].mxu0
      %v4667 = vadd.f32 0.0, %v4666
      %v4668 = vpop.f32.mrb[0].mxu0
      %v4669 = vadd.f32 0.0, %v4668
      %v4670 = vpop.f32.mrb[0].mxu0
      %v4671 = vadd.f32 0.0, %v4670
      %v4672 = vpop.f32.mrb[0].mxu0
      %v4673 = vadd.f32 0.0, %v4672
      %4674 = vmatprep.mubr.bf16.mxu0 %v4469
      %4675 = vmatmul.mubr.bf16.gmra.mrb[0].mxu0 %v3871
      %v4676 = vpop.f32.mrb[0].mxu0
      %v4677 = vadd.f32 0.0, %v4676
      %v4678 = vpop.f32.mrb[0].mxu0
      %v4679 = vadd.f32 0.0, %v4678
      %v4680 = vpop.f32.mrb[0].mxu0
      %v4681 = vadd.f32 0.0, %v4680
      %v4682 = vpop.f32.mrb[0].mxu0
      %v4683 = vadd.f32 0.0, %v4682
      %4684 = vdwg.mxu0
      %4685 = vmatprep.subr.bf16.mxu0 %v4251
      %4686 = vmatpush1.bf16.msra.mxu0 %v4250
      %4687 = vmatprep.subr.bf16.mxu0 %v4258
      %4688 = vmatpush1.bf16.msra.mxu0 %v4257
      %4689 = vmatprep.subr.bf16.mxu0 %v4265
      %4690 = vmatpush1.bf16.msra.mxu0 %v4264
      %4691 = vmatprep.subr.bf16.mxu0 %v4272
      %4692 = vmatpush1.bf16.msra.mxu0 %v4271
      %4693 = vmatprep.subr.bf16.mxu0 %v4279
      %4694 = vmatpush1.bf16.msra.mxu0 %v4278
      %4695 = vmatprep.subr.bf16.mxu0 %v4286
      %4696 = vmatpush1.bf16.msra.mxu0 %v4285
      %4697 = vmatprep.subr.bf16.mxu0 %v4293
      %4698 = vmatpush1.bf16.msra.mxu0 %v4292
      %4699 = vmatprep.subr.bf16.mxu0 %v4300
      %4700 = vmatpush1.bf16.msra.mxu0 %v4299
      %4701 = vmatprep.subr.bf16.mxu0 %v4307
      %4702 = vmatpush1.bf16.msra.mxu0 %v4306
      %4703 = vmatprep.subr.bf16.mxu0 %v4314
      %4704 = vmatpush1.bf16.msra.mxu0 %v4313
      %4705 = vmatprep.subr.bf16.mxu0 %v4321
      %4706 = vmatpush1.bf16.msra.mxu0 %v4320
      %4707 = vmatprep.subr.bf16.mxu0 %v4328
      %4708 = vmatpush1.bf16.msra.mxu0 %v4327
      %4709 = vmatprep.subr.bf16.mxu0 %v4481
      %4710 = vmatpush1.bf16.msra.mxu0 %v4478
      %4711 = vmatprep.subr.bf16.mxu0 0
      %4712 = vmatpush1.bf16.msra.mxu0 0
      %4713 = vmatprep.subr.bf16.mxu0 0
      %4714 = vmatpush1.bf16.msra.mxu0 0
      %4715 = vmatprep.subr.bf16.mxu0 0
      %4716 = vmatpush1.bf16.msra.mxu0 0
      %4717 = vmatprep.mubr.bf16.mxu0 %v4424
      %4718 = vmatmul.mubr.bf16.gmra.mrb[0].mxu0 %v3841
      %v4719 = vpop.f32.mrb[0].mxu0
      %v4720 = vadd.f32 0.0, %v4719
      %v4721 = vpop.f32.mrb[0].mxu0
      %v4722 = vadd.f32 0.0, %v4721
      %v4723 = vpop.f32.mrb[0].mxu0
      %v4724 = vadd.f32 0.0, %v4723
      %v4725 = vpop.f32.mrb[0].mxu0
      %v4726 = vadd.f32 0.0, %v4725
      %4727 = vmatprep.mubr.bf16.mxu0 %v4427
      %4728 = vmatmul.mubr.bf16.gmra.mrb[0].mxu0 %v3843
      %v4729 = vpop.f32.mrb[0].mxu0
      %v4730 = vadd.f32 0.0, %v4729
      %v4731 = vpop.f32.mrb[0].mxu0
      %v4732 = vadd.f32 0.0, %v4731
      %v4733 = vpop.f32.mrb[0].mxu0
      %v4734 = vadd.f32 0.0, %v4733
      %v4735 = vpop.f32.mrb[0].mxu0
      %v4736 = vadd.f32 0.0, %v4735
      %4737 = vmatprep.mubr.bf16.mxu0 %v4430
      %4738 = vmatmul.mubr.bf16.gmra.mrb[0].mxu0 %v3845
      %v4739 = vpop.f32.mrb[0].mxu0
      %v4740 = vadd.f32 0.0, %v4739
      %v4741 = vpop.f32.mrb[0].mxu0
      %v4742 = vadd.f32 0.0, %v4741
      %v4743 = vpop.f32.mrb[0].mxu0
      %v4744 = vadd.f32 0.0, %v4743
      %v4745 = vpop.f32.mrb[0].mxu0
      %v4746 = vadd.f32 0.0, %v4745
      %4747 = vmatprep.mubr.bf16.mxu0 %v4433
      %4748 = vmatmul.mubr.bf16.gmra.mrb[0].mxu0 %v3847
      %v4749 = vpop.f32.mrb[0].mxu0
      %v4750 = vadd.f32 0.0, %v4749
      %v4751 = vpop.f32.mrb[0].mxu0
      %v4752 = vadd.f32 0.0, %v4751
      %v4753 = vpop.f32.mrb[0].mxu0
      %v4754 = vadd.f32 0.0, %v4753
      %v4755 = vpop.f32.mrb[0].mxu0
      %v4756 = vadd.f32 0.0, %v4755
      %4757 = vmatprep.mubr.bf16.mxu0 %v4436
      %4758 = vmatmul.mubr.bf16.gmra.mrb[0].mxu0 %v3849
      %v4759 = vpop.f32.mrb[0].mxu0
      %v4760 = vadd.f32 0.0, %v4759
      %v4761 = vpop.f32.mrb[0].mxu0
      %v4762 = vadd.f32 0.0, %v4761
      %v4763 = vpop.f32.mrb[0].mxu0
      %v4764 = vadd.f32 0.0, %v4763
      %v4765 = vpop.f32.mrb[0].mxu0
      %v4766 = vadd.f32 0.0, %v4765
      %4767 = vmatprep.mubr.bf16.mxu0 %v4439
      %4768 = vmatmul.mubr.bf16.gmra.mrb[0].mxu0 %v3851
      %v4769 = vpop.f32.mrb[0].mxu0
      %v4770 = vadd.f32 0.0, %v4769
      %v4771 = vpop.f32.mrb[0].mxu0
      %v4772 = vadd.f32 0.0, %v4771
      %v4773 = vpop.f32.mrb[0].mxu0
      %v4774 = vadd.f32 0.0, %v4773
      %v4775 = vpop.f32.mrb[0].mxu0
      %v4776 = vadd.f32 0.0, %v4775
      %4777 = vmatprep.mubr.bf16.mxu0 %v4442
      %4778 = vmatmul.mubr.bf16.gmra.mrb[0].mxu0 %v3853
      %v4779 = vpop.f32.mrb[0].mxu0
      %v4780 = vadd.f32 0.0, %v4779
      %v4781 = vpop.f32.mrb[0].mxu0
      %v4782 = vadd.f32 0.0, %v4781
      %v4783 = vpop.f32.mrb[0].mxu0
      %v4784 = vadd.f32 0.0, %v4783
      %v4785 = vpop.f32.mrb[0].mxu0
      %v4786 = vadd.f32 0.0, %v4785
      %4787 = vmatprep.mubr.bf16.mxu0 %v4445
      %4788 = vmatmul.mubr.bf16.gmra.mrb[0].mxu0 %v3855
      %v4789 = vpop.f32.mrb[0].mxu0
      %v4790 = vadd.f32 0.0, %v4789
      %v4791 = vpop.f32.mrb[0].mxu0
      %v4792 = vadd.f32 0.0, %v4791
      %v4793 = vpop.f32.mrb[0].mxu0
      %v4794 = vadd.f32 0.0, %v4793
      %v4795 = vpop.f32.mrb[0].mxu0
      %v4796 = vadd.f32 0.0, %v4795
      %4797 = vmatprep.mubr.bf16.mxu0 %v4448
      %4798 = vmatmul.mubr.bf16.gmra.mrb[0].mxu0 %v3857
      %v4799 = vpop.f32.mrb[0].mxu0
      %v4800 = vadd.f32 0.0, %v4799
      %v4801 = vpop.f32.mrb[0].mxu0
      %v4802 = vadd.f32 0.0, %v4801
      %v4803 = vpop.f32.mrb[0].mxu0
      %v4804 = vadd.f32 0.0, %v4803
      %v4805 = vpop.f32.mrb[0].mxu0
      %v4806 = vadd.f32 0.0, %v4805
      %4807 = vmatprep.mubr.bf16.mxu0 %v4451
      %4808 = vmatmul.mubr.bf16.gmra.mrb[0].mxu0 %v3859
      %v4809 = vpop.f32.mrb[0].mxu0
      %v4810 = vadd.f32 0.0, %v4809
      %v4811 = vpop.f32.mrb[0].mxu0
      %v4812 = vadd.f32 0.0, %v4811
      %v4813 = vpop.f32.mrb[0].mxu0
      %v4814 = vadd.f32 0.0, %v4813
      %v4815 = vpop.f32.mrb[0].mxu0
      %v4816 = vadd.f32 0.0, %v4815
      %4817 = vmatprep.mubr.bf16.mxu0 %v4454
      %4818 = vmatmul.mubr.bf16.gmra.mrb[0].mxu0 %v3861
      %v4819 = vpop.f32.mrb[0].mxu0
      %v4820 = vadd.f32 0.0, %v4819
      %v4821 = vpop.f32.mrb[0].mxu0
      %v4822 = vadd.f32 0.0, %v4821
      %v4823 = vpop.f32.mrb[0].mxu0
      %v4824 = vadd.f32 0.0, %v4823
      %v4825 = vpop.f32.mrb[0].mxu0
      %v4826 = vadd.f32 0.0, %v4825
      %4827 = vmatprep.mubr.bf16.mxu0 %v4457
      %4828 = vmatmul.mubr.bf16.gmra.mrb[0].mxu0 %v3863
      %v4829 = vpop.f32.mrb[0].mxu0
      %v4830 = vadd.f32 0.0, %v4829
      %v4831 = vpop.f32.mrb[0].mxu0
      %v4832 = vadd.f32 0.0, %v4831
      %v4833 = vpop.f32.mrb[0].mxu0
      %v4834 = vadd.f32 0.0, %v4833
      %v4835 = vpop.f32.mrb[0].mxu0
      %v4836 = vadd.f32 0.0, %v4835
      %4837 = vmatprep.mubr.bf16.mxu0 %v4460
      %4838 = vmatmul.mubr.bf16.gmra.mrb[0].mxu0 %v3865
      %v4839 = vpop.f32.mrb[0].mxu0
      %v4840 = vadd.f32 0.0, %v4839
      %v4841 = vpop.f32.mrb[0].mxu0
      %v4842 = vadd.f32 0.0, %v4841
      %v4843 = vpop.f32.mrb[0].mxu0
      %v4844 = vadd.f32 0.0, %v4843
      %v4845 = vpop.f32.mrb[0].mxu0
      %v4846 = vadd.f32 0.0, %v4845
      %4847 = vmatprep.mubr.bf16.mxu0 %v4463
      %4848 = vmatmul.mubr.bf16.gmra.mrb[0].mxu0 %v3867
      %v4849 = vpop.f32.mrb[0].mxu0
      %v4850 = vadd.f32 0.0, %v4849
      %v4851 = vpop.f32.mrb[0].mxu0
      %v4852 = vadd.f32 0.0, %v4851
      %v4853 = vpop.f32.mrb[0].mxu0
      %v4854 = vadd.f32 0.0, %v4853
      %v4855 = vpop.f32.mrb[0].mxu0
      %v4856 = vadd.f32 0.0, %v4855
      %4857 = vmatprep.mubr.bf16.mxu0 %v4466
      %4858 = vmatmul.mubr.bf16.gmra.mrb[0].mxu0 %v3869
      %v4859 = vpop.f32.mrb[0].mxu0
      %v4860 = vadd.f32 0.0, %v4859
      %v4861 = vpop.f32.mrb[0].mxu0
      %v4862 = vadd.f32 0.0, %v4861
      %v4863 = vpop.f32.mrb[0].mxu0
      %v4864 = vadd.f32 0.0, %v4863
      %v4865 = vpop.f32.mrb[0].mxu0
      %v4866 = vadd.f32 0.0, %v4865
      %4867 = vmatprep.mubr.bf16.mxu0 %v4469
      %4868 = vmatmul.mubr.bf16.gmra.mrb[0].mxu0 %v3871
      %v4869 = vpop.f32.mrb[0].mxu0
      %v4870 = vadd.f32 0.0, %v4869
      %v4871 = vpop.f32.mrb[0].mxu0
      %v4872 = vadd.f32 0.0, %v4871
      %v4873 = vpop.f32.mrb[0].mxu0
      %v4874 = vadd.f32 0.0, %v4873
      %v4875 = vpop.f32.mrb[0].mxu0
      %v4876 = vadd.f32 0.0, %v4875
      %4877 = vdwg.mxu0
      %4878 = vmatprep.subr.bf16.mxu0 %v4253
      %4879 = vmatpush1.bf16.msra.mxu0 %v4252
      %4880 = vmatprep.subr.bf16.mxu0 %v4260
      %4881 = vmatpush1.bf16.msra.mxu0 %v4259
      %4882 = vmatprep.subr.bf16.mxu0 %v4267
      %4883 = vmatpush1.bf16.msra.mxu0 %v4266
      %4884 = vmatprep.subr.bf16.mxu0 %v4274
      %4885 = vmatpush1.bf16.msra.mxu0 %v4273
      %4886 = vmatprep.subr.bf16.mxu0 %v4281
      %4887 = vmatpush1.bf16.msra.mxu0 %v4280
      %4888 = vmatprep.subr.bf16.mxu0 %v4288
      %4889 = vmatpush1.bf16.msra.mxu0 %v4287
      %4890 = vmatprep.subr.bf16.mxu0 %v4295
      %4891 = vmatpush1.bf16.msra.mxu0 %v4294
      %4892 = vmatprep.subr.bf16.mxu0 %v4302
      %4893 = vmatpush1.bf16.msra.mxu0 %v4301
      %4894 = vmatprep.subr.bf16.mxu0 %v4309
      %4895 = vmatpush1.bf16.msra.mxu0 %v4308
      %4896 = vmatprep.subr.bf16.mxu0 %v4316
      %4897 = vmatpush1.bf16.msra.mxu0 %v4315
      %4898 = vmatprep.subr.bf16.mxu0 %v4323
      %4899 = vmatpush1.bf16.msra.mxu0 %v4322
      %4900 = vmatprep.subr.bf16.mxu0 %v4330
      %4901 = vmatpush1.bf16.msra.mxu0 %v4329
      %4902 = vmatprep.subr.bf16.mxu0 %v4487
      %4903 = vmatpush1.bf16.msra.mxu0 %v4484
      %4904 = vmatprep.subr.bf16.mxu0 0
      %4905 = vmatpush1.bf16.msra.mxu0 0
      %4906 = vmatprep.subr.bf16.mxu0 0
      %4907 = vmatpush1.bf16.msra.mxu0 0
      %4908 = vmatprep.subr.bf16.mxu0 0
      %4909 = vmatpush1.bf16.msra.mxu0 0
      %4910 = vmatprep.mubr.bf16.mxu0 %v4424
      %4911 = vmatmul.mubr.bf16.gmra.mrb[0].mxu0 %v3841
      %v4912 = vpop.f32.mrb[0].mxu0
      %v4913 = vadd.f32 0.0, %v4912
      %v4914 = vpop.f32.mrb[0].mxu0
      %v4915 = vadd.f32 0.0, %v4914
      %v4916 = vpop.f32.mrb[0].mxu0
      %v4917 = vadd.f32 0.0, %v4916
      %v4918 = vpop.f32.mrb[0].mxu0
      %v4919 = vadd.f32 0.0, %v4918
      %4920 = vmatprep.mubr.bf16.mxu0 %v4427
      %4921 = vmatmul.mubr.bf16.gmra.mrb[0].mxu0 %v3843
      %v4922 = vpop.f32.mrb[0].mxu0
      %v4923 = vadd.f32 0.0, %v4922
      %v4924 = vpop.f32.mrb[0].mxu0
      %v4925 = vadd.f32 0.0, %v4924
      %v4926 = vpop.f32.mrb[0].mxu0
      %v4927 = vadd.f32 0.0, %v4926
      %v4928 = vpop.f32.mrb[0].mxu0
      %v4929 = vadd.f32 0.0, %v4928
      %4930 = vmatprep.mubr.bf16.mxu0 %v4430
      %4931 = vmatmul.mubr.bf16.gmra.mrb[0].mxu0 %v3845
      %v4932 = vpop.f32.mrb[0].mxu0
      %v4933 = vadd.f32 0.0, %v4932
      %v4934 = vpop.f32.mrb[0].mxu0
      %v4935 = vadd.f32 0.0, %v4934
      %v4936 = vpop.f32.mrb[0].mxu0
      %v4937 = vadd.f32 0.0, %v4936
      %v4938 = vpop.f32.mrb[0].mxu0
      %v4939 = vadd.f32 0.0, %v4938
      %4940 = vmatprep.mubr.bf16.mxu0 %v4433
      %4941 = vmatmul.mubr.bf16.gmra.mrb[0].mxu0 %v3847
      %v4942 = vpop.f32.mrb[0].mxu0
      %v4943 = vadd.f32 0.0, %v4942
      %v4944 = vpop.f32.mrb[0].mxu0
      %v4945 = vadd.f32 0.0, %v4944
      %v4946 = vpop.f32.mrb[0].mxu0
      %v4947 = vadd.f32 0.0, %v4946
      %v4948 = vpop.f32.mrb[0].mxu0
      %v4949 = vadd.f32 0.0, %v4948
      %4950 = vmatprep.mubr.bf16.mxu0 %v4436
      %4951 = vmatmul.mubr.bf16.gmra.mrb[0].mxu0 %v3849
      %v4952 = vpop.f32.mrb[0].mxu0
      %v4953 = vadd.f32 0.0, %v4952
      %v4954 = vpop.f32.mrb[0].mxu0
      %v4955 = vadd.f32 0.0, %v4954
      %v4956 = vpop.f32.mrb[0].mxu0
      %v4957 = vadd.f32 0.0, %v4956
      %v4958 = vpop.f32.mrb[0].mxu0
      %v4959 = vadd.f32 0.0, %v4958
      %4960 = vmatprep.mubr.bf16.mxu0 %v4439
      %4961 = vmatmul.mubr.bf16.gmra.mrb[0].mxu0 %v3851
      %v4962 = vpop.f32.mrb[0].mxu0
      %v4963 = vadd.f32 0.0, %v4962
      %v4964 = vpop.f32.mrb[0].mxu0
      %v4965 = vadd.f32 0.0, %v4964
      %v4966 = vpop.f32.mrb[0].mxu0
      %v4967 = vadd.f32 0.0, %v4966
      %v4968 = vpop.f32.mrb[0].mxu0
      %v4969 = vadd.f32 0.0, %v4968
      %4970 = vmatprep.mubr.bf16.mxu0 %v4442
      %4971 = vmatmul.mubr.bf16.gmra.mrb[0].mxu0 %v3853
      %v4972 = vpop.f32.mrb[0].mxu0
      %v4973 = vadd.f32 0.0, %v4972
      %v4974 = vpop.f32.mrb[0].mxu0
      %v4975 = vadd.f32 0.0, %v4974
      %v4976 = vpop.f32.mrb[0].mxu0
      %v4977 = vadd.f32 0.0, %v4976
      %v4978 = vpop.f32.mrb[0].mxu0
      %v4979 = vadd.f32 0.0, %v4978
      %4980 = vmatprep.mubr.bf16.mxu0 %v4445
      %4981 = vmatmul.mubr.bf16.gmra.mrb[0].mxu0 %v3855
      %v4982 = vpop.f32.mrb[0].mxu0
      %v4983 = vadd.f32 0.0, %v4982
      %v4984 = vpop.f32.mrb[0].mxu0
      %v4985 = vadd.f32 0.0, %v4984
      %v4986 = vpop.f32.mrb[0].mxu0
      %v4987 = vadd.f32 0.0, %v4986
      %v4988 = vpop.f32.mrb[0].mxu0
      %v4989 = vadd.f32 0.0, %v4988
      %4990 = vmatprep.mubr.bf16.mxu0 %v4448
      %4991 = vmatmul.mubr.bf16.gmra.mrb[0].mxu0 %v3857
      %v4992 = vpop.f32.mrb[0].mxu0
      %v4993 = vadd.f32 0.0, %v4992
      %v4994 = vpop.f32.mrb[0].mxu0
      %v4995 = vadd.f32 0.0, %v4994
      %v4996 = vpop.f32.mrb[0].mxu0
      %v4997 = vadd.f32 0.0, %v4996
      %v4998 = vpop.f32.mrb[0].mxu0
      %v4999 = vadd.f32 0.0, %v4998
      %5000 = vmatprep.mubr.bf16.mxu0 %v4451
      %5001 = vmatmul.mubr.bf16.gmra.mrb[0].mxu0 %v3859
      %v5002 = vpop.f32.mrb[0].mxu0
      %v5003 = vadd.f32 0.0, %v5002
      %v5004 = vpop.f32.mrb[0].mxu0
      %v5005 = vadd.f32 0.0, %v5004
      %v5006 = vpop.f32.mrb[0].mxu0
      %v5007 = vadd.f32 0.0, %v5006
      %v5008 = vpop.f32.mrb[0].mxu0
      %v5009 = vadd.f32 0.0, %v5008
      %5010 = vmatprep.mubr.bf16.mxu0 %v4454
      %5011 = vmatmul.mubr.bf16.gmra.mrb[0].mxu0 %v3861
      %v5012 = vpop.f32.mrb[0].mxu0
      %v5013 = vadd.f32 0.0, %v5012
      %v5014 = vpop.f32.mrb[0].mxu0
      %v5015 = vadd.f32 0.0, %v5014
      %v5016 = vpop.f32.mrb[0].mxu0
      %v5017 = vadd.f32 0.0, %v5016
      %v5018 = vpop.f32.mrb[0].mxu0
      %v5019 = vadd.f32 0.0, %v5018
      %5020 = vmatprep.mubr.bf16.mxu0 %v4457
      %5021 = vmatmul.mubr.bf16.gmra.mrb[0].mxu0 %v3863
      %v5022 = vpop.f32.mrb[0].mxu0
      %v5023 = vadd.f32 0.0, %v5022
      %v5024 = vpop.f32.mrb[0].mxu0
      %v5025 = vadd.f32 0.0, %v5024
      %v5026 = vpop.f32.mrb[0].mxu0
      %v5027 = vadd.f32 0.0, %v5026
      %v5028 = vpop.f32.mrb[0].mxu0
      %v5029 = vadd.f32 0.0, %v5028
      %5030 = vmatprep.mubr.bf16.mxu0 %v4460
      %5031 = vmatmul.mubr.bf16.gmra.mrb[0].mxu0 %v3865
      %v5032 = vpop.f32.mrb[0].mxu0
      %v5033 = vadd.f32 0.0, %v5032
      %v5034 = vpop.f32.mrb[0].mxu0
      %v5035 = vadd.f32 0.0, %v5034
      %v5036 = vpop.f32.mrb[0].mxu0
      %v5037 = vadd.f32 0.0, %v5036
      %v5038 = vpop.f32.mrb[0].mxu0
      %v5039 = vadd.f32 0.0, %v5038
      %5040 = vmatprep.mubr.bf16.mxu0 %v4463
      %5041 = vmatmul.mubr.bf16.gmra.mrb[0].mxu0 %v3867
      %v5042 = vpop.f32.mrb[0].mxu0
      %v5043 = vadd.f32 0.0, %v5042
      %v5044 = vpop.f32.mrb[0].mxu0
      %v5045 = vadd.f32 0.0, %v5044
      %v5046 = vpop.f32.mrb[0].mxu0
      %v5047 = vadd.f32 0.0, %v5046
      %v5048 = vpop.f32.mrb[0].mxu0
      %v5049 = vadd.f32 0.0, %v5048
      %5050 = vmatprep.mubr.bf16.mxu0 %v4466
      %5051 = vmatmul.mubr.bf16.gmra.mrb[0].mxu0 %v3869
      %v5052 = vpop.f32.mrb[0].mxu0
      %v5053 = vadd.f32 0.0, %v5052
      %v5054 = vpop.f32.mrb[0].mxu0
      %v5055 = vadd.f32 0.0, %v5054
      %v5056 = vpop.f32.mrb[0].mxu0
      %v5057 = vadd.f32 0.0, %v5056
      %v5058 = vpop.f32.mrb[0].mxu0
      %v5059 = vadd.f32 0.0, %v5058
      %5060 = vmatprep.mubr.bf16.mxu0 %v4469
      %5061 = vmatmul.mubr.bf16.gmra.mrb[0].mxu0 %v3871
      %v5062 = vpop.f32.mrb[0].mxu0
      %v5063 = vadd.f32 0.0, %v5062
      %v5064 = vpop.f32.mrb[0].mxu0
      %v5065 = vadd.f32 0.0, %v5064
      %v5066 = vpop.f32.mrb[0].mxu0
      %v5067 = vadd.f32 0.0, %v5066
      %v5068 = vpop.f32.mrb[0].mxu0
      %v5069 = vadd.f32 0.0, %v5068
      %5070 = vdwg.mxu0
      %5071 = vmatprep.subr.bf16.mxu0 0
      %5072 = vmatpush1.bf16.msra.mxu0 %v4254
      %5073 = vmatprep.subr.bf16.mxu0 0
      %5074 = vmatpush1.bf16.msra.mxu0 %v4261
      %5075 = vmatprep.subr.bf16.mxu0 0
      %5076 = vmatpush1.bf16.msra.mxu0 %v4268
      %5077 = vmatprep.subr.bf16.mxu0 0
      %5078 = vmatpush1.bf16.msra.mxu0 %v4275
      %5079 = vmatprep.subr.bf16.mxu0 0
      %5080 = vmatpush1.bf16.msra.mxu0 %v4282
      %5081 = vmatprep.subr.bf16.mxu0 0
      %5082 = vmatpush1.bf16.msra.mxu0 %v4289
      %5083 = vmatprep.subr.bf16.mxu0 0
      %5084 = vmatpush1.bf16.msra.mxu0 %v4296
      %5085 = vmatprep.subr.bf16.mxu0 0
      %5086 = vmatpush1.bf16.msra.mxu0 %v4303
      %5087 = vmatprep.subr.bf16.mxu0 0
      %5088 = vmatpush1.bf16.msra.mxu0 %v4310
      %5089 = vmatprep.subr.bf16.mxu0 0
      %5090 = vmatpush1.bf16.msra.mxu0 %v4317
      %5091 = vmatprep.subr.bf16.mxu0 0
      %5092 = vmatpush1.bf16.msra.mxu0 %v4324
      %5093 = vmatprep.subr.bf16.mxu0 0
      %5094 = vmatpush1.bf16.msra.mxu0 %v4331
      %5095 = vmatprep.subr.bf16.mxu0 0
      %5096 = vmatpush1.bf16.msra.mxu0 %v4490
      %5097 = vmatprep.subr.bf16.mxu0 0
      %5098 = vmatpush1.bf16.msra.mxu0 0
      %5099 = vmatprep.subr.bf16.mxu0 0
      %5100 = vmatpush1.bf16.msra.mxu0 0
      %5101 = vmatprep.subr.bf16.mxu0 0
      %5102 = vmatpush1.bf16.msra.mxu0 0
      %5103 = vmatprep.mubr.bf16.mxu0 %v4424
      %5104 = vmatmul.mubr.bf16.gmra.mrb[0].mxu0 %v3841
      %v5105 = vpop.f32.mrb[0].mxu0
      %v5106 = vadd.f32 0.0, %v5105
      %v5107 = vpop.f32.mrb[0].mxu0
      %v5108 = vpop.f32.mrb[0].mxu0
      %v5109 = vadd.f32 0.0, %v5108
      %v5110 = vpop.f32.mrb[0].mxu0
      %5111 = vmatprep.mubr.bf16.mxu0 %v4427
      %5112 = vmatmul.mubr.bf16.gmra.mrb[0].mxu0 %v3843
      %v5113 = vpop.f32.mrb[0].mxu0
      %v5114 = vadd.f32 0.0, %v5113
      %v5115 = vpop.f32.mrb[0].mxu0
      %v5116 = vpop.f32.mrb[0].mxu0
      %v5117 = vadd.f32 0.0, %v5116
      %v5118 = vpop.f32.mrb[0].mxu0
      %5119 = vmatprep.mubr.bf16.mxu0 %v4430
      %5120 = vmatmul.mubr.bf16.gmra.mrb[0].mxu0 %v3845
      %v5121 = vpop.f32.mrb[0].mxu0
      %v5122 = vadd.f32 0.0, %v5121
      %v5123 = vpop.f32.mrb[0].mxu0
      %v5124 = vpop.f32.mrb[0].mxu0
      %v5125 = vadd.f32 0.0, %v5124
      %v5126 = vpop.f32.mrb[0].mxu0
      %5127 = vmatprep.mubr.bf16.mxu0 %v4433
      %5128 = vmatmul.mubr.bf16.gmra.mrb[0].mxu0 %v3847
      %v5129 = vpop.f32.mrb[0].mxu0
      %v5130 = vadd.f32 0.0, %v5129
      %v5131 = vpop.f32.mrb[0].mxu0
      %v5132 = vpop.f32.mrb[0].mxu0
      %v5133 = vadd.f32 0.0, %v5132
      %v5134 = vpop.f32.mrb[0].mxu0
      %5135 = vmatprep.mubr.bf16.mxu0 %v4436
      %5136 = vmatmul.mubr.bf16.gmra.mrb[0].mxu0 %v3849
      %v5137 = vpop.f32.mrb[0].mxu0
      %v5138 = vadd.f32 0.0, %v5137
      %v5139 = vpop.f32.mrb[0].mxu0
      %v5140 = vpop.f32.mrb[0].mxu0
      %v5141 = vadd.f32 0.0, %v5140
      %v5142 = vpop.f32.mrb[0].mxu0
      %5143 = vmatprep.mubr.bf16.mxu0 %v4439
      %5144 = vmatmul.mubr.bf16.gmra.mrb[0].mxu0 %v3851
      %v5145 = vpop.f32.mrb[0].mxu0
      %v5146 = vadd.f32 0.0, %v5145
      %v5147 = vpop.f32.mrb[0].mxu0
      %v5148 = vpop.f32.mrb[0].mxu0
      %v5149 = vadd.f32 0.0, %v5148
      %v5150 = vpop.f32.mrb[0].mxu0
      %5151 = vmatprep.mubr.bf16.mxu0 %v4442
      %5152 = vmatmul.mubr.bf16.gmra.mrb[0].mxu0 %v3853
      %v5153 = vpop.f32.mrb[0].mxu0
      %v5154 = vadd.f32 0.0, %v5153
      %v5155 = vpop.f32.mrb[0].mxu0
      %v5156 = vpop.f32.mrb[0].mxu0
      %v5157 = vadd.f32 0.0, %v5156
      %v5158 = vpop.f32.mrb[0].mxu0
      %5159 = vmatprep.mubr.bf16.mxu0 %v4445
      %5160 = vmatmul.mubr.bf16.gmra.mrb[0].mxu0 %v3855
      %v5161 = vpop.f32.mrb[0].mxu0
      %v5162 = vadd.f32 0.0, %v5161
      %v5163 = vpop.f32.mrb[0].mxu0
      %v5164 = vpop.f32.mrb[0].mxu0
      %v5165 = vadd.f32 0.0, %v5164
      %v5166 = vpop.f32.mrb[0].mxu0
      %5167 = vmatprep.mubr.bf16.mxu0 %v4448
      %5168 = vmatmul.mubr.bf16.gmra.mrb[0].mxu0 %v3857
      %v5169 = vpop.f32.mrb[0].mxu0
      %v5170 = vadd.f32 0.0, %v5169
      %v5171 = vpop.f32.mrb[0].mxu0
      %v5172 = vpop.f32.mrb[0].mxu0
      %v5173 = vadd.f32 0.0, %v5172
      %v5174 = vpop.f32.mrb[0].mxu0
      %5175 = vmatprep.mubr.bf16.mxu0 %v4451
      %5176 = vmatmul.mubr.bf16.gmra.mrb[0].mxu0 %v3859
      %v5177 = vpop.f32.mrb[0].mxu0
      %v5178 = vadd.f32 0.0, %v5177
      %v5179 = vpop.f32.mrb[0].mxu0
      %v5180 = vpop.f32.mrb[0].mxu0
      %v5181 = vadd.f32 0.0, %v5180
      %v5182 = vpop.f32.mrb[0].mxu0
      %5183 = vmatprep.mubr.bf16.mxu0 %v4454
      %5184 = vmatmul.mubr.bf16.gmra.mrb[0].mxu0 %v3861
      %v5185 = vpop.f32.mrb[0].mxu0
      %v5186 = vadd.f32 0.0, %v5185
      %v5187 = vpop.f32.mrb[0].mxu0
      %v5188 = vpop.f32.mrb[0].mxu0
      %v5189 = vadd.f32 0.0, %v5188
      %v5190 = vpop.f32.mrb[0].mxu0
      %5191 = vmatprep.mubr.bf16.mxu0 %v4457
      %5192 = vmatmul.mubr.bf16.gmra.mrb[0].mxu0 %v3863
      %v5193 = vpop.f32.mrb[0].mxu0
      %v5194 = vadd.f32 0.0, %v5193
      %v5195 = vpop.f32.mrb[0].mxu0
      %v5196 = vpop.f32.mrb[0].mxu0
      %v5197 = vadd.f32 0.0, %v5196
      %v5198 = vpop.f32.mrb[0].mxu0
      %5199 = vmatprep.mubr.bf16.mxu0 %v4460
      %5200 = vmatmul.mubr.bf16.gmra.mrb[0].mxu0 %v3865
      %v5201 = vpop.f32.mrb[0].mxu0
      %v5202 = vadd.f32 0.0, %v5201
      %v5203 = vpop.f32.mrb[0].mxu0
      %v5204 = vpop.f32.mrb[0].mxu0
      %v5205 = vadd.f32 0.0, %v5204
      %v5206 = vpop.f32.mrb[0].mxu0
      %5207 = vmatprep.mubr.bf16.mxu0 %v4463
      %5208 = vmatmul.mubr.bf16.gmra.mrb[0].mxu0 %v3867
      %v5209 = vpop.f32.mrb[0].mxu0
      %v5210 = vadd.f32 0.0, %v5209
      %v5211 = vpop.f32.mrb[0].mxu0
      %v5212 = vpop.f32.mrb[0].mxu0
      %v5213 = vadd.f32 0.0, %v5212
      %v5214 = vpop.f32.mrb[0].mxu0
      %5215 = vmatprep.mubr.bf16.mxu0 %v4466
      %5216 = vmatmul.mubr.bf16.gmra.mrb[0].mxu0 %v3869
      %v5217 = vpop.f32.mrb[0].mxu0
      %v5218 = vadd.f32 0.0, %v5217
      %v5219 = vpop.f32.mrb[0].mxu0
      %v5220 = vpop.f32.mrb[0].mxu0
      %v5221 = vadd.f32 0.0, %v5220
      %v5222 = vpop.f32.mrb[0].mxu0
      %5223 = vmatprep.mubr.bf16.mxu0 %v4469
      %5224 = vmatmul.mubr.bf16.gmra.mrb[0].mxu0 %v3871
      %v5225 = vpop.f32.mrb[0].mxu0
      %v5226 = vadd.f32 0.0, %v5225
      %v5227 = vpop.f32.mrb[0].mxu0
      %v5228 = vpop.f32.mrb[0].mxu0
      %v5229 = vadd.f32 0.0, %v5228
      %v5230 = vpop.f32.mrb[0].mxu0
      %5231 = vdwg.mxu0
      %v5232 = vmax.f32 %v4527, 0.0
      %v5233 = vmax.f32 %v4529, 0.0
      %v5234 = vmax.f32 %v4720, 0.0
      %v5235 = vmax.f32 %v4722, 0.0
      %v5236 = vmax.f32 %v4913, 0.0
      %v5237 = vmax.f32 %v4915, 0.0
      %v5238 = vmax.f32 %v5106, 0.0
      %v5239 = vmax.f32 %v4531, 0.0
      %v5240 = vmax.f32 %v4533, 0.0
      %v5241 = vmax.f32 %v4724, 0.0
      %v5242 = vmax.f32 %v4726, 0.0
      %v5243 = vmax.f32 %v4917, 0.0
      %v5244 = vmax.f32 %v4919, 0.0
      %v5245 = vmax.f32 %v5109, 0.0
      %v5246 = vmax.f32 %v4537, 0.0
      %v5247 = vmax.f32 %v4539, 0.0
      %v5248 = vmax.f32 %v4730, 0.0
      %v5249 = vmax.f32 %v4732, 0.0
      %v5250 = vmax.f32 %v4923, 0.0
      %v5251 = vmax.f32 %v4925, 0.0
      %v5252 = vmax.f32 %v5114, 0.0
      %v5253 = vmax.f32 %v4541, 0.0
      %v5254 = vmax.f32 %v4543, 0.0
      %v5255 = vmax.f32 %v4734, 0.0
      %v5256 = vmax.f32 %v4736, 0.0
      %v5257 = vmax.f32 %v4927, 0.0
      %v5258 = vmax.f32 %v4929, 0.0
      %v5259 = vmax.f32 %v5117, 0.0
      %v5260 = vmax.f32 %v4547, 0.0
      %v5261 = vmax.f32 %v4549, 0.0
      %v5262 = vmax.f32 %v4740, 0.0
      %v5263 = vmax.f32 %v4742, 0.0
      %v5264 = vmax.f32 %v4933, 0.0
      %v5265 = vmax.f32 %v4935, 0.0
      %v5266 = vmax.f32 %v5122, 0.0
      %v5267 = vmax.f32 %v4551, 0.0
      %v5268 = vmax.f32 %v4553, 0.0
      %v5269 = vmax.f32 %v4744, 0.0
      %v5270 = vmax.f32 %v4746, 0.0
      %v5271 = vmax.f32 %v4937, 0.0
      %v5272 = vmax.f32 %v4939, 0.0
      %v5273 = vmax.f32 %v5125, 0.0
      %v5274 = vmax.f32 %v4557, 0.0
      %v5275 = vmax.f32 %v4559, 0.0
      %v5276 = vmax.f32 %v4750, 0.0
      %v5277 = vmax.f32 %v4752, 0.0
      %v5278 = vmax.f32 %v4943, 0.0
      %v5279 = vmax.f32 %v4945, 0.0
      %v5280 = vmax.f32 %v5130, 0.0
      %v5281 = vmax.f32 %v4561, 0.0
      %v5282 = vmax.f32 %v4563, 0.0
      %v5283 = vmax.f32 %v4754, 0.0
      %v5284 = vmax.f32 %v4756, 0.0
      %v5285 = vmax.f32 %v4947, 0.0
      %v5286 = vmax.f32 %v4949, 0.0
      %v5287 = vmax.f32 %v5133, 0.0
      %v5288 = vmax.f32 %v4567, 0.0
      %v5289 = vmax.f32 %v4569, 0.0
      %v5290 = vmax.f32 %v4760, 0.0
      %v5291 = vmax.f32 %v4762, 0.0
      %v5292 = vmax.f32 %v4953, 0.0
      %v5293 = vmax.f32 %v4955, 0.0
      %v5294 = vmax.f32 %v5138, 0.0
      %v5295 = vmax.f32 %v4571, 0.0
      %v5296 = vmax.f32 %v4573, 0.0
      %v5297 = vmax.f32 %v4764, 0.0
      %v5298 = vmax.f32 %v4766, 0.0
      %v5299 = vmax.f32 %v4957, 0.0
      %v5300 = vmax.f32 %v4959, 0.0
      %v5301 = vmax.f32 %v5141, 0.0
      %v5302 = vmax.f32 %v4577, 0.0
      %v5303 = vmax.f32 %v4579, 0.0
      %v5304 = vmax.f32 %v4770, 0.0
      %v5305 = vmax.f32 %v4772, 0.0
      %v5306 = vmax.f32 %v4963, 0.0
      %v5307 = vmax.f32 %v4965, 0.0
      %v5308 = vmax.f32 %v5146, 0.0
      %v5309 = vmax.f32 %v4581, 0.0
      %v5310 = vmax.f32 %v4583, 0.0
      %v5311 = vmax.f32 %v4774, 0.0
      %v5312 = vmax.f32 %v4776, 0.0
      %v5313 = vmax.f32 %v4967, 0.0
      %v5314 = vmax.f32 %v4969, 0.0
      %v5315 = vmax.f32 %v5149, 0.0
      %v5316 = vmax.f32 %v4587, 0.0
      %v5317 = vmax.f32 %v4589, 0.0
      %v5318 = vmax.f32 %v4780, 0.0
      %v5319 = vmax.f32 %v4782, 0.0
      %v5320 = vmax.f32 %v4973, 0.0
      %v5321 = vmax.f32 %v4975, 0.0
      %v5322 = vmax.f32 %v5154, 0.0
      %v5323 = vmax.f32 %v4591, 0.0
      %v5324 = vmax.f32 %v4593, 0.0
      %v5325 = vmax.f32 %v4784, 0.0
      %v5326 = vmax.f32 %v4786, 0.0
      %v5327 = vmax.f32 %v4977, 0.0
      %v5328 = vmax.f32 %v4979, 0.0
      %v5329 = vmax.f32 %v5157, 0.0
      %v5330 = vmax.f32 %v4597, 0.0
      %v5331 = vmax.f32 %v4599, 0.0
      %v5332 = vmax.f32 %v4790, 0.0
      %v5333 = vmax.f32 %v4792, 0.0
      %v5334 = vmax.f32 %v4983, 0.0
      %v5335 = vmax.f32 %v4985, 0.0
      %v5336 = vmax.f32 %v5162, 0.0
      %v5337 = vmax.f32 %v4601, 0.0
      %v5338 = vmax.f32 %v4603, 0.0
      %v5339 = vmax.f32 %v4794, 0.0
      %v5340 = vmax.f32 %v4796, 0.0
      %v5341 = vmax.f32 %v4987, 0.0
      %v5342 = vmax.f32 %v4989, 0.0
      %v5343 = vmax.f32 %v5165, 0.0
      %v5344 = vmax.f32 %v4607, 0.0
      %v5345 = vmax.f32 %v4609, 0.0
      %v5346 = vmax.f32 %v4800, 0.0
      %v5347 = vmax.f32 %v4802, 0.0
      %v5348 = vmax.f32 %v4993, 0.0
      %v5349 = vmax.f32 %v4995, 0.0
      %v5350 = vmax.f32 %v5170, 0.0
      %v5351 = vmax.f32 %v4611, 0.0
      %v5352 = vmax.f32 %v4613, 0.0
      %v5353 = vmax.f32 %v4804, 0.0
      %v5354 = vmax.f32 %v4806, 0.0
      %v5355 = vmax.f32 %v4997, 0.0
      %v5356 = vmax.f32 %v4999, 0.0
      %v5357 = vmax.f32 %v5173, 0.0
      %v5358 = vmax.f32 %v4617, 0.0
      %v5359 = vmax.f32 %v4619, 0.0
      %v5360 = vmax.f32 %v4810, 0.0
      %v5361 = vmax.f32 %v4812, 0.0
      %v5362 = vmax.f32 %v5003, 0.0
      %v5363 = vmax.f32 %v5005, 0.0
      %v5364 = vmax.f32 %v5178, 0.0
      %v5365 = vmax.f32 %v4621, 0.0
      %v5366 = vmax.f32 %v4623, 0.0
      %v5367 = vmax.f32 %v4814, 0.0
      %v5368 = vmax.f32 %v4816, 0.0
      %v5369 = vmax.f32 %v5007, 0.0
      %v5370 = vmax.f32 %v5009, 0.0
      %v5371 = vmax.f32 %v5181, 0.0
      %v5372 = vmax.f32 %v4627, 0.0
      %v5373 = vmax.f32 %v4629, 0.0
      %v5374 = vmax.f32 %v4820, 0.0
      %v5375 = vmax.f32 %v4822, 0.0
      %v5376 = vmax.f32 %v5013, 0.0
      %v5377 = vmax.f32 %v5015, 0.0
      %v5378 = vmax.f32 %v5186, 0.0
      %v5379 = vmax.f32 %v4631, 0.0
      %v5380 = vmax.f32 %v4633, 0.0
      %v5381 = vmax.f32 %v4824, 0.0
      %v5382 = vmax.f32 %v4826, 0.0
      %v5383 = vmax.f32 %v5017, 0.0
      %v5384 = vmax.f32 %v5019, 0.0
      %v5385 = vmax.f32 %v5189, 0.0
      %v5386 = vmax.f32 %v4637, 0.0
      %v5387 = vmax.f32 %v4639, 0.0
      %v5388 = vmax.f32 %v4830, 0.0
      %v5389 = vmax.f32 %v4832, 0.0
      %v5390 = vmax.f32 %v5023, 0.0
      %v5391 = vmax.f32 %v5025, 0.0
      %v5392 = vmax.f32 %v5194, 0.0
      %v5393 = vmax.f32 %v4641, 0.0
      %v5394 = vmax.f32 %v4643, 0.0
      %v5395 = vmax.f32 %v4834, 0.0
      %v5396 = vmax.f32 %v4836, 0.0
      %v5397 = vmax.f32 %v5027, 0.0
      %v5398 = vmax.f32 %v5029, 0.0
      %v5399 = vmax.f32 %v5197, 0.0
      %v5400 = vmax.f32 %v4647, 0.0
      %v5401 = vmax.f32 %v4649, 0.0
      %v5402 = vmax.f32 %v4840, 0.0
      %v5403 = vmax.f32 %v4842, 0.0
      %v5404 = vmax.f32 %v5033, 0.0
      %v5405 = vmax.f32 %v5035, 0.0
      %v5406 = vmax.f32 %v5202, 0.0
      %v5407 = vmax.f32 %v4651, 0.0
      %v5408 = vmax.f32 %v4653, 0.0
      %v5409 = vmax.f32 %v4844, 0.0
      %v5410 = vmax.f32 %v4846, 0.0
      %v5411 = vmax.f32 %v5037, 0.0
      %v5412 = vmax.f32 %v5039, 0.0
      %v5413 = vmax.f32 %v5205, 0.0
      %v5414 = vmax.f32 %v4657, 0.0
      %v5415 = vmax.f32 %v4659, 0.0
      %v5416 = vmax.f32 %v4850, 0.0
      %v5417 = vmax.f32 %v4852, 0.0
      %v5418 = vmax.f32 %v5043, 0.0
      %v5419 = vmax.f32 %v5045, 0.0
      %v5420 = vmax.f32 %v5210, 0.0
      %v5421 = vmax.f32 %v4661, 0.0
      %v5422 = vmax.f32 %v4663, 0.0
      %v5423 = vmax.f32 %v4854, 0.0
      %v5424 = vmax.f32 %v4856, 0.0
      %v5425 = vmax.f32 %v5047, 0.0
      %v5426 = vmax.f32 %v5049, 0.0
      %v5427 = vmax.f32 %v5213, 0.0
      %v5428 = vmax.f32 %v4667, 0.0
      %v5429 = vmax.f32 %v4669, 0.0
      %v5430 = vmax.f32 %v4860, 0.0
      %v5431 = vmax.f32 %v4862, 0.0
      %v5432 = vmax.f32 %v5053, 0.0
      %v5433 = vmax.f32 %v5055, 0.0
      %v5434 = vmax.f32 %v5218, 0.0
      %v5435 = vmax.f32 %v4671, 0.0
      %v5436 = vmax.f32 %v4673, 0.0
      %v5437 = vmax.f32 %v4864, 0.0
      %v5438 = vmax.f32 %v4866, 0.0
      %v5439 = vmax.f32 %v5057, 0.0
      %v5440 = vmax.f32 %v5059, 0.0
      %v5441 = vmax.f32 %v5221, 0.0
      %v5442 = vmax.f32 %v4677, 0.0
      %v5443 = vmax.f32 %v4679, 0.0
      %v5444 = vmax.f32 %v4870, 0.0
      %v5445 = vmax.f32 %v4872, 0.0
      %v5446 = vmax.f32 %v5063, 0.0
      %v5447 = vmax.f32 %v5065, 0.0
      %v5448 = vmax.f32 %v5226, 0.0
      %v5449 = vmax.f32 %v4681, 0.0
      %v5450 = vmax.f32 %v4683, 0.0
      %v5451 = vmax.f32 %v4874, 0.0
      %v5452 = vmax.f32 %v4876, 0.0
      %v5453 = vmax.f32 %v5067, 0.0
      %v5454 = vmax.f32 %v5069, 0.0
      %v5455 = vmax.f32 %v5229, 0.0
      %v5456 = vld [vmem:[#allocation3] sm:$0xff]
      %v5457 = vld [vmem:[#allocation3 + $0x8] sm:$0xff]
      %v5458 = vld [vmem:[#allocation3 + $0x10] sm:$0xff]
      %v5459 = vld [vmem:[#allocation3 + $0x18] sm:$0xff]
      %v5460 = vld [vmem:[#allocation3 + $0x20] sm:$0xff]
      %v5461 = vld [vmem:[#allocation3 + $0x28] sm:$0xff]
      %v5462 = vpack.c.bf16 %v5458, %v5456
      %v5463 = vpack.c.bf16 %v5459, %v5457
      %v5464 = vpack.c.bf16 %v5460, %v5460
      %v5465 = vpack.c.bf16 %v5461, %v5461
      %v5466 = vld [vmem:[%s8] sm:$0xff]
      %v5467 = vld [vmem:[%s8 + $0x8] sm:$0xff]
      %v5468 = vld [vmem:[%s8 + $0x10] sm:$0xff]
      %v5469 = vld [vmem:[%s8 + $0x18] sm:$0xf]
      %v5470 = vld [vmem:[%s8 + $0x1c] sm:$0xff]
      %v5471 = vld [vmem:[%s8 + $0x24] sm:$0xff]
      %v5472 = vld [vmem:[%s8 + $0x2c] sm:$0xff]
      %v5473 = vld [vmem:[%s8 + $0x34] sm:$0xf]
      %v5474 = vld [vmem:[%s8 + $0x38] sm:$0xff]
      %v5475 = vld [vmem:[%s8 + $0x40] sm:$0xff]
      %v5476 = vld [vmem:[%s8 + $0x48] sm:$0xff]
      %v5477 = vld [vmem:[%s8 + $0x50] sm:$0xf]
      %v5478 = vld [vmem:[%s8 + $0x54] sm:$0xff]
      %v5479 = vld [vmem:[%s8 + $0x5c] sm:$0xff]
      %v5480 = vld [vmem:[%s8 + $0x64] sm:$0xff]
      %v5481 = vld [vmem:[%s8 + $0x6c] sm:$0xf]
      %v5482 = vld [vmem:[%s8 + $0x70] sm:$0xff]
      %v5483 = vld [vmem:[%s8 + $0x78] sm:$0xff]
      %v5484 = vld [vmem:[%s8 + $0x80] sm:$0xff]
      %v5485 = vld [vmem:[%s8 + $0x88] sm:$0xf]
      %v5486 = vld [vmem:[%s8 + $0x8c] sm:$0xff]
      %v5487 = vld [vmem:[%s8 + $0x94] sm:$0xff]
      %v5488 = vld [vmem:[%s8 + $0x9c] sm:$0xff]
      %v5489 = vld [vmem:[%s8 + $0xa4] sm:$0xf]
      %v5490 = vld [vmem:[%s8 + $0xa8] sm:$0xff]
      %v5491 = vld [vmem:[%s8 + $0xb0] sm:$0xff]
      %v5492 = vld [vmem:[%s8 + $0xb8] sm:$0xff]
      %v5493 = vld [vmem:[%s8 + $0xc0] sm:$0xf]
      %v5494 = vld [vmem:[%s8 + $0xc4] sm:$0xff]
      %v5495 = vld [vmem:[%s8 + $0xcc] sm:$0xff]
      %v5496 = vld [vmem:[%s8 + $0xd4] sm:$0xff]
      %v5497 = vld [vmem:[%s8 + $0xdc] sm:$0xf]
      %v5498 = vld [vmem:[%s8 + $0xe0] sm:$0xff]
      %v5499 = vld [vmem:[%s8 + $0xe8] sm:$0xff]
      %v5500 = vld [vmem:[%s8 + $0xf0] sm:$0xff]
      %v5501 = vld [vmem:[%s8 + $0xf8] sm:$0xf]
      %v5502 = vld [vmem:[%s8 + $0xfc] sm:$0xff]
      %v5503 = vld [vmem:[%s8 + $0x104] sm:$0xff]
      %v5504 = vld [vmem:[%s8 + $0x10c] sm:$0xff]
      %v5505 = vld [vmem:[%s8 + $0x114] sm:$0xf]
      %v5506 = vld [vmem:[%s8 + $0x118] sm:$0xff]
      %v5507 = vld [vmem:[%s8 + $0x120] sm:$0xff]
      %v5508 = vld [vmem:[%s8 + $0x128] sm:$0xff]
      %v5509 = vld [vmem:[%s8 + $0x130] sm:$0xf]
      %v5510 = vld [vmem:[%s8 + $0x134] sm:$0xff]
      %v5511 = vld [vmem:[%s8 + $0x13c] sm:$0xff]
      %v5512 = vld [vmem:[%s8 + $0x144] sm:$0xff]
      %v5513 = vld [vmem:[%s8 + $0x14c] sm:$0xf]
      %v5514 = vld [vmem:[%s8 + $0x150] sm:$0xff]
      %v5515 = vld [vmem:[%s8 + $0x158] sm:$0xff]
      %v5516 = vld [vmem:[%s8 + $0x160] sm:$0xff]
      %v5517 = vld [vmem:[%s8 + $0x168] sm:$0xf]
      %v5518 = vld [vmem:[%s8 + $0x16c] sm:$0xff]
      %v5519 = vld [vmem:[%s8 + $0x174] sm:$0xff]
      %v5520 = vld [vmem:[%s8 + $0x17c] sm:$0xff]
      %v5521 = vld [vmem:[%s8 + $0x184] sm:$0xf]
      %v5522 = vld [vmem:[%s8 + $0x188] sm:$0xff]
      %v5523 = vld [vmem:[%s8 + $0x190] sm:$0xff]
      %v5524 = vld [vmem:[%s8 + $0x198] sm:$0xff]
      %v5525 = vld [vmem:[%s8 + $0x1a0] sm:$0xf]
      %v5526 = vld [vmem:[%s8 + $0x1a4] sm:$0xff]
      %v5527 = vld [vmem:[%s8 + $0x1ac] sm:$0xff]
      %v5528 = vld [vmem:[%s8 + $0x1b4] sm:$0xff]
      %v5529 = vld [vmem:[%s8 + $0x1bc] sm:$0xf]
      %v5530 = vld [vmem:[%s8 + $0x1c0] sm:$0xff]
      %v5531 = vld [vmem:[%s8 + $0x1c8] sm:$0xff]
      %v5532 = vld [vmem:[%s8 + $0x1d0] sm:$0xff]
      %v5533 = vld [vmem:[%s8 + $0x1d8] sm:$0xf]
      %v5534 = vld [vmem:[%s8 + $0x1dc] sm:$0xff]
      %v5535 = vld [vmem:[%s8 + $0x1e4] sm:$0xff]
      %v5536 = vld [vmem:[%s8 + $0x1ec] sm:$0xff]
      %v5537 = vld [vmem:[%s8 + $0x1f4] sm:$0xf]
      %v5538 = vld [vmem:[%s8 + $0x1f8] sm:$0xff]
      %v5539 = vld [vmem:[%s8 + $0x200] sm:$0xff]
      %v5540 = vld [vmem:[%s8 + $0x208] sm:$0xff]
      %v5541 = vld [vmem:[%s8 + $0x210] sm:$0xf]
      %v5542 = vld [vmem:[%s8 + $0x214] sm:$0xff]
      %v5543 = vld [vmem:[%s8 + $0x21c] sm:$0xff]
      %v5544 = vld [vmem:[%s8 + $0x224] sm:$0xff]
      %v5545 = vld [vmem:[%s8 + $0x22c] sm:$0xf]
      %v5546 = vld [vmem:[%s8 + $0x230] sm:$0xff]
      %v5547 = vld [vmem:[%s8 + $0x238] sm:$0xff]
      %v5548 = vld [vmem:[%s8 + $0x240] sm:$0xff]
      %v5549 = vld [vmem:[%s8 + $0x248] sm:$0xf]
      %v5550 = vld [vmem:[%s8 + $0x24c] sm:$0xff]
      %v5551 = vld [vmem:[%s8 + $0x254] sm:$0xff]
      %v5552 = vld [vmem:[%s8 + $0x25c] sm:$0xff]
      %v5553 = vld [vmem:[%s8 + $0x264] sm:$0xf]
      %v5554 = vld [vmem:[%s8 + $0x268] sm:$0xff]
      %v5555 = vld [vmem:[%s8 + $0x270] sm:$0xff]
      %v5556 = vld [vmem:[%s8 + $0x278] sm:$0xff]
      %v5557 = vld [vmem:[%s8 + $0x280] sm:$0xf]
      %v5558 = vld [vmem:[%s8 + $0x284] sm:$0xff]
      %v5559 = vld [vmem:[%s8 + $0x28c] sm:$0xff]
      %v5560 = vld [vmem:[%s8 + $0x294] sm:$0xff]
      %v5561 = vld [vmem:[%s8 + $0x29c] sm:$0xf]
      %v5562 = vld [vmem:[%s8 + $0x2a0] sm:$0x33]
      %v5563 = vld [vmem:[%s8 + $0x2a8] sm:$0x33]
      %v5564 = vld [vmem:[%s8 + $0x2b0] sm:$0x33]
      %v5565 = vld [vmem:[%s8 + $0x2b8] sm:$0x3]
      %v5666 = vunpack.c.l.b16 %v5466
      %v5667 = vunpack.c.h.b16 %v5466
      %v5668 = vunpack.c.l.b16 %v5467
      %v5669 = vunpack.c.h.b16 %v5467
      %v5670 = vunpack.c.l.b16 %v5468
      %v5671 = vunpack.c.h.b16 %v5468
      %v5672 = vunpack.c.l.b16 %v5469
      %v5673 = vunpack.c.l.b16 %v5470
      %v5674 = vunpack.c.h.b16 %v5470
      %v5675 = vunpack.c.l.b16 %v5471
      %v5676 = vunpack.c.h.b16 %v5471
      %v5677 = vunpack.c.l.b16 %v5472
      %v5678 = vunpack.c.h.b16 %v5472
      %v5679 = vunpack.c.l.b16 %v5473
      %v5680 = vunpack.c.l.b16 %v5474
      %v5681 = vunpack.c.h.b16 %v5474
      %v5682 = vunpack.c.l.b16 %v5475
      %v5683 = vunpack.c.h.b16 %v5475
      %v5684 = vunpack.c.l.b16 %v5476
      %v5685 = vunpack.c.h.b16 %v5476
      %v5686 = vunpack.c.l.b16 %v5477
      %v5687 = vunpack.c.l.b16 %v5478
      %v5688 = vunpack.c.h.b16 %v5478
      %v5689 = vunpack.c.l.b16 %v5479
      %v5690 = vunpack.c.h.b16 %v5479
      %v5691 = vunpack.c.l.b16 %v5480
      %v5692 = vunpack.c.h.b16 %v5480
      %v5693 = vunpack.c.l.b16 %v5481
      %v5694 = vunpack.c.l.b16 %v5482
      %v5695 = vunpack.c.h.b16 %v5482
      %v5696 = vunpack.c.l.b16 %v5483
      %v5697 = vunpack.c.h.b16 %v5483
      %v5698 = vunpack.c.l.b16 %v5484
      %v5699 = vunpack.c.h.b16 %v5484
      %v5700 = vunpack.c.l.b16 %v5485
      %v5701 = vunpack.c.l.b16 %v5486
      %v5702 = vunpack.c.h.b16 %v5486
      %v5703 = vunpack.c.l.b16 %v5487
      %v5704 = vunpack.c.h.b16 %v5487
      %v5705 = vunpack.c.l.b16 %v5488
      %v5706 = vunpack.c.h.b16 %v5488
      %v5707 = vunpack.c.l.b16 %v5489
      %v5708 = vunpack.c.l.b16 %v5490
      %v5709 = vunpack.c.h.b16 %v5490
      %v5710 = vunpack.c.l.b16 %v5491
      %v5711 = vunpack.c.h.b16 %v5491
      %v5712 = vunpack.c.l.b16 %v5492
      %v5713 = vunpack.c.h.b16 %v5492
      %v5714 = vunpack.c.l.b16 %v5493
      %v5715 = vunpack.c.l.b16 %v5494
      %v5716 = vunpack.c.h.b16 %v5494
      %v5717 = vunpack.c.l.b16 %v5495
      %v5718 = vunpack.c.h.b16 %v5495
      %v5719 = vunpack.c.l.b16 %v5496
      %v5720 = vunpack.c.h.b16 %v5496
      %v5721 = vunpack.c.l.b16 %v5497
      %v5722 = vunpack.c.l.b16 %v5498
      %v5723 = vunpack.c.h.b16 %v5498
      %v5724 = vunpack.c.l.b16 %v5499
      %v5725 = vunpack.c.h.b16 %v5499
      %v5726 = vunpack.c.l.b16 %v5500
      %v5727 = vunpack.c.h.b16 %v5500
      %v5728 = vunpack.c.l.b16 %v5501
      %v5729 = vunpack.c.l.b16 %v5502
      %v5730 = vunpack.c.h.b16 %v5502
      %v5731 = vunpack.c.l.b16 %v5503
      %v5732 = vunpack.c.h.b16 %v5503
      %v5733 = vunpack.c.l.b16 %v5504
      %v5734 = vunpack.c.h.b16 %v5504
      %v5735 = vunpack.c.l.b16 %v5505
      %v5736 = vunpack.c.l.b16 %v5506
      %v5737 = vunpack.c.h.b16 %v5506
      %v5738 = vunpack.c.l.b16 %v5507
      %v5739 = vunpack.c.h.b16 %v5507
      %v5740 = vunpack.c.l.b16 %v5508
      %v5741 = vunpack.c.h.b16 %v5508
      %v5742 = vunpack.c.l.b16 %v5509
      %v5743 = vunpack.c.l.b16 %v5510
      %v5744 = vunpack.c.h.b16 %v5510
      %v5745 = vunpack.c.l.b16 %v5511
      %v5746 = vunpack.c.h.b16 %v5511
      %v5747 = vunpack.c.l.b16 %v5512
      %v5748 = vunpack.c.h.b16 %v5512
      %v5749 = vunpack.c.l.b16 %v5513
      %v5750 = vunpack.c.l.b16 %v5514
      %v5751 = vunpack.c.h.b16 %v5514
      %v5752 = vunpack.c.l.b16 %v5515
      %v5753 = vunpack.c.h.b16 %v5515
      %v5754 = vunpack.c.l.b16 %v5516
      %v5755 = vunpack.c.h.b16 %v5516
      %v5756 = vunpack.c.l.b16 %v5517
      %v5757 = vunpack.c.l.b16 %v5518
      %v5758 = vunpack.c.h.b16 %v5518
      %v5759 = vunpack.c.l.b16 %v5519
      %v5760 = vunpack.c.h.b16 %v5519
      %v5761 = vunpack.c.l.b16 %v5520
      %v5762 = vunpack.c.h.b16 %v5520
      %v5763 = vunpack.c.l.b16 %v5521
      %v5764 = vunpack.c.l.b16 %v5522
      %v5765 = vunpack.c.h.b16 %v5522
      %v5766 = vunpack.c.l.b16 %v5523
      %v5767 = vunpack.c.h.b16 %v5523
      %v5768 = vunpack.c.l.b16 %v5524
      %v5769 = vunpack.c.h.b16 %v5524
      %v5770 = vunpack.c.l.b16 %v5525
      %v5771 = vunpack.c.l.b16 %v5526
      %v5772 = vunpack.c.h.b16 %v5526
      %v5773 = vunpack.c.l.b16 %v5527
      %v5774 = vunpack.c.h.b16 %v5527
      %v5775 = vunpack.c.l.b16 %v5528
      %v5776 = vunpack.c.h.b16 %v5528
      %v5777 = vunpack.c.l.b16 %v5529
      %v5778 = vunpack.c.l.b16 %v5530
      %v5779 = vunpack.c.h.b16 %v5530
      %v5780 = vunpack.c.l.b16 %v5531
      %v5781 = vunpack.c.h.b16 %v5531
      %v5782 = vunpack.c.l.b16 %v5532
      %v5783 = vunpack.c.h.b16 %v5532
      %v5784 = vunpack.c.l.b16 %v5533
      %v5785 = vunpack.c.l.b16 %v5534
      %v5786 = vunpack.c.h.b16 %v5534
      %v5787 = vunpack.c.l.b16 %v5535
      %v5788 = vunpack.c.h.b16 %v5535
      %v5789 = vunpack.c.l.b16 %v5536
      %v5790 = vunpack.c.h.b16 %v5536
      %v5791 = vunpack.c.l.b16 %v5537
      %v5792 = vunpack.c.l.b16 %v5538
      %v5793 = vunpack.c.h.b16 %v5538
      %v5794 = vunpack.c.l.b16 %v5539
      %v5795 = vunpack.c.h.b16 %v5539
      %v5796 = vunpack.c.l.b16 %v5540
      %v5797 = vunpack.c.h.b16 %v5540
      %v5798 = vunpack.c.l.b16 %v5541
      %v5799 = vunpack.c.l.b16 %v5542
      %v5800 = vunpack.c.h.b16 %v5542
      %v5801 = vunpack.c.l.b16 %v5543
      %v5802 = vunpack.c.h.b16 %v5543
      %v5803 = vunpack.c.l.b16 %v5544
      %v5804 = vunpack.c.h.b16 %v5544
      %v5805 = vunpack.c.l.b16 %v5545
      %v5806 = vunpack.c.l.b16 %v5546
      %v5807 = vunpack.c.h.b16 %v5546
      %v5808 = vunpack.c.l.b16 %v5547
      %v5809 = vunpack.c.h.b16 %v5547
      %v5810 = vunpack.c.l.b16 %v5548
      %v5811 = vunpack.c.h.b16 %v5548
      %v5812 = vunpack.c.l.b16 %v5549
      %v5813 = vunpack.c.l.b16 %v5550
      %v5814 = vunpack.c.h.b16 %v5550
      %v5815 = vunpack.c.l.b16 %v5551
      %v5816 = vunpack.c.h.b16 %v5551
      %v5817 = vunpack.c.l.b16 %v5552
      %v5818 = vunpack.c.h.b16 %v5552
      %v5819 = vunpack.c.l.b16 %v5553
      %v5820 = vunpack.c.l.b16 %v5554
      %v5821 = vunpack.c.h.b16 %v5554
      %v5822 = vunpack.c.l.b16 %v5555
      %v5823 = vunpack.c.h.b16 %v5555
      %v5824 = vunpack.c.l.b16 %v5556
      %v5825 = vunpack.c.h.b16 %v5556
      %v5826 = vunpack.c.l.b16 %v5557
      %v5827 = vunpack.c.l.b16 %v5558
      %v5828 = vunpack.c.h.b16 %v5558
      %v5829 = vunpack.c.l.b16 %v5559
      %v5830 = vunpack.c.h.b16 %v5559
      %v5831 = vunpack.c.l.b16 %v5560
      %v5832 = vunpack.c.h.b16 %v5560
      %v5833 = vunpack.c.l.b16 %v5561
      %v5834 = vunpack.c.l.b16 %v5562
      %v5835 = vunpack.c.h.b16 %v5562
      %v5836 = vunpack.c.l.b16 %v5563
      %v5837 = vunpack.c.h.b16 %v5563
      %v5838 = vunpack.c.l.b16 %v5564
      %v5839 = vunpack.c.h.b16 %v5564
      %v5840 = vunpack.c.l.b16 %v5565
      %v5841 = vpack.c.b16 %v5673, %v5666
      %v5842 = vpack.c.b16 %v5674, %v5667
      %v5843 = vpack.c.b16 %v5675, %v5668
      %v5844 = vpack.c.b16 %v5676, %v5669
      %v5845 = vpack.c.b16 %v5677, %v5670
      %v5846 = vpack.c.b16 %v5678, %v5671
      %v5847 = vpack.c.b16 %v5679, %v5672
      %v5848 = vpack.c.b16 %v5687, %v5680
      %v5849 = vpack.c.b16 %v5688, %v5681
      %v5850 = vpack.c.b16 %v5689, %v5682
      %v5851 = vpack.c.b16 %v5690, %v5683
      %v5852 = vpack.c.b16 %v5691, %v5684
      %v5853 = vpack.c.b16 %v5692, %v5685
      %v5854 = vpack.c.b16 %v5693, %v5686
      %v5855 = vpack.c.b16 %v5701, %v5694
      %v5856 = vpack.c.b16 %v5702, %v5695
      %v5857 = vpack.c.b16 %v5703, %v5696
      %v5858 = vpack.c.b16 %v5704, %v5697
      %v5859 = vpack.c.b16 %v5705, %v5698
      %v5860 = vpack.c.b16 %v5706, %v5699
      %v5861 = vpack.c.b16 %v5707, %v5700
      %v5862 = vpack.c.b16 %v5715, %v5708
      %v5863 = vpack.c.b16 %v5716, %v5709
      %v5864 = vpack.c.b16 %v5717, %v5710
      %v5865 = vpack.c.b16 %v5718, %v5711
      %v5866 = vpack.c.b16 %v5719, %v5712
      %v5867 = vpack.c.b16 %v5720, %v5713
      %v5868 = vpack.c.b16 %v5721, %v5714
      %v5869 = vpack.c.b16 %v5729, %v5722
      %v5870 = vpack.c.b16 %v5730, %v5723
      %v5871 = vpack.c.b16 %v5731, %v5724
      %v5872 = vpack.c.b16 %v5732, %v5725
      %v5873 = vpack.c.b16 %v5733, %v5726
      %v5874 = vpack.c.b16 %v5734, %v5727
      %v5875 = vpack.c.b16 %v5735, %v5728
      %v5876 = vpack.c.b16 %v5743, %v5736
      %v5877 = vpack.c.b16 %v5744, %v5737
      %v5878 = vpack.c.b16 %v5745, %v5738
      %v5879 = vpack.c.b16 %v5746, %v5739
      %v5880 = vpack.c.b16 %v5747, %v5740
      %v5881 = vpack.c.b16 %v5748, %v5741
      %v5882 = vpack.c.b16 %v5749, %v5742
      %v5883 = vpack.c.b16 %v5757, %v5750
      %v5884 = vpack.c.b16 %v5758, %v5751
      %v5885 = vpack.c.b16 %v5759, %v5752
      %v5886 = vpack.c.b16 %v5760, %v5753
      %v5887 = vpack.c.b16 %v5761, %v5754
      %v5888 = vpack.c.b16 %v5762, %v5755
      %v5889 = vpack.c.b16 %v5763, %v5756
      %v5890 = vpack.c.b16 %v5771, %v5764
      %v5891 = vpack.c.b16 %v5772, %v5765
      %v5892 = vpack.c.b16 %v5773, %v5766
      %v5893 = vpack.c.b16 %v5774, %v5767
      %v5894 = vpack.c.b16 %v5775, %v5768
      %v5895 = vpack.c.b16 %v5776, %v5769
      %v5896 = vpack.c.b16 %v5777, %v5770
      %v5897 = vpack.c.b16 %v5785, %v5778
      %v5898 = vpack.c.b16 %v5786, %v5779
      %v5899 = vpack.c.b16 %v5787, %v5780
      %v5900 = vpack.c.b16 %v5788, %v5781
      %v5901 = vpack.c.b16 %v5789, %v5782
      %v5902 = vpack.c.b16 %v5790, %v5783
      %v5903 = vpack.c.b16 %v5791, %v5784
      %v5904 = vpack.c.b16 %v5799, %v5792
      %v5905 = vpack.c.b16 %v5800, %v5793
      %v5906 = vpack.c.b16 %v5801, %v5794
      %v5907 = vpack.c.b16 %v5802, %v5795
      %v5908 = vpack.c.b16 %v5803, %v5796
      %v5909 = vpack.c.b16 %v5804, %v5797
      %v5910 = vpack.c.b16 %v5805, %v5798
      %v5911 = vpack.c.b16 %v5813, %v5806
      %v5912 = vpack.c.b16 %v5814, %v5807
      %v5913 = vpack.c.b16 %v5815, %v5808
      %v5914 = vpack.c.b16 %v5816, %v5809
      %v5915 = vpack.c.b16 %v5817, %v5810
      %v5916 = vpack.c.b16 %v5818, %v5811
      %v5917 = vpack.c.b16 %v5819, %v5812
      %v5918 = vpack.c.b16 %v5827, %v5820
      %v5919 = vpack.c.b16 %v5828, %v5821
      %v5920 = vpack.c.b16 %v5829, %v5822
      %v5921 = vpack.c.b16 %v5830, %v5823
      %v5922 = vpack.c.b16 %v5831, %v5824
      %v5923 = vpack.c.b16 %v5832, %v5825
      %v5924 = vpack.c.b16 %v5833, %v5826
      %v5925 = vpack.c.b16 %v5834, %v5834
      %v5926 = vpack.c.b16 %v5835, %v5835
      %v5927 = vpack.c.b16 %v5836, %v5836
      %v5928 = vpack.c.b16 %v5837, %v5837
      %v5929 = vpack.c.b16 %v5838, %v5838
      %v5930 = vpack.c.b16 %v5839, %v5839
      %v5931 = vpack.c.b16 %v5840, %v5840
      %v6017 = vsel %vm820, %v5463, 0
      %v6020 = vsel %vm820, %v5465, 0
      %v6023 = vsel %vm632, %v5925, 0
      %v6026 = vsel %vm632, %v5926, 0
      %v6029 = vsel %vm632, %v5927, 0
      %v6032 = vsel %vm632, %v5928, 0
      %v6035 = vsel %vm632, %v5929, 0
      %v6038 = vsel %vm632, %v5930, 0
      %v6041 = vsel %vm632, %v5931, 0
      %6043 = vmatprep.subr.bf16.mxu0 %v5842
      %6044 = vmatpush1.bf16.msra.mxu0 %v5841
      %6045 = vmatprep.subr.bf16.mxu0 %v5849
      %6046 = vmatpush1.bf16.msra.mxu0 %v5848
      %6047 = vmatprep.subr.bf16.mxu0 %v5856
      %6048 = vmatpush1.bf16.msra.mxu0 %v5855
      %6049 = vmatprep.subr.bf16.mxu0 %v5863
      %6050 = vmatpush1.bf16.msra.mxu0 %v5862
      %6051 = vmatprep.subr.bf16.mxu0 %v5870
      %6052 = vmatpush1.bf16.msra.mxu0 %v5869
      %6053 = vmatprep.subr.bf16.mxu0 %v5877
      %6054 = vmatpush1.bf16.msra.mxu0 %v5876
      %6055 = vmatprep.subr.bf16.mxu0 %v5884
      %6056 = vmatpush1.bf16.msra.mxu0 %v5883
      %6057 = vmatprep.subr.bf16.mxu0 %v5891
      %6058 = vmatpush1.bf16.msra.mxu0 %v5890
      %6059 = vmatprep.subr.bf16.mxu0 %v5898
      %6060 = vmatpush1.bf16.msra.mxu0 %v5897
      %6061 = vmatprep.subr.bf16.mxu0 %v5905
      %6062 = vmatpush1.bf16.msra.mxu0 %v5904
      %6063 = vmatprep.subr.bf16.mxu0 %v5912
      %6064 = vmatpush1.bf16.msra.mxu0 %v5911
      %6065 = vmatprep.subr.bf16.mxu0 %v5919
      %6066 = vmatpush1.bf16.msra.mxu0 %v5918
      %6067 = vmatprep.subr.bf16.mxu0 %v6026
      %6068 = vmatpush1.bf16.msra.mxu0 %v6023
      %6069 = vmatprep.subr.bf16.mxu0 0
      %6070 = vmatpush1.bf16.msra.mxu0 0
      %6071 = vmatprep.subr.bf16.mxu0 0
      %6072 = vmatpush1.bf16.msra.mxu0 0
      %6073 = vmatprep.subr.bf16.mxu0 0
      %6074 = vmatpush1.bf16.msra.mxu0 0
      %6075 = vmatprep.mubr.bf16.mxu0 %v6017
      %6076 = vmatmul.mubr.bf16.gmra.mrb[0].mxu0 %v5462
      %v6077 = vpop.f32.mrb[0].mxu0
      %v6078 = vadd.f32 0.0, %v6077
      %v6079 = vpop.f32.mrb[0].mxu0
      %v6080 = vadd.f32 0.0, %v6079
      %v6081 = vpop.f32.mrb[0].mxu0
      %v6082 = vadd.f32 0.0, %v6081
      %v6083 = vpop.f32.mrb[0].mxu0
      %v6084 = vadd.f32 0.0, %v6083
      %6085 = vmatprep.mubr.bf16.mxu0 %v6020
      %6086 = vmatmul.mubr.bf16.gmra.mrb[0].mxu0 %v5464
      %v6087 = vpop.f32.mrb[0].mxu0
      %v6088 = vadd.f32 0.0, %v6087
      %v6089 = vpop.f32.mrb[0].mxu0
      %v6090 = vadd.f32 0.0, %v6089
      %v6091 = vpop.f32.mrb[0].mxu0
      %v6092 = vpop.f32.mrb[0].mxu0
      %6093 = vdwg.mxu0
      %6094 = vmatprep.subr.bf16.mxu0 %v5844
      %6095 = vmatpush1.bf16.msra.mxu0 %v5843
      %6096 = vmatprep.subr.bf16.mxu0 %v5851
      %6097 = vmatpush1.bf16.msra.mxu0 %v5850
      %6098 = vmatprep.subr.bf16.mxu0 %v5858
      %6099 = vmatpush1.bf16.msra.mxu0 %v5857
      %6100 = vmatprep.subr.bf16.mxu0 %v5865
      %6101 = vmatpush1.bf16.msra.mxu0 %v5864
      %6102 = vmatprep.subr.bf16.mxu0 %v5872
      %6103 = vmatpush1.bf16.msra.mxu0 %v5871
      %6104 = vmatprep.subr.bf16.mxu0 %v5879
      %6105 = vmatpush1.bf16.msra.mxu0 %v5878
      %6106 = vmatprep.subr.bf16.mxu0 %v5886
      %6107 = vmatpush1.bf16.msra.mxu0 %v5885
      %6108 = vmatprep.subr.bf16.mxu0 %v5893
      %6109 = vmatpush1.bf16.msra.mxu0 %v5892
      %6110 = vmatprep.subr.bf16.mxu0 %v5900
      %6111 = vmatpush1.bf16.msra.mxu0 %v5899
      %6112 = vmatprep.subr.bf16.mxu0 %v5907
      %6113 = vmatpush1.bf16.msra.mxu0 %v5906
      %6114 = vmatprep.subr.bf16.mxu0 %v5914
      %6115 = vmatpush1.bf16.msra.mxu0 %v5913
      %6116 = vmatprep.subr.bf16.mxu0 %v5921
      %6117 = vmatpush1.bf16.msra.mxu0 %v5920
      %6118 = vmatprep.subr.bf16.mxu0 %v6032
      %6119 = vmatpush1.bf16.msra.mxu0 %v6029
      %6120 = vmatprep.subr.bf16.mxu0 0
      %6121 = vmatpush1.bf16.msra.mxu0 0
      %6122 = vmatprep.subr.bf16.mxu0 0
      %6123 = vmatpush1.bf16.msra.mxu0 0
      %6124 = vmatprep.subr.bf16.mxu0 0
      %6125 = vmatpush1.bf16.msra.mxu0 0
      %6126 = vmatprep.mubr.bf16.mxu0 %v6017
      %6127 = vmatmul.mubr.bf16.gmra.mrb[0].mxu0 %v5462
      %v6128 = vpop.f32.mrb[0].mxu0
      %v6129 = vadd.f32 0.0, %v6128
      %v6130 = vpop.f32.mrb[0].mxu0
      %v6131 = vadd.f32 0.0, %v6130
      %v6132 = vpop.f32.mrb[0].mxu0
      %v6133 = vadd.f32 0.0, %v6132
      %v6134 = vpop.f32.mrb[0].mxu0
      %v6135 = vadd.f32 0.0, %v6134
      %6136 = vmatprep.mubr.bf16.mxu0 %v6020
      %6137 = vmatmul.mubr.bf16.gmra.mrb[0].mxu0 %v5464
      %v6138 = vpop.f32.mrb[0].mxu0
      %v6139 = vadd.f32 0.0, %v6138
      %v6140 = vpop.f32.mrb[0].mxu0
      %v6141 = vadd.f32 0.0, %v6140
      %v6142 = vpop.f32.mrb[0].mxu0
      %v6143 = vpop.f32.mrb[0].mxu0
      %6144 = vdwg.mxu0
      %6145 = vmatprep.subr.bf16.mxu0 %v5846
      %6146 = vmatpush1.bf16.msra.mxu0 %v5845
      %6147 = vmatprep.subr.bf16.mxu0 %v5853
      %6148 = vmatpush1.bf16.msra.mxu0 %v5852
      %6149 = vmatprep.subr.bf16.mxu0 %v5860
      %6150 = vmatpush1.bf16.msra.mxu0 %v5859
      %6151 = vmatprep.subr.bf16.mxu0 %v5867
      %6152 = vmatpush1.bf16.msra.mxu0 %v5866
      %6153 = vmatprep.subr.bf16.mxu0 %v5874
      %6154 = vmatpush1.bf16.msra.mxu0 %v5873
      %6155 = vmatprep.subr.bf16.mxu0 %v5881
      %6156 = vmatpush1.bf16.msra.mxu0 %v5880
      %6157 = vmatprep.subr.bf16.mxu0 %v5888
      %6158 = vmatpush1.bf16.msra.mxu0 %v5887
      %6159 = vmatprep.subr.bf16.mxu0 %v5895
      %6160 = vmatpush1.bf16.msra.mxu0 %v5894
      %6161 = vmatprep.subr.bf16.mxu0 %v5902
      %6162 = vmatpush1.bf16.msra.mxu0 %v5901
      %6163 = vmatprep.subr.bf16.mxu0 %v5909
      %6164 = vmatpush1.bf16.msra.mxu0 %v5908
      %6165 = vmatprep.subr.bf16.mxu0 %v5916
      %6166 = vmatpush1.bf16.msra.mxu0 %v5915
      %6167 = vmatprep.subr.bf16.mxu0 %v5923
      %6168 = vmatpush1.bf16.msra.mxu0 %v5922
      %6169 = vmatprep.subr.bf16.mxu0 %v6038
      %6170 = vmatpush1.bf16.msra.mxu0 %v6035
      %6171 = vmatprep.subr.bf16.mxu0 0
      %6172 = vmatpush1.bf16.msra.mxu0 0
      %6173 = vmatprep.subr.bf16.mxu0 0
      %6174 = vmatpush1.bf16.msra.mxu0 0
      %6175 = vmatprep.subr.bf16.mxu0 0
      %6176 = vmatpush1.bf16.msra.mxu0 0
      %6177 = vmatprep.mubr.bf16.mxu0 %v6017
      %6178 = vmatmul.mubr.bf16.gmra.mrb[0].mxu0 %v5462
      %v6179 = vpop.f32.mrb[0].mxu0
      %v6180 = vadd.f32 0.0, %v6179
      %v6181 = vpop.f32.mrb[0].mxu0
      %v6182 = vadd.f32 0.0, %v6181
      %v6183 = vpop.f32.mrb[0].mxu0
      %v6184 = vadd.f32 0.0, %v6183
      %v6185 = vpop.f32.mrb[0].mxu0
      %v6186 = vadd.f32 0.0, %v6185
      %6187 = vmatprep.mubr.bf16.mxu0 %v6020
      %6188 = vmatmul.mubr.bf16.gmra.mrb[0].mxu0 %v5464
      %v6189 = vpop.f32.mrb[0].mxu0
      %v6190 = vadd.f32 0.0, %v6189
      %v6191 = vpop.f32.mrb[0].mxu0
      %v6192 = vadd.f32 0.0, %v6191
      %v6193 = vpop.f32.mrb[0].mxu0
      %v6194 = vpop.f32.mrb[0].mxu0
      %6195 = vdwg.mxu0
      %6196 = vmatprep.subr.bf16.mxu0 0
      %6197 = vmatpush1.bf16.msra.mxu0 %v5847
      %6198 = vmatprep.subr.bf16.mxu0 0
      %6199 = vmatpush1.bf16.msra.mxu0 %v5854
      %6200 = vmatprep.subr.bf16.mxu0 0
      %6201 = vmatpush1.bf16.msra.mxu0 %v5861
      %6202 = vmatprep.subr.bf16.mxu0 0
      %6203 = vmatpush1.bf16.msra.mxu0 %v5868
      %6204 = vmatprep.subr.bf16.mxu0 0
      %6205 = vmatpush1.bf16.msra.mxu0 %v5875
      %6206 = vmatprep.subr.bf16.mxu0 0
      %6207 = vmatpush1.bf16.msra.mxu0 %v5882
      %6208 = vmatprep.subr.bf16.mxu0 0
      %6209 = vmatpush1.bf16.msra.mxu0 %v5889
      %6210 = vmatprep.subr.bf16.mxu0 0
      %6211 = vmatpush1.bf16.msra.mxu0 %v5896
      %6212 = vmatprep.subr.bf16.mxu0 0
      %6213 = vmatpush1.bf16.msra.mxu0 %v5903
      %6214 = vmatprep.subr.bf16.mxu0 0
      %6215 = vmatpush1.bf16.msra.mxu0 %v5910
      %6216 = vmatprep.subr.bf16.mxu0 0
      %6217 = vmatpush1.bf16.msra.mxu0 %v5917
      %6218 = vmatprep.subr.bf16.mxu0 0
      %6219 = vmatpush1.bf16.msra.mxu0 %v5924
      %6220 = vmatprep.subr.bf16.mxu0 0
      %6221 = vmatpush1.bf16.msra.mxu0 %v6041
      %6222 = vmatprep.subr.bf16.mxu0 0
      %6223 = vmatpush1.bf16.msra.mxu0 0
      %6224 = vmatprep.subr.bf16.mxu0 0
      %6225 = vmatpush1.bf16.msra.mxu0 0
      %6226 = vmatprep.subr.bf16.mxu0 0
      %6227 = vmatpush1.bf16.msra.mxu0 0
      %6228 = vmatprep.mubr.bf16.mxu0 %v6017
      %6229 = vmatmul.mubr.bf16.gmra.mrb[0].mxu0 %v5462
      %v6230 = vpop.f32.mrb[0].mxu0
      %v6231 = vadd.f32 0.0, %v6230
      %v6232 = vpop.f32.mrb[0].mxu0
      %v6233 = vpop.f32.mrb[0].mxu0
      %v6234 = vadd.f32 0.0, %v6233
      %v6235 = vpop.f32.mrb[0].mxu0
      %6236 = vmatprep.mubr.bf16.mxu0 %v6020
      %6237 = vmatmul.mubr.bf16.gmra.mrb[0].mxu0 %v5464
      %v6238 = vpop.f32.mrb[0].mxu0
      %v6239 = vadd.f32 0.0, %v6238
      %v6240 = vpop.f32.mrb[0].mxu0
      %v6241 = vpop.f32.mrb[0].mxu0
      %v6242 = vpop.f32.mrb[0].mxu0
      %6243 = vdwg.mxu0
      %6244 = vst [vmem:[%s482] sm:$0xff] %v5232
      %6245 = vst [vmem:[%s482 + $0x8] sm:$0xff] %v5233
      %6246 = vst [vmem:[%s482 + $0x10] sm:$0xff] %v5234
      %6247 = vst [vmem:[%s482 + $0x18] sm:$0xff] %v5235
      %6248 = vst [vmem:[%s482 + $0x20] sm:$0xff] %v5236
      %6249 = vst [vmem:[%s482 + $0x28] sm:$0xff] %v5237
      %vm6250 = vcmask 130048
      %6251 = vst.msk [vmem:[%s482 + $0x30] sm:$0xff] %vm6250, %v5238
      %6252 = vst [vmem:[%s482 + $0x38] sm:$0xff] %v5239
      %6253 = vst [vmem:[%s482 + $0x40] sm:$0xff] %v5240
      %6254 = vst [vmem:[%s482 + $0x48] sm:$0xff] %v5241
      %6255 = vst [vmem:[%s482 + $0x50] sm:$0xff] %v5242
      %6256 = vst [vmem:[%s482 + $0x58] sm:$0xff] %v5243
      %6257 = vst [vmem:[%s482 + $0x60] sm:$0xff] %v5244
      %6258 = vst.msk [vmem:[%s482 + $0x68] sm:$0xff] %vm6250, %v5245
      %6259 = vst [vmem:[%s482 + $0x70] sm:$0xff] %v5246
      %6260 = vst [vmem:[%s482 + $0x78] sm:$0xff] %v5247
      %6261 = vst [vmem:[%s482 + $0x80] sm:$0xff] %v5248
      %6262 = vst [vmem:[%s482 + $0x88] sm:$0xff] %v5249
      %6263 = vst [vmem:[%s482 + $0x90] sm:$0xff] %v5250
      %6264 = vst [vmem:[%s482 + $0x98] sm:$0xff] %v5251
      %6265 = vst.msk [vmem:[%s482 + $0xa0] sm:$0xff] %vm6250, %v5252
      %6266 = vst [vmem:[%s482 + $0xa8] sm:$0xff] %v5253
      %6267 = vst [vmem:[%s482 + $0xb0] sm:$0xff] %v5254
      %6268 = vst [vmem:[%s482 + $0xb8] sm:$0xff] %v5255
      %6269 = vst [vmem:[%s482 + $0xc0] sm:$0xff] %v5256
      %6270 = vst [vmem:[%s482 + $0xc8] sm:$0xff] %v5257
      %6271 = vst [vmem:[%s482 + $0xd0] sm:$0xff] %v5258
      %6272 = vst.msk [vmem:[%s482 + $0xd8] sm:$0xff] %vm6250, %v5259
      %6273 = vst [vmem:[%s482 + $0xe0] sm:$0x7] %v6078
      %6274 = vst [vmem:[%s482 + $0xe8] sm:$0x7] %v6080
      %6275 = vst [vmem:[%s482 + $0xf0] sm:$0x7] %v6129
      %6276 = vst [vmem:[%s482 + $0xf8] sm:$0x7] %v6131
      %6277 = vst [vmem:[%s482 + $0x100] sm:$0x7] %v6180
      %6278 = vst [vmem:[%s482 + $0x108] sm:$0x7] %v6182
      %vm6279 = vcmask 124928
      %6280 = vst.msk [vmem:[%s482 + $0x110] sm:$0x7] %vm6279, %v6231
      %s6281 = scalar_lea.vmem %s482, 280
      %6282 = vst [vmem:[%s6281] sm:$0xff] %v5260
      %6283 = vst [vmem:[%s6281 + $0x8] sm:$0xff] %v5261
      %6284 = vst [vmem:[%s6281 + $0x10] sm:$0xff] %v5262
      %6285 = vst [vmem:[%s6281 + $0x18] sm:$0xff] %v5263
      %6286 = vst [vmem:[%s6281 + $0x20] sm:$0xff] %v5264
      %6287 = vst [vmem:[%s6281 + $0x28] sm:$0xff] %v5265
      %6288 = vst.msk [vmem:[%s6281 + $0x30] sm:$0xff] %vm6250, %v5266
      %6289 = vst [vmem:[%s6281 + $0x38] sm:$0xff] %v5267
      %6290 = vst [vmem:[%s6281 + $0x40] sm:$0xff] %v5268
      %6291 = vst [vmem:[%s6281 + $0x48] sm:$0xff] %v5269
      %6292 = vst [vmem:[%s6281 + $0x50] sm:$0xff] %v5270
      %6293 = vst [vmem:[%s6281 + $0x58] sm:$0xff] %v5271
      %6294 = vst [vmem:[%s6281 + $0x60] sm:$0xff] %v5272
      %6295 = vst.msk [vmem:[%s6281 + $0x68] sm:$0xff] %vm6250, %v5273
      %6296 = vst [vmem:[%s6281 + $0x70] sm:$0xff] %v5274
      %6297 = vst [vmem:[%s6281 + $0x78] sm:$0xff] %v5275
      %6298 = vst [vmem:[%s6281 + $0x80] sm:$0xff] %v5276
      %6299 = vst [vmem:[%s6281 + $0x88] sm:$0xff] %v5277
      %6300 = vst [vmem:[%s6281 + $0x90] sm:$0xff] %v5278
      %6301 = vst [vmem:[%s6281 + $0x98] sm:$0xff] %v5279
      %6302 = vst.msk [vmem:[%s6281 + $0xa0] sm:$0xff] %vm6250, %v5280
      %6303 = vst [vmem:[%s6281 + $0xa8] sm:$0xff] %v5281
      %6304 = vst [vmem:[%s6281 + $0xb0] sm:$0xff] %v5282
      %6305 = vst [vmem:[%s6281 + $0xb8] sm:$0xff] %v5283
      %6306 = vst [vmem:[%s6281 + $0xc0] sm:$0xff] %v5284
      %6307 = vst [vmem:[%s6281 + $0xc8] sm:$0xff] %v5285
      %6308 = vst [vmem:[%s6281 + $0xd0] sm:$0xff] %v5286
      %6309 = vst.msk [vmem:[%s6281 + $0xd8] sm:$0xff] %vm6250, %v5287
      %v6317 = vrot.slane %v6078, 3
      %v6318 = vrot.slane %v6080, 3
      %v6319 = vrot.slane %v6129, 3
      %v6320 = vrot.slane %v6131, 3
      %v6321 = vrot.slane %v6180, 3
      %v6322 = vrot.slane %v6182, 3
      %v6323 = vrot.slane %v6231, 3
      %6331 = vst [vmem:[%s6281 + $0xe0] sm:$0x7] %v6317
      %6332 = vst [vmem:[%s6281 + $0xe8] sm:$0x7] %v6318
      %6333 = vst [vmem:[%s6281 + $0xf0] sm:$0x7] %v6319
      %6334 = vst [vmem:[%s6281 + $0xf8] sm:$0x7] %v6320
      %6335 = vst [vmem:[%s6281 + $0x100] sm:$0x7] %v6321
      %6336 = vst [vmem:[%s6281 + $0x108] sm:$0x7] %v6322
      %6337 = vst.msk [vmem:[%s6281 + $0x110] sm:$0x7] %vm6279, %v6323
      %s6338 = scalar_lea.vmem %s482, 560
      %6339 = vst [vmem:[%s6338] sm:$0xff] %v5288
      %6340 = vst [vmem:[%s6338 + $0x8] sm:$0xff] %v5289
      %6341 = vst [vmem:[%s6338 + $0x10] sm:$0xff] %v5290
      %6342 = vst [vmem:[%s6338 + $0x18] sm:$0xff] %v5291
      %6343 = vst [vmem:[%s6338 + $0x20] sm:$0xff] %v5292
      %6344 = vst [vmem:[%s6338 + $0x28] sm:$0xff] %v5293
      %6345 = vst.msk [vmem:[%s6338 + $0x30] sm:$0xff] %vm6250, %v5294
      %6346 = vst [vmem:[%s6338 + $0x38] sm:$0xff] %v5295
      %6347 = vst [vmem:[%s6338 + $0x40] sm:$0xff] %v5296
      %6348 = vst [vmem:[%s6338 + $0x48] sm:$0xff] %v5297
      %6349 = vst [vmem:[%s6338 + $0x50] sm:$0xff] %v5298
      %6350 = vst [vmem:[%s6338 + $0x58] sm:$0xff] %v5299
      %6351 = vst [vmem:[%s6338 + $0x60] sm:$0xff] %v5300
      %6352 = vst.msk [vmem:[%s6338 + $0x68] sm:$0xff] %vm6250, %v5301
      %6353 = vst [vmem:[%s6338 + $0x70] sm:$0xff] %v5302
      %6354 = vst [vmem:[%s6338 + $0x78] sm:$0xff] %v5303
      %6355 = vst [vmem:[%s6338 + $0x80] sm:$0xff] %v5304
      %6356 = vst [vmem:[%s6338 + $0x88] sm:$0xff] %v5305
      %6357 = vst [vmem:[%s6338 + $0x90] sm:$0xff] %v5306
      %6358 = vst [vmem:[%s6338 + $0x98] sm:$0xff] %v5307
      %6359 = vst.msk [vmem:[%s6338 + $0xa0] sm:$0xff] %vm6250, %v5308
      %6360 = vst [vmem:[%s6338 + $0xa8] sm:$0xff] %v5309
      %6361 = vst [vmem:[%s6338 + $0xb0] sm:$0xff] %v5310
      %6362 = vst [vmem:[%s6338 + $0xb8] sm:$0xff] %v5311
      %6363 = vst [vmem:[%s6338 + $0xc0] sm:$0xff] %v5312
      %6364 = vst [vmem:[%s6338 + $0xc8] sm:$0xff] %v5313
      %6365 = vst [vmem:[%s6338 + $0xd0] sm:$0xff] %v5314
      %6366 = vst.msk [vmem:[%s6338 + $0xd8] sm:$0xff] %vm6250, %v5315
      %v6374 = vrot.slane %v6078, 6
      %v6375 = vrot.slane %v6082, 6
      %v6376 = vsel %vm632, %v6374, %v6375
      %v6377 = vrot.slane %v6080, 6
      %v6378 = vrot.slane %v6084, 6
      %v6379 = vsel %vm632, %v6377, %v6378
      %v6380 = vrot.slane %v6129, 6
      %v6381 = vrot.slane %v6133, 6
      %v6382 = vsel %vm632, %v6380, %v6381
      %v6383 = vrot.slane %v6131, 6
      %v6384 = vrot.slane %v6135, 6
      %v6385 = vsel %vm632, %v6383, %v6384
      %v6386 = vrot.slane %v6180, 6
      %v6387 = vrot.slane %v6184, 6
      %v6388 = vsel %vm632, %v6386, %v6387
      %v6389 = vrot.slane %v6182, 6
      %v6390 = vrot.slane %v6186, 6
      %v6391 = vsel %vm632, %v6389, %v6390
      %v6392 = vrot.slane %v6231, 6
      %v6393 = vrot.slane %v6234, 6
      %v6394 = vsel %vm632, %v6392, %v6393
      %6402 = vst [vmem:[%s6338 + $0xe0] sm:$0x7] %v6376
      %6403 = vst [vmem:[%s6338 + $0xe8] sm:$0x7] %v6379
      %6404 = vst [vmem:[%s6338 + $0xf0] sm:$0x7] %v6382
      %6405 = vst [vmem:[%s6338 + $0xf8] sm:$0x7] %v6385
      %6406 = vst [vmem:[%s6338 + $0x100] sm:$0x7] %v6388
      %6407 = vst [vmem:[%s6338 + $0x108] sm:$0x7] %v6391
      %6408 = vst.msk [vmem:[%s6338 + $0x110] sm:$0x7] %vm6279, %v6394
      %s6409 = scalar_lea.vmem %s482, 840
      %6410 = vst [vmem:[%s6409] sm:$0xff] %v5316
      %6411 = vst [vmem:[%s6409 + $0x8] sm:$0xff] %v5317
      %6412 = vst [vmem:[%s6409 + $0x10] sm:$0xff] %v5318
      %6413 = vst [vmem:[%s6409 + $0x18] sm:$0xff] %v5319
      %6414 = vst [vmem:[%s6409 + $0x20] sm:$0xff] %v5320
      %6415 = vst [vmem:[%s6409 + $0x28] sm:$0xff] %v5321
      %6416 = vst.msk [vmem:[%s6409 + $0x30] sm:$0xff] %vm6250, %v5322
      %6417 = vst [vmem:[%s6409 + $0x38] sm:$0xff] %v5323
      %6418 = vst [vmem:[%s6409 + $0x40] sm:$0xff] %v5324
      %6419 = vst [vmem:[%s6409 + $0x48] sm:$0xff] %v5325
      %6420 = vst [vmem:[%s6409 + $0x50] sm:$0xff] %v5326
      %6421 = vst [vmem:[%s6409 + $0x58] sm:$0xff] %v5327
      %6422 = vst [vmem:[%s6409 + $0x60] sm:$0xff] %v5328
      %6423 = vst.msk [vmem:[%s6409 + $0x68] sm:$0xff] %vm6250, %v5329
      %6424 = vst [vmem:[%s6409 + $0x70] sm:$0xff] %v5330
      %6425 = vst [vmem:[%s6409 + $0x78] sm:$0xff] %v5331
      %6426 = vst [vmem:[%s6409 + $0x80] sm:$0xff] %v5332
      %6427 = vst [vmem:[%s6409 + $0x88] sm:$0xff] %v5333
      %6428 = vst [vmem:[%s6409 + $0x90] sm:$0xff] %v5334
      %6429 = vst [vmem:[%s6409 + $0x98] sm:$0xff] %v5335
      %6430 = vst.msk [vmem:[%s6409 + $0xa0] sm:$0xff] %vm6250, %v5336
      %6431 = vst [vmem:[%s6409 + $0xa8] sm:$0xff] %v5337
      %6432 = vst [vmem:[%s6409 + $0xb0] sm:$0xff] %v5338
      %6433 = vst [vmem:[%s6409 + $0xb8] sm:$0xff] %v5339
      %6434 = vst [vmem:[%s6409 + $0xc0] sm:$0xff] %v5340
      %6435 = vst [vmem:[%s6409 + $0xc8] sm:$0xff] %v5341
      %6436 = vst [vmem:[%s6409 + $0xd0] sm:$0xff] %v5342
      %6437 = vst.msk [vmem:[%s6409 + $0xd8] sm:$0xff] %vm6250, %v5343
      %v6438 = vrot.slane %v6082, 1
      %v6439 = vrot.slane %v6084, 1
      %v6440 = vrot.slane %v6133, 1
      %v6441 = vrot.slane %v6135, 1
      %v6442 = vrot.slane %v6184, 1
      %v6443 = vrot.slane %v6186, 1
      %v6444 = vrot.slane %v6234, 1
      %6452 = vst [vmem:[%s6409 + $0xe0] sm:$0x7] %v6438
      %6453 = vst [vmem:[%s6409 + $0xe8] sm:$0x7] %v6439
      %6454 = vst [vmem:[%s6409 + $0xf0] sm:$0x7] %v6440
      %6455 = vst [vmem:[%s6409 + $0xf8] sm:$0x7] %v6441
      %6456 = vst [vmem:[%s6409 + $0x100] sm:$0x7] %v6442
      %6457 = vst [vmem:[%s6409 + $0x108] sm:$0x7] %v6443
      %6458 = vst.msk [vmem:[%s6409 + $0x110] sm:$0x7] %vm6279, %v6444
      %s6459 = scalar_lea.vmem %s482, 1120
      %6460 = vst [vmem:[%s6459] sm:$0xff] %v5344
      %6461 = vst [vmem:[%s6459 + $0x8] sm:$0xff] %v5345
      %6462 = vst [vmem:[%s6459 + $0x10] sm:$0xff] %v5346
      %6463 = vst [vmem:[%s6459 + $0x18] sm:$0xff] %v5347
      %6464 = vst [vmem:[%s6459 + $0x20] sm:$0xff] %v5348
      %6465 = vst [vmem:[%s6459 + $0x28] sm:$0xff] %v5349
      %6466 = vst.msk [vmem:[%s6459 + $0x30] sm:$0xff] %vm6250, %v5350
      %6467 = vst [vmem:[%s6459 + $0x38] sm:$0xff] %v5351
      %6468 = vst [vmem:[%s6459 + $0x40] sm:$0xff] %v5352
      %6469 = vst [vmem:[%s6459 + $0x48] sm:$0xff] %v5353
      %6470 = vst [vmem:[%s6459 + $0x50] sm:$0xff] %v5354
      %6471 = vst [vmem:[%s6459 + $0x58] sm:$0xff] %v5355
      %6472 = vst [vmem:[%s6459 + $0x60] sm:$0xff] %v5356
      %6473 = vst.msk [vmem:[%s6459 + $0x68] sm:$0xff] %vm6250, %v5357
      %6474 = vst [vmem:[%s6459 + $0x70] sm:$0xff] %v5358
      %6475 = vst [vmem:[%s6459 + $0x78] sm:$0xff] %v5359
      %6476 = vst [vmem:[%s6459 + $0x80] sm:$0xff] %v5360
      %6477 = vst [vmem:[%s6459 + $0x88] sm:$0xff] %v5361
      %6478 = vst [vmem:[%s6459 + $0x90] sm:$0xff] %v5362
      %6479 = vst [vmem:[%s6459 + $0x98] sm:$0xff] %v5363
      %6480 = vst.msk [vmem:[%s6459 + $0xa0] sm:$0xff] %vm6250, %v5364
      %6481 = vst [vmem:[%s6459 + $0xa8] sm:$0xff] %v5365
      %6482 = vst [vmem:[%s6459 + $0xb0] sm:$0xff] %v5366
      %6483 = vst [vmem:[%s6459 + $0xb8] sm:$0xff] %v5367
      %6484 = vst [vmem:[%s6459 + $0xc0] sm:$0xff] %v5368
      %6485 = vst [vmem:[%s6459 + $0xc8] sm:$0xff] %v5369
      %6486 = vst [vmem:[%s6459 + $0xd0] sm:$0xff] %v5370
      %6487 = vst.msk [vmem:[%s6459 + $0xd8] sm:$0xff] %vm6250, %v5371
      %v6488 = vrot.slane %v6082, 4
      %v6489 = vrot.slane %v6084, 4
      %v6490 = vrot.slane %v6133, 4
      %v6491 = vrot.slane %v6135, 4
      %v6492 = vrot.slane %v6184, 4
      %v6493 = vrot.slane %v6186, 4
      %v6494 = vrot.slane %v6234, 4
      %6502 = vst [vmem:[%s6459 + $0xe0] sm:$0x7] %v6488
      %6503 = vst [vmem:[%s6459 + $0xe8] sm:$0x7] %v6489
      %6504 = vst [vmem:[%s6459 + $0xf0] sm:$0x7] %v6490
      %6505 = vst [vmem:[%s6459 + $0xf8] sm:$0x7] %v6491
      %6506 = vst [vmem:[%s6459 + $0x100] sm:$0x7] %v6492
      %6507 = vst [vmem:[%s6459 + $0x108] sm:$0x7] %v6493
      %6508 = vst.msk [vmem:[%s6459 + $0x110] sm:$0x7] %vm6279, %v6494
      %s6509 = scalar_lea.vmem %s482, 1400
      %6510 = vst [vmem:[%s6509] sm:$0xff] %v5372
      %6511 = vst [vmem:[%s6509 + $0x8] sm:$0xff] %v5373
      %6512 = vst [vmem:[%s6509 + $0x10] sm:$0xff] %v5374
      %6513 = vst [vmem:[%s6509 + $0x18] sm:$0xff] %v5375
      %6514 = vst [vmem:[%s6509 + $0x20] sm:$0xff] %v5376
      %6515 = vst [vmem:[%s6509 + $0x28] sm:$0xff] %v5377
      %6516 = vst.msk [vmem:[%s6509 + $0x30] sm:$0xff] %vm6250, %v5378
      %6517 = vst [vmem:[%s6509 + $0x38] sm:$0xff] %v5379
      %6518 = vst [vmem:[%s6509 + $0x40] sm:$0xff] %v5380
      %6519 = vst [vmem:[%s6509 + $0x48] sm:$0xff] %v5381
      %6520 = vst [vmem:[%s6509 + $0x50] sm:$0xff] %v5382
      %6521 = vst [vmem:[%s6509 + $0x58] sm:$0xff] %v5383
      %6522 = vst [vmem:[%s6509 + $0x60] sm:$0xff] %v5384
      %6523 = vst.msk [vmem:[%s6509 + $0x68] sm:$0xff] %vm6250, %v5385
      %6524 = vst [vmem:[%s6509 + $0x70] sm:$0xff] %v5386
      %6525 = vst [vmem:[%s6509 + $0x78] sm:$0xff] %v5387
      %6526 = vst [vmem:[%s6509 + $0x80] sm:$0xff] %v5388
      %6527 = vst [vmem:[%s6509 + $0x88] sm:$0xff] %v5389
      %6528 = vst [vmem:[%s6509 + $0x90] sm:$0xff] %v5390
      %6529 = vst [vmem:[%s6509 + $0x98] sm:$0xff] %v5391
      %6530 = vst.msk [vmem:[%s6509 + $0xa0] sm:$0xff] %vm6250, %v5392
      %6531 = vst [vmem:[%s6509 + $0xa8] sm:$0xff] %v5393
      %6532 = vst [vmem:[%s6509 + $0xb0] sm:$0xff] %v5394
      %6533 = vst [vmem:[%s6509 + $0xb8] sm:$0xff] %v5395
      %6534 = vst [vmem:[%s6509 + $0xc0] sm:$0xff] %v5396
      %6535 = vst [vmem:[%s6509 + $0xc8] sm:$0xff] %v5397
      %6536 = vst [vmem:[%s6509 + $0xd0] sm:$0xff] %v5398
      %6537 = vst.msk [vmem:[%s6509 + $0xd8] sm:$0xff] %vm6250, %v5399
      %v6545 = vrot.slane %v6082, 7
      %v6546 = vrot.slane %v6088, 7
      %v6547 = vsel %vm551, %v6545, %v6546
      %v6548 = vrot.slane %v6084, 7
      %v6549 = vrot.slane %v6090, 7
      %v6550 = vsel %vm551, %v6548, %v6549
      %v6551 = vrot.slane %v6133, 7
      %v6552 = vrot.slane %v6139, 7
      %v6553 = vsel %vm551, %v6551, %v6552
      %v6554 = vrot.slane %v6135, 7
      %v6555 = vrot.slane %v6141, 7
      %v6556 = vsel %vm551, %v6554, %v6555
      %v6557 = vrot.slane %v6184, 7
      %v6558 = vrot.slane %v6190, 7
      %v6559 = vsel %vm551, %v6557, %v6558
      %v6560 = vrot.slane %v6186, 7
      %v6561 = vrot.slane %v6192, 7
      %v6562 = vsel %vm551, %v6560, %v6561
      %v6563 = vrot.slane %v6234, 7
      %v6564 = vrot.slane %v6239, 7
      %v6565 = vsel %vm551, %v6563, %v6564
      %6573 = vst [vmem:[%s6509 + $0xe0] sm:$0x7] %v6547
      %6574 = vst [vmem:[%s6509 + $0xe8] sm:$0x7] %v6550
      %6575 = vst [vmem:[%s6509 + $0xf0] sm:$0x7] %v6553
      %6576 = vst [vmem:[%s6509 + $0xf8] sm:$0x7] %v6556
      %6577 = vst [vmem:[%s6509 + $0x100] sm:$0x7] %v6559
      %6578 = vst [vmem:[%s6509 + $0x108] sm:$0x7] %v6562
      %6579 = vst.msk [vmem:[%s6509 + $0x110] sm:$0x7] %vm6279, %v6565
      %s6580 = scalar_lea.vmem %s482, 1680
      %6581 = vst [vmem:[%s6580] sm:$0xff] %v5400
      %6582 = vst [vmem:[%s6580 + $0x8] sm:$0xff] %v5401
      %6583 = vst [vmem:[%s6580 + $0x10] sm:$0xff] %v5402
      %6584 = vst [vmem:[%s6580 + $0x18] sm:$0xff] %v5403
      %6585 = vst [vmem:[%s6580 + $0x20] sm:$0xff] %v5404
      %6586 = vst [vmem:[%s6580 + $0x28] sm:$0xff] %v5405
      %6587 = vst.msk [vmem:[%s6580 + $0x30] sm:$0xff] %vm6250, %v5406
      %6588 = vst [vmem:[%s6580 + $0x38] sm:$0xff] %v5407
      %6589 = vst [vmem:[%s6580 + $0x40] sm:$0xff] %v5408
      %6590 = vst [vmem:[%s6580 + $0x48] sm:$0xff] %v5409
      %6591 = vst [vmem:[%s6580 + $0x50] sm:$0xff] %v5410
      %6592 = vst [vmem:[%s6580 + $0x58] sm:$0xff] %v5411
      %6593 = vst [vmem:[%s6580 + $0x60] sm:$0xff] %v5412
      %6594 = vst.msk [vmem:[%s6580 + $0x68] sm:$0xff] %vm6250, %v5413
      %6595 = vst [vmem:[%s6580 + $0x70] sm:$0xff] %v5414
      %6596 = vst [vmem:[%s6580 + $0x78] sm:$0xff] %v5415
      %6597 = vst [vmem:[%s6580 + $0x80] sm:$0xff] %v5416
      %6598 = vst [vmem:[%s6580 + $0x88] sm:$0xff] %v5417
      %6599 = vst [vmem:[%s6580 + $0x90] sm:$0xff] %v5418
      %6600 = vst [vmem:[%s6580 + $0x98] sm:$0xff] %v5419
      %6601 = vst.msk [vmem:[%s6580 + $0xa0] sm:$0xff] %vm6250, %v5420
      %6602 = vst [vmem:[%s6580 + $0xa8] sm:$0xff] %v5421
      %6603 = vst [vmem:[%s6580 + $0xb0] sm:$0xff] %v5422
      %6604 = vst [vmem:[%s6580 + $0xb8] sm:$0xff] %v5423
      %6605 = vst [vmem:[%s6580 + $0xc0] sm:$0xff] %v5424
      %6606 = vst [vmem:[%s6580 + $0xc8] sm:$0xff] %v5425
      %6607 = vst [vmem:[%s6580 + $0xd0] sm:$0xff] %v5426
      %6608 = vst.msk [vmem:[%s6580 + $0xd8] sm:$0xff] %vm6250, %v5427
      %v6609 = vrot.slane %v6088, 2
      %v6610 = vrot.slane %v6090, 2
      %v6611 = vrot.slane %v6139, 2
      %v6612 = vrot.slane %v6141, 2
      %v6613 = vrot.slane %v6190, 2
      %v6614 = vrot.slane %v6192, 2
      %v6615 = vrot.slane %v6239, 2
      %6623 = vst [vmem:[%s6580 + $0xe0] sm:$0x7] %v6609
      %6624 = vst [vmem:[%s6580 + $0xe8] sm:$0x7] %v6610
      %6625 = vst [vmem:[%s6580 + $0xf0] sm:$0x7] %v6611
      %6626 = vst [vmem:[%s6580 + $0xf8] sm:$0x7] %v6612
      %6627 = vst [vmem:[%s6580 + $0x100] sm:$0x7] %v6613
      %6628 = vst [vmem:[%s6580 + $0x108] sm:$0x7] %v6614
      %6629 = vst.msk [vmem:[%s6580 + $0x110] sm:$0x7] %vm6279, %v6615
      %s6630 = scalar_lea.vmem %s482, 1960
      %6631 = vst [vmem:[%s6630] sm:$0xff] %v5428
      %6632 = vst [vmem:[%s6630 + $0x8] sm:$0xff] %v5429
      %6633 = vst [vmem:[%s6630 + $0x10] sm:$0xff] %v5430
      %6634 = vst [vmem:[%s6630 + $0x18] sm:$0xff] %v5431
      %6635 = vst [vmem:[%s6630 + $0x20] sm:$0xff] %v5432
      %6636 = vst [vmem:[%s6630 + $0x28] sm:$0xff] %v5433
      %6637 = vst.msk [vmem:[%s6630 + $0x30] sm:$0xff] %vm6250, %v5434
      %6638 = vst [vmem:[%s6630 + $0x38] sm:$0xff] %v5435
      %6639 = vst [vmem:[%s6630 + $0x40] sm:$0xff] %v5436
      %6640 = vst [vmem:[%s6630 + $0x48] sm:$0xff] %v5437
      %6641 = vst [vmem:[%s6630 + $0x50] sm:$0xff] %v5438
      %6642 = vst [vmem:[%s6630 + $0x58] sm:$0xff] %v5439
      %6643 = vst [vmem:[%s6630 + $0x60] sm:$0xff] %v5440
      %6644 = vst.msk [vmem:[%s6630 + $0x68] sm:$0xff] %vm6250, %v5441
      %6645 = vst [vmem:[%s6630 + $0x70] sm:$0xff] %v5442
      %6646 = vst [vmem:[%s6630 + $0x78] sm:$0xff] %v5443
      %6647 = vst [vmem:[%s6630 + $0x80] sm:$0xff] %v5444
      %6648 = vst [vmem:[%s6630 + $0x88] sm:$0xff] %v5445
      %6649 = vst [vmem:[%s6630 + $0x90] sm:$0xff] %v5446
      %6650 = vst [vmem:[%s6630 + $0x98] sm:$0xff] %v5447
      %6651 = vst.msk [vmem:[%s6630 + $0xa0] sm:$0xff] %vm6250, %v5448
      %6652 = vst [vmem:[%s6630 + $0xa8] sm:$0xff] %v5449
      %6653 = vst [vmem:[%s6630 + $0xb0] sm:$0xff] %v5450
      %6654 = vst [vmem:[%s6630 + $0xb8] sm:$0xff] %v5451
      %6655 = vst [vmem:[%s6630 + $0xc0] sm:$0xff] %v5452
      %6656 = vst [vmem:[%s6630 + $0xc8] sm:$0xff] %v5453
      %6657 = vst [vmem:[%s6630 + $0xd0] sm:$0xff] %v5454
      %6658 = vst.msk [vmem:[%s6630 + $0xd8] sm:$0xff] %vm6250, %v5455
      %v6659 = vrot.slane %v6088, 5
      %v6660 = vrot.slane %v6090, 5
      %v6661 = vrot.slane %v6139, 5
      %v6662 = vrot.slane %v6141, 5
      %v6663 = vrot.slane %v6190, 5
      %v6664 = vrot.slane %v6192, 5
      %v6665 = vrot.slane %v6239, 5
      %6673 = vst [vmem:[%s6630 + $0xe0] sm:$0x7] %v6659
      %6674 = vst [vmem:[%s6630 + $0xe8] sm:$0x7] %v6660
      %6675 = vst [vmem:[%s6630 + $0xf0] sm:$0x7] %v6661
      %6676 = vst [vmem:[%s6630 + $0xf8] sm:$0x7] %v6662
      %6677 = vst [vmem:[%s6630 + $0x100] sm:$0x7] %v6663
      %6678 = vst [vmem:[%s6630 + $0x108] sm:$0x7] %v6664
      %6679 = vst.msk [vmem:[%s6630 + $0x110] sm:$0x7] %vm6279, %v6665
      %s6680 = smul.u32 8, %s22
      %p6681 = scmp.lt.s32.totalorder %s6680, 15
      %s6682 = scalar_select %p6681, %s6680, 15
      %s6683 = smul.addr %s6682, 2
      %s6684 = smul.addr %s6683, 2
      %s6685 = scalar_lea.vmem %s9, %s6684
      %s6686 = smul.u32 8, %s22
      %p6687 = scmp.lt.s32.totalorder %s6686, 15
      %s6688 = scalar_select %p6687, %s6686, 15
      %s6689 = smul.addr %s6688, 35
      %s6690 = smul.addr %s6689, 8
      %s6691 = scalar_lea.vmem %s10, %s6690
      // Predicated region
      $region57: #{_sfm_forward_impl.1} parent=55 // pred_check
        %p6692 = pneg %p254
      $region58: #{_sfm_forward_impl.1} parent=55 // pred_check_branch
        %6694 = sbr.rel (%p6692) target = $region60
      $region59: #{_sfm_forward_impl.1} parent=55 // pred_region
        %s6695 = smul.u32 8, %s22
      $region60: #{_sfm_forward_impl.1} parent=55 // pred_fallthru
        _
      // Predicated region
      $region61: #{_sfm_forward_impl.1} parent=55 // pred_check
        %p6696 = pneg %p280
      $region62: #{_sfm_forward_impl.1} parent=55 // pred_check_branch
        %6698 = sbr.rel (%p6696) target = $region64
      $region63: #{_sfm_forward_impl.1} parent=55 // pred_region
        %s6699 = smul.u32 8, %s22
      $region64: #{_sfm_forward_impl.1} parent=55 // pred_fallthru
        _
    $region56: #{_sfm_forward_impl.1} parent=5 // pred_fallthru
      _
    %p6700 = scmp.le.s32.totalorder 2, %s17
    // Predicated region
    $region65: #{_sfm_forward_impl.1} parent=5 // pred_check
      %p6701 = pneg %p6700
    $region66: #{_sfm_forward_impl.1} parent=5 // pred_check_branch
      %6703 = sbr.rel (%p6701) target = $region68
    $region67: #{_sfm_forward_impl.1} parent=5 // pred_region
      %s6704 = ssub.s32 %s17, 2
      // Predicated region
      $region69: #{_sfm_forward_impl.1} parent=67 // pred_check
        %p6705 = pneg %p260
      $region70: #{_sfm_forward_impl.1} parent=67 // pred_check_branch
        %6707 = sbr.rel (%p6705) target = $region72
      $region71: #{_sfm_forward_impl.1} parent=67 // pred_region
        %s6708 = smul.u32 8, %s23
        %p6709 = scmp.lt.s32.totalorder %s6708, 15
        %s6710 = scalar_select %p6709, %s6708, 15
        %s6711 = smul.addr %s6710, 2
        %s6712 = smul.addr %s6711, 2
        %s6713 = scalar_lea.vmem %s9, %s6712
      $region72: #{_sfm_forward_impl.1} parent=67 // pred_fallthru
        _
      // Predicated region
      $region73: #{_sfm_forward_impl.1} parent=67 // pred_check
        %p6714 = pneg %p286
      $region74: #{_sfm_forward_impl.1} parent=67 // pred_check_branch
        %6716 = sbr.rel (%p6714) target = $region76
      $region75: #{_sfm_forward_impl.1} parent=67 // pred_region
        %s6717 = smul.u32 8, %s23
        %p6718 = scmp.lt.s32.totalorder %s6717, 15
        %s6719 = scalar_select %p6718, %s6717, 15
        %s6720 = smul.addr %s6719, 35
        %s6721 = smul.addr %s6720, 8
        %s6722 = scalar_lea.vmem %s10, %s6721
      $region76: #{_sfm_forward_impl.1} parent=67 // pred_fallthru
        _
    $region68: #{_sfm_forward_impl.1} parent=5 // pred_fallthru
      _
  $region6: #{_sfm_forward_impl.1} parent=0 // loop_footer
    %s21 = sadd.s32 1, %s17
  $region7: #{_sfm_forward_impl.1} parent=0 // loop_footer_branch
    %16 = sbr.rel target = $region3
  $region8: #{_sfm_forward_impl.1} parent=0 // loop_exit
    _

</llo_original>
